<compile_context>
chip_gen: v7x
topology: tpu7x:2x2x1
jax: 0.10.0
libtpu: 0.0.40
codegen_flags: <defaults>
</compile_context>

<pallas_src>
import math
from functools import partial

import jax
import jax.numpy as jnp
from jax.experimental import pallas as pl
from jax.experimental.pallas import tpu as pltpu

_BN_EPS = 1e-5
_LANE = 128


# ----------------------------------------------------------------------------
# small helpers (plain JAX glue, run once per block at trace time)
# ----------------------------------------------------------------------------
def _round_up(x, m):
    return (x + m - 1) // m * m


def _pad_last(a, cp):
    c = a.shape[-1]
    if c == cp:
        return a
    return jnp.pad(a, [(0, 0)] * (a.ndim - 1) + [(0, cp - c)])


def _fold_bn(gamma, beta, mean, var):
    scale = gamma / jnp.sqrt(var + _BN_EPS)
    bias = beta - mean * scale
    return scale, bias


def _conv3_taps(w_oihw, cinp, coutp):
    """(Cout,Cin,3,3) -> (9, Cinp, Coutp); tap index t = dy*3 + dx."""
    cout, cin = w_oihw.shape[0], w_oihw.shape[1]
    w = jnp.transpose(w_oihw, (2, 3, 1, 0)).reshape(9, cin, cout)
    return jnp.pad(w, ((0, 0), (0, cinp - cin), (0, coutp - cout)))


# ----------------------------------------------------------------------------
# Fused BasicBlock kernel (one grid step == one batch image)
# ----------------------------------------------------------------------------
def _basic_block_kernel(*refs, h, w, ho, wo, stride, cinp, coutp, has_sc):
    if has_sc:
        (x_ref, s1_ref, b1_ref, w1_ref, s2_ref, b2_ref, w2_ref, wsc_ref,
         o_ref, hpad_ref, opad_ref) = refs
    else:
        (x_ref, s1_ref, b1_ref, w1_ref, s2_ref, b2_ref, w2_ref,
         o_ref, hpad_ref, opad_ref) = refs

    def win(d, size):
        # `size` output taps starting at padded-offset d with the conv stride.
        return pl.ds(d, size) if stride == 1 else pl.ds(d, size, stride)

    # ---- h = relu(bn1(x)), written into a zero-padded (halo=1) VMEM scratch.
    hpad_ref[...] = jnp.zeros_like(hpad_ref)
    x = x_ref[0]                                              # (h, w, cinp)
    hpad_ref[1:h + 1, 1:w + 1, :] = jnp.maximum(
        x * s1_ref[...] + b1_ref[...], 0.0)

    # ---- conv1: 3x3, stride `stride`, as 9 shifted-window MXU matmuls.
    acc = jnp.zeros((ho * wo, coutp), jnp.float32)
    for t in range(9):
        dy, dx = divmod(t, 3)
        tap = hpad_ref[win(dy, ho), win(dx, wo), :]           # (ho, wo, cinp)
        acc = acc + jnp.dot(tap.reshape(ho * wo, cinp), w1_ref[t],
                            preferred_element_type=jnp.float32)

    # ---- relu(bn2(.)) epilogue, into zero-padded scratch for conv2.
    # TODO(synk): F.dropout in training mode not implemented; dropRate=0.0 -> identity.
    o1 = jnp.maximum(acc * s2_ref[...] + b2_ref[...], 0.0)    # (ho*wo, coutp)
    opad_ref[...] = jnp.zeros_like(opad_ref)
    opad_ref[1:ho + 1, 1:wo + 1, :] = o1.reshape(ho, wo, coutp)

    # ---- shortcut seeds the conv2 accumulator (fused residual add).
    if has_sc:
        # convShortcut is applied to relu(bn1(x)) subsampled by `stride`.
        hsub = hpad_ref[win(1, ho), win(1, wo), :]
        acc2 = jnp.dot(hsub.reshape(ho * wo, cinp), wsc_ref[...],
                       preferred_element_type=jnp.float32)
    else:
        # equal_in_out (stride 1): shortcut is the raw input x.
        acc2 = x_ref[0].reshape(ho * wo, coutp).astype(jnp.float32)

    # ---- conv2: 3x3, stride 1.
    for t in range(9):
        dy, dx = divmod(t, 3)
        tap = opad_ref[dy:dy + ho, dx:dx + wo, :]             # (ho, wo, coutp)
        acc2 = acc2 + jnp.dot(tap.reshape(ho * wo, coutp), w2_ref[t],
                              preferred_element_type=jnp.float32)

    o_ref[0] = acc2.reshape(ho, wo, coutp).astype(o_ref.dtype)


def basic_block_forward(x_nhwc_p, p, stride):
    """x_nhwc_p: (N, H, W, Cinp) with channels already padded to a 128 multiple."""
    n, h, w, cinp = x_nhwc_p.shape
    cout, cin = p["conv1_w"].shape[0], p["conv1_w"].shape[1]
    coutp = _round_up(cout, _LANE)
    ho = (h + 2 - 3) // stride + 1
    wo = (w + 2 - 3) // stride + 1
    equal = (cin == cout)

    s1, b1 = _fold_bn(p["bn1_gamma"], p["bn1_beta"], p["bn1_mean"], p["bn1_var"])
    s2, b2 = _fold_bn(p["bn2_gamma"], p["bn2_beta"], p["bn2_mean"], p["bn2_var"])
    s1 = _pad_last(s1.reshape(1, cin), cinp)
    b1 = _pad_last(b1.reshape(1, cin), cinp)
    s2 = _pad_last(s2.reshape(1, cout), coutp)
    b2 = _pad_last(b2.reshape(1, cout), coutp)
    w1 = _conv3_taps(p["conv1_w"], cinp, coutp)
    w2 = _conv3_taps(p["conv2_w"], coutp, coutp)

    args = [x_nhwc_p, s1, b1, w1, s2, b2, w2]
    in_specs = [
        pl.BlockSpec((1, h, w, cinp), lambda i: (i, 0, 0, 0)),
        pl.BlockSpec((1, cinp), lambda i: (0, 0)),
        pl.BlockSpec((1, cinp), lambda i: (0, 0)),
        pl.BlockSpec((9, cinp, coutp), lambda i: (0, 0, 0)),
        pl.BlockSpec((1, coutp), lambda i: (0, 0)),
        pl.BlockSpec((1, coutp), lambda i: (0, 0)),
        pl.BlockSpec((9, coutp, coutp), lambda i: (0, 0, 0)),
    ]
    if not equal:
        wsc = jnp.pad(p["conv_sc_w"].reshape(cout, cin).T,
                      ((0, cinp - cin), (0, coutp - cout)))
        args.append(wsc)
        in_specs.append(pl.BlockSpec((cinp, coutp), lambda i: (0, 0)))

    kernel = partial(_basic_block_kernel, h=h, w=w, ho=ho, wo=wo,
                     stride=stride, cinp=cinp, coutp=coutp, has_sc=not equal)

    # TODO(synk): for production WRN widths (Cin up to 640) add a channel-chunk
    # grid axis + explicit vmem_limit_bytes so the tiles fit v7x's 64 MiB VMEM.
    return pl.pallas_call(
        kernel,
        out_shape=jax.ShapeDtypeStruct((n, ho, wo, coutp), x_nhwc_p.dtype),
        grid=(n,),
        in_specs=in_specs,
        out_specs=pl.BlockSpec((1, ho, wo, coutp), lambda i: (i, 0, 0, 0)),
        scratch_shapes=[
            pltpu.VMEM((h + 2, w + 2, cinp), jnp.float32),    # padded relu(bn1(x))
            pltpu.VMEM((ho + 2, wo + 2, coutp), jnp.float32),  # padded relu(bn2(conv1))
        ],
        compiler_params=pltpu.CompilerParams(
            dimension_semantics=("parallel",)),
    )(*args)


def network_block_forward(x_nchw, params, stride):
    x = jnp.transpose(x_nchw, (0, 2, 3, 1))                   # NCHW -> NHWC
    x = _pad_last(x, _round_up(x.shape[-1], _LANE))           # pad channels once
    for i, p in enumerate(params):
        x = basic_block_forward(x, p, stride if i == 0 else 1)
    cout = params[-1]["conv2_w"].shape[0]
    x = x[..., :cout]                                         # drop padding once
    return jnp.transpose(x, (0, 3, 1, 2))                     # NHWC -> NCHW


# ----------------------------------------------------------------------------
# Deterministic parameter init (shapes per wrn.BasicBlock)
# ----------------------------------------------------------------------------
def init_basic_block_params(key, in_planes, out_planes):
    ks = jax.random.split(key, 11)

    def conv_init(k, shape):
        fan = shape[1] * shape[2] * shape[3]
        return jax.random.normal(k, shape, jnp.float32) * math.sqrt(2.0 / fan)

    p = {
        "bn1_gamma": 1.0 + 0.1 * jax.random.normal(ks[0], (in_planes,), jnp.float32),
        "bn1_beta": 0.1 * jax.random.normal(ks[1], (in_planes,), jnp.float32),
        "bn1_mean": 0.1 * jax.random.normal(ks[2], (in_planes,), jnp.float32),
        "bn1_var": 1.0 + 0.1 * jnp.abs(jax.random.normal(ks[3], (in_planes,), jnp.float32)),
        "conv1_w": conv_init(ks[4], (out_planes, in_planes, 3, 3)),
        "bn2_gamma": 1.0 + 0.1 * jax.random.normal(ks[5], (out_planes,), jnp.float32),
        "bn2_beta": 0.1 * jax.random.normal(ks[6], (out_planes,), jnp.float32),
        "bn2_mean": 0.1 * jax.random.normal(ks[7], (out_planes,), jnp.float32),
        "bn2_var": 1.0 + 0.1 * jnp.abs(jax.random.normal(ks[8], (out_planes,), jnp.float32)),
        "conv2_w": conv_init(ks[9], (out_planes, out_planes, 3, 3)),
    }
    if in_planes != out_planes:
        p["conv_sc_w"] = conv_init(ks[10], (out_planes, in_planes, 1, 1))
    return p


# ----------------------------------------------------------------------------
# Pure-JAX reference (lax.conv, NCHW) for correctness check
# ----------------------------------------------------------------------------
def reference_forward(x_nchw, params, stride):
    def bn(x, g, b, m, v):
        g, b, m, v = (t[None, :, None, None] for t in (g, b, m, v))
        return (x - m) / jnp.sqrt(v + _BN_EPS) * g + b

    def conv(x, w, s, pad):
        return jax.lax.conv_general_dilated(
            x, w, (s, s), [(pad, pad), (pad, pad)],
            dimension_numbers=("NCHW", "OIHW", "NCHW"))

    out = x_nchw
    for i, p in enumerate(params):
        s = stride if i == 0 else 1
        equal = p["conv1_w"].shape[1] == p["conv1_w"].shape[0]
        x = out
        h = jax.nn.relu(bn(x, p["bn1_gamma"], p["bn1_beta"], p["bn1_mean"], p["bn1_var"]))
        o = conv(h, p["conv1_w"], s, 1)
        o = jax.nn.relu(bn(o, p["bn2_gamma"], p["bn2_beta"], p["bn2_mean"], p["bn2_var"]))
        o = conv(o, p["conv2_w"], 1, 1)
        sc = x if equal else conv(h, p["conv_sc_w"], s, 0)
        out = o + sc
    return out


# ----------------------------------------------------------------------------
if __name__ == "__main__":
    key = jax.random.PRNGKey(0)
    kx, k0, k1 = jax.random.split(key, 3)

    # NetworkBlock(nb_layers=2, in_planes=4, out_planes=8, block=BasicBlock,
    #              stride=2, dropRate=0.0)
    nb_layers, in_planes, out_planes, stride = 2, 4, 8, 2
    params = [
        init_basic_block_params(k0, in_planes, out_planes),
        init_basic_block_params(k1, out_planes, out_planes),
    ]

    x = jax.random.normal(kx, (2, in_planes, 16, 16), jnp.float32)  # NCHW like PyTorch

    fwd = jax.jit(network_block_forward, static_argnums=2)
    out = jax.block_until_ready(fwd(x, params, stride))

    ref = jax.block_until_ready(reference_forward(x, params, stride))
    assert out.shape == ref.shape == (2, out_planes, 8, 8), out.shape
    assert jnp.allclose(out, ref, atol=2e-3, rtol=2e-3), float(jnp.max(jnp.abs(out - ref)))

    print("KERNEL_OK")
</pallas_src>

<mosaic_0001>
module attributes {stable_mosaic.version = 11 : i64} {
  func.func @_basic_block_kernel(%arg0: i32, %arg1: memref<1x16x16x128xf32, #tpu.memory_space<vmem>>, %arg2: memref<1x128xf32, #tpu.memory_space<vmem>>, %arg3: memref<1x128xf32, #tpu.memory_space<vmem>>, %arg4: memref<9x128x128xf32, #tpu.memory_space<vmem>>, %arg5: memref<1x128xf32, #tpu.memory_space<vmem>>, %arg6: memref<1x128xf32, #tpu.memory_space<vmem>>, %arg7: memref<9x128x128xf32, #tpu.memory_space<vmem>>, %arg8: memref<128x128xf32, #tpu.memory_space<vmem>>, %arg9: memref<1x8x8x128xf32, #tpu.memory_space<vmem>>, %arg10: memref<18x18x128xf32, #tpu.memory_space<vmem>>, %arg11: memref<10x10x128xf32, #tpu.memory_space<vmem>>) attributes {dimension_semantics = [#tpu.dimension_semantics<parallel>], iteration_bounds = array<i64: 2>, scalar_prefetch = 0 : i64, scratch_operands = 2 : i64, tpu.core_type = #tpu.core_type<tc>, window_params = [{transform_indices = @transform_0, window_bounds = array<i64: 1, 16, 16, 128>}, {pipeline_mode = #tpu.pipeline_mode<synchronous>, transform_indices = @transform_1, window_bounds = array<i64: 1, 128>}, {pipeline_mode = #tpu.pipeline_mode<synchronous>, transform_indices = @transform_2, window_bounds = array<i64: 1, 128>}, {pipeline_mode = #tpu.pipeline_mode<synchronous>, transform_indices = @transform_3, window_bounds = array<i64: 9, 128, 128>}, {pipeline_mode = #tpu.pipeline_mode<synchronous>, transform_indices = @transform_4, window_bounds = array<i64: 1, 128>}, {pipeline_mode = #tpu.pipeline_mode<synchronous>, transform_indices = @transform_5, window_bounds = array<i64: 1, 128>}, {pipeline_mode = #tpu.pipeline_mode<synchronous>, transform_indices = @transform_6, window_bounds = array<i64: 9, 128, 128>}, {pipeline_mode = #tpu.pipeline_mode<synchronous>, transform_indices = @transform_7, window_bounds = array<i64: 128, 128>}, {transform_indices = @transform_8, window_bounds = array<i64: 1, 8, 8, 128>}]} {
    %cst = arith.constant 0.000000e+00 : f32
    %0 = vector.broadcast %cst : f32 to vector<18x18x128xf32>
    %c0 = arith.constant 0 : index
    %c0_0 = arith.constant 0 : index
    %c0_1 = arith.constant 0 : index
    %1 = vector.load %arg10[%c0, %c0_0, %c0_1] : memref<18x18x128xf32, #tpu.memory_space<vmem>>, vector<18x18x128xf32>
    tpu.vector_store %arg10[%c0, %c0_0, %c0_1], %0 {strides = array<i32>} : memref<18x18x128xf32, #tpu.memory_space<vmem>>, vector<18x18x128xf32>,
    %c0_2 = arith.constant 0 : index
    %c0_3 = arith.constant 0 : index
    %c0_4 = arith.constant 0 : index
    %c0_5 = arith.constant 0 : index
    %2 = vector.load %arg1[%c0_2, %c0_3, %c0_4, %c0_5] : memref<1x16x16x128xf32, #tpu.memory_space<vmem>>, vector<1x16x16x128xf32>
    %3 = vector.shape_cast %2 : vector<1x16x16x128xf32> to vector<16x16x128xf32>
    %c0_6 = arith.constant 0 : index
    %c0_7 = arith.constant 0 : index
    %4 = vector.load %arg2[%c0_6, %c0_7] : memref<1x128xf32, #tpu.memory_space<vmem>>, vector<1x128xf32>
    %5 = vector.shape_cast %4 : vector<1x128xf32> to vector<1x1x128xf32>
    %6 = vector.broadcast %5 : vector<1x1x128xf32> to vector<16x16x128xf32>
    %7 = arith.mulf %3, %6 : vector<16x16x128xf32>
    %c0_8 = arith.constant 0 : index
    %c0_9 = arith.constant 0 : index
    %8 = vector.load %arg3[%c0_8, %c0_9] : memref<1x128xf32, #tpu.memory_space<vmem>>, vector<1x128xf32>
    %9 = vector.shape_cast %8 : vector<1x128xf32> to vector<1x1x128xf32>
    %10 = vector.broadcast %9 : vector<1x1x128xf32> to vector<16x16x128xf32>
    %11 = arith.addf %7, %10 : vector<16x16x128xf32>
    %cst_10 = arith.constant 0.000000e+00 : f32
    %12 = vector.broadcast %cst_10 : f32 to vector<16x16x128xf32>
    %13 = arith.maximumf %11, %12 : vector<16x16x128xf32>
    %c1 = arith.constant 1 : index
    %c1_11 = arith.constant 1 : index
    %c0_12 = arith.constant 0 : index
    %14 = vector.load %arg10[%c1, %c1_11, %c0_12] : memref<18x18x128xf32, #tpu.memory_space<vmem>>, vector<16x16x128xf32>
    tpu.vector_store %arg10[%c1, %c1_11, %c0_12], %13 {strides = array<i32>} : memref<18x18x128xf32, #tpu.memory_space<vmem>>, vector<16x16x128xf32>,
    %cst_13 = arith.constant 0.000000e+00 : f32
    %15 = vector.broadcast %cst_13 : f32 to vector<64x128xf32>
    %c0_14 = arith.constant 0 : index
    %c0_15 = arith.constant 0 : index
    %c0_16 = arith.constant 0 : index
    %16 = tpu.strided_load %arg10[%c0_14, %c0_15, %c0_16] {strides = array<i32: 2, 2, 1>} : memref<18x18x128xf32, #tpu.memory_space<vmem>>, vector<8x8x128xf32>
    %17 = vector.shape_cast %16 : vector<8x8x128xf32> to vector<64x128xf32>
    %c0_17 = arith.constant 0 : index
    %c0_18 = arith.constant 0 : index
    %c0_19 = arith.constant 0 : index
    %18 = vector.load %arg4[%c0_17, %c0_18, %c0_19] : memref<9x128x128xf32, #tpu.memory_space<vmem>>, vector<1x128x128xf32>
    %19 = vector.shape_cast %18 : vector<1x128x128xf32> to vector<128x128xf32>
    %cst_20 = arith.constant dense<0.000000e+00> : vector<64x128xf32>
    %20 = tpu.matmul %17, %19, %cst_20 {dimension_numbers = #tpu.dot_dimension_numbers<[1], [0], [0], [1], [0, 0, 1, 1], [], []>} : vector<64x128xf32>, vector<128x128xf32>, vector<64x128xf32> -> vector<64x128xf32>
    %21 = arith.addf %15, %20 : vector<64x128xf32>
    %c0_21 = arith.constant 0 : index
    %c1_22 = arith.constant 1 : index
    %c0_23 = arith.constant 0 : index
    %22 = tpu.strided_load %arg10[%c0_21, %c1_22, %c0_23] {strides = array<i32: 2, 2, 1>} : memref<18x18x128xf32, #tpu.memory_space<vmem>>, vector<8x8x128xf32>
    %23 = vector.shape_cast %22 : vector<8x8x128xf32> to vector<64x128xf32>
    %c1_24 = arith.constant 1 : index
    %c0_25 = arith.constant 0 : index
    %c0_26 = arith.constant 0 : index
    %24 = vector.load %arg4[%c1_24, %c0_25, %c0_26] : memref<9x128x128xf32, #tpu.memory_space<vmem>>, vector<1x128x128xf32>
    %25 = vector.shape_cast %24 : vector<1x128x128xf32> to vector<128x128xf32>
    %cst_27 = arith.constant dense<0.000000e+00> : vector<64x128xf32>
    %26 = tpu.matmul %23, %25, %cst_27 {dimension_numbers = #tpu.dot_dimension_numbers<[1], [0], [0], [1], [0, 0, 1, 1], [], []>} : vector<64x128xf32>, vector<128x128xf32>, vector<64x128xf32> -> vector<64x128xf32>
    %27 = arith.addf %21, %26 : vector<64x128xf32>
    %c0_28 = arith.constant 0 : index
    %c2 = arith.constant 2 : index
    %c0_29 = arith.constant 0 : index
    %28 = tpu.strided_load %arg10[%c0_28, %c2, %c0_29] {strides = array<i32: 2, 2, 1>} : memref<18x18x128xf32, #tpu.memory_space<vmem>>, vector<8x8x128xf32>
    %29 = vector.shape_cast %28 : vector<8x8x128xf32> to vector<64x128xf32>
    %c2_30 = arith.constant 2 : index
    %c0_31 = arith.constant 0 : index
    %c0_32 = arith.constant 0 : index
    %30 = vector.load %arg4[%c2_30, %c0_31, %c0_32] : memref<9x128x128xf32, #tpu.memory_space<vmem>>, vector<1x128x128xf32>
    %31 = vector.shape_cast %30 : vector<1x128x128xf32> to vector<128x128xf32>
    %cst_33 = arith.constant dense<0.000000e+00> : vector<64x128xf32>
    %32 = tpu.matmul %29, %31, %cst_33 {dimension_numbers = #tpu.dot_dimension_numbers<[1], [0], [0], [1], [0, 0, 1, 1], [], []>} : vector<64x128xf32>, vector<128x128xf32>, vector<64x128xf32> -> vector<64x128xf32>
    %33 = arith.addf %27, %32 : vector<64x128xf32>
    %c1_34 = arith.constant 1 : index
    %c0_35 = arith.constant 0 : index
    %c0_36 = arith.constant 0 : index
    %34 = tpu.strided_load %arg10[%c1_34, %c0_35, %c0_36] {strides = array<i32: 2, 2, 1>} : memref<18x18x128xf32, #tpu.memory_space<vmem>>, vector<8x8x128xf32>
    %35 = vector.shape_cast %34 : vector<8x8x128xf32> to vector<64x128xf32>
    %c3 = arith.constant 3 : index
    %c0_37 = arith.constant 0 : index
    %c0_38 = arith.constant 0 : index
    %36 = vector.load %arg4[%c3, %c0_37, %c0_38] : memref<9x128x128xf32, #tpu.memory_space<vmem>>, vector<1x128x128xf32>
    %37 = vector.shape_cast %36 : vector<1x128x128xf32> to vector<128x128xf32>
    %cst_39 = arith.constant dense<0.000000e+00> : vector<64x128xf32>
    %38 = tpu.matmul %35, %37, %cst_39 {dimension_numbers = #tpu.dot_dimension_numbers<[1], [0], [0], [1], [0, 0, 1, 1], [], []>} : vector<64x128xf32>, vector<128x128xf32>, vector<64x128xf32> -> vector<64x128xf32>
    %39 = arith.addf %33, %38 : vector<64x128xf32>
    %c1_40 = arith.constant 1 : index
    %c1_41 = arith.constant 1 : index
    %c0_42 = arith.constant 0 : index
    %40 = tpu.strided_load %arg10[%c1_40, %c1_41, %c0_42] {strides = array<i32: 2, 2, 1>} : memref<18x18x128xf32, #tpu.memory_space<vmem>>, vector<8x8x128xf32>
    %41 = vector.shape_cast %40 : vector<8x8x128xf32> to vector<64x128xf32>
    %c4 = arith.constant 4 : index
    %c0_43 = arith.constant 0 : index
    %c0_44 = arith.constant 0 : index
    %42 = vector.load %arg4[%c4, %c0_43, %c0_44] : memref<9x128x128xf32, #tpu.memory_space<vmem>>, vector<1x128x128xf32>
    %43 = vector.shape_cast %42 : vector<1x128x128xf32> to vector<128x128xf32>
    %cst_45 = arith.constant dense<0.000000e+00> : vector<64x128xf32>
    %44 = tpu.matmul %41, %43, %cst_45 {dimension_numbers = #tpu.dot_dimension_numbers<[1], [0], [0], [1], [0, 0, 1, 1], [], []>} : vector<64x128xf32>, vector<128x128xf32>, vector<64x128xf32> -> vector<64x128xf32>
    %45 = arith.addf %39, %44 : vector<64x128xf32>
    %c1_46 = arith.constant 1 : index
    %c2_47 = arith.constant 2 : index
    %c0_48 = arith.constant 0 : index
    %46 = tpu.strided_load %arg10[%c1_46, %c2_47, %c0_48] {strides = array<i32: 2, 2, 1>} : memref<18x18x128xf32, #tpu.memory_space<vmem>>, vector<8x8x128xf32>
    %47 = vector.shape_cast %46 : vector<8x8x128xf32> to vector<64x128xf32>
    %c5 = arith.constant 5 : index
    %c0_49 = arith.constant 0 : index
    %c0_50 = arith.constant 0 : index
    %48 = vector.load %arg4[%c5, %c0_49, %c0_50] : memref<9x128x128xf32, #tpu.memory_space<vmem>>, vector<1x128x128xf32>
    %49 = vector.shape_cast %48 : vector<1x128x128xf32> to vector<128x128xf32>
    %cst_51 = arith.constant dense<0.000000e+00> : vector<64x128xf32>
    %50 = tpu.matmul %47, %49, %cst_51 {dimension_numbers = #tpu.dot_dimension_numbers<[1], [0], [0], [1], [0, 0, 1, 1], [], []>} : vector<64x128xf32>, vector<128x128xf32>, vector<64x128xf32> -> vector<64x128xf32>
    %51 = arith.addf %45, %50 : vector<64x128xf32>
    %c2_52 = arith.constant 2 : index
    %c0_53 = arith.constant 0 : index
    %c0_54 = arith.constant 0 : index
    %52 = tpu.strided_load %arg10[%c2_52, %c0_53, %c0_54] {strides = array<i32: 2, 2, 1>} : memref<18x18x128xf32, #tpu.memory_space<vmem>>, vector<8x8x128xf32>
    %53 = vector.shape_cast %52 : vector<8x8x128xf32> to vector<64x128xf32>
    %c6 = arith.constant 6 : index
    %c0_55 = arith.constant 0 : index
    %c0_56 = arith.constant 0 : index
    %54 = vector.load %arg4[%c6, %c0_55, %c0_56] : memref<9x128x128xf32, #tpu.memory_space<vmem>>, vector<1x128x128xf32>
    %55 = vector.shape_cast %54 : vector<1x128x128xf32> to vector<128x128xf32>
    %cst_57 = arith.constant dense<0.000000e+00> : vector<64x128xf32>
    %56 = tpu.matmul %53, %55, %cst_57 {dimension_numbers = #tpu.dot_dimension_numbers<[1], [0], [0], [1], [0, 0, 1, 1], [], []>} : vector<64x128xf32>, vector<128x128xf32>, vector<64x128xf32> -> vector<64x128xf32>
    %57 = arith.addf %51, %56 : vector<64x128xf32>
    %c2_58 = arith.constant 2 : index
    %c1_59 = arith.constant 1 : index
    %c0_60 = arith.constant 0 : index
    %58 = tpu.strided_load %arg10[%c2_58, %c1_59, %c0_60] {strides = array<i32: 2, 2, 1>} : memref<18x18x128xf32, #tpu.memory_space<vmem>>, vector<8x8x128xf32>
    %59 = vector.shape_cast %58 : vector<8x8x128xf32> to vector<64x128xf32>
    %c7 = arith.constant 7 : index
    %c0_61 = arith.constant 0 : index
    %c0_62 = arith.constant 0 : index
    %60 = vector.load %arg4[%c7, %c0_61, %c0_62] : memref<9x128x128xf32, #tpu.memory_space<vmem>>, vector<1x128x128xf32>
    %61 = vector.shape_cast %60 : vector<1x128x128xf32> to vector<128x128xf32>
    %cst_63 = arith.constant dense<0.000000e+00> : vector<64x128xf32>
    %62 = tpu.matmul %59, %61, %cst_63 {dimension_numbers = #tpu.dot_dimension_numbers<[1], [0], [0], [1], [0, 0, 1, 1], [], []>} : vector<64x128xf32>, vector<128x128xf32>, vector<64x128xf32> -> vector<64x128xf32>
    %63 = arith.addf %57, %62 : vector<64x128xf32>
    %c2_64 = arith.constant 2 : index
    %c2_65 = arith.constant 2 : index
    %c0_66 = arith.constant 0 : index
    %64 = tpu.strided_load %arg10[%c2_64, %c2_65, %c0_66] {strides = array<i32: 2, 2, 1>} : memref<18x18x128xf32, #tpu.memory_space<vmem>>, vector<8x8x128xf32>
    %65 = vector.shape_cast %64 : vector<8x8x128xf32> to vector<64x128xf32>
    %c8 = arith.constant 8 : index
    %c0_67 = arith.constant 0 : index
    %c0_68 = arith.constant 0 : index
    %66 = vector.load %arg4[%c8, %c0_67, %c0_68] : memref<9x128x128xf32, #tpu.memory_space<vmem>>, vector<1x128x128xf32>
    %67 = vector.shape_cast %66 : vector<1x128x128xf32> to vector<128x128xf32>
    %cst_69 = arith.constant dense<0.000000e+00> : vector<64x128xf32>
    %68 = tpu.matmul %65, %67, %cst_69 {dimension_numbers = #tpu.dot_dimension_numbers<[1], [0], [0], [1], [0, 0, 1, 1], [], []>} : vector<64x128xf32>, vector<128x128xf32>, vector<64x128xf32> -> vector<64x128xf32>
    %69 = arith.addf %63, %68 : vector<64x128xf32>
    %c0_70 = arith.constant 0 : index
    %c0_71 = arith.constant 0 : index
    %70 = vector.load %arg5[%c0_70, %c0_71] : memref<1x128xf32, #tpu.memory_space<vmem>>, vector<1x128xf32>
    %71 = vector.broadcast %70 : vector<1x128xf32> to vector<64x128xf32>
    %72 = arith.mulf %69, %71 : vector<64x128xf32>
    %c0_72 = arith.constant 0 : index
    %c0_73 = arith.constant 0 : index
    %73 = vector.load %arg6[%c0_72, %c0_73] : memref<1x128xf32, #tpu.memory_space<vmem>>, vector<1x128xf32>
    %74 = vector.broadcast %73 : vector<1x128xf32> to vector<64x128xf32>
    %75 = arith.addf %72, %74 : vector<64x128xf32>
    %cst_74 = arith.constant 0.000000e+00 : f32
    %76 = vector.broadcast %cst_74 : f32 to vector<64x128xf32>
    %77 = arith.maximumf %75, %76 : vector<64x128xf32>
    %cst_75 = arith.constant 0.000000e+00 : f32
    %78 = vector.broadcast %cst_75 : f32 to vector<10x10x128xf32>
    %c0_76 = arith.constant 0 : index
    %c0_77 = arith.constant 0 : index
    %c0_78 = arith.constant 0 : index
    %79 = vector.load %arg11[%c0_76, %c0_77, %c0_78] : memref<10x10x128xf32, #tpu.memory_space<vmem>>, vector<10x10x128xf32>
    tpu.vector_store %arg11[%c0_76, %c0_77, %c0_78], %78 {strides = array<i32>} : memref<10x10x128xf32, #tpu.memory_space<vmem>>, vector<10x10x128xf32>,
    %80 = vector.shape_cast %77 : vector<64x128xf32> to vector<8x8x128xf32>
    %c1_79 = arith.constant 1 : index
    %c1_80 = arith.constant 1 : index
    %c0_81 = arith.constant 0 : index
    %81 = vector.load %arg11[%c1_79, %c1_80, %c0_81] : memref<10x10x128xf32, #tpu.memory_space<vmem>>, vector<8x8x128xf32>
    tpu.vector_store %arg11[%c1_79, %c1_80, %c0_81], %80 {strides = array<i32>} : memref<10x10x128xf32, #tpu.memory_space<vmem>>, vector<8x8x128xf32>,
    %c1_82 = arith.constant 1 : index
    %c1_83 = arith.constant 1 : index
    %c0_84 = arith.constant 0 : index
    %82 = tpu.strided_load %arg10[%c1_82, %c1_83, %c0_84] {strides = array<i32: 2, 2, 1>} : memref<18x18x128xf32, #tpu.memory_space<vmem>>, vector<8x8x128xf32>
    %83 = vector.shape_cast %82 : vector<8x8x128xf32> to vector<64x128xf32>
    %c0_85 = arith.constant 0 : index
    %c0_86 = arith.constant 0 : index
    %84 = vector.load %arg8[%c0_85, %c0_86] : memref<128x128xf32, #tpu.memory_space<vmem>>, vector<128x128xf32>
    %cst_87 = arith.constant dense<0.000000e+00> : vector<64x128xf32>
    %85 = tpu.matmul %83, %84, %cst_87 {dimension_numbers = #tpu.dot_dimension_numbers<[1], [0], [0], [1], [0, 0, 1, 1], [], []>} : vector<64x128xf32>, vector<128x128xf32>, vector<64x128xf32> -> vector<64x128xf32>
    %c0_88 = arith.constant 0 : index
    %c0_89 = arith.constant 0 : index
    %c0_90 = arith.constant 0 : index
    %86 = vector.load %arg11[%c0_88, %c0_89, %c0_90] : memref<10x10x128xf32, #tpu.memory_space<vmem>>, vector<8x8x128xf32>
    %87 = vector.shape_cast %86 : vector<8x8x128xf32> to vector<64x128xf32>
    %c0_91 = arith.constant 0 : index
    %c0_92 = arith.constant 0 : index
    %c0_93 = arith.constant 0 : index
    %88 = vector.load %arg7[%c0_91, %c0_92, %c0_93] : memref<9x128x128xf32, #tpu.memory_space<vmem>>, vector<1x128x128xf32>
    %89 = vector.shape_cast %88 : vector<1x128x128xf32> to vector<128x128xf32>
    %cst_94 = arith.constant dense<0.000000e+00> : vector<64x128xf32>
    %90 = tpu.matmul %87, %89, %cst_94 {dimension_numbers = #tpu.dot_dimension_numbers<[1], [0], [0], [1], [0, 0, 1, 1], [], []>} : vector<64x128xf32>, vector<128x128xf32>, vector<64x128xf32> -> vector<64x128xf32>
    %91 = arith.addf %85, %90 : vector<64x128xf32>
    %c0_95 = arith.constant 0 : index
    %c1_96 = arith.constant 1 : index
    %c0_97 = arith.constant 0 : index
    %92 = vector.load %arg11[%c0_95, %c1_96, %c0_97] : memref<10x10x128xf32, #tpu.memory_space<vmem>>, vector<8x8x128xf32>
    %93 = vector.shape_cast %92 : vector<8x8x128xf32> to vector<64x128xf32>
    %c1_98 = arith.constant 1 : index
    %c0_99 = arith.constant 0 : index
    %c0_100 = arith.constant 0 : index
    %94 = vector.load %arg7[%c1_98, %c0_99, %c0_100] : memref<9x128x128xf32, #tpu.memory_space<vmem>>, vector<1x128x128xf32>
    %95 = vector.shape_cast %94 : vector<1x128x128xf32> to vector<128x128xf32>
    %cst_101 = arith.constant dense<0.000000e+00> : vector<64x128xf32>
    %96 = tpu.matmul %93, %95, %cst_101 {dimension_numbers = #tpu.dot_dimension_numbers<[1], [0], [0], [1], [0, 0, 1, 1], [], []>} : vector<64x128xf32>, vector<128x128xf32>, vector<64x128xf32> -> vector<64x128xf32>
    %97 = arith.addf %91, %96 : vector<64x128xf32>
    %c0_102 = arith.constant 0 : index
    %c2_103 = arith.constant 2 : index
    %c0_104 = arith.constant 0 : index
    %98 = vector.load %arg11[%c0_102, %c2_103, %c0_104] : memref<10x10x128xf32, #tpu.memory_space<vmem>>, vector<8x8x128xf32>
    %99 = vector.shape_cast %98 : vector<8x8x128xf32> to vector<64x128xf32>
    %c2_105 = arith.constant 2 : index
    %c0_106 = arith.constant 0 : index
    %c0_107 = arith.constant 0 : index
    %100 = vector.load %arg7[%c2_105, %c0_106, %c0_107] : memref<9x128x128xf32, #tpu.memory_space<vmem>>, vector<1x128x128xf32>
    %101 = vector.shape_cast %100 : vector<1x128x128xf32> to vector<128x128xf32>
    %cst_108 = arith.constant dense<0.000000e+00> : vector<64x128xf32>
    %102 = tpu.matmul %99, %101, %cst_108 {dimension_numbers = #tpu.dot_dimension_numbers<[1], [0], [0], [1], [0, 0, 1, 1], [], []>} : vector<64x128xf32>, vector<128x128xf32>, vector<64x128xf32> -> vector<64x128xf32>
    %103 = arith.addf %97, %102 : vector<64x128xf32>
    %c1_109 = arith.constant 1 : index
    %c0_110 = arith.constant 0 : index
    %c0_111 = arith.constant 0 : index
    %104 = vector.load %arg11[%c1_109, %c0_110, %c0_111] : memref<10x10x128xf32, #tpu.memory_space<vmem>>, vector<8x8x128xf32>
    %105 = vector.shape_cast %104 : vector<8x8x128xf32> to vector<64x128xf32>
    %c3_112 = arith.constant 3 : index
    %c0_113 = arith.constant 0 : index
    %c0_114 = arith.constant 0 : index
    %106 = vector.load %arg7[%c3_112, %c0_113, %c0_114] : memref<9x128x128xf32, #tpu.memory_space<vmem>>, vector<1x128x128xf32>
    %107 = vector.shape_cast %106 : vector<1x128x128xf32> to vector<128x128xf32>
    %cst_115 = arith.constant dense<0.000000e+00> : vector<64x128xf32>
    %108 = tpu.matmul %105, %107, %cst_115 {dimension_numbers = #tpu.dot_dimension_numbers<[1], [0], [0], [1], [0, 0, 1, 1], [], []>} : vector<64x128xf32>, vector<128x128xf32>, vector<64x128xf32> -> vector<64x128xf32>
    %109 = arith.addf %103, %108 : vector<64x128xf32>
    %c1_116 = arith.constant 1 : index
    %c1_117 = arith.constant 1 : index
    %c0_118 = arith.constant 0 : index
    %110 = vector.load %arg11[%c1_116, %c1_117, %c0_118] : memref<10x10x128xf32, #tpu.memory_space<vmem>>, vector<8x8x128xf32>
    %111 = vector.shape_cast %110 : vector<8x8x128xf32> to vector<64x128xf32>
    %c4_119 = arith.constant 4 : index
    %c0_120 = arith.constant 0 : index
    %c0_121 = arith.constant 0 : index
    %112 = vector.load %arg7[%c4_119, %c0_120, %c0_121] : memref<9x128x128xf32, #tpu.memory_space<vmem>>, vector<1x128x128xf32>
    %113 = vector.shape_cast %112 : vector<1x128x128xf32> to vector<128x128xf32>
    %cst_122 = arith.constant dense<0.000000e+00> : vector<64x128xf32>
    %114 = tpu.matmul %111, %113, %cst_122 {dimension_numbers = #tpu.dot_dimension_numbers<[1], [0], [0], [1], [0, 0, 1, 1], [], []>} : vector<64x128xf32>, vector<128x128xf32>, vector<64x128xf32> -> vector<64x128xf32>
    %115 = arith.addf %109, %114 : vector<64x128xf32>
    %c1_123 = arith.constant 1 : index
    %c2_124 = arith.constant 2 : index
    %c0_125 = arith.constant 0 : index
    %116 = vector.load %arg11[%c1_123, %c2_124, %c0_125] : memref<10x10x128xf32, #tpu.memory_space<vmem>>, vector<8x8x128xf32>
    %117 = vector.shape_cast %116 : vector<8x8x128xf32> to vector<64x128xf32>
    %c5_126 = arith.constant 5 : index
    %c0_127 = arith.constant 0 : index
    %c0_128 = arith.constant 0 : index
    %118 = vector.load %arg7[%c5_126, %c0_127, %c0_128] : memref<9x128x128xf32, #tpu.memory_space<vmem>>, vector<1x128x128xf32>
    %119 = vector.shape_cast %118 : vector<1x128x128xf32> to vector<128x128xf32>
    %cst_129 = arith.constant dense<0.000000e+00> : vector<64x128xf32>
    %120 = tpu.matmul %117, %119, %cst_129 {dimension_numbers = #tpu.dot_dimension_numbers<[1], [0], [0], [1], [0, 0, 1, 1], [], []>} : vector<64x128xf32>, vector<128x128xf32>, vector<64x128xf32> -> vector<64x128xf32>
    %121 = arith.addf %115, %120 : vector<64x128xf32>
    %c2_130 = arith.constant 2 : index
    %c0_131 = arith.constant 0 : index
    %c0_132 = arith.constant 0 : index
    %122 = vector.load %arg11[%c2_130, %c0_131, %c0_132] : memref<10x10x128xf32, #tpu.memory_space<vmem>>, vector<8x8x128xf32>
    %123 = vector.shape_cast %122 : vector<8x8x128xf32> to vector<64x128xf32>
    %c6_133 = arith.constant 6 : index
    %c0_134 = arith.constant 0 : index
    %c0_135 = arith.constant 0 : index
    %124 = vector.load %arg7[%c6_133, %c0_134, %c0_135] : memref<9x128x128xf32, #tpu.memory_space<vmem>>, vector<1x128x128xf32>
    %125 = vector.shape_cast %124 : vector<1x128x128xf32> to vector<128x128xf32>
    %cst_136 = arith.constant dense<0.000000e+00> : vector<64x128xf32>
    %126 = tpu.matmul %123, %125, %cst_136 {dimension_numbers = #tpu.dot_dimension_numbers<[1], [0], [0], [1], [0, 0, 1, 1], [], []>} : vector<64x128xf32>, vector<128x128xf32>, vector<64x128xf32> -> vector<64x128xf32>
    %127 = arith.addf %121, %126 : vector<64x128xf32>
    %c2_137 = arith.constant 2 : index
    %c1_138 = arith.constant 1 : index
    %c0_139 = arith.constant 0 : index
    %128 = vector.load %arg11[%c2_137, %c1_138, %c0_139] : memref<10x10x128xf32, #tpu.memory_space<vmem>>, vector<8x8x128xf32>
    %129 = vector.shape_cast %128 : vector<8x8x128xf32> to vector<64x128xf32>
    %c7_140 = arith.constant 7 : index
    %c0_141 = arith.constant 0 : index
    %c0_142 = arith.constant 0 : index
    %130 = vector.load %arg7[%c7_140, %c0_141, %c0_142] : memref<9x128x128xf32, #tpu.memory_space<vmem>>, vector<1x128x128xf32>
    %131 = vector.shape_cast %130 : vector<1x128x128xf32> to vector<128x128xf32>
    %cst_143 = arith.constant dense<0.000000e+00> : vector<64x128xf32>
    %132 = tpu.matmul %129, %131, %cst_143 {dimension_numbers = #tpu.dot_dimension_numbers<[1], [0], [0], [1], [0, 0, 1, 1], [], []>} : vector<64x128xf32>, vector<128x128xf32>, vector<64x128xf32> -> vector<64x128xf32>
    %133 = arith.addf %127, %132 : vector<64x128xf32>
    %c2_144 = arith.constant 2 : index
    %c2_145 = arith.constant 2 : index
    %c0_146 = arith.constant 0 : index
    %134 = vector.load %arg11[%c2_144, %c2_145, %c0_146] : memref<10x10x128xf32, #tpu.memory_space<vmem>>, vector<8x8x128xf32>
    %135 = vector.shape_cast %134 : vector<8x8x128xf32> to vector<64x128xf32>
    %c8_147 = arith.constant 8 : index
    %c0_148 = arith.constant 0 : index
    %c0_149 = arith.constant 0 : index
    %136 = vector.load %arg7[%c8_147, %c0_148, %c0_149] : memref<9x128x128xf32, #tpu.memory_space<vmem>>, vector<1x128x128xf32>
    %137 = vector.shape_cast %136 : vector<1x128x128xf32> to vector<128x128xf32>
    %cst_150 = arith.constant dense<0.000000e+00> : vector<64x128xf32>
    %138 = tpu.matmul %135, %137, %cst_150 {dimension_numbers = #tpu.dot_dimension_numbers<[1], [0], [0], [1], [0, 0, 1, 1], [], []>} : vector<64x128xf32>, vector<128x128xf32>, vector<64x128xf32> -> vector<64x128xf32>
    %139 = arith.addf %133, %138 : vector<64x128xf32>
    %140 = vector.shape_cast %139 : vector<64x128xf32> to vector<8x8x128xf32>
    %c0_151 = arith.constant 0 : index
    %c0_152 = arith.constant 0 : index
    %c0_153 = arith.constant 0 : index
    %c0_154 = arith.constant 0 : index
    %141 = vector.load %arg9[%c0_151, %c0_152, %c0_153, %c0_154] : memref<1x8x8x128xf32, #tpu.memory_space<vmem>>, vector<1x8x8x128xf32>
    %142 = vector.shape_cast %141 : vector<1x8x8x128xf32> to vector<8x8x128xf32>
    %143 = vector.shape_cast %140 : vector<8x8x128xf32> to vector<1x8x8x128xf32>
    tpu.vector_store %arg9[%c0_151, %c0_152, %c0_153, %c0_154], %143 {strides = array<i32>} : memref<1x8x8x128xf32, #tpu.memory_space<vmem>>, vector<1x8x8x128xf32>,
    return
  }
  func.func @transform_0(%arg0: i32) -> (i32, i32, i32, i32) {
    %c0_i32 = arith.constant 0 : i32
    %c0_i32_0 = arith.constant 0 : i32
    %c0_i32_1 = arith.constant 0 : i32
    %c0_i32_2 = arith.constant 0 : i32
    return %arg0, %c0_i32, %c0_i32_0, %c0_i32_1 : i32, i32, i32, i32
  }
  func.func @transform_1(%arg0: i32) -> (i32, i32) {
    %c0_i32 = arith.constant 0 : i32
    %c0_i32_0 = arith.constant 0 : i32
    %c0_i32_1 = arith.constant 0 : i32
    return %c0_i32, %c0_i32_0 : i32, i32
  }
  func.func @transform_2(%arg0: i32) -> (i32, i32) {
    %c0_i32 = arith.constant 0 : i32
    %c0_i32_0 = arith.constant 0 : i32
    %c0_i32_1 = arith.constant 0 : i32
    return %c0_i32, %c0_i32_0 : i32, i32
  }
  func.func @transform_3(%arg0: i32) -> (i32, i32, i32) {
    %c0_i32 = arith.constant 0 : i32
    %c0_i32_0 = arith.constant 0 : i32
    %c0_i32_1 = arith.constant 0 : i32
    %c0_i32_2 = arith.constant 0 : i32
    return %c0_i32, %c0_i32_0, %c0_i32_1 : i32, i32, i32
  }
  func.func @transform_4(%arg0: i32) -> (i32, i32) {
    %c0_i32 = arith.constant 0 : i32
    %c0_i32_0 = arith.constant 0 : i32
    %c0_i32_1 = arith.constant 0 : i32
    return %c0_i32, %c0_i32_0 : i32, i32
  }
  func.func @transform_5(%arg0: i32) -> (i32, i32) {
    %c0_i32 = arith.constant 0 : i32
    %c0_i32_0 = arith.constant 0 : i32
    %c0_i32_1 = arith.constant 0 : i32
    return %c0_i32, %c0_i32_0 : i32, i32
  }
  func.func @transform_6(%arg0: i32) -> (i32, i32, i32) {
    %c0_i32 = arith.constant 0 : i32
    %c0_i32_0 = arith.constant 0 : i32
    %c0_i32_1 = arith.constant 0 : i32
    %c0_i32_2 = arith.constant 0 : i32
    return %c0_i32, %c0_i32_0, %c0_i32_1 : i32, i32, i32
  }
  func.func @transform_7(%arg0: i32) -> (i32, i32) {
    %c0_i32 = arith.constant 0 : i32
    %c0_i32_0 = arith.constant 0 : i32
    %c0_i32_1 = arith.constant 0 : i32
    return %c0_i32, %c0_i32_0 : i32, i32
  }
  func.func @transform_8(%arg0: i32) -> (i32, i32, i32, i32) {
    %c0_i32 = arith.constant 0 : i32
    %c0_i32_0 = arith.constant 0 : i32
    %c0_i32_1 = arith.constant 0 : i32
    %c0_i32_2 = arith.constant 0 : i32
    return %arg0, %c0_i32, %c0_i32_0, %c0_i32_1 : i32, i32, i32, i32
  }
}

module attributes {stable_mosaic.version = 11 : i64} {
  func.func @_basic_block_kernel(%arg0: i32, %arg1: memref<1x8x8x128xf32, #tpu.memory_space<vmem>>, %arg2: memref<1x128xf32, #tpu.memory_space<vmem>>, %arg3: memref<1x128xf32, #tpu.memory_space<vmem>>, %arg4: memref<9x128x128xf32, #tpu.memory_space<vmem>>, %arg5: memref<1x128xf32, #tpu.memory_space<vmem>>, %arg6: memref<1x128xf32, #tpu.memory_space<vmem>>, %arg7: memref<9x128x128xf32, #tpu.memory_space<vmem>>, %arg8: memref<1x8x8x128xf32, #tpu.memory_space<vmem>>, %arg9: memref<10x10x128xf32, #tpu.memory_space<vmem>>, %arg10: memref<10x10x128xf32, #tpu.memory_space<vmem>>) attributes {dimension_semantics = [#tpu.dimension_semantics<parallel>], iteration_bounds = array<i64: 2>, scalar_prefetch = 0 : i64, scratch_operands = 2 : i64, tpu.core_type = #tpu.core_type<tc>, window_params = [{transform_indices = @transform_0, window_bounds = array<i64: 1, 8, 8, 128>}, {pipeline_mode = #tpu.pipeline_mode<synchronous>, transform_indices = @transform_1, window_bounds = array<i64: 1, 128>}, {pipeline_mode = #tpu.pipeline_mode<synchronous>, transform_indices = @transform_2, window_bounds = array<i64: 1, 128>}, {pipeline_mode = #tpu.pipeline_mode<synchronous>, transform_indices = @transform_3, window_bounds = array<i64: 9, 128, 128>}, {pipeline_mode = #tpu.pipeline_mode<synchronous>, transform_indices = @transform_4, window_bounds = array<i64: 1, 128>}, {pipeline_mode = #tpu.pipeline_mode<synchronous>, transform_indices = @transform_5, window_bounds = array<i64: 1, 128>}, {pipeline_mode = #tpu.pipeline_mode<synchronous>, transform_indices = @transform_6, window_bounds = array<i64: 9, 128, 128>}, {transform_indices = @transform_7, window_bounds = array<i64: 1, 8, 8, 128>}]} {
    %cst = arith.constant 0.000000e+00 : f32
    %0 = vector.broadcast %cst : f32 to vector<10x10x128xf32>
    %c0 = arith.constant 0 : index
    %c0_0 = arith.constant 0 : index
    %c0_1 = arith.constant 0 : index
    %1 = vector.load %arg9[%c0, %c0_0, %c0_1] : memref<10x10x128xf32, #tpu.memory_space<vmem>>, vector<10x10x128xf32>
    tpu.vector_store %arg9[%c0, %c0_0, %c0_1], %0 {strides = array<i32>} : memref<10x10x128xf32, #tpu.memory_space<vmem>>, vector<10x10x128xf32>,
    %c0_2 = arith.constant 0 : index
    %c0_3 = arith.constant 0 : index
    %c0_4 = arith.constant 0 : index
    %c0_5 = arith.constant 0 : index
    %2 = vector.load %arg1[%c0_2, %c0_3, %c0_4, %c0_5] : memref<1x8x8x128xf32, #tpu.memory_space<vmem>>, vector<1x8x8x128xf32>
    %3 = vector.shape_cast %2 : vector<1x8x8x128xf32> to vector<8x8x128xf32>
    %c0_6 = arith.constant 0 : index
    %c0_7 = arith.constant 0 : index
    %4 = vector.load %arg2[%c0_6, %c0_7] : memref<1x128xf32, #tpu.memory_space<vmem>>, vector<1x128xf32>
    %5 = vector.shape_cast %4 : vector<1x128xf32> to vector<1x1x128xf32>
    %6 = vector.broadcast %5 : vector<1x1x128xf32> to vector<8x8x128xf32>
    %7 = arith.mulf %3, %6 : vector<8x8x128xf32>
    %c0_8 = arith.constant 0 : index
    %c0_9 = arith.constant 0 : index
    %8 = vector.load %arg3[%c0_8, %c0_9] : memref<1x128xf32, #tpu.memory_space<vmem>>, vector<1x128xf32>
    %9 = vector.shape_cast %8 : vector<1x128xf32> to vector<1x1x128xf32>
    %10 = vector.broadcast %9 : vector<1x1x128xf32> to vector<8x8x128xf32>
    %11 = arith.addf %7, %10 : vector<8x8x128xf32>
    %cst_10 = arith.constant 0.000000e+00 : f32
    %12 = vector.broadcast %cst_10 : f32 to vector<8x8x128xf32>
    %13 = arith.maximumf %11, %12 : vector<8x8x128xf32>
    %c1 = arith.constant 1 : index
    %c1_11 = arith.constant 1 : index
    %c0_12 = arith.constant 0 : index
    %14 = vector.load %arg9[%c1, %c1_11, %c0_12] : memref<10x10x128xf32, #tpu.memory_space<vmem>>, vector<8x8x128xf32>
    tpu.vector_store %arg9[%c1, %c1_11, %c0_12], %13 {strides = array<i32>} : memref<10x10x128xf32, #tpu.memory_space<vmem>>, vector<8x8x128xf32>,
    %cst_13 = arith.constant 0.000000e+00 : f32
    %15 = vector.broadcast %cst_13 : f32 to vector<64x128xf32>
    %c0_14 = arith.constant 0 : index
    %c0_15 = arith.constant 0 : index
    %c0_16 = arith.constant 0 : index
    %16 = vector.load %arg9[%c0_14, %c0_15, %c0_16] : memref<10x10x128xf32, #tpu.memory_space<vmem>>, vector<8x8x128xf32>
    %17 = vector.shape_cast %16 : vector<8x8x128xf32> to vector<64x128xf32>
    %c0_17 = arith.constant 0 : index
    %c0_18 = arith.constant 0 : index
    %c0_19 = arith.constant 0 : index
    %18 = vector.load %arg4[%c0_17, %c0_18, %c0_19] : memref<9x128x128xf32, #tpu.memory_space<vmem>>, vector<1x128x128xf32>
    %19 = vector.shape_cast %18 : vector<1x128x128xf32> to vector<128x128xf32>
    %cst_20 = arith.constant dense<0.000000e+00> : vector<64x128xf32>
    %20 = tpu.matmul %17, %19, %cst_20 {dimension_numbers = #tpu.dot_dimension_numbers<[1], [0], [0], [1], [0, 0, 1, 1], [], []>} : vector<64x128xf32>, vector<128x128xf32>, vector<64x128xf32> -> vector<64x128xf32>
    %21 = arith.addf %15, %20 : vector<64x128xf32>
    %c0_21 = arith.constant 0 : index
    %c1_22 = arith.constant 1 : index
    %c0_23 = arith.constant 0 : index
    %22 = vector.load %arg9[%c0_21, %c1_22, %c0_23] : memref<10x10x128xf32, #tpu.memory_space<vmem>>, vector<8x8x128xf32>
    %23 = vector.shape_cast %22 : vector<8x8x128xf32> to vector<64x128xf32>
    %c1_24 = arith.constant 1 : index
    %c0_25 = arith.constant 0 : index
    %c0_26 = arith.constant 0 : index
    %24 = vector.load %arg4[%c1_24, %c0_25, %c0_26] : memref<9x128x128xf32, #tpu.memory_space<vmem>>, vector<1x128x128xf32>
    %25 = vector.shape_cast %24 : vector<1x128x128xf32> to vector<128x128xf32>
    %cst_27 = arith.constant dense<0.000000e+00> : vector<64x128xf32>
    %26 = tpu.matmul %23, %25, %cst_27 {dimension_numbers = #tpu.dot_dimension_numbers<[1], [0], [0], [1], [0, 0, 1, 1], [], []>} : vector<64x128xf32>, vector<128x128xf32>, vector<64x128xf32> -> vector<64x128xf32>
    %27 = arith.addf %21, %26 : vector<64x128xf32>
    %c0_28 = arith.constant 0 : index
    %c2 = arith.constant 2 : index
    %c0_29 = arith.constant 0 : index
    %28 = vector.load %arg9[%c0_28, %c2, %c0_29] : memref<10x10x128xf32, #tpu.memory_space<vmem>>, vector<8x8x128xf32>
    %29 = vector.shape_cast %28 : vector<8x8x128xf32> to vector<64x128xf32>
    %c2_30 = arith.constant 2 : index
    %c0_31 = arith.constant 0 : index
    %c0_32 = arith.constant 0 : index
    %30 = vector.load %arg4[%c2_30, %c0_31, %c0_32] : memref<9x128x128xf32, #tpu.memory_space<vmem>>, vector<1x128x128xf32>
    %31 = vector.shape_cast %30 : vector<1x128x128xf32> to vector<128x128xf32>
    %cst_33 = arith.constant dense<0.000000e+00> : vector<64x128xf32>
    %32 = tpu.matmul %29, %31, %cst_33 {dimension_numbers = #tpu.dot_dimension_numbers<[1], [0], [0], [1], [0, 0, 1, 1], [], []>} : vector<64x128xf32>, vector<128x128xf32>, vector<64x128xf32> -> vector<64x128xf32>
    %33 = arith.addf %27, %32 : vector<64x128xf32>
    %c1_34 = arith.constant 1 : index
    %c0_35 = arith.constant 0 : index
    %c0_36 = arith.constant 0 : index
    %34 = vector.load %arg9[%c1_34, %c0_35, %c0_36] : memref<10x10x128xf32, #tpu.memory_space<vmem>>, vector<8x8x128xf32>
    %35 = vector.shape_cast %34 : vector<8x8x128xf32> to vector<64x128xf32>
    %c3 = arith.constant 3 : index
    %c0_37 = arith.constant 0 : index
    %c0_38 = arith.constant 0 : index
    %36 = vector.load %arg4[%c3, %c0_37, %c0_38] : memref<9x128x128xf32, #tpu.memory_space<vmem>>, vector<1x128x128xf32>
    %37 = vector.shape_cast %36 : vector<1x128x128xf32> to vector<128x128xf32>
    %cst_39 = arith.constant dense<0.000000e+00> : vector<64x128xf32>
    %38 = tpu.matmul %35, %37, %cst_39 {dimension_numbers = #tpu.dot_dimension_numbers<[1], [0], [0], [1], [0, 0, 1, 1], [], []>} : vector<64x128xf32>, vector<128x128xf32>, vector<64x128xf32> -> vector<64x128xf32>
    %39 = arith.addf %33, %38 : vector<64x128xf32>
    %c1_40 = arith.constant 1 : index
    %c1_41 = arith.constant 1 : index
    %c0_42 = arith.constant 0 : index
    %40 = vector.load %arg9[%c1_40, %c1_41, %c0_42] : memref<10x10x128xf32, #tpu.memory_space<vmem>>, vector<8x8x128xf32>
    %41 = vector.shape_cast %40 : vector<8x8x128xf32> to vector<64x128xf32>
    %c4 = arith.constant 4 : index
    %c0_43 = arith.constant 0 : index
    %c0_44 = arith.constant 0 : index
    %42 = vector.load %arg4[%c4, %c0_43, %c0_44] : memref<9x128x128xf32, #tpu.memory_space<vmem>>, vector<1x128x128xf32>
    %43 = vector.shape_cast %42 : vector<1x128x128xf32> to vector<128x128xf32>
    %cst_45 = arith.constant dense<0.000000e+00> : vector<64x128xf32>
    %44 = tpu.matmul %41, %43, %cst_45 {dimension_numbers = #tpu.dot_dimension_numbers<[1], [0], [0], [1], [0, 0, 1, 1], [], []>} : vector<64x128xf32>, vector<128x128xf32>, vector<64x128xf32> -> vector<64x128xf32>
    %45 = arith.addf %39, %44 : vector<64x128xf32>
    %c1_46 = arith.constant 1 : index
    %c2_47 = arith.constant 2 : index
    %c0_48 = arith.constant 0 : index
    %46 = vector.load %arg9[%c1_46, %c2_47, %c0_48] : memref<10x10x128xf32, #tpu.memory_space<vmem>>, vector<8x8x128xf32>
    %47 = vector.shape_cast %46 : vector<8x8x128xf32> to vector<64x128xf32>
    %c5 = arith.constant 5 : index
    %c0_49 = arith.constant 0 : index
    %c0_50 = arith.constant 0 : index
    %48 = vector.load %arg4[%c5, %c0_49, %c0_50] : memref<9x128x128xf32, #tpu.memory_space<vmem>>, vector<1x128x128xf32>
    %49 = vector.shape_cast %48 : vector<1x128x128xf32> to vector<128x128xf32>
    %cst_51 = arith.constant dense<0.000000e+00> : vector<64x128xf32>
    %50 = tpu.matmul %47, %49, %cst_51 {dimension_numbers = #tpu.dot_dimension_numbers<[1], [0], [0], [1], [0, 0, 1, 1], [], []>} : vector<64x128xf32>, vector<128x128xf32>, vector<64x128xf32> -> vector<64x128xf32>
    %51 = arith.addf %45, %50 : vector<64x128xf32>
    %c2_52 = arith.constant 2 : index
    %c0_53 = arith.constant 0 : index
    %c0_54 = arith.constant 0 : index
    %52 = vector.load %arg9[%c2_52, %c0_53, %c0_54] : memref<10x10x128xf32, #tpu.memory_space<vmem>>, vector<8x8x128xf32>
    %53 = vector.shape_cast %52 : vector<8x8x128xf32> to vector<64x128xf32>
    %c6 = arith.constant 6 : index
    %c0_55 = arith.constant 0 : index
    %c0_56 = arith.constant 0 : index
    %54 = vector.load %arg4[%c6, %c0_55, %c0_56] : memref<9x128x128xf32, #tpu.memory_space<vmem>>, vector<1x128x128xf32>
    %55 = vector.shape_cast %54 : vector<1x128x128xf32> to vector<128x128xf32>
    %cst_57 = arith.constant dense<0.000000e+00> : vector<64x128xf32>
    %56 = tpu.matmul %53, %55, %cst_57 {dimension_numbers = #tpu.dot_dimension_numbers<[1], [0], [0], [1], [0, 0, 1, 1], [], []>} : vector<64x128xf32>, vector<128x128xf32>, vector<64x128xf32> -> vector<64x128xf32>
    %57 = arith.addf %51, %56 : vector<64x128xf32>
    %c2_58 = arith.constant 2 : index
    %c1_59 = arith.constant 1 : index
    %c0_60 = arith.constant 0 : index
    %58 = vector.load %arg9[%c2_58, %c1_59, %c0_60] : memref<10x10x128xf32, #tpu.memory_space<vmem>>, vector<8x8x128xf32>
    %59 = vector.shape_cast %58 : vector<8x8x128xf32> to vector<64x128xf32>
    %c7 = arith.constant 7 : index
    %c0_61 = arith.constant 0 : index
    %c0_62 = arith.constant 0 : index
    %60 = vector.load %arg4[%c7, %c0_61, %c0_62] : memref<9x128x128xf32, #tpu.memory_space<vmem>>, vector<1x128x128xf32>
    %61 = vector.shape_cast %60 : vector<1x128x128xf32> to vector<128x128xf32>
    %cst_63 = arith.constant dense<0.000000e+00> : vector<64x128xf32>
    %62 = tpu.matmul %59, %61, %cst_63 {dimension_numbers = #tpu.dot_dimension_numbers<[1], [0], [0], [1], [0, 0, 1, 1], [], []>} : vector<64x128xf32>, vector<128x128xf32>, vector<64x128xf32> -> vector<64x128xf32>
    %63 = arith.addf %57, %62 : vector<64x128xf32>
    %c2_64 = arith.constant 2 : index
    %c2_65 = arith.constant 2 : index
    %c0_66 = arith.constant 0 : index
    %64 = vector.load %arg9[%c2_64, %c2_65, %c0_66] : memref<10x10x128xf32, #tpu.memory_space<vmem>>, vector<8x8x128xf32>
    %65 = vector.shape_cast %64 : vector<8x8x128xf32> to vector<64x128xf32>
    %c8 = arith.constant 8 : index
    %c0_67 = arith.constant 0 : index
    %c0_68 = arith.constant 0 : index
    %66 = vector.load %arg4[%c8, %c0_67, %c0_68] : memref<9x128x128xf32, #tpu.memory_space<vmem>>, vector<1x128x128xf32>
    %67 = vector.shape_cast %66 : vector<1x128x128xf32> to vector<128x128xf32>
    %cst_69 = arith.constant dense<0.000000e+00> : vector<64x128xf32>
    %68 = tpu.matmul %65, %67, %cst_69 {dimension_numbers = #tpu.dot_dimension_numbers<[1], [0], [0], [1], [0, 0, 1, 1], [], []>} : vector<64x128xf32>, vector<128x128xf32>, vector<64x128xf32> -> vector<64x128xf32>
    %69 = arith.addf %63, %68 : vector<64x128xf32>
    %c0_70 = arith.constant 0 : index
    %c0_71 = arith.constant 0 : index
    %70 = vector.load %arg5[%c0_70, %c0_71] : memref<1x128xf32, #tpu.memory_space<vmem>>, vector<1x128xf32>
    %71 = vector.broadcast %70 : vector<1x128xf32> to vector<64x128xf32>
    %72 = arith.mulf %69, %71 : vector<64x128xf32>
    %c0_72 = arith.constant 0 : index
    %c0_73 = arith.constant 0 : index
    %73 = vector.load %arg6[%c0_72, %c0_73] : memref<1x128xf32, #tpu.memory_space<vmem>>, vector<1x128xf32>
    %74 = vector.broadcast %73 : vector<1x128xf32> to vector<64x128xf32>
    %75 = arith.addf %72, %74 : vector<64x128xf32>
    %cst_74 = arith.constant 0.000000e+00 : f32
    %76 = vector.broadcast %cst_74 : f32 to vector<64x128xf32>
    %77 = arith.maximumf %75, %76 : vector<64x128xf32>
    %cst_75 = arith.constant 0.000000e+00 : f32
    %78 = vector.broadcast %cst_75 : f32 to vector<10x10x128xf32>
    %c0_76 = arith.constant 0 : index
    %c0_77 = arith.constant 0 : index
    %c0_78 = arith.constant 0 : index
    %79 = vector.load %arg10[%c0_76, %c0_77, %c0_78] : memref<10x10x128xf32, #tpu.memory_space<vmem>>, vector<10x10x128xf32>
    tpu.vector_store %arg10[%c0_76, %c0_77, %c0_78], %78 {strides = array<i32>} : memref<10x10x128xf32, #tpu.memory_space<vmem>>, vector<10x10x128xf32>,
    %80 = vector.shape_cast %77 : vector<64x128xf32> to vector<8x8x128xf32>
    %c1_79 = arith.constant 1 : index
    %c1_80 = arith.constant 1 : index
    %c0_81 = arith.constant 0 : index
    %81 = vector.load %arg10[%c1_79, %c1_80, %c0_81] : memref<10x10x128xf32, #tpu.memory_space<vmem>>, vector<8x8x128xf32>
    tpu.vector_store %arg10[%c1_79, %c1_80, %c0_81], %80 {strides = array<i32>} : memref<10x10x128xf32, #tpu.memory_space<vmem>>, vector<8x8x128xf32>,
    %c0_82 = arith.constant 0 : index
    %c0_83 = arith.constant 0 : index
    %c0_84 = arith.constant 0 : index
    %c0_85 = arith.constant 0 : index
    %82 = vector.load %arg1[%c0_82, %c0_83, %c0_84, %c0_85] : memref<1x8x8x128xf32, #tpu.memory_space<vmem>>, vector<1x8x8x128xf32>
    %83 = vector.shape_cast %82 : vector<1x8x8x128xf32> to vector<8x8x128xf32>
    %84 = vector.shape_cast %83 : vector<8x8x128xf32> to vector<64x128xf32>
    %c0_86 = arith.constant 0 : index
    %c0_87 = arith.constant 0 : index
    %c0_88 = arith.constant 0 : index
    %85 = vector.load %arg10[%c0_86, %c0_87, %c0_88] : memref<10x10x128xf32, #tpu.memory_space<vmem>>, vector<8x8x128xf32>
    %86 = vector.shape_cast %85 : vector<8x8x128xf32> to vector<64x128xf32>
    %c0_89 = arith.constant 0 : index
    %c0_90 = arith.constant 0 : index
    %c0_91 = arith.constant 0 : index
    %87 = vector.load %arg7[%c0_89, %c0_90, %c0_91] : memref<9x128x128xf32, #tpu.memory_space<vmem>>, vector<1x128x128xf32>
    %88 = vector.shape_cast %87 : vector<1x128x128xf32> to vector<128x128xf32>
    %cst_92 = arith.constant dense<0.000000e+00> : vector<64x128xf32>
    %89 = tpu.matmul %86, %88, %cst_92 {dimension_numbers = #tpu.dot_dimension_numbers<[1], [0], [0], [1], [0, 0, 1, 1], [], []>} : vector<64x128xf32>, vector<128x128xf32>, vector<64x128xf32> -> vector<64x128xf32>
    %90 = arith.addf %84, %89 : vector<64x128xf32>
    %c0_93 = arith.constant 0 : index
    %c1_94 = arith.constant 1 : index
    %c0_95 = arith.constant 0 : index
    %91 = vector.load %arg10[%c0_93, %c1_94, %c0_95] : memref<10x10x128xf32, #tpu.memory_space<vmem>>, vector<8x8x128xf32>
    %92 = vector.shape_cast %91 : vector<8x8x128xf32> to vector<64x128xf32>
    %c1_96 = arith.constant 1 : index
    %c0_97 = arith.constant 0 : index
    %c0_98 = arith.constant 0 : index
    %93 = vector.load %arg7[%c1_96, %c0_97, %c0_98] : memref<9x128x128xf32, #tpu.memory_space<vmem>>, vector<1x128x128xf32>
    %94 = vector.shape_cast %93 : vector<1x128x128xf32> to vector<128x128xf32>
    %cst_99 = arith.constant dense<0.000000e+00> : vector<64x128xf32>
    %95 = tpu.matmul %92, %94, %cst_99 {dimension_numbers = #tpu.dot_dimension_numbers<[1], [0], [0], [1], [0, 0, 1, 1], [], []>} : vector<64x128xf32>, vector<128x128xf32>, vector<64x128xf32> -> vector<64x128xf32>
    %96 = arith.addf %90, %95 : vector<64x128xf32>
    %c0_100 = arith.constant 0 : index
    %c2_101 = arith.constant 2 : index
    %c0_102 = arith.constant 0 : index
    %97 = vector.load %arg10[%c0_100, %c2_101, %c0_102] : memref<10x10x128xf32, #tpu.memory_space<vmem>>, vector<8x8x128xf32>
    %98 = vector.shape_cast %97 : vector<8x8x128xf32> to vector<64x128xf32>
    %c2_103 = arith.constant 2 : index
    %c0_104 = arith.constant 0 : index
    %c0_105 = arith.constant 0 : index
    %99 = vector.load %arg7[%c2_103, %c0_104, %c0_105] : memref<9x128x128xf32, #tpu.memory_space<vmem>>, vector<1x128x128xf32>
    %100 = vector.shape_cast %99 : vector<1x128x128xf32> to vector<128x128xf32>
    %cst_106 = arith.constant dense<0.000000e+00> : vector<64x128xf32>
    %101 = tpu.matmul %98, %100, %cst_106 {dimension_numbers = #tpu.dot_dimension_numbers<[1], [0], [0], [1], [0, 0, 1, 1], [], []>} : vector<64x128xf32>, vector<128x128xf32>, vector<64x128xf32> -> vector<64x128xf32>
    %102 = arith.addf %96, %101 : vector<64x128xf32>
    %c1_107 = arith.constant 1 : index
    %c0_108 = arith.constant 0 : index
    %c0_109 = arith.constant 0 : index
    %103 = vector.load %arg10[%c1_107, %c0_108, %c0_109] : memref<10x10x128xf32, #tpu.memory_space<vmem>>, vector<8x8x128xf32>
    %104 = vector.shape_cast %103 : vector<8x8x128xf32> to vector<64x128xf32>
    %c3_110 = arith.constant 3 : index
    %c0_111 = arith.constant 0 : index
    %c0_112 = arith.constant 0 : index
    %105 = vector.load %arg7[%c3_110, %c0_111, %c0_112] : memref<9x128x128xf32, #tpu.memory_space<vmem>>, vector<1x128x128xf32>
    %106 = vector.shape_cast %105 : vector<1x128x128xf32> to vector<128x128xf32>
    %cst_113 = arith.constant dense<0.000000e+00> : vector<64x128xf32>
    %107 = tpu.matmul %104, %106, %cst_113 {dimension_numbers = #tpu.dot_dimension_numbers<[1], [0], [0], [1], [0, 0, 1, 1], [], []>} : vector<64x128xf32>, vector<128x128xf32>, vector<64x128xf32> -> vector<64x128xf32>
    %108 = arith.addf %102, %107 : vector<64x128xf32>
    %c1_114 = arith.constant 1 : index
    %c1_115 = arith.constant 1 : index
    %c0_116 = arith.constant 0 : index
    %109 = vector.load %arg10[%c1_114, %c1_115, %c0_116] : memref<10x10x128xf32, #tpu.memory_space<vmem>>, vector<8x8x128xf32>
    %110 = vector.shape_cast %109 : vector<8x8x128xf32> to vector<64x128xf32>
    %c4_117 = arith.constant 4 : index
    %c0_118 = arith.constant 0 : index
    %c0_119 = arith.constant 0 : index
    %111 = vector.load %arg7[%c4_117, %c0_118, %c0_119] : memref<9x128x128xf32, #tpu.memory_space<vmem>>, vector<1x128x128xf32>
    %112 = vector.shape_cast %111 : vector<1x128x128xf32> to vector<128x128xf32>
    %cst_120 = arith.constant dense<0.000000e+00> : vector<64x128xf32>
    %113 = tpu.matmul %110, %112, %cst_120 {dimension_numbers = #tpu.dot_dimension_numbers<[1], [0], [0], [1], [0, 0, 1, 1], [], []>} : vector<64x128xf32>, vector<128x128xf32>, vector<64x128xf32> -> vector<64x128xf32>
    %114 = arith.addf %108, %113 : vector<64x128xf32>
    %c1_121 = arith.constant 1 : index
    %c2_122 = arith.constant 2 : index
    %c0_123 = arith.constant 0 : index
    %115 = vector.load %arg10[%c1_121, %c2_122, %c0_123] : memref<10x10x128xf32, #tpu.memory_space<vmem>>, vector<8x8x128xf32>
    %116 = vector.shape_cast %115 : vector<8x8x128xf32> to vector<64x128xf32>
    %c5_124 = arith.constant 5 : index
    %c0_125 = arith.constant 0 : index
    %c0_126 = arith.constant 0 : index
    %117 = vector.load %arg7[%c5_124, %c0_125, %c0_126] : memref<9x128x128xf32, #tpu.memory_space<vmem>>, vector<1x128x128xf32>
    %118 = vector.shape_cast %117 : vector<1x128x128xf32> to vector<128x128xf32>
    %cst_127 = arith.constant dense<0.000000e+00> : vector<64x128xf32>
    %119 = tpu.matmul %116, %118, %cst_127 {dimension_numbers = #tpu.dot_dimension_numbers<[1], [0], [0], [1], [0, 0, 1, 1], [], []>} : vector<64x128xf32>, vector<128x128xf32>, vector<64x128xf32> -> vector<64x128xf32>
    %120 = arith.addf %114, %119 : vector<64x128xf32>
    %c2_128 = arith.constant 2 : index
    %c0_129 = arith.constant 0 : index
    %c0_130 = arith.constant 0 : index
    %121 = vector.load %arg10[%c2_128, %c0_129, %c0_130] : memref<10x10x128xf32, #tpu.memory_space<vmem>>, vector<8x8x128xf32>
    %122 = vector.shape_cast %121 : vector<8x8x128xf32> to vector<64x128xf32>
    %c6_131 = arith.constant 6 : index
    %c0_132 = arith.constant 0 : index
    %c0_133 = arith.constant 0 : index
    %123 = vector.load %arg7[%c6_131, %c0_132, %c0_133] : memref<9x128x128xf32, #tpu.memory_space<vmem>>, vector<1x128x128xf32>
    %124 = vector.shape_cast %123 : vector<1x128x128xf32> to vector<128x128xf32>
    %cst_134 = arith.constant dense<0.000000e+00> : vector<64x128xf32>
    %125 = tpu.matmul %122, %124, %cst_134 {dimension_numbers = #tpu.dot_dimension_numbers<[1], [0], [0], [1], [0, 0, 1, 1], [], []>} : vector<64x128xf32>, vector<128x128xf32>, vector<64x128xf32> -> vector<64x128xf32>
    %126 = arith.addf %120, %125 : vector<64x128xf32>
    %c2_135 = arith.constant 2 : index
    %c1_136 = arith.constant 1 : index
    %c0_137 = arith.constant 0 : index
    %127 = vector.load %arg10[%c2_135, %c1_136, %c0_137] : memref<10x10x128xf32, #tpu.memory_space<vmem>>, vector<8x8x128xf32>
    %128 = vector.shape_cast %127 : vector<8x8x128xf32> to vector<64x128xf32>
    %c7_138 = arith.constant 7 : index
    %c0_139 = arith.constant 0 : index
    %c0_140 = arith.constant 0 : index
    %129 = vector.load %arg7[%c7_138, %c0_139, %c0_140] : memref<9x128x128xf32, #tpu.memory_space<vmem>>, vector<1x128x128xf32>
    %130 = vector.shape_cast %129 : vector<1x128x128xf32> to vector<128x128xf32>
    %cst_141 = arith.constant dense<0.000000e+00> : vector<64x128xf32>
    %131 = tpu.matmul %128, %130, %cst_141 {dimension_numbers = #tpu.dot_dimension_numbers<[1], [0], [0], [1], [0, 0, 1, 1], [], []>} : vector<64x128xf32>, vector<128x128xf32>, vector<64x128xf32> -> vector<64x128xf32>
    %132 = arith.addf %126, %131 : vector<64x128xf32>
    %c2_142 = arith.constant 2 : index
    %c2_143 = arith.constant 2 : index
    %c0_144 = arith.constant 0 : index
    %133 = vector.load %arg10[%c2_142, %c2_143, %c0_144] : memref<10x10x128xf32, #tpu.memory_space<vmem>>, vector<8x8x128xf32>
    %134 = vector.shape_cast %133 : vector<8x8x128xf32> to vector<64x128xf32>
    %c8_145 = arith.constant 8 : index
    %c0_146 = arith.constant 0 : index
    %c0_147 = arith.constant 0 : index
    %135 = vector.load %arg7[%c8_145, %c0_146, %c0_147] : memref<9x128x128xf32, #tpu.memory_space<vmem>>, vector<1x128x128xf32>
    %136 = vector.shape_cast %135 : vector<1x128x128xf32> to vector<128x128xf32>
    %cst_148 = arith.constant dense<0.000000e+00> : vector<64x128xf32>
    %137 = tpu.matmul %134, %136, %cst_148 {dimension_numbers = #tpu.dot_dimension_numbers<[1], [0], [0], [1], [0, 0, 1, 1], [], []>} : vector<64x128xf32>, vector<128x128xf32>, vector<64x128xf32> -> vector<64x128xf32>
    %138 = arith.addf %132, %137 : vector<64x128xf32>
    %139 = vector.shape_cast %138 : vector<64x128xf32> to vector<8x8x128xf32>
    %c0_149 = arith.constant 0 : index
    %c0_150 = arith.constant 0 : index
    %c0_151 = arith.constant 0 : index
    %c0_152 = arith.constant 0 : index
    %140 = vector.load %arg8[%c0_149, %c0_150, %c0_151, %c0_152] : memref<1x8x8x128xf32, #tpu.memory_space<vmem>>, vector<1x8x8x128xf32>
    %141 = vector.shape_cast %140 : vector<1x8x8x128xf32> to vector<8x8x128xf32>
    %142 = vector.shape_cast %139 : vector<8x8x128xf32> to vector<1x8x8x128xf32>
    tpu.vector_store %arg8[%c0_149, %c0_150, %c0_151, %c0_152], %142 {strides = array<i32>} : memref<1x8x8x128xf32, #tpu.memory_space<vmem>>, vector<1x8x8x128xf32>,
    return
  }
  func.func @transform_0(%arg0: i32) -> (i32, i32, i32, i32) {
    %c0_i32 = arith.constant 0 : i32
    %c0_i32_0 = arith.constant 0 : i32
    %c0_i32_1 = arith.constant 0 : i32
    %c0_i32_2 = arith.constant 0 : i32
    return %arg0, %c0_i32, %c0_i32_0, %c0_i32_1 : i32, i32, i32, i32
  }
  func.func @transform_1(%arg0: i32) -> (i32, i32) {
    %c0_i32 = arith.constant 0 : i32
    %c0_i32_0 = arith.constant 0 : i32
    %c0_i32_1 = arith.constant 0 : i32
    return %c0_i32, %c0_i32_0 : i32, i32
  }
  func.func @transform_2(%arg0: i32) -> (i32, i32) {
    %c0_i32 = arith.constant 0 : i32
    %c0_i32_0 = arith.constant 0 : i32
    %c0_i32_1 = arith.constant 0 : i32
    return %c0_i32, %c0_i32_0 : i32, i32
  }
  func.func @transform_3(%arg0: i32) -> (i32, i32, i32) {
    %c0_i32 = arith.constant 0 : i32
    %c0_i32_0 = arith.constant 0 : i32
    %c0_i32_1 = arith.constant 0 : i32
    %c0_i32_2 = arith.constant 0 : i32
    return %c0_i32, %c0_i32_0, %c0_i32_1 : i32, i32, i32
  }
  func.func @transform_4(%arg0: i32) -> (i32, i32) {
    %c0_i32 = arith.constant 0 : i32
    %c0_i32_0 = arith.constant 0 : i32
    %c0_i32_1 = arith.constant 0 : i32
    return %c0_i32, %c0_i32_0 : i32, i32
  }
  func.func @transform_5(%arg0: i32) -> (i32, i32) {
    %c0_i32 = arith.constant 0 : i32
    %c0_i32_0 = arith.constant 0 : i32
    %c0_i32_1 = arith.constant 0 : i32
    return %c0_i32, %c0_i32_0 : i32, i32
  }
  func.func @transform_6(%arg0: i32) -> (i32, i32, i32) {
    %c0_i32 = arith.constant 0 : i32
    %c0_i32_0 = arith.constant 0 : i32
    %c0_i32_1 = arith.constant 0 : i32
    %c0_i32_2 = arith.constant 0 : i32
    return %c0_i32, %c0_i32_0, %c0_i32_1 : i32, i32, i32
  }
  func.func @transform_7(%arg0: i32) -> (i32, i32, i32, i32) {
    %c0_i32 = arith.constant 0 : i32
    %c0_i32_0 = arith.constant 0 : i32
    %c0_i32_1 = arith.constant 0 : i32
    %c0_i32_2 = arith.constant 0 : i32
    return %arg0, %c0_i32, %c0_i32_0, %c0_i32_1 : i32, i32, i32, i32
  }
}

</mosaic_0001>

<llo_original>
// kernel: network_block_forward.3
$region0: #{network_block_forward.3}
  #allocation0 [shape = 'u32[]', space=smem, size = 0x4, offset = 0x4, fixed_abs, tag = 'smem constant byte address 0x4 - core index']
  #allocation1 [shape = 'u32[144,128]{1,0:T(1,128)}', space=vmem, size = 0x12000, scoped, tag = 'internal scratch']
  #allocation2 [shape = 'f32[10,10,128]{2,1,0:T(8,128)}', space=vmem, size = 0x14000, scoped, tag = 'scratch operand']
  #allocation3 [shape = 'f32[10,10,128]{2,1,0:T(8,128)}', space=vmem, size = 0x14000, scoped, tag = 'scratch operand']
  %s0 = inlined_call_operand.vmem [shape: f32[2,8,8,128], index: 0, kind: input, shape index: {}]
  %s1 = inlined_call_operand.vmem [shape: f32[1,128], index: 1, kind: input, shape index: {}]
  %s2 = inlined_call_operand.vmem [shape: f32[1,128], index: 2, kind: input, shape index: {}]
  %s3 = inlined_call_operand.vmem [shape: f32[9,128,128], index: 3, kind: input, shape index: {}]
  %s4 = inlined_call_operand.vmem [shape: f32[1,128], index: 4, kind: input, shape index: {}]
  %s5 = inlined_call_operand.vmem [shape: f32[1,128], index: 5, kind: input, shape index: {}]
  %s6 = inlined_call_operand.vmem [shape: f32[9,128,128], index: 6, kind: input, shape index: {}]
  %s7 = inlined_call_operand.vmem [shape: f32[2,8,8,128], index: 7, kind: output, shape index: {}]
  %s8 = sld [smem:[#allocation0]]
  $region61: #{network_block_forward.3} parent=0
    _
  %s10 = ssub.s32 1, %s8
  %s11 = scalar_select 0, %s10, %s8
  loop: start=0, step=1, limit=4
  $region2: #{network_block_forward.3} parent=0 // loop_pre_header
    _
  $region3: #{network_block_forward.3} parent=0 // loop_header
    %s13 = sphi 0, %s17
    %p14 = scmp.ge.s32.totalorder %s13, 4
    %s23 = sphi 0, %s25
    %s26 = sphi 0, %s23
    %s27 = sphi 0, %s26
    %s43 = sphi 0, %s27
    %s47 = sphi 0, %s47
    %s49 = sphi 0, %s47
    %s50 = sphi 0, %s49
    %s64 = sphi 0, %s50
    %s68 = sphi 0, %s68
    %s70 = sphi 0, %s68
    %s71 = sphi 0, %s70
    %s85 = sphi 0, %s71
    %s89 = sphi 0, %s89
    %s91 = sphi 0, %s89
    %s92 = sphi 0, %s91
    %s106 = sphi 0, %s92
    %s110 = sphi 0, %s110
    %s112 = sphi 0, %s110
    %s113 = sphi 0, %s112
    %s127 = sphi 0, %s113
    %s131 = sphi 0, %s131
    %s133 = sphi 0, %s131
    %s134 = sphi 0, %s133
    %s148 = sphi 0, %s134
    %s152 = sphi 0, %s152
    %s154 = sphi 0, %s152
    %s155 = sphi 0, %s154
    %s169 = sphi 0, %s155
    %s175 = sphi 0, %s177
    %s178 = sphi 0, %s175
    %s179 = sphi 0, %s178
    %s195 = sphi 0, %s179
  $region4: #{network_block_forward.3} parent=0 // loop_header_branch
    %16 = sbr.rel (%p14) target = $region8
  $region5: #{network_block_forward.3} parent=0 // loop_body
    %s18 = ssub.s32 %s13, 1
    %s19 = ssub.s32 %s13, 2
    %s20 = sadd.s32 %s13, 1
    %s21 = ssub.s32 %s13, %s20
    %p22 = scmp.eq.s32.totalorder %s21, 0
    %s24 = sadd.s32 %s23, 1
    %s25 = scalar_select %p22, %s23, %s24
    %p28 = pneg %p22
    %p29 = scmp.eq.s32.totalorder %s13, 1
    %p30 = por %p28, %p29
    %p31 = scmp.ne.s32.totalorder %s23, %s26
    %p32 = scmp.eq.s32.totalorder %s13, 0
    %p33 = por %p31, %p32
    %p34 = scmp.ne.s32.totalorder %s23, %s26
    %p35 = scmp.eq.s32.totalorder %s18, 1
    %p36 = por %p34, %p35
    %p37 = scmp.ne.s32.totalorder %s26, %s27
    %p38 = scmp.eq.s32.totalorder %s18, 0
    %p39 = por %p37, %p38
    %p40 = scmp.ne.s32.totalorder %s26, %s27
    %p41 = scmp.eq.s32.totalorder %s19, 1
    %p42 = por %p40, %p41
    %p44 = scmp.ne.s32.totalorder %s27, %s43
    %p45 = scmp.eq.s32.totalorder %s19, 0
    %p46 = por %p44, %p45
    %s48 = sadd.s32 %s47, 1
    %p51 = scmp.eq.s32.totalorder %s13, 1
    %p52 = scmp.ne.s32.totalorder %s47, %s49
    %p53 = scmp.eq.s32.totalorder %s13, 0
    %p54 = por %p52, %p53
    %p55 = scmp.ne.s32.totalorder %s47, %s49
    %p56 = scmp.eq.s32.totalorder %s18, 1
    %p57 = por %p55, %p56
    %p58 = scmp.ne.s32.totalorder %s49, %s50
    %p59 = scmp.eq.s32.totalorder %s18, 0
    %p60 = por %p58, %p59
    %p61 = scmp.ne.s32.totalorder %s49, %s50
    %p62 = scmp.eq.s32.totalorder %s19, 1
    %p63 = por %p61, %p62
    %p65 = scmp.ne.s32.totalorder %s50, %s64
    %p66 = scmp.eq.s32.totalorder %s19, 0
    %p67 = por %p65, %p66
    %s69 = sadd.s32 %s68, 1
    %p72 = scmp.eq.s32.totalorder %s13, 1
    %p73 = scmp.ne.s32.totalorder %s68, %s70
    %p74 = scmp.eq.s32.totalorder %s13, 0
    %p75 = por %p73, %p74
    %p76 = scmp.ne.s32.totalorder %s68, %s70
    %p77 = scmp.eq.s32.totalorder %s18, 1
    %p78 = por %p76, %p77
    %p79 = scmp.ne.s32.totalorder %s70, %s71
    %p80 = scmp.eq.s32.totalorder %s18, 0
    %p81 = por %p79, %p80
    %p82 = scmp.ne.s32.totalorder %s70, %s71
    %p83 = scmp.eq.s32.totalorder %s19, 1
    %p84 = por %p82, %p83
    %p86 = scmp.ne.s32.totalorder %s71, %s85
    %p87 = scmp.eq.s32.totalorder %s19, 0
    %p88 = por %p86, %p87
    %s90 = sadd.s32 %s89, 1
    %p93 = scmp.eq.s32.totalorder %s13, 1
    %p94 = scmp.ne.s32.totalorder %s89, %s91
    %p95 = scmp.eq.s32.totalorder %s13, 0
    %p96 = por %p94, %p95
    %p97 = scmp.ne.s32.totalorder %s89, %s91
    %p98 = scmp.eq.s32.totalorder %s18, 1
    %p99 = por %p97, %p98
    %p100 = scmp.ne.s32.totalorder %s91, %s92
    %p101 = scmp.eq.s32.totalorder %s18, 0
    %p102 = por %p100, %p101
    %p103 = scmp.ne.s32.totalorder %s91, %s92
    %p104 = scmp.eq.s32.totalorder %s19, 1
    %p105 = por %p103, %p104
    %p107 = scmp.ne.s32.totalorder %s92, %s106
    %p108 = scmp.eq.s32.totalorder %s19, 0
    %p109 = por %p107, %p108
    %s111 = sadd.s32 %s110, 1
    %p114 = scmp.eq.s32.totalorder %s13, 1
    %p115 = scmp.ne.s32.totalorder %s110, %s112
    %p116 = scmp.eq.s32.totalorder %s13, 0
    %p117 = por %p115, %p116
    %p118 = scmp.ne.s32.totalorder %s110, %s112
    %p119 = scmp.eq.s32.totalorder %s18, 1
    %p120 = por %p118, %p119
    %p121 = scmp.ne.s32.totalorder %s112, %s113
    %p122 = scmp.eq.s32.totalorder %s18, 0
    %p123 = por %p121, %p122
    %p124 = scmp.ne.s32.totalorder %s112, %s113
    %p125 = scmp.eq.s32.totalorder %s19, 1
    %p126 = por %p124, %p125
    %p128 = scmp.ne.s32.totalorder %s113, %s127
    %p129 = scmp.eq.s32.totalorder %s19, 0
    %p130 = por %p128, %p129
    %s132 = sadd.s32 %s131, 1
    %p135 = scmp.eq.s32.totalorder %s13, 1
    %p136 = scmp.ne.s32.totalorder %s131, %s133
    %p137 = scmp.eq.s32.totalorder %s13, 0
    %p138 = por %p136, %p137
    %p139 = scmp.ne.s32.totalorder %s131, %s133
    %p140 = scmp.eq.s32.totalorder %s18, 1
    %p141 = por %p139, %p140
    %p142 = scmp.ne.s32.totalorder %s133, %s134
    %p143 = scmp.eq.s32.totalorder %s18, 0
    %p144 = por %p142, %p143
    %p145 = scmp.ne.s32.totalorder %s133, %s134
    %p146 = scmp.eq.s32.totalorder %s19, 1
    %p147 = por %p145, %p146
    %p149 = scmp.ne.s32.totalorder %s134, %s148
    %p150 = scmp.eq.s32.totalorder %s19, 0
    %p151 = por %p149, %p150
    %s153 = sadd.s32 %s152, 1
    %p156 = scmp.eq.s32.totalorder %s13, 1
    %p157 = scmp.ne.s32.totalorder %s152, %s154
    %p158 = scmp.eq.s32.totalorder %s13, 0
    %p159 = por %p157, %p158
    %p160 = scmp.ne.s32.totalorder %s152, %s154
    %p161 = scmp.eq.s32.totalorder %s18, 1
    %p162 = por %p160, %p161
    %p163 = scmp.ne.s32.totalorder %s154, %s155
    %p164 = scmp.eq.s32.totalorder %s18, 0
    %p165 = por %p163, %p164
    %p166 = scmp.ne.s32.totalorder %s154, %s155
    %p167 = scmp.eq.s32.totalorder %s19, 1
    %p168 = por %p166, %p167
    %p170 = scmp.ne.s32.totalorder %s155, %s169
    %p171 = scmp.eq.s32.totalorder %s19, 0
    %p172 = por %p170, %p171
    %s173 = ssub.s32 %s13, %s20
    %p174 = scmp.eq.s32.totalorder %s173, 0
    %s176 = sadd.s32 %s175, 1
    %s177 = scalar_select %p174, %s175, %s176
    %p180 = pneg %p174
    %p181 = scmp.eq.s32.totalorder %s13, 1
    %p182 = por %p180, %p181
    %p183 = scmp.ne.s32.totalorder %s175, %s178
    %p184 = scmp.eq.s32.totalorder %s13, 0
    %p185 = por %p183, %p184
    %p186 = scmp.ne.s32.totalorder %s175, %s178
    %p187 = scmp.eq.s32.totalorder %s18, 1
    %p188 = por %p186, %p187
    %p189 = scmp.ne.s32.totalorder %s178, %s179
    %p190 = scmp.eq.s32.totalorder %s18, 0
    %p191 = por %p189, %p190
    %p192 = scmp.ne.s32.totalorder %s178, %s179
    %p193 = scmp.eq.s32.totalorder %s19, 1
    %p194 = por %p192, %p193
    %p196 = scmp.ne.s32.totalorder %s179, %s195
    %p197 = scmp.eq.s32.totalorder %s19, 0
    %p198 = por %p196, %p197
    %p199 = scmp.le.s32.totalorder 1, %s13
    %p200 = scmp.lt.s32.totalorder %s13, 3
    %p201 = pnand %p199, %p200
    %p202 = pneg %p201
    // Predicated region
    $region9: #{network_block_forward.3} parent=5 // pred_check
      _
    $region10: #{network_block_forward.3} parent=5 // pred_check_branch
      %204 = sbr.rel (%p201) target = $region12
    $region11: #{network_block_forward.3} parent=5 // pred_region
      %s205 = ssub.s32 %s13, 1
      // Predicated region
      $region13: #{network_block_forward.3} parent=11 // pred_check
        %p206 = pneg %p60
      $region14: #{network_block_forward.3} parent=11 // pred_check_branch
        %208 = sbr.rel (%p206) target = $region16
      $region15: #{network_block_forward.3} parent=11 // pred_region
        _
      $region16: #{network_block_forward.3} parent=11 // pred_fallthru
        _
      // Predicated region
      $region17: #{network_block_forward.3} parent=11 // pred_check
        %p209 = pneg %p81
      $region18: #{network_block_forward.3} parent=11 // pred_check_branch
        %211 = sbr.rel (%p209) target = $region20
      $region19: #{network_block_forward.3} parent=11 // pred_region
        _
      $region20: #{network_block_forward.3} parent=11 // pred_fallthru
        _
      // Predicated region
      $region21: #{network_block_forward.3} parent=11 // pred_check
        %p212 = pneg %p102
      $region22: #{network_block_forward.3} parent=11 // pred_check_branch
        %214 = sbr.rel (%p212) target = $region24
      $region23: #{network_block_forward.3} parent=11 // pred_region
        _
      $region24: #{network_block_forward.3} parent=11 // pred_fallthru
        _
      // Predicated region
      $region25: #{network_block_forward.3} parent=11 // pred_check
        %p215 = pneg %p123
      $region26: #{network_block_forward.3} parent=11 // pred_check_branch
        %217 = sbr.rel (%p215) target = $region28
      $region27: #{network_block_forward.3} parent=11 // pred_region
        _
      $region28: #{network_block_forward.3} parent=11 // pred_fallthru
        _
      // Predicated region
      $region29: #{network_block_forward.3} parent=11 // pred_check
        %p218 = pneg %p144
      $region30: #{network_block_forward.3} parent=11 // pred_check_branch
        %220 = sbr.rel (%p218) target = $region32
      $region31: #{network_block_forward.3} parent=11 // pred_region
        _
      $region32: #{network_block_forward.3} parent=11 // pred_fallthru
        _
      // Predicated region
      $region33: #{network_block_forward.3} parent=11 // pred_check
        %p221 = pneg %p165
      $region34: #{network_block_forward.3} parent=11 // pred_check_branch
        %223 = sbr.rel (%p221) target = $region36
      $region35: #{network_block_forward.3} parent=11 // pred_region
        _
      $region36: #{network_block_forward.3} parent=11 // pred_fallthru
        _
    $region12: #{network_block_forward.3} parent=5 // pred_fallthru
      _
    %p224 = scmp.lt.s32.totalorder %s13, 2
    // Predicated region
    $region37: #{network_block_forward.3} parent=5 // pred_check
      %p225 = pneg %p224
    $region38: #{network_block_forward.3} parent=5 // pred_check_branch
      %227 = sbr.rel (%p225) target = $region40
    $region39: #{network_block_forward.3} parent=5 // pred_region
      // Predicated region
      $region41: #{network_block_forward.3} parent=39 // pred_check
        %p228 = pneg %p33
      $region42: #{network_block_forward.3} parent=39 // pred_check_branch
        %230 = sbr.rel (%p228) target = $region44
      $region43: #{network_block_forward.3} parent=39 // pred_region
        %p231 = scmp.lt.s32.totalorder %s13, 1
        %s232 = scalar_select %p231, %s13, 1
        %s233 = smul.addr %s232, 8
        %s234 = smul.addr %s233, 8
        %s235 = scalar_lea.vmem %s0, %s234
      $region44: #{network_block_forward.3} parent=39 // pred_fallthru
        _
    $region40: #{network_block_forward.3} parent=5 // pred_fallthru
      _
    %p236 = scmp.le.s32.totalorder 1, %s13
    %p237 = scmp.lt.s32.totalorder %s13, 3
    %p238 = pnand %p236, %p237
    %p239 = pneg %p238
    // Predicated region
    $region45: #{network_block_forward.3} parent=5 // pred_check
      _
    $region46: #{network_block_forward.3} parent=5 // pred_check_branch
      %241 = sbr.rel (%p238) target = $region48
    $region47: #{network_block_forward.3} parent=5 // pred_region
      %s242 = ssub.s32 %s13, 1
      %p243 = scmp.lt.s32.totalorder %s18, 1
      %s244 = scalar_select %p243, %s18, 1
      %s245 = smul.addr %s244, 8
      %s246 = smul.addr %s245, 8
      %s247 = scalar_lea.vmem %s0, %s246
      %p248 = pneg %p39
      %p249 = pneg %p36
      %p250 = pneg %p60
      %p251 = pneg %p57
      %p252 = pneg %p81
      %p253 = pneg %p78
      %p254 = pneg %p102
      %p255 = pneg %p99
      %p256 = pneg %p123
      %p257 = pneg %p120
      %p258 = pneg %p144
      %p259 = pneg %p141
      %p260 = pneg %p165
      %p261 = pneg %p162
      %p262 = pneg %p191
      %p263 = pneg %p188
      %p264 = scmp.lt.s32.totalorder %s18, 1
      %s265 = scalar_select %p264, %s18, 1
      %s266 = smul.addr %s265, 8
      %s267 = smul.addr %s266, 8
      %s268 = scalar_lea.vmem %s7, %s267
      %p269 = scmp.lt.s32.totalorder %s18, 1
      %s270 = scalar_select %p269, %s18, 1
      %s271 = smul.addr %s270, 8
      %s272 = smul.addr %s271, 8
      %s273 = scalar_lea.vmem %s0, %s272
      %p274 = scmp.lt.s32.totalorder %s18, 1
      %s275 = scalar_select %p274, %s18, 1
      %s276 = smul.addr %s275, 8
      %s277 = smul.addr %s276, 8
      %s278 = scalar_lea.vmem %s7, %s277
      %279 = vst [vmem:[#allocation2] sm:$0xff] 0.0
      %280 = vst [vmem:[#allocation2 + $0x8] sm:$0x3] 0.0
      %281 = vst [vmem:[#allocation2 + $0x10] sm:$0xff] 0.0
      %282 = vst [vmem:[#allocation2 + $0x18] sm:$0x3] 0.0
      %283 = vst [vmem:[#allocation2 + $0x20] sm:$0xff] 0.0
      %284 = vst [vmem:[#allocation2 + $0x28] sm:$0x3] 0.0
      %285 = vst [vmem:[#allocation2 + $0x30] sm:$0xff] 0.0
      %286 = vst [vmem:[#allocation2 + $0x38] sm:$0x3] 0.0
      %287 = vst [vmem:[#allocation2 + $0x40] sm:$0xff] 0.0
      %288 = vst [vmem:[#allocation2 + $0x48] sm:$0x3] 0.0
      %289 = vst [vmem:[#allocation2 + $0x50] sm:$0xff] 0.0
      %290 = vst [vmem:[#allocation2 + $0x58] sm:$0x3] 0.0
      %291 = vst [vmem:[#allocation2 + $0x60] sm:$0xff] 0.0
      %292 = vst [vmem:[#allocation2 + $0x68] sm:$0x3] 0.0
      %293 = vst [vmem:[#allocation2 + $0x70] sm:$0xff] 0.0
      %294 = vst [vmem:[#allocation2 + $0x78] sm:$0x3] 0.0
      %295 = vst [vmem:[#allocation2 + $0x80] sm:$0xff] 0.0
      %296 = vst [vmem:[#allocation2 + $0x88] sm:$0x3] 0.0
      %297 = vst [vmem:[#allocation2 + $0x90] sm:$0xff] 0.0
      %298 = vst [vmem:[#allocation2 + $0x98] sm:$0x3] 0.0
      %v299 = vld [vmem:[%s273] sm:$0xff]
      %v300 = vld [vmem:[%s273 + $0x8] sm:$0xff]
      %v301 = vld [vmem:[%s273 + $0x10] sm:$0xff]
      %v302 = vld [vmem:[%s273 + $0x18] sm:$0xff]
      %v303 = vld [vmem:[%s273 + $0x20] sm:$0xff]
      %v304 = vld [vmem:[%s273 + $0x28] sm:$0xff]
      %v305 = vld [vmem:[%s273 + $0x30] sm:$0xff]
      %v306 = vld [vmem:[%s273 + $0x38] sm:$0xff]
      %v307 = vld [vmem:[%s1] sm:$0x1]
      %v309 = vlaneseq
      %v310 = vshrl.u32 %v309, 7
      %v311 = vsub.s32 0, %v310
      %v312 = vrot.slane %v307, %v311
      %v314 = vmul.f32 %v299, %v312
      %v315 = vmul.f32 %v300, %v312
      %v316 = vmul.f32 %v301, %v312
      %v317 = vmul.f32 %v302, %v312
      %v318 = vmul.f32 %v303, %v312
      %v319 = vmul.f32 %v304, %v312
      %v320 = vmul.f32 %v305, %v312
      %v321 = vmul.f32 %v306, %v312
      %v322 = vld [vmem:[%s2] sm:$0x1]
      %v324 = vlaneseq
      %v325 = vshrl.u32 %v324, 7
      %v326 = vsub.s32 0, %v325
      %v327 = vrot.slane %v322, %v326
      %v329 = vadd.f32 %v314, %v327
      %v330 = vadd.f32 %v315, %v327
      %v331 = vadd.f32 %v316, %v327
      %v332 = vadd.f32 %v317, %v327
      %v333 = vadd.f32 %v318, %v327
      %v334 = vadd.f32 %v319, %v327
      %v335 = vadd.f32 %v320, %v327
      %v336 = vadd.f32 %v321, %v327
      %v337 = vmax.f32 %v329, 0.0
      %v338 = vmax.f32 %v330, 0.0
      %v339 = vmax.f32 %v331, 0.0
      %v340 = vmax.f32 %v332, 0.0
      %v341 = vmax.f32 %v333, 0.0
      %v342 = vmax.f32 %v334, 0.0
      %v343 = vmax.f32 %v335, 0.0
      %v344 = vmax.f32 %v336, 0.0
      %s345 = scalar_lea.vmem [#allocation2], 16
      %346 = vst [vmem:[%s345 + $0x1] sm:$0xff] %v337
      %347 = vst [vmem:[%s345 + $0x11] sm:$0xff] %v338
      %348 = vst [vmem:[%s345 + $0x21] sm:$0xff] %v339
      %349 = vst [vmem:[%s345 + $0x31] sm:$0xff] %v340
      %350 = vst [vmem:[%s345 + $0x41] sm:$0xff] %v341
      %351 = vst [vmem:[%s345 + $0x51] sm:$0xff] %v342
      %352 = vst [vmem:[%s345 + $0x61] sm:$0xff] %v343
      %353 = vst [vmem:[%s345 + $0x71] sm:$0xff] %v344
      %v354 = vld [vmem:[#allocation2] sm:$0xff]
      %v355 = vld [vmem:[#allocation2 + $0x10] sm:$0xff]
      %v356 = vld [vmem:[#allocation2 + $0x20] sm:$0xff]
      %v357 = vld [vmem:[#allocation2 + $0x30] sm:$0xff]
      %v358 = vld [vmem:[#allocation2 + $0x40] sm:$0xff]
      %v359 = vld [vmem:[#allocation2 + $0x50] sm:$0xff]
      %v360 = vld [vmem:[#allocation2 + $0x60] sm:$0xff]
      %v361 = vld [vmem:[#allocation2 + $0x70] sm:$0xff]
      %v362 = vld [vmem:[%s3] sm:$0xff]
      %v363 = vld [vmem:[%s3 + $0x8] sm:$0xff]
      %v364 = vld [vmem:[%s3 + $0x10] sm:$0xff]
      %v365 = vld [vmem:[%s3 + $0x18] sm:$0xff]
      %v366 = vld [vmem:[%s3 + $0x20] sm:$0xff]
      %v367 = vld [vmem:[%s3 + $0x28] sm:$0xff]
      %v368 = vld [vmem:[%s3 + $0x30] sm:$0xff]
      %v369 = vld [vmem:[%s3 + $0x38] sm:$0xff]
      %v370 = vld [vmem:[%s3 + $0x40] sm:$0xff]
      %v371 = vld [vmem:[%s3 + $0x48] sm:$0xff]
      %v372 = vld [vmem:[%s3 + $0x50] sm:$0xff]
      %v373 = vld [vmem:[%s3 + $0x58] sm:$0xff]
      %v374 = vld [vmem:[%s3 + $0x60] sm:$0xff]
      %v375 = vld [vmem:[%s3 + $0x68] sm:$0xff]
      %v376 = vld [vmem:[%s3 + $0x70] sm:$0xff]
      %v377 = vld [vmem:[%s3 + $0x78] sm:$0xff]
      %v378 = vld [vmem:[#allocation2 + $0x1] sm:$0xff]
      %v379 = vld [vmem:[#allocation2 + $0x11] sm:$0xff]
      %v380 = vld [vmem:[#allocation2 + $0x21] sm:$0xff]
      %v381 = vld [vmem:[#allocation2 + $0x31] sm:$0xff]
      %v382 = vld [vmem:[#allocation2 + $0x41] sm:$0xff]
      %v383 = vld [vmem:[#allocation2 + $0x51] sm:$0xff]
      %v384 = vld [vmem:[#allocation2 + $0x61] sm:$0xff]
      %v385 = vld [vmem:[#allocation2 + $0x71] sm:$0xff]
      %s386 = scalar_lea.vmem %s3, 128
      %v387 = vld [vmem:[%s386] sm:$0xff]
      %v388 = vld [vmem:[%s386 + $0x8] sm:$0xff]
      %v389 = vld [vmem:[%s386 + $0x10] sm:$0xff]
      %v390 = vld [vmem:[%s386 + $0x18] sm:$0xff]
      %v391 = vld [vmem:[%s386 + $0x20] sm:$0xff]
      %v392 = vld [vmem:[%s386 + $0x28] sm:$0xff]
      %v393 = vld [vmem:[%s386 + $0x30] sm:$0xff]
      %v394 = vld [vmem:[%s386 + $0x38] sm:$0xff]
      %v395 = vld [vmem:[%s386 + $0x40] sm:$0xff]
      %v396 = vld [vmem:[%s386 + $0x48] sm:$0xff]
      %v397 = vld [vmem:[%s386 + $0x50] sm:$0xff]
      %v398 = vld [vmem:[%s386 + $0x58] sm:$0xff]
      %v399 = vld [vmem:[%s386 + $0x60] sm:$0xff]
      %v400 = vld [vmem:[%s386 + $0x68] sm:$0xff]
      %v401 = vld [vmem:[%s386 + $0x70] sm:$0xff]
      %v402 = vld [vmem:[%s386 + $0x78] sm:$0xff]
      %403 = vmatprep.subr.mxu0 0.0
      %404 = vmatpush1.msra.mxu0 %v387
      %405 = vmatprep.subr.mxu0 0.0
      %406 = vmatpush1.msra.mxu0 %v388
      %407 = vmatprep.subr.mxu0 0.0
      %408 = vmatpush1.msra.mxu0 %v389
      %409 = vmatprep.subr.mxu0 0.0
      %410 = vmatpush1.msra.mxu0 %v390
      %411 = vmatprep.subr.mxu0 0.0
      %412 = vmatpush1.msra.mxu0 %v391
      %413 = vmatprep.subr.mxu0 0.0
      %414 = vmatpush1.msra.mxu0 %v392
      %415 = vmatprep.subr.mxu0 0.0
      %416 = vmatpush1.msra.mxu0 %v393
      %417 = vmatprep.subr.mxu0 0.0
      %418 = vmatpush1.msra.mxu0 %v394
      %419 = vmatprep.subr.mxu0 0.0
      %420 = vmatpush1.msra.mxu0 %v395
      %421 = vmatprep.subr.mxu0 0.0
      %422 = vmatpush1.msra.mxu0 %v396
      %423 = vmatprep.subr.mxu0 0.0
      %424 = vmatpush1.msra.mxu0 %v397
      %425 = vmatprep.subr.mxu0 0.0
      %426 = vmatpush1.msra.mxu0 %v398
      %427 = vmatprep.subr.mxu0 0.0
      %428 = vmatpush1.msra.mxu0 %v399
      %429 = vmatprep.subr.mxu0 0.0
      %430 = vmatpush1.msra.mxu0 %v400
      %431 = vmatprep.subr.mxu0 0.0
      %432 = vmatpush1.msra.mxu0 %v401
      %433 = vmatprep.subr.mxu0 0.0
      %434 = vmatpush1.msra.mxu0 %v402
      %435 = vmatprep.subr.mxu0 0.0
      %436 = vmatpush1.msra.mxu0 0.0
      %437 = vmatprep.subr.mxu0 0.0
      %438 = vmatpush1.msra.mxu0 0.0
      %439 = vmatprep.subr.mxu0 0.0
      %440 = vmatpush1.msra.mxu0 0.0
      %441 = vmatprep.subr.mxu0 0.0
      %442 = vmatpush1.msra.mxu0 0.0
      %443 = vmatprep.subr.mxu0 0.0
      %444 = vmatpush1.msra.mxu0 0.0
      %445 = vmatprep.subr.mxu0 0.0
      %446 = vmatpush1.msra.mxu0 0.0
      %447 = vmatprep.subr.mxu0 0.0
      %448 = vmatpush1.msra.mxu0 0.0
      %449 = vmatprep.subr.mxu0 0.0
      %450 = vmatpush1.msra.mxu0 0.0
      %451 = vmatprep.subr.mxu0 0.0
      %452 = vmatpush1.msra.mxu0 0.0
      %453 = vmatprep.subr.mxu0 0.0
      %454 = vmatpush1.msra.mxu0 0.0
      %455 = vmatprep.subr.mxu0 0.0
      %456 = vmatpush1.msra.mxu0 0.0
      %457 = vmatprep.subr.mxu0 0.0
      %458 = vmatpush1.msra.mxu0 0.0
      %459 = vmatprep.subr.mxu0 0.0
      %460 = vmatpush1.msra.mxu0 0.0
      %461 = vmatprep.subr.mxu0 0.0
      %462 = vmatpush1.msra.mxu0 0.0
      %463 = vmatprep.subr.mxu0 0.0
      %464 = vmatpush1.msra.mxu0 0.0
      %465 = vmatprep.subr.mxu0 0.0
      %466 = vmatpush1.msra.mxu0 0.0
      %467 = vmatprep.mubr.f32.mxu0 0.0
      %468 = vmatmul.mubr.f32.gmra.mrb[0].mxu0 %v378
      %v469 = vpop.f32.mrb[0].mxu0
      %v470 = vadd.f32 0.0, %v469
      %v471 = vpop.f32.mrb[0].mxu0
      %472 = vmatprep.mubr.f32.mxu0 0.0
      %473 = vmatmul.mubr.f32.gmra.mrb[0].mxu0 %v379
      %v474 = vpop.f32.mrb[0].mxu0
      %v475 = vadd.f32 0.0, %v474
      %v476 = vpop.f32.mrb[0].mxu0
      %477 = vmatprep.mubr.f32.mxu0 0.0
      %478 = vmatmul.mubr.f32.gmra.mrb[0].mxu0 %v380
      %v479 = vpop.f32.mrb[0].mxu0
      %v480 = vadd.f32 0.0, %v479
      %v481 = vpop.f32.mrb[0].mxu0
      %482 = vmatprep.mubr.f32.mxu0 0.0
      %483 = vmatmul.mubr.f32.gmra.mrb[0].mxu0 %v381
      %v484 = vpop.f32.mrb[0].mxu0
      %v485 = vadd.f32 0.0, %v484
      %v486 = vpop.f32.mrb[0].mxu0
      %487 = vmatprep.mubr.f32.mxu0 0.0
      %488 = vmatmul.mubr.f32.gmra.mrb[0].mxu0 %v382
      %v489 = vpop.f32.mrb[0].mxu0
      %v490 = vadd.f32 0.0, %v489
      %v491 = vpop.f32.mrb[0].mxu0
      %492 = vmatprep.mubr.f32.mxu0 0.0
      %493 = vmatmul.mubr.f32.gmra.mrb[0].mxu0 %v383
      %v494 = vpop.f32.mrb[0].mxu0
      %v495 = vadd.f32 0.0, %v494
      %v496 = vpop.f32.mrb[0].mxu0
      %497 = vmatprep.mubr.f32.mxu0 0.0
      %498 = vmatmul.mubr.f32.gmra.mrb[0].mxu0 %v384
      %v499 = vpop.f32.mrb[0].mxu0
      %v500 = vadd.f32 0.0, %v499
      %v501 = vpop.f32.mrb[0].mxu0
      %502 = vmatprep.mubr.f32.mxu0 0.0
      %503 = vmatmul.mubr.f32.gmra.mrb[0].mxu0 %v385
      %v504 = vpop.f32.mrb[0].mxu0
      %v505 = vadd.f32 0.0, %v504
      %v506 = vpop.f32.mrb[0].mxu0
      %507 = vdwg.mxu0
      %508 = vmatprep.subr.mxu0 0.0
      %509 = vmatpush1.msra.mxu0 %v362
      %510 = vmatprep.subr.mxu0 0.0
      %511 = vmatpush1.msra.mxu0 %v363
      %512 = vmatprep.subr.mxu0 0.0
      %513 = vmatpush1.msra.mxu0 %v364
      %514 = vmatprep.subr.mxu0 0.0
      %515 = vmatpush1.msra.mxu0 %v365
      %516 = vmatprep.subr.mxu0 0.0
      %517 = vmatpush1.msra.mxu0 %v366
      %518 = vmatprep.subr.mxu0 0.0
      %519 = vmatpush1.msra.mxu0 %v367
      %520 = vmatprep.subr.mxu0 0.0
      %521 = vmatpush1.msra.mxu0 %v368
      %522 = vmatprep.subr.mxu0 0.0
      %523 = vmatpush1.msra.mxu0 %v369
      %524 = vmatprep.subr.mxu0 0.0
      %525 = vmatpush1.msra.mxu0 %v370
      %526 = vmatprep.subr.mxu0 0.0
      %527 = vmatpush1.msra.mxu0 %v371
      %528 = vmatprep.subr.mxu0 0.0
      %529 = vmatpush1.msra.mxu0 %v372
      %530 = vmatprep.subr.mxu0 0.0
      %531 = vmatpush1.msra.mxu0 %v373
      %532 = vmatprep.subr.mxu0 0.0
      %533 = vmatpush1.msra.mxu0 %v374
      %534 = vmatprep.subr.mxu0 0.0
      %535 = vmatpush1.msra.mxu0 %v375
      %536 = vmatprep.subr.mxu0 0.0
      %537 = vmatpush1.msra.mxu0 %v376
      %538 = vmatprep.subr.mxu0 0.0
      %539 = vmatpush1.msra.mxu0 %v377
      %540 = vmatprep.subr.mxu0 0.0
      %541 = vmatpush1.msra.mxu0 0.0
      %542 = vmatprep.subr.mxu0 0.0
      %543 = vmatpush1.msra.mxu0 0.0
      %544 = vmatprep.subr.mxu0 0.0
      %545 = vmatpush1.msra.mxu0 0.0
      %546 = vmatprep.subr.mxu0 0.0
      %547 = vmatpush1.msra.mxu0 0.0
      %548 = vmatprep.subr.mxu0 0.0
      %549 = vmatpush1.msra.mxu0 0.0
      %550 = vmatprep.subr.mxu0 0.0
      %551 = vmatpush1.msra.mxu0 0.0
      %552 = vmatprep.subr.mxu0 0.0
      %553 = vmatpush1.msra.mxu0 0.0
      %554 = vmatprep.subr.mxu0 0.0
      %555 = vmatpush1.msra.mxu0 0.0
      %556 = vmatprep.subr.mxu0 0.0
      %557 = vmatpush1.msra.mxu0 0.0
      %558 = vmatprep.subr.mxu0 0.0
      %559 = vmatpush1.msra.mxu0 0.0
      %560 = vmatprep.subr.mxu0 0.0
      %561 = vmatpush1.msra.mxu0 0.0
      %562 = vmatprep.subr.mxu0 0.0
      %563 = vmatpush1.msra.mxu0 0.0
      %564 = vmatprep.subr.mxu0 0.0
      %565 = vmatpush1.msra.mxu0 0.0
      %566 = vmatprep.subr.mxu0 0.0
      %567 = vmatpush1.msra.mxu0 0.0
      %568 = vmatprep.subr.mxu0 0.0
      %569 = vmatpush1.msra.mxu0 0.0
      %570 = vmatprep.subr.mxu0 0.0
      %571 = vmatpush1.msra.mxu0 0.0
      %572 = vmatprep.mubr.f32.mxu0 0.0
      %573 = vmatmul.mubr.f32.gmra.mrb[0].mxu0 %v354
      %v574 = vpop.f32.mrb[0].mxu0
      %v575 = vadd.f32 %v470, %v574
      %v576 = vpop.f32.mrb[0].mxu0
      %577 = vmatprep.mubr.f32.mxu0 0.0
      %578 = vmatmul.mubr.f32.gmra.mrb[0].mxu0 %v355
      %v579 = vpop.f32.mrb[0].mxu0
      %v580 = vadd.f32 %v475, %v579
      %v581 = vpop.f32.mrb[0].mxu0
      %582 = vmatprep.mubr.f32.mxu0 0.0
      %583 = vmatmul.mubr.f32.gmra.mrb[0].mxu0 %v356
      %v584 = vpop.f32.mrb[0].mxu0
      %v585 = vadd.f32 %v480, %v584
      %v586 = vpop.f32.mrb[0].mxu0
      %587 = vmatprep.mubr.f32.mxu0 0.0
      %588 = vmatmul.mubr.f32.gmra.mrb[0].mxu0 %v357
      %v589 = vpop.f32.mrb[0].mxu0
      %v590 = vadd.f32 %v485, %v589
      %v591 = vpop.f32.mrb[0].mxu0
      %592 = vmatprep.mubr.f32.mxu0 0.0
      %593 = vmatmul.mubr.f32.gmra.mrb[0].mxu0 %v358
      %v594 = vpop.f32.mrb[0].mxu0
      %v595 = vadd.f32 %v490, %v594
      %v596 = vpop.f32.mrb[0].mxu0
      %597 = vmatprep.mubr.f32.mxu0 0.0
      %598 = vmatmul.mubr.f32.gmra.mrb[0].mxu0 %v359
      %v599 = vpop.f32.mrb[0].mxu0
      %v600 = vadd.f32 %v495, %v599
      %v601 = vpop.f32.mrb[0].mxu0
      %602 = vmatprep.mubr.f32.mxu0 0.0
      %603 = vmatmul.mubr.f32.gmra.mrb[0].mxu0 %v360
      %v604 = vpop.f32.mrb[0].mxu0
      %v605 = vadd.f32 %v500, %v604
      %v606 = vpop.f32.mrb[0].mxu0
      %607 = vmatprep.mubr.f32.mxu0 0.0
      %608 = vmatmul.mubr.f32.gmra.mrb[0].mxu0 %v361
      %v609 = vpop.f32.mrb[0].mxu0
      %v610 = vadd.f32 %v505, %v609
      %v611 = vpop.f32.mrb[0].mxu0
      %612 = vdwg.mxu0
      %v613 = vld [vmem:[#allocation2 + $0x2] sm:$0xff]
      %v614 = vld [vmem:[#allocation2 + $0x12] sm:$0xff]
      %v615 = vld [vmem:[#allocation2 + $0x22] sm:$0xff]
      %v616 = vld [vmem:[#allocation2 + $0x32] sm:$0xff]
      %v617 = vld [vmem:[#allocation2 + $0x42] sm:$0xff]
      %v618 = vld [vmem:[#allocation2 + $0x52] sm:$0xff]
      %v619 = vld [vmem:[#allocation2 + $0x62] sm:$0xff]
      %v620 = vld [vmem:[#allocation2 + $0x72] sm:$0xff]
      %s621 = scalar_lea.vmem %s3, 256
      %v622 = vld [vmem:[%s621] sm:$0xff]
      %v623 = vld [vmem:[%s621 + $0x8] sm:$0xff]
      %v624 = vld [vmem:[%s621 + $0x10] sm:$0xff]
      %v625 = vld [vmem:[%s621 + $0x18] sm:$0xff]
      %v626 = vld [vmem:[%s621 + $0x20] sm:$0xff]
      %v627 = vld [vmem:[%s621 + $0x28] sm:$0xff]
      %v628 = vld [vmem:[%s621 + $0x30] sm:$0xff]
      %v629 = vld [vmem:[%s621 + $0x38] sm:$0xff]
      %v630 = vld [vmem:[%s621 + $0x40] sm:$0xff]
      %v631 = vld [vmem:[%s621 + $0x48] sm:$0xff]
      %v632 = vld [vmem:[%s621 + $0x50] sm:$0xff]
      %v633 = vld [vmem:[%s621 + $0x58] sm:$0xff]
      %v634 = vld [vmem:[%s621 + $0x60] sm:$0xff]
      %v635 = vld [vmem:[%s621 + $0x68] sm:$0xff]
      %v636 = vld [vmem:[%s621 + $0x70] sm:$0xff]
      %v637 = vld [vmem:[%s621 + $0x78] sm:$0xff]
      %638 = vmatprep.subr.mxu0 0.0
      %639 = vmatpush1.msra.mxu0 %v622
      %640 = vmatprep.subr.mxu0 0.0
      %641 = vmatpush1.msra.mxu0 %v623
      %642 = vmatprep.subr.mxu0 0.0
      %643 = vmatpush1.msra.mxu0 %v624
      %644 = vmatprep.subr.mxu0 0.0
      %645 = vmatpush1.msra.mxu0 %v625
      %646 = vmatprep.subr.mxu0 0.0
      %647 = vmatpush1.msra.mxu0 %v626
      %648 = vmatprep.subr.mxu0 0.0
      %649 = vmatpush1.msra.mxu0 %v627
      %650 = vmatprep.subr.mxu0 0.0
      %651 = vmatpush1.msra.mxu0 %v628
      %652 = vmatprep.subr.mxu0 0.0
      %653 = vmatpush1.msra.mxu0 %v629
      %654 = vmatprep.subr.mxu0 0.0
      %655 = vmatpush1.msra.mxu0 %v630
      %656 = vmatprep.subr.mxu0 0.0
      %657 = vmatpush1.msra.mxu0 %v631
      %658 = vmatprep.subr.mxu0 0.0
      %659 = vmatpush1.msra.mxu0 %v632
      %660 = vmatprep.subr.mxu0 0.0
      %661 = vmatpush1.msra.mxu0 %v633
      %662 = vmatprep.subr.mxu0 0.0
      %663 = vmatpush1.msra.mxu0 %v634
      %664 = vmatprep.subr.mxu0 0.0
      %665 = vmatpush1.msra.mxu0 %v635
      %666 = vmatprep.subr.mxu0 0.0
      %667 = vmatpush1.msra.mxu0 %v636
      %668 = vmatprep.subr.mxu0 0.0
      %669 = vmatpush1.msra.mxu0 %v637
      %670 = vmatprep.subr.mxu0 0.0
      %671 = vmatpush1.msra.mxu0 0.0
      %672 = vmatprep.subr.mxu0 0.0
      %673 = vmatpush1.msra.mxu0 0.0
      %674 = vmatprep.subr.mxu0 0.0
      %675 = vmatpush1.msra.mxu0 0.0
      %676 = vmatprep.subr.mxu0 0.0
      %677 = vmatpush1.msra.mxu0 0.0
      %678 = vmatprep.subr.mxu0 0.0
      %679 = vmatpush1.msra.mxu0 0.0
      %680 = vmatprep.subr.mxu0 0.0
      %681 = vmatpush1.msra.mxu0 0.0
      %682 = vmatprep.subr.mxu0 0.0
      %683 = vmatpush1.msra.mxu0 0.0
      %684 = vmatprep.subr.mxu0 0.0
      %685 = vmatpush1.msra.mxu0 0.0
      %686 = vmatprep.subr.mxu0 0.0
      %687 = vmatpush1.msra.mxu0 0.0
      %688 = vmatprep.subr.mxu0 0.0
      %689 = vmatpush1.msra.mxu0 0.0
      %690 = vmatprep.subr.mxu0 0.0
      %691 = vmatpush1.msra.mxu0 0.0
      %692 = vmatprep.subr.mxu0 0.0
      %693 = vmatpush1.msra.mxu0 0.0
      %694 = vmatprep.subr.mxu0 0.0
      %695 = vmatpush1.msra.mxu0 0.0
      %696 = vmatprep.subr.mxu0 0.0
      %697 = vmatpush1.msra.mxu0 0.0
      %698 = vmatprep.subr.mxu0 0.0
      %699 = vmatpush1.msra.mxu0 0.0
      %700 = vmatprep.subr.mxu0 0.0
      %701 = vmatpush1.msra.mxu0 0.0
      %702 = vmatprep.mubr.f32.mxu0 0.0
      %703 = vmatmul.mubr.f32.gmra.mrb[0].mxu0 %v613
      %v704 = vpop.f32.mrb[0].mxu0
      %v705 = vadd.f32 0.0, %v704
      %v706 = vpop.f32.mrb[0].mxu0
      %707 = vmatprep.mubr.f32.mxu0 0.0
      %708 = vmatmul.mubr.f32.gmra.mrb[0].mxu0 %v614
      %v709 = vpop.f32.mrb[0].mxu0
      %v710 = vadd.f32 0.0, %v709
      %v711 = vpop.f32.mrb[0].mxu0
      %712 = vmatprep.mubr.f32.mxu0 0.0
      %713 = vmatmul.mubr.f32.gmra.mrb[0].mxu0 %v615
      %v714 = vpop.f32.mrb[0].mxu0
      %v715 = vadd.f32 0.0, %v714
      %v716 = vpop.f32.mrb[0].mxu0
      %717 = vmatprep.mubr.f32.mxu0 0.0
      %718 = vmatmul.mubr.f32.gmra.mrb[0].mxu0 %v616
      %v719 = vpop.f32.mrb[0].mxu0
      %v720 = vadd.f32 0.0, %v719
      %v721 = vpop.f32.mrb[0].mxu0
      %722 = vmatprep.mubr.f32.mxu0 0.0
      %723 = vmatmul.mubr.f32.gmra.mrb[0].mxu0 %v617
      %v724 = vpop.f32.mrb[0].mxu0
      %v725 = vadd.f32 0.0, %v724
      %v726 = vpop.f32.mrb[0].mxu0
      %727 = vmatprep.mubr.f32.mxu0 0.0
      %728 = vmatmul.mubr.f32.gmra.mrb[0].mxu0 %v618
      %v729 = vpop.f32.mrb[0].mxu0
      %v730 = vadd.f32 0.0, %v729
      %v731 = vpop.f32.mrb[0].mxu0
      %732 = vmatprep.mubr.f32.mxu0 0.0
      %733 = vmatmul.mubr.f32.gmra.mrb[0].mxu0 %v619
      %v734 = vpop.f32.mrb[0].mxu0
      %v735 = vadd.f32 0.0, %v734
      %v736 = vpop.f32.mrb[0].mxu0
      %737 = vmatprep.mubr.f32.mxu0 0.0
      %738 = vmatmul.mubr.f32.gmra.mrb[0].mxu0 %v620
      %v739 = vpop.f32.mrb[0].mxu0
      %v740 = vadd.f32 0.0, %v739
      %v741 = vpop.f32.mrb[0].mxu0
      %742 = vdwg.mxu0
      %v743 = vadd.f32 %v575, %v705
      %v744 = vadd.f32 %v580, %v710
      %v745 = vadd.f32 %v585, %v715
      %v746 = vadd.f32 %v590, %v720
      %v747 = vadd.f32 %v595, %v725
      %v748 = vadd.f32 %v600, %v730
      %v749 = vadd.f32 %v605, %v735
      %v750 = vadd.f32 %v610, %v740
      %v751 = vld [vmem:[%s345] sm:$0xff]
      %v752 = vld [vmem:[%s345 + $0x10] sm:$0xff]
      %v753 = vld [vmem:[%s345 + $0x20] sm:$0xff]
      %v754 = vld [vmem:[%s345 + $0x30] sm:$0xff]
      %v755 = vld [vmem:[%s345 + $0x40] sm:$0xff]
      %v756 = vld [vmem:[%s345 + $0x50] sm:$0xff]
      %v757 = vld [vmem:[%s345 + $0x60] sm:$0xff]
      %v758 = vld [vmem:[%s345 + $0x70] sm:$0xff]
      %s759 = scalar_lea.vmem %s3, 384
      %v760 = vld [vmem:[%s759] sm:$0xff]
      %v761 = vld [vmem:[%s759 + $0x8] sm:$0xff]
      %v762 = vld [vmem:[%s759 + $0x10] sm:$0xff]
      %v763 = vld [vmem:[%s759 + $0x18] sm:$0xff]
      %v764 = vld [vmem:[%s759 + $0x20] sm:$0xff]
      %v765 = vld [vmem:[%s759 + $0x28] sm:$0xff]
      %v766 = vld [vmem:[%s759 + $0x30] sm:$0xff]
      %v767 = vld [vmem:[%s759 + $0x38] sm:$0xff]
      %v768 = vld [vmem:[%s759 + $0x40] sm:$0xff]
      %v769 = vld [vmem:[%s759 + $0x48] sm:$0xff]
      %v770 = vld [vmem:[%s759 + $0x50] sm:$0xff]
      %v771 = vld [vmem:[%s759 + $0x58] sm:$0xff]
      %v772 = vld [vmem:[%s759 + $0x60] sm:$0xff]
      %v773 = vld [vmem:[%s759 + $0x68] sm:$0xff]
      %v774 = vld [vmem:[%s759 + $0x70] sm:$0xff]
      %v775 = vld [vmem:[%s759 + $0x78] sm:$0xff]
      %776 = vmatprep.subr.mxu0 0.0
      %777 = vmatpush1.msra.mxu0 %v760
      %778 = vmatprep.subr.mxu0 0.0
      %779 = vmatpush1.msra.mxu0 %v761
      %780 = vmatprep.subr.mxu0 0.0
      %781 = vmatpush1.msra.mxu0 %v762
      %782 = vmatprep.subr.mxu0 0.0
      %783 = vmatpush1.msra.mxu0 %v763
      %784 = vmatprep.subr.mxu0 0.0
      %785 = vmatpush1.msra.mxu0 %v764
      %786 = vmatprep.subr.mxu0 0.0
      %787 = vmatpush1.msra.mxu0 %v765
      %788 = vmatprep.subr.mxu0 0.0
      %789 = vmatpush1.msra.mxu0 %v766
      %790 = vmatprep.subr.mxu0 0.0
      %791 = vmatpush1.msra.mxu0 %v767
      %792 = vmatprep.subr.mxu0 0.0
      %793 = vmatpush1.msra.mxu0 %v768
      %794 = vmatprep.subr.mxu0 0.0
      %795 = vmatpush1.msra.mxu0 %v769
      %796 = vmatprep.subr.mxu0 0.0
      %797 = vmatpush1.msra.mxu0 %v770
      %798 = vmatprep.subr.mxu0 0.0
      %799 = vmatpush1.msra.mxu0 %v771
      %800 = vmatprep.subr.mxu0 0.0
      %801 = vmatpush1.msra.mxu0 %v772
      %802 = vmatprep.subr.mxu0 0.0
      %803 = vmatpush1.msra.mxu0 %v773
      %804 = vmatprep.subr.mxu0 0.0
      %805 = vmatpush1.msra.mxu0 %v774
      %806 = vmatprep.subr.mxu0 0.0
      %807 = vmatpush1.msra.mxu0 %v775
      %808 = vmatprep.subr.mxu0 0.0
      %809 = vmatpush1.msra.mxu0 0.0
      %810 = vmatprep.subr.mxu0 0.0
      %811 = vmatpush1.msra.mxu0 0.0
      %812 = vmatprep.subr.mxu0 0.0
      %813 = vmatpush1.msra.mxu0 0.0
      %814 = vmatprep.subr.mxu0 0.0
      %815 = vmatpush1.msra.mxu0 0.0
      %816 = vmatprep.subr.mxu0 0.0
      %817 = vmatpush1.msra.mxu0 0.0
      %818 = vmatprep.subr.mxu0 0.0
      %819 = vmatpush1.msra.mxu0 0.0
      %820 = vmatprep.subr.mxu0 0.0
      %821 = vmatpush1.msra.mxu0 0.0
      %822 = vmatprep.subr.mxu0 0.0
      %823 = vmatpush1.msra.mxu0 0.0
      %824 = vmatprep.subr.mxu0 0.0
      %825 = vmatpush1.msra.mxu0 0.0
      %826 = vmatprep.subr.mxu0 0.0
      %827 = vmatpush1.msra.mxu0 0.0
      %828 = vmatprep.subr.mxu0 0.0
      %829 = vmatpush1.msra.mxu0 0.0
      %830 = vmatprep.subr.mxu0 0.0
      %831 = vmatpush1.msra.mxu0 0.0
      %832 = vmatprep.subr.mxu0 0.0
      %833 = vmatpush1.msra.mxu0 0.0
      %834 = vmatprep.subr.mxu0 0.0
      %835 = vmatpush1.msra.mxu0 0.0
      %836 = vmatprep.subr.mxu0 0.0
      %837 = vmatpush1.msra.mxu0 0.0
      %838 = vmatprep.subr.mxu0 0.0
      %839 = vmatpush1.msra.mxu0 0.0
      %840 = vmatprep.mubr.f32.mxu0 0.0
      %841 = vmatmul.mubr.f32.gmra.mrb[0].mxu0 %v751
      %v842 = vpop.f32.mrb[0].mxu0
      %v843 = vadd.f32 0.0, %v842
      %v844 = vpop.f32.mrb[0].mxu0
      %845 = vmatprep.mubr.f32.mxu0 0.0
      %846 = vmatmul.mubr.f32.gmra.mrb[0].mxu0 %v752
      %v847 = vpop.f32.mrb[0].mxu0
      %v848 = vadd.f32 0.0, %v847
      %v849 = vpop.f32.mrb[0].mxu0
      %850 = vmatprep.mubr.f32.mxu0 0.0
      %851 = vmatmul.mubr.f32.gmra.mrb[0].mxu0 %v753
      %v852 = vpop.f32.mrb[0].mxu0
      %v853 = vadd.f32 0.0, %v852
      %v854 = vpop.f32.mrb[0].mxu0
      %855 = vmatprep.mubr.f32.mxu0 0.0
      %856 = vmatmul.mubr.f32.gmra.mrb[0].mxu0 %v754
      %v857 = vpop.f32.mrb[0].mxu0
      %v858 = vadd.f32 0.0, %v857
      %v859 = vpop.f32.mrb[0].mxu0
      %860 = vmatprep.mubr.f32.mxu0 0.0
      %861 = vmatmul.mubr.f32.gmra.mrb[0].mxu0 %v755
      %v862 = vpop.f32.mrb[0].mxu0
      %v863 = vadd.f32 0.0, %v862
      %v864 = vpop.f32.mrb[0].mxu0
      %865 = vmatprep.mubr.f32.mxu0 0.0
      %866 = vmatmul.mubr.f32.gmra.mrb[0].mxu0 %v756
      %v867 = vpop.f32.mrb[0].mxu0
      %v868 = vadd.f32 0.0, %v867
      %v869 = vpop.f32.mrb[0].mxu0
      %870 = vmatprep.mubr.f32.mxu0 0.0
      %871 = vmatmul.mubr.f32.gmra.mrb[0].mxu0 %v757
      %v872 = vpop.f32.mrb[0].mxu0
      %v873 = vadd.f32 0.0, %v872
      %v874 = vpop.f32.mrb[0].mxu0
      %875 = vmatprep.mubr.f32.mxu0 0.0
      %876 = vmatmul.mubr.f32.gmra.mrb[0].mxu0 %v758
      %v877 = vpop.f32.mrb[0].mxu0
      %v878 = vadd.f32 0.0, %v877
      %v879 = vpop.f32.mrb[0].mxu0
      %880 = vdwg.mxu0
      %v881 = vadd.f32 %v743, %v843
      %v882 = vadd.f32 %v744, %v848
      %v883 = vadd.f32 %v745, %v853
      %v884 = vadd.f32 %v746, %v858
      %v885 = vadd.f32 %v747, %v863
      %v886 = vadd.f32 %v748, %v868
      %v887 = vadd.f32 %v749, %v873
      %v888 = vadd.f32 %v750, %v878
      %v889 = vld [vmem:[%s345 + $0x1] sm:$0xff]
      %v890 = vld [vmem:[%s345 + $0x11] sm:$0xff]
      %v891 = vld [vmem:[%s345 + $0x21] sm:$0xff]
      %v892 = vld [vmem:[%s345 + $0x31] sm:$0xff]
      %v893 = vld [vmem:[%s345 + $0x41] sm:$0xff]
      %v894 = vld [vmem:[%s345 + $0x51] sm:$0xff]
      %v895 = vld [vmem:[%s345 + $0x61] sm:$0xff]
      %v896 = vld [vmem:[%s345 + $0x71] sm:$0xff]
      %s897 = scalar_lea.vmem %s3, 512
      %v898 = vld [vmem:[%s897] sm:$0xff]
      %v899 = vld [vmem:[%s897 + $0x8] sm:$0xff]
      %v900 = vld [vmem:[%s897 + $0x10] sm:$0xff]
      %v901 = vld [vmem:[%s897 + $0x18] sm:$0xff]
      %v902 = vld [vmem:[%s897 + $0x20] sm:$0xff]
      %v903 = vld [vmem:[%s897 + $0x28] sm:$0xff]
      %v904 = vld [vmem:[%s897 + $0x30] sm:$0xff]
      %v905 = vld [vmem:[%s897 + $0x38] sm:$0xff]
      %v906 = vld [vmem:[%s897 + $0x40] sm:$0xff]
      %v907 = vld [vmem:[%s897 + $0x48] sm:$0xff]
      %v908 = vld [vmem:[%s897 + $0x50] sm:$0xff]
      %v909 = vld [vmem:[%s897 + $0x58] sm:$0xff]
      %v910 = vld [vmem:[%s897 + $0x60] sm:$0xff]
      %v911 = vld [vmem:[%s897 + $0x68] sm:$0xff]
      %v912 = vld [vmem:[%s897 + $0x70] sm:$0xff]
      %v913 = vld [vmem:[%s897 + $0x78] sm:$0xff]
      %914 = vmatprep.subr.mxu0 0.0
      %915 = vmatpush1.msra.mxu0 %v898
      %916 = vmatprep.subr.mxu0 0.0
      %917 = vmatpush1.msra.mxu0 %v899
      %918 = vmatprep.subr.mxu0 0.0
      %919 = vmatpush1.msra.mxu0 %v900
      %920 = vmatprep.subr.mxu0 0.0
      %921 = vmatpush1.msra.mxu0 %v901
      %922 = vmatprep.subr.mxu0 0.0
      %923 = vmatpush1.msra.mxu0 %v902
      %924 = vmatprep.subr.mxu0 0.0
      %925 = vmatpush1.msra.mxu0 %v903
      %926 = vmatprep.subr.mxu0 0.0
      %927 = vmatpush1.msra.mxu0 %v904
      %928 = vmatprep.subr.mxu0 0.0
      %929 = vmatpush1.msra.mxu0 %v905
      %930 = vmatprep.subr.mxu0 0.0
      %931 = vmatpush1.msra.mxu0 %v906
      %932 = vmatprep.subr.mxu0 0.0
      %933 = vmatpush1.msra.mxu0 %v907
      %934 = vmatprep.subr.mxu0 0.0
      %935 = vmatpush1.msra.mxu0 %v908
      %936 = vmatprep.subr.mxu0 0.0
      %937 = vmatpush1.msra.mxu0 %v909
      %938 = vmatprep.subr.mxu0 0.0
      %939 = vmatpush1.msra.mxu0 %v910
      %940 = vmatprep.subr.mxu0 0.0
      %941 = vmatpush1.msra.mxu0 %v911
      %942 = vmatprep.subr.mxu0 0.0
      %943 = vmatpush1.msra.mxu0 %v912
      %944 = vmatprep.subr.mxu0 0.0
      %945 = vmatpush1.msra.mxu0 %v913
      %946 = vmatprep.subr.mxu0 0.0
      %947 = vmatpush1.msra.mxu0 0.0
      %948 = vmatprep.subr.mxu0 0.0
      %949 = vmatpush1.msra.mxu0 0.0
      %950 = vmatprep.subr.mxu0 0.0
      %951 = vmatpush1.msra.mxu0 0.0
      %952 = vmatprep.subr.mxu0 0.0
      %953 = vmatpush1.msra.mxu0 0.0
      %954 = vmatprep.subr.mxu0 0.0
      %955 = vmatpush1.msra.mxu0 0.0
      %956 = vmatprep.subr.mxu0 0.0
      %957 = vmatpush1.msra.mxu0 0.0
      %958 = vmatprep.subr.mxu0 0.0
      %959 = vmatpush1.msra.mxu0 0.0
      %960 = vmatprep.subr.mxu0 0.0
      %961 = vmatpush1.msra.mxu0 0.0
      %962 = vmatprep.subr.mxu0 0.0
      %963 = vmatpush1.msra.mxu0 0.0
      %964 = vmatprep.subr.mxu0 0.0
      %965 = vmatpush1.msra.mxu0 0.0
      %966 = vmatprep.subr.mxu0 0.0
      %967 = vmatpush1.msra.mxu0 0.0
      %968 = vmatprep.subr.mxu0 0.0
      %969 = vmatpush1.msra.mxu0 0.0
      %970 = vmatprep.subr.mxu0 0.0
      %971 = vmatpush1.msra.mxu0 0.0
      %972 = vmatprep.subr.mxu0 0.0
      %973 = vmatpush1.msra.mxu0 0.0
      %974 = vmatprep.subr.mxu0 0.0
      %975 = vmatpush1.msra.mxu0 0.0
      %976 = vmatprep.subr.mxu0 0.0
      %977 = vmatpush1.msra.mxu0 0.0
      %978 = vmatprep.mubr.f32.mxu0 0.0
      %979 = vmatmul.mubr.f32.gmra.mrb[0].mxu0 %v889
      %v980 = vpop.f32.mrb[0].mxu0
      %v981 = vadd.f32 0.0, %v980
      %v982 = vpop.f32.mrb[0].mxu0
      %983 = vmatprep.mubr.f32.mxu0 0.0
      %984 = vmatmul.mubr.f32.gmra.mrb[0].mxu0 %v890
      %v985 = vpop.f32.mrb[0].mxu0
      %v986 = vadd.f32 0.0, %v985
      %v987 = vpop.f32.mrb[0].mxu0
      %988 = vmatprep.mubr.f32.mxu0 0.0
      %989 = vmatmul.mubr.f32.gmra.mrb[0].mxu0 %v891
      %v990 = vpop.f32.mrb[0].mxu0
      %v991 = vadd.f32 0.0, %v990
      %v992 = vpop.f32.mrb[0].mxu0
      %993 = vmatprep.mubr.f32.mxu0 0.0
      %994 = vmatmul.mubr.f32.gmra.mrb[0].mxu0 %v892
      %v995 = vpop.f32.mrb[0].mxu0
      %v996 = vadd.f32 0.0, %v995
      %v997 = vpop.f32.mrb[0].mxu0
      %998 = vmatprep.mubr.f32.mxu0 0.0
      %999 = vmatmul.mubr.f32.gmra.mrb[0].mxu0 %v893
      %v1000 = vpop.f32.mrb[0].mxu0
      %v1001 = vadd.f32 0.0, %v1000
      %v1002 = vpop.f32.mrb[0].mxu0
      %1003 = vmatprep.mubr.f32.mxu0 0.0
      %1004 = vmatmul.mubr.f32.gmra.mrb[0].mxu0 %v894
      %v1005 = vpop.f32.mrb[0].mxu0
      %v1006 = vadd.f32 0.0, %v1005
      %v1007 = vpop.f32.mrb[0].mxu0
      %1008 = vmatprep.mubr.f32.mxu0 0.0
      %1009 = vmatmul.mubr.f32.gmra.mrb[0].mxu0 %v895
      %v1010 = vpop.f32.mrb[0].mxu0
      %v1011 = vadd.f32 0.0, %v1010
      %v1012 = vpop.f32.mrb[0].mxu0
      %1013 = vmatprep.mubr.f32.mxu0 0.0
      %1014 = vmatmul.mubr.f32.gmra.mrb[0].mxu0 %v896
      %v1015 = vpop.f32.mrb[0].mxu0
      %v1016 = vadd.f32 0.0, %v1015
      %v1017 = vpop.f32.mrb[0].mxu0
      %1018 = vdwg.mxu0
      %v1019 = vadd.f32 %v881, %v981
      %v1020 = vadd.f32 %v882, %v986
      %v1021 = vadd.f32 %v883, %v991
      %v1022 = vadd.f32 %v884, %v996
      %v1023 = vadd.f32 %v885, %v1001
      %v1024 = vadd.f32 %v886, %v1006
      %v1025 = vadd.f32 %v887, %v1011
      %v1026 = vadd.f32 %v888, %v1016
      %v1027 = vld [vmem:[%s345 + $0x2] sm:$0xff]
      %v1028 = vld [vmem:[%s345 + $0x12] sm:$0xff]
      %v1029 = vld [vmem:[%s345 + $0x22] sm:$0xff]
      %v1030 = vld [vmem:[%s345 + $0x32] sm:$0xff]
      %v1031 = vld [vmem:[%s345 + $0x42] sm:$0xff]
      %v1032 = vld [vmem:[%s345 + $0x52] sm:$0xff]
      %v1033 = vld [vmem:[%s345 + $0x62] sm:$0xff]
      %v1034 = vld [vmem:[%s345 + $0x72] sm:$0xff]
      %s1035 = scalar_lea.vmem %s3, 640
      %v1036 = vld [vmem:[%s1035] sm:$0xff]
      %v1037 = vld [vmem:[%s1035 + $0x8] sm:$0xff]
      %v1038 = vld [vmem:[%s1035 + $0x10] sm:$0xff]
      %v1039 = vld [vmem:[%s1035 + $0x18] sm:$0xff]
      %v1040 = vld [vmem:[%s1035 + $0x20] sm:$0xff]
      %v1041 = vld [vmem:[%s1035 + $0x28] sm:$0xff]
      %v1042 = vld [vmem:[%s1035 + $0x30] sm:$0xff]
      %v1043 = vld [vmem:[%s1035 + $0x38] sm:$0xff]
      %v1044 = vld [vmem:[%s1035 + $0x40] sm:$0xff]
      %v1045 = vld [vmem:[%s1035 + $0x48] sm:$0xff]
      %v1046 = vld [vmem:[%s1035 + $0x50] sm:$0xff]
      %v1047 = vld [vmem:[%s1035 + $0x58] sm:$0xff]
      %v1048 = vld [vmem:[%s1035 + $0x60] sm:$0xff]
      %v1049 = vld [vmem:[%s1035 + $0x68] sm:$0xff]
      %v1050 = vld [vmem:[%s1035 + $0x70] sm:$0xff]
      %v1051 = vld [vmem:[%s1035 + $0x78] sm:$0xff]
      %1052 = vmatprep.subr.mxu0 0.0
      %1053 = vmatpush1.msra.mxu0 %v1036
      %1054 = vmatprep.subr.mxu0 0.0
      %1055 = vmatpush1.msra.mxu0 %v1037
      %1056 = vmatprep.subr.mxu0 0.0
      %1057 = vmatpush1.msra.mxu0 %v1038
      %1058 = vmatprep.subr.mxu0 0.0
      %1059 = vmatpush1.msra.mxu0 %v1039
      %1060 = vmatprep.subr.mxu0 0.0
      %1061 = vmatpush1.msra.mxu0 %v1040
      %1062 = vmatprep.subr.mxu0 0.0
      %1063 = vmatpush1.msra.mxu0 %v1041
      %1064 = vmatprep.subr.mxu0 0.0
      %1065 = vmatpush1.msra.mxu0 %v1042
      %1066 = vmatprep.subr.mxu0 0.0
      %1067 = vmatpush1.msra.mxu0 %v1043
      %1068 = vmatprep.subr.mxu0 0.0
      %1069 = vmatpush1.msra.mxu0 %v1044
      %1070 = vmatprep.subr.mxu0 0.0
      %1071 = vmatpush1.msra.mxu0 %v1045
      %1072 = vmatprep.subr.mxu0 0.0
      %1073 = vmatpush1.msra.mxu0 %v1046
      %1074 = vmatprep.subr.mxu0 0.0
      %1075 = vmatpush1.msra.mxu0 %v1047
      %1076 = vmatprep.subr.mxu0 0.0
      %1077 = vmatpush1.msra.mxu0 %v1048
      %1078 = vmatprep.subr.mxu0 0.0
      %1079 = vmatpush1.msra.mxu0 %v1049
      %1080 = vmatprep.subr.mxu0 0.0
      %1081 = vmatpush1.msra.mxu0 %v1050
      %1082 = vmatprep.subr.mxu0 0.0
      %1083 = vmatpush1.msra.mxu0 %v1051
      %1084 = vmatprep.subr.mxu0 0.0
      %1085 = vmatpush1.msra.mxu0 0.0
      %1086 = vmatprep.subr.mxu0 0.0
      %1087 = vmatpush1.msra.mxu0 0.0
      %1088 = vmatprep.subr.mxu0 0.0
      %1089 = vmatpush1.msra.mxu0 0.0
      %1090 = vmatprep.subr.mxu0 0.0
      %1091 = vmatpush1.msra.mxu0 0.0
      %1092 = vmatprep.subr.mxu0 0.0
      %1093 = vmatpush1.msra.mxu0 0.0
      %1094 = vmatprep.subr.mxu0 0.0
      %1095 = vmatpush1.msra.mxu0 0.0
      %1096 = vmatprep.subr.mxu0 0.0
      %1097 = vmatpush1.msra.mxu0 0.0
      %1098 = vmatprep.subr.mxu0 0.0
      %1099 = vmatpush1.msra.mxu0 0.0
      %1100 = vmatprep.subr.mxu0 0.0
      %1101 = vmatpush1.msra.mxu0 0.0
      %1102 = vmatprep.subr.mxu0 0.0
      %1103 = vmatpush1.msra.mxu0 0.0
      %1104 = vmatprep.subr.mxu0 0.0
      %1105 = vmatpush1.msra.mxu0 0.0
      %1106 = vmatprep.subr.mxu0 0.0
      %1107 = vmatpush1.msra.mxu0 0.0
      %1108 = vmatprep.subr.mxu0 0.0
      %1109 = vmatpush1.msra.mxu0 0.0
      %1110 = vmatprep.subr.mxu0 0.0
      %1111 = vmatpush1.msra.mxu0 0.0
      %1112 = vmatprep.subr.mxu0 0.0
      %1113 = vmatpush1.msra.mxu0 0.0
      %1114 = vmatprep.subr.mxu0 0.0
      %1115 = vmatpush1.msra.mxu0 0.0
      %1116 = vmatprep.mubr.f32.mxu0 0.0
      %1117 = vmatmul.mubr.f32.gmra.mrb[0].mxu0 %v1027
      %v1118 = vpop.f32.mrb[0].mxu0
      %v1119 = vadd.f32 0.0, %v1118
      %v1120 = vpop.f32.mrb[0].mxu0
      %1121 = vmatprep.mubr.f32.mxu0 0.0
      %1122 = vmatmul.mubr.f32.gmra.mrb[0].mxu0 %v1028
      %v1123 = vpop.f32.mrb[0].mxu0
      %v1124 = vadd.f32 0.0, %v1123
      %v1125 = vpop.f32.mrb[0].mxu0
      %1126 = vmatprep.mubr.f32.mxu0 0.0
      %1127 = vmatmul.mubr.f32.gmra.mrb[0].mxu0 %v1029
      %v1128 = vpop.f32.mrb[0].mxu0
      %v1129 = vadd.f32 0.0, %v1128
      %v1130 = vpop.f32.mrb[0].mxu0
      %1131 = vmatprep.mubr.f32.mxu0 0.0
      %1132 = vmatmul.mubr.f32.gmra.mrb[0].mxu0 %v1030
      %v1133 = vpop.f32.mrb[0].mxu0
      %v1134 = vadd.f32 0.0, %v1133
      %v1135 = vpop.f32.mrb[0].mxu0
      %1136 = vmatprep.mubr.f32.mxu0 0.0
      %1137 = vmatmul.mubr.f32.gmra.mrb[0].mxu0 %v1031
      %v1138 = vpop.f32.mrb[0].mxu0
      %v1139 = vadd.f32 0.0, %v1138
      %v1140 = vpop.f32.mrb[0].mxu0
      %1141 = vmatprep.mubr.f32.mxu0 0.0
      %1142 = vmatmul.mubr.f32.gmra.mrb[0].mxu0 %v1032
      %v1143 = vpop.f32.mrb[0].mxu0
      %v1144 = vadd.f32 0.0, %v1143
      %v1145 = vpop.f32.mrb[0].mxu0
      %1146 = vmatprep.mubr.f32.mxu0 0.0
      %1147 = vmatmul.mubr.f32.gmra.mrb[0].mxu0 %v1033
      %v1148 = vpop.f32.mrb[0].mxu0
      %v1149 = vadd.f32 0.0, %v1148
      %v1150 = vpop.f32.mrb[0].mxu0
      %1151 = vmatprep.mubr.f32.mxu0 0.0
      %1152 = vmatmul.mubr.f32.gmra.mrb[0].mxu0 %v1034
      %v1153 = vpop.f32.mrb[0].mxu0
      %v1154 = vadd.f32 0.0, %v1153
      %v1155 = vpop.f32.mrb[0].mxu0
      %1156 = vdwg.mxu0
      %v1157 = vadd.f32 %v1019, %v1119
      %v1158 = vadd.f32 %v1020, %v1124
      %v1159 = vadd.f32 %v1021, %v1129
      %v1160 = vadd.f32 %v1022, %v1134
      %v1161 = vadd.f32 %v1023, %v1139
      %v1162 = vadd.f32 %v1024, %v1144
      %v1163 = vadd.f32 %v1025, %v1149
      %v1164 = vadd.f32 %v1026, %v1154
      %s1165 = scalar_lea.vmem [#allocation2], 32
      %v1166 = vld [vmem:[%s1165] sm:$0xff]
      %v1167 = vld [vmem:[%s1165 + $0x10] sm:$0xff]
      %v1168 = vld [vmem:[%s1165 + $0x20] sm:$0xff]
      %v1169 = vld [vmem:[%s1165 + $0x30] sm:$0xff]
      %v1170 = vld [vmem:[%s1165 + $0x40] sm:$0xff]
      %v1171 = vld [vmem:[%s1165 + $0x50] sm:$0xff]
      %v1172 = vld [vmem:[%s1165 + $0x60] sm:$0xff]
      %v1173 = vld [vmem:[%s1165 + $0x70] sm:$0xff]
      %s1174 = scalar_lea.vmem %s3, 768
      %v1175 = vld [vmem:[%s1174] sm:$0xff]
      %v1176 = vld [vmem:[%s1174 + $0x8] sm:$0xff]
      %v1177 = vld [vmem:[%s1174 + $0x10] sm:$0xff]
      %v1178 = vld [vmem:[%s1174 + $0x18] sm:$0xff]
      %v1179 = vld [vmem:[%s1174 + $0x20] sm:$0xff]
      %v1180 = vld [vmem:[%s1174 + $0x28] sm:$0xff]
      %v1181 = vld [vmem:[%s1174 + $0x30] sm:$0xff]
      %v1182 = vld [vmem:[%s1174 + $0x38] sm:$0xff]
      %v1183 = vld [vmem:[%s1174 + $0x40] sm:$0xff]
      %v1184 = vld [vmem:[%s1174 + $0x48] sm:$0xff]
      %v1185 = vld [vmem:[%s1174 + $0x50] sm:$0xff]
      %v1186 = vld [vmem:[%s1174 + $0x58] sm:$0xff]
      %v1187 = vld [vmem:[%s1174 + $0x60] sm:$0xff]
      %v1188 = vld [vmem:[%s1174 + $0x68] sm:$0xff]
      %v1189 = vld [vmem:[%s1174 + $0x70] sm:$0xff]
      %v1190 = vld [vmem:[%s1174 + $0x78] sm:$0xff]
      %1191 = vmatprep.subr.mxu0 0.0
      %1192 = vmatpush1.msra.mxu0 %v1175
      %1193 = vmatprep.subr.mxu0 0.0
      %1194 = vmatpush1.msra.mxu0 %v1176
      %1195 = vmatprep.subr.mxu0 0.0
      %1196 = vmatpush1.msra.mxu0 %v1177
      %1197 = vmatprep.subr.mxu0 0.0
      %1198 = vmatpush1.msra.mxu0 %v1178
      %1199 = vmatprep.subr.mxu0 0.0
      %1200 = vmatpush1.msra.mxu0 %v1179
      %1201 = vmatprep.subr.mxu0 0.0
      %1202 = vmatpush1.msra.mxu0 %v1180
      %1203 = vmatprep.subr.mxu0 0.0
      %1204 = vmatpush1.msra.mxu0 %v1181
      %1205 = vmatprep.subr.mxu0 0.0
      %1206 = vmatpush1.msra.mxu0 %v1182
      %1207 = vmatprep.subr.mxu0 0.0
      %1208 = vmatpush1.msra.mxu0 %v1183
      %1209 = vmatprep.subr.mxu0 0.0
      %1210 = vmatpush1.msra.mxu0 %v1184
      %1211 = vmatprep.subr.mxu0 0.0
      %1212 = vmatpush1.msra.mxu0 %v1185
      %1213 = vmatprep.subr.mxu0 0.0
      %1214 = vmatpush1.msra.mxu0 %v1186
      %1215 = vmatprep.subr.mxu0 0.0
      %1216 = vmatpush1.msra.mxu0 %v1187
      %1217 = vmatprep.subr.mxu0 0.0
      %1218 = vmatpush1.msra.mxu0 %v1188
      %1219 = vmatprep.subr.mxu0 0.0
      %1220 = vmatpush1.msra.mxu0 %v1189
      %1221 = vmatprep.subr.mxu0 0.0
      %1222 = vmatpush1.msra.mxu0 %v1190
      %1223 = vmatprep.subr.mxu0 0.0
      %1224 = vmatpush1.msra.mxu0 0.0
      %1225 = vmatprep.subr.mxu0 0.0
      %1226 = vmatpush1.msra.mxu0 0.0
      %1227 = vmatprep.subr.mxu0 0.0
      %1228 = vmatpush1.msra.mxu0 0.0
      %1229 = vmatprep.subr.mxu0 0.0
      %1230 = vmatpush1.msra.mxu0 0.0
      %1231 = vmatprep.subr.mxu0 0.0
      %1232 = vmatpush1.msra.mxu0 0.0
      %1233 = vmatprep.subr.mxu0 0.0
      %1234 = vmatpush1.msra.mxu0 0.0
      %1235 = vmatprep.subr.mxu0 0.0
      %1236 = vmatpush1.msra.mxu0 0.0
      %1237 = vmatprep.subr.mxu0 0.0
      %1238 = vmatpush1.msra.mxu0 0.0
      %1239 = vmatprep.subr.mxu0 0.0
      %1240 = vmatpush1.msra.mxu0 0.0
      %1241 = vmatprep.subr.mxu0 0.0
      %1242 = vmatpush1.msra.mxu0 0.0
      %1243 = vmatprep.subr.mxu0 0.0
      %1244 = vmatpush1.msra.mxu0 0.0
      %1245 = vmatprep.subr.mxu0 0.0
      %1246 = vmatpush1.msra.mxu0 0.0
      %1247 = vmatprep.subr.mxu0 0.0
      %1248 = vmatpush1.msra.mxu0 0.0
      %1249 = vmatprep.subr.mxu0 0.0
      %1250 = vmatpush1.msra.mxu0 0.0
      %1251 = vmatprep.subr.mxu0 0.0
      %1252 = vmatpush1.msra.mxu0 0.0
      %1253 = vmatprep.subr.mxu0 0.0
      %1254 = vmatpush1.msra.mxu0 0.0
      %1255 = vmatprep.mubr.f32.mxu0 0.0
      %1256 = vmatmul.mubr.f32.gmra.mrb[0].mxu0 %v1166
      %v1257 = vpop.f32.mrb[0].mxu0
      %v1258 = vadd.f32 0.0, %v1257
      %v1259 = vpop.f32.mrb[0].mxu0
      %1260 = vmatprep.mubr.f32.mxu0 0.0
      %1261 = vmatmul.mubr.f32.gmra.mrb[0].mxu0 %v1167
      %v1262 = vpop.f32.mrb[0].mxu0
      %v1263 = vadd.f32 0.0, %v1262
      %v1264 = vpop.f32.mrb[0].mxu0
      %1265 = vmatprep.mubr.f32.mxu0 0.0
      %1266 = vmatmul.mubr.f32.gmra.mrb[0].mxu0 %v1168
      %v1267 = vpop.f32.mrb[0].mxu0
      %v1268 = vadd.f32 0.0, %v1267
      %v1269 = vpop.f32.mrb[0].mxu0
      %1270 = vmatprep.mubr.f32.mxu0 0.0
      %1271 = vmatmul.mubr.f32.gmra.mrb[0].mxu0 %v1169
      %v1272 = vpop.f32.mrb[0].mxu0
      %v1273 = vadd.f32 0.0, %v1272
      %v1274 = vpop.f32.mrb[0].mxu0
      %1275 = vmatprep.mubr.f32.mxu0 0.0
      %1276 = vmatmul.mubr.f32.gmra.mrb[0].mxu0 %v1170
      %v1277 = vpop.f32.mrb[0].mxu0
      %v1278 = vadd.f32 0.0, %v1277
      %v1279 = vpop.f32.mrb[0].mxu0
      %1280 = vmatprep.mubr.f32.mxu0 0.0
      %1281 = vmatmul.mubr.f32.gmra.mrb[0].mxu0 %v1171
      %v1282 = vpop.f32.mrb[0].mxu0
      %v1283 = vadd.f32 0.0, %v1282
      %v1284 = vpop.f32.mrb[0].mxu0
      %1285 = vmatprep.mubr.f32.mxu0 0.0
      %1286 = vmatmul.mubr.f32.gmra.mrb[0].mxu0 %v1172
      %v1287 = vpop.f32.mrb[0].mxu0
      %v1288 = vadd.f32 0.0, %v1287
      %v1289 = vpop.f32.mrb[0].mxu0
      %1290 = vmatprep.mubr.f32.mxu0 0.0
      %1291 = vmatmul.mubr.f32.gmra.mrb[0].mxu0 %v1173
      %v1292 = vpop.f32.mrb[0].mxu0
      %v1293 = vadd.f32 0.0, %v1292
      %v1294 = vpop.f32.mrb[0].mxu0
      %1295 = vdwg.mxu0
      %v1296 = vadd.f32 %v1157, %v1258
      %v1297 = vadd.f32 %v1158, %v1263
      %v1298 = vadd.f32 %v1159, %v1268
      %v1299 = vadd.f32 %v1160, %v1273
      %v1300 = vadd.f32 %v1161, %v1278
      %v1301 = vadd.f32 %v1162, %v1283
      %v1302 = vadd.f32 %v1163, %v1288
      %v1303 = vadd.f32 %v1164, %v1293
      %v1304 = vld [vmem:[%s1165 + $0x1] sm:$0xff]
      %v1305 = vld [vmem:[%s1165 + $0x11] sm:$0xff]
      %v1306 = vld [vmem:[%s1165 + $0x21] sm:$0xff]
      %v1307 = vld [vmem:[%s1165 + $0x31] sm:$0xff]
      %v1308 = vld [vmem:[%s1165 + $0x41] sm:$0xff]
      %v1309 = vld [vmem:[%s1165 + $0x51] sm:$0xff]
      %v1310 = vld [vmem:[%s1165 + $0x61] sm:$0xff]
      %v1311 = vld [vmem:[%s1165 + $0x71] sm:$0xff]
      %s1312 = scalar_lea.vmem %s3, 896
      %v1313 = vld [vmem:[%s1312] sm:$0xff]
      %v1314 = vld [vmem:[%s1312 + $0x8] sm:$0xff]
      %v1315 = vld [vmem:[%s1312 + $0x10] sm:$0xff]
      %v1316 = vld [vmem:[%s1312 + $0x18] sm:$0xff]
      %v1317 = vld [vmem:[%s1312 + $0x20] sm:$0xff]
      %v1318 = vld [vmem:[%s1312 + $0x28] sm:$0xff]
      %v1319 = vld [vmem:[%s1312 + $0x30] sm:$0xff]
      %v1320 = vld [vmem:[%s1312 + $0x38] sm:$0xff]
      %v1321 = vld [vmem:[%s1312 + $0x40] sm:$0xff]
      %v1322 = vld [vmem:[%s1312 + $0x48] sm:$0xff]
      %v1323 = vld [vmem:[%s1312 + $0x50] sm:$0xff]
      %v1324 = vld [vmem:[%s1312 + $0x58] sm:$0xff]
      %v1325 = vld [vmem:[%s1312 + $0x60] sm:$0xff]
      %v1326 = vld [vmem:[%s1312 + $0x68] sm:$0xff]
      %v1327 = vld [vmem:[%s1312 + $0x70] sm:$0xff]
      %v1328 = vld [vmem:[%s1312 + $0x78] sm:$0xff]
      %1329 = vmatprep.subr.mxu0 0.0
      %1330 = vmatpush1.msra.mxu0 %v1313
      %1331 = vmatprep.subr.mxu0 0.0
      %1332 = vmatpush1.msra.mxu0 %v1314
      %1333 = vmatprep.subr.mxu0 0.0
      %1334 = vmatpush1.msra.mxu0 %v1315
      %1335 = vmatprep.subr.mxu0 0.0
      %1336 = vmatpush1.msra.mxu0 %v1316
      %1337 = vmatprep.subr.mxu0 0.0
      %1338 = vmatpush1.msra.mxu0 %v1317
      %1339 = vmatprep.subr.mxu0 0.0
      %1340 = vmatpush1.msra.mxu0 %v1318
      %1341 = vmatprep.subr.mxu0 0.0
      %1342 = vmatpush1.msra.mxu0 %v1319
      %1343 = vmatprep.subr.mxu0 0.0
      %1344 = vmatpush1.msra.mxu0 %v1320
      %1345 = vmatprep.subr.mxu0 0.0
      %1346 = vmatpush1.msra.mxu0 %v1321
      %1347 = vmatprep.subr.mxu0 0.0
      %1348 = vmatpush1.msra.mxu0 %v1322
      %1349 = vmatprep.subr.mxu0 0.0
      %1350 = vmatpush1.msra.mxu0 %v1323
      %1351 = vmatprep.subr.mxu0 0.0
      %1352 = vmatpush1.msra.mxu0 %v1324
      %1353 = vmatprep.subr.mxu0 0.0
      %1354 = vmatpush1.msra.mxu0 %v1325
      %1355 = vmatprep.subr.mxu0 0.0
      %1356 = vmatpush1.msra.mxu0 %v1326
      %1357 = vmatprep.subr.mxu0 0.0
      %1358 = vmatpush1.msra.mxu0 %v1327
      %1359 = vmatprep.subr.mxu0 0.0
      %1360 = vmatpush1.msra.mxu0 %v1328
      %1361 = vmatprep.subr.mxu0 0.0
      %1362 = vmatpush1.msra.mxu0 0.0
      %1363 = vmatprep.subr.mxu0 0.0
      %1364 = vmatpush1.msra.mxu0 0.0
      %1365 = vmatprep.subr.mxu0 0.0
      %1366 = vmatpush1.msra.mxu0 0.0
      %1367 = vmatprep.subr.mxu0 0.0
      %1368 = vmatpush1.msra.mxu0 0.0
      %1369 = vmatprep.subr.mxu0 0.0
      %1370 = vmatpush1.msra.mxu0 0.0
      %1371 = vmatprep.subr.mxu0 0.0
      %1372 = vmatpush1.msra.mxu0 0.0
      %1373 = vmatprep.subr.mxu0 0.0
      %1374 = vmatpush1.msra.mxu0 0.0
      %1375 = vmatprep.subr.mxu0 0.0
      %1376 = vmatpush1.msra.mxu0 0.0
      %1377 = vmatprep.subr.mxu0 0.0
      %1378 = vmatpush1.msra.mxu0 0.0
      %1379 = vmatprep.subr.mxu0 0.0
      %1380 = vmatpush1.msra.mxu0 0.0
      %1381 = vmatprep.subr.mxu0 0.0
      %1382 = vmatpush1.msra.mxu0 0.0
      %1383 = vmatprep.subr.mxu0 0.0
      %1384 = vmatpush1.msra.mxu0 0.0
      %1385 = vmatprep.subr.mxu0 0.0
      %1386 = vmatpush1.msra.mxu0 0.0
      %1387 = vmatprep.subr.mxu0 0.0
      %1388 = vmatpush1.msra.mxu0 0.0
      %1389 = vmatprep.subr.mxu0 0.0
      %1390 = vmatpush1.msra.mxu0 0.0
      %1391 = vmatprep.subr.mxu0 0.0
      %1392 = vmatpush1.msra.mxu0 0.0
      %1393 = vmatprep.mubr.f32.mxu0 0.0
      %1394 = vmatmul.mubr.f32.gmra.mrb[0].mxu0 %v1304
      %v1395 = vpop.f32.mrb[0].mxu0
      %v1396 = vadd.f32 0.0, %v1395
      %v1397 = vpop.f32.mrb[0].mxu0
      %1398 = vmatprep.mubr.f32.mxu0 0.0
      %1399 = vmatmul.mubr.f32.gmra.mrb[0].mxu0 %v1305
      %v1400 = vpop.f32.mrb[0].mxu0
      %v1401 = vadd.f32 0.0, %v1400
      %v1402 = vpop.f32.mrb[0].mxu0
      %1403 = vmatprep.mubr.f32.mxu0 0.0
      %1404 = vmatmul.mubr.f32.gmra.mrb[0].mxu0 %v1306
      %v1405 = vpop.f32.mrb[0].mxu0
      %v1406 = vadd.f32 0.0, %v1405
      %v1407 = vpop.f32.mrb[0].mxu0
      %1408 = vmatprep.mubr.f32.mxu0 0.0
      %1409 = vmatmul.mubr.f32.gmra.mrb[0].mxu0 %v1307
      %v1410 = vpop.f32.mrb[0].mxu0
      %v1411 = vadd.f32 0.0, %v1410
      %v1412 = vpop.f32.mrb[0].mxu0
      %1413 = vmatprep.mubr.f32.mxu0 0.0
      %1414 = vmatmul.mubr.f32.gmra.mrb[0].mxu0 %v1308
      %v1415 = vpop.f32.mrb[0].mxu0
      %v1416 = vadd.f32 0.0, %v1415
      %v1417 = vpop.f32.mrb[0].mxu0
      %1418 = vmatprep.mubr.f32.mxu0 0.0
      %1419 = vmatmul.mubr.f32.gmra.mrb[0].mxu0 %v1309
      %v1420 = vpop.f32.mrb[0].mxu0
      %v1421 = vadd.f32 0.0, %v1420
      %v1422 = vpop.f32.mrb[0].mxu0
      %1423 = vmatprep.mubr.f32.mxu0 0.0
      %1424 = vmatmul.mubr.f32.gmra.mrb[0].mxu0 %v1310
      %v1425 = vpop.f32.mrb[0].mxu0
      %v1426 = vadd.f32 0.0, %v1425
      %v1427 = vpop.f32.mrb[0].mxu0
      %1428 = vmatprep.mubr.f32.mxu0 0.0
      %1429 = vmatmul.mubr.f32.gmra.mrb[0].mxu0 %v1311
      %v1430 = vpop.f32.mrb[0].mxu0
      %v1431 = vadd.f32 0.0, %v1430
      %v1432 = vpop.f32.mrb[0].mxu0
      %1433 = vdwg.mxu0
      %v1434 = vadd.f32 %v1296, %v1396
      %v1435 = vadd.f32 %v1297, %v1401
      %v1436 = vadd.f32 %v1298, %v1406
      %v1437 = vadd.f32 %v1299, %v1411
      %v1438 = vadd.f32 %v1300, %v1416
      %v1439 = vadd.f32 %v1301, %v1421
      %v1440 = vadd.f32 %v1302, %v1426
      %v1441 = vadd.f32 %v1303, %v1431
      %v1442 = vld [vmem:[%s1165 + $0x2] sm:$0xff]
      %v1443 = vld [vmem:[%s1165 + $0x12] sm:$0xff]
      %v1444 = vld [vmem:[%s1165 + $0x22] sm:$0xff]
      %v1445 = vld [vmem:[%s1165 + $0x32] sm:$0xff]
      %v1446 = vld [vmem:[%s1165 + $0x42] sm:$0xff]
      %v1447 = vld [vmem:[%s1165 + $0x52] sm:$0xff]
      %v1448 = vld [vmem:[%s1165 + $0x62] sm:$0xff]
      %v1449 = vld [vmem:[%s1165 + $0x72] sm:$0xff]
      %s1450 = scalar_lea.vmem %s3, 1024
      %v1451 = vld [vmem:[%s1450] sm:$0xff]
      %v1452 = vld [vmem:[%s1450 + $0x8] sm:$0xff]
      %v1453 = vld [vmem:[%s1450 + $0x10] sm:$0xff]
      %v1454 = vld [vmem:[%s1450 + $0x18] sm:$0xff]
      %v1455 = vld [vmem:[%s1450 + $0x20] sm:$0xff]
      %v1456 = vld [vmem:[%s1450 + $0x28] sm:$0xff]
      %v1457 = vld [vmem:[%s1450 + $0x30] sm:$0xff]
      %v1458 = vld [vmem:[%s1450 + $0x38] sm:$0xff]
      %v1459 = vld [vmem:[%s1450 + $0x40] sm:$0xff]
      %v1460 = vld [vmem:[%s1450 + $0x48] sm:$0xff]
      %v1461 = vld [vmem:[%s1450 + $0x50] sm:$0xff]
      %v1462 = vld [vmem:[%s1450 + $0x58] sm:$0xff]
      %v1463 = vld [vmem:[%s1450 + $0x60] sm:$0xff]
      %v1464 = vld [vmem:[%s1450 + $0x68] sm:$0xff]
      %v1465 = vld [vmem:[%s1450 + $0x70] sm:$0xff]
      %v1466 = vld [vmem:[%s1450 + $0x78] sm:$0xff]
      %1467 = vmatprep.subr.mxu0 0.0
      %1468 = vmatpush1.msra.mxu0 %v1451
      %1469 = vmatprep.subr.mxu0 0.0
      %1470 = vmatpush1.msra.mxu0 %v1452
      %1471 = vmatprep.subr.mxu0 0.0
      %1472 = vmatpush1.msra.mxu0 %v1453
      %1473 = vmatprep.subr.mxu0 0.0
      %1474 = vmatpush1.msra.mxu0 %v1454
      %1475 = vmatprep.subr.mxu0 0.0
      %1476 = vmatpush1.msra.mxu0 %v1455
      %1477 = vmatprep.subr.mxu0 0.0
      %1478 = vmatpush1.msra.mxu0 %v1456
      %1479 = vmatprep.subr.mxu0 0.0
      %1480 = vmatpush1.msra.mxu0 %v1457
      %1481 = vmatprep.subr.mxu0 0.0
      %1482 = vmatpush1.msra.mxu0 %v1458
      %1483 = vmatprep.subr.mxu0 0.0
      %1484 = vmatpush1.msra.mxu0 %v1459
      %1485 = vmatprep.subr.mxu0 0.0
      %1486 = vmatpush1.msra.mxu0 %v1460
      %1487 = vmatprep.subr.mxu0 0.0
      %1488 = vmatpush1.msra.mxu0 %v1461
      %1489 = vmatprep.subr.mxu0 0.0
      %1490 = vmatpush1.msra.mxu0 %v1462
      %1491 = vmatprep.subr.mxu0 0.0
      %1492 = vmatpush1.msra.mxu0 %v1463
      %1493 = vmatprep.subr.mxu0 0.0
      %1494 = vmatpush1.msra.mxu0 %v1464
      %1495 = vmatprep.subr.mxu0 0.0
      %1496 = vmatpush1.msra.mxu0 %v1465
      %1497 = vmatprep.subr.mxu0 0.0
      %1498 = vmatpush1.msra.mxu0 %v1466
      %1499 = vmatprep.subr.mxu0 0.0
      %1500 = vmatpush1.msra.mxu0 0.0
      %1501 = vmatprep.subr.mxu0 0.0
      %1502 = vmatpush1.msra.mxu0 0.0
      %1503 = vmatprep.subr.mxu0 0.0
      %1504 = vmatpush1.msra.mxu0 0.0
      %1505 = vmatprep.subr.mxu0 0.0
      %1506 = vmatpush1.msra.mxu0 0.0
      %1507 = vmatprep.subr.mxu0 0.0
      %1508 = vmatpush1.msra.mxu0 0.0
      %1509 = vmatprep.subr.mxu0 0.0
      %1510 = vmatpush1.msra.mxu0 0.0
      %1511 = vmatprep.subr.mxu0 0.0
      %1512 = vmatpush1.msra.mxu0 0.0
      %1513 = vmatprep.subr.mxu0 0.0
      %1514 = vmatpush1.msra.mxu0 0.0
      %1515 = vmatprep.subr.mxu0 0.0
      %1516 = vmatpush1.msra.mxu0 0.0
      %1517 = vmatprep.subr.mxu0 0.0
      %1518 = vmatpush1.msra.mxu0 0.0
      %1519 = vmatprep.subr.mxu0 0.0
      %1520 = vmatpush1.msra.mxu0 0.0
      %1521 = vmatprep.subr.mxu0 0.0
      %1522 = vmatpush1.msra.mxu0 0.0
      %1523 = vmatprep.subr.mxu0 0.0
      %1524 = vmatpush1.msra.mxu0 0.0
      %1525 = vmatprep.subr.mxu0 0.0
      %1526 = vmatpush1.msra.mxu0 0.0
      %1527 = vmatprep.subr.mxu0 0.0
      %1528 = vmatpush1.msra.mxu0 0.0
      %1529 = vmatprep.subr.mxu0 0.0
      %1530 = vmatpush1.msra.mxu0 0.0
      %1531 = vmatprep.mubr.f32.mxu0 0.0
      %1532 = vmatmul.mubr.f32.gmra.mrb[0].mxu0 %v1442
      %v1533 = vpop.f32.mrb[0].mxu0
      %v1534 = vadd.f32 0.0, %v1533
      %v1535 = vpop.f32.mrb[0].mxu0
      %1536 = vmatprep.mubr.f32.mxu0 0.0
      %1537 = vmatmul.mubr.f32.gmra.mrb[0].mxu0 %v1443
      %v1538 = vpop.f32.mrb[0].mxu0
      %v1539 = vadd.f32 0.0, %v1538
      %v1540 = vpop.f32.mrb[0].mxu0
      %1541 = vmatprep.mubr.f32.mxu0 0.0
      %1542 = vmatmul.mubr.f32.gmra.mrb[0].mxu0 %v1444
      %v1543 = vpop.f32.mrb[0].mxu0
      %v1544 = vadd.f32 0.0, %v1543
      %v1545 = vpop.f32.mrb[0].mxu0
      %1546 = vmatprep.mubr.f32.mxu0 0.0
      %1547 = vmatmul.mubr.f32.gmra.mrb[0].mxu0 %v1445
      %v1548 = vpop.f32.mrb[0].mxu0
      %v1549 = vadd.f32 0.0, %v1548
      %v1550 = vpop.f32.mrb[0].mxu0
      %1551 = vmatprep.mubr.f32.mxu0 0.0
      %1552 = vmatmul.mubr.f32.gmra.mrb[0].mxu0 %v1446
      %v1553 = vpop.f32.mrb[0].mxu0
      %v1554 = vadd.f32 0.0, %v1553
      %v1555 = vpop.f32.mrb[0].mxu0
      %1556 = vmatprep.mubr.f32.mxu0 0.0
      %1557 = vmatmul.mubr.f32.gmra.mrb[0].mxu0 %v1447
      %v1558 = vpop.f32.mrb[0].mxu0
      %v1559 = vadd.f32 0.0, %v1558
      %v1560 = vpop.f32.mrb[0].mxu0
      %1561 = vmatprep.mubr.f32.mxu0 0.0
      %1562 = vmatmul.mubr.f32.gmra.mrb[0].mxu0 %v1448
      %v1563 = vpop.f32.mrb[0].mxu0
      %v1564 = vadd.f32 0.0, %v1563
      %v1565 = vpop.f32.mrb[0].mxu0
      %1566 = vmatprep.mubr.f32.mxu0 0.0
      %1567 = vmatmul.mubr.f32.gmra.mrb[0].mxu0 %v1449
      %v1568 = vpop.f32.mrb[0].mxu0
      %v1569 = vadd.f32 0.0, %v1568
      %v1570 = vpop.f32.mrb[0].mxu0
      %1571 = vdwg.mxu0
      %v1572 = vadd.f32 %v1434, %v1534
      %v1573 = vadd.f32 %v1435, %v1539
      %v1574 = vadd.f32 %v1436, %v1544
      %v1575 = vadd.f32 %v1437, %v1549
      %v1576 = vadd.f32 %v1438, %v1554
      %v1577 = vadd.f32 %v1439, %v1559
      %v1578 = vadd.f32 %v1440, %v1564
      %v1579 = vadd.f32 %v1441, %v1569
      %v1580 = vld [vmem:[%s4] sm:$0x1]
      %v1582 = vlaneseq
      %v1583 = vshrl.u32 %v1582, 7
      %v1584 = vsub.s32 0, %v1583
      %v1585 = vrot.slane %v1580, %v1584
      %v1587 = vmul.f32 %v1572, %v1585
      %v1588 = vmul.f32 %v1573, %v1585
      %v1589 = vmul.f32 %v1574, %v1585
      %v1590 = vmul.f32 %v1575, %v1585
      %v1591 = vmul.f32 %v1576, %v1585
      %v1592 = vmul.f32 %v1577, %v1585
      %v1593 = vmul.f32 %v1578, %v1585
      %v1594 = vmul.f32 %v1579, %v1585
      %v1595 = vld [vmem:[%s5] sm:$0x1]
      %v1597 = vlaneseq
      %v1598 = vshrl.u32 %v1597, 7
      %v1599 = vsub.s32 0, %v1598
      %v1600 = vrot.slane %v1595, %v1599
      %v1602 = vadd.f32 %v1587, %v1600
      %v1603 = vadd.f32 %v1588, %v1600
      %v1604 = vadd.f32 %v1589, %v1600
      %v1605 = vadd.f32 %v1590, %v1600
      %v1606 = vadd.f32 %v1591, %v1600
      %v1607 = vadd.f32 %v1592, %v1600
      %v1608 = vadd.f32 %v1593, %v1600
      %v1609 = vadd.f32 %v1594, %v1600
      %v1610 = vmax.f32 %v1602, 0.0
      %v1611 = vmax.f32 %v1603, 0.0
      %v1612 = vmax.f32 %v1604, 0.0
      %v1613 = vmax.f32 %v1605, 0.0
      %v1614 = vmax.f32 %v1606, 0.0
      %v1615 = vmax.f32 %v1607, 0.0
      %v1616 = vmax.f32 %v1608, 0.0
      %v1617 = vmax.f32 %v1609, 0.0
      %1618 = vst [vmem:[#allocation3] sm:$0xff] 0.0
      %1619 = vst [vmem:[#allocation3 + $0x8] sm:$0x3] 0.0
      %1620 = vst [vmem:[#allocation3 + $0x10] sm:$0xff] 0.0
      %1621 = vst [vmem:[#allocation3 + $0x18] sm:$0x3] 0.0
      %1622 = vst [vmem:[#allocation3 + $0x20] sm:$0xff] 0.0
      %1623 = vst [vmem:[#allocation3 + $0x28] sm:$0x3] 0.0
      %1624 = vst [vmem:[#allocation3 + $0x30] sm:$0xff] 0.0
      %1625 = vst [vmem:[#allocation3 + $0x38] sm:$0x3] 0.0
      %1626 = vst [vmem:[#allocation3 + $0x40] sm:$0xff] 0.0
      %1627 = vst [vmem:[#allocation3 + $0x48] sm:$0x3] 0.0
      %1628 = vst [vmem:[#allocation3 + $0x50] sm:$0xff] 0.0
      %1629 = vst [vmem:[#allocation3 + $0x58] sm:$0x3] 0.0
      %1630 = vst [vmem:[#allocation3 + $0x60] sm:$0xff] 0.0
      %1631 = vst [vmem:[#allocation3 + $0x68] sm:$0x3] 0.0
      %1632 = vst [vmem:[#allocation3 + $0x70] sm:$0xff] 0.0
      %1633 = vst [vmem:[#allocation3 + $0x78] sm:$0x3] 0.0
      %1634 = vst [vmem:[#allocation3 + $0x80] sm:$0xff] 0.0
      %1635 = vst [vmem:[#allocation3 + $0x88] sm:$0x3] 0.0
      %1636 = vst [vmem:[#allocation3 + $0x90] sm:$0xff] 0.0
      %1637 = vst [vmem:[#allocation3 + $0x98] sm:$0x3] 0.0
      %s1638 = scalar_lea.vmem [#allocation3], 16
      %1639 = vst [vmem:[%s1638 + $0x1] sm:$0xff] %v1610
      %1640 = vst [vmem:[%s1638 + $0x11] sm:$0xff] %v1611
      %1641 = vst [vmem:[%s1638 + $0x21] sm:$0xff] %v1612
      %1642 = vst [vmem:[%s1638 + $0x31] sm:$0xff] %v1613
      %1643 = vst [vmem:[%s1638 + $0x41] sm:$0xff] %v1614
      %1644 = vst [vmem:[%s1638 + $0x51] sm:$0xff] %v1615
      %1645 = vst [vmem:[%s1638 + $0x61] sm:$0xff] %v1616
      %1646 = vst [vmem:[%s1638 + $0x71] sm:$0xff] %v1617
      %v1647 = vld [vmem:[%s273] sm:$0xff]
      %v1648 = vld [vmem:[%s273 + $0x8] sm:$0xff]
      %v1649 = vld [vmem:[%s273 + $0x10] sm:$0xff]
      %v1650 = vld [vmem:[%s273 + $0x18] sm:$0xff]
      %v1651 = vld [vmem:[%s273 + $0x20] sm:$0xff]
      %v1652 = vld [vmem:[%s273 + $0x28] sm:$0xff]
      %v1653 = vld [vmem:[%s273 + $0x30] sm:$0xff]
      %v1654 = vld [vmem:[%s273 + $0x38] sm:$0xff]
      %v1655 = vld [vmem:[#allocation3] sm:$0xff]
      %v1656 = vld [vmem:[#allocation3 + $0x10] sm:$0xff]
      %v1657 = vld [vmem:[#allocation3 + $0x20] sm:$0xff]
      %v1658 = vld [vmem:[#allocation3 + $0x30] sm:$0xff]
      %v1659 = vld [vmem:[#allocation3 + $0x40] sm:$0xff]
      %v1660 = vld [vmem:[#allocation3 + $0x50] sm:$0xff]
      %v1661 = vld [vmem:[#allocation3 + $0x60] sm:$0xff]
      %v1662 = vld [vmem:[#allocation3 + $0x70] sm:$0xff]
      %v1663 = vld [vmem:[%s6] sm:$0xff]
      %v1664 = vld [vmem:[%s6 + $0x8] sm:$0xff]
      %v1665 = vld [vmem:[%s6 + $0x10] sm:$0xff]
      %v1666 = vld [vmem:[%s6 + $0x18] sm:$0xff]
      %v1667 = vld [vmem:[%s6 + $0x20] sm:$0xff]
      %v1668 = vld [vmem:[%s6 + $0x28] sm:$0xff]
      %v1669 = vld [vmem:[%s6 + $0x30] sm:$0xff]
      %v1670 = vld [vmem:[%s6 + $0x38] sm:$0xff]
      %v1671 = vld [vmem:[%s6 + $0x40] sm:$0xff]
      %v1672 = vld [vmem:[%s6 + $0x48] sm:$0xff]
      %v1673 = vld [vmem:[%s6 + $0x50] sm:$0xff]
      %v1674 = vld [vmem:[%s6 + $0x58] sm:$0xff]
      %v1675 = vld [vmem:[%s6 + $0x60] sm:$0xff]
      %v1676 = vld [vmem:[%s6 + $0x68] sm:$0xff]
      %v1677 = vld [vmem:[%s6 + $0x70] sm:$0xff]
      %v1678 = vld [vmem:[%s6 + $0x78] sm:$0xff]
      %1679 = vmatprep.subr.mxu0 0.0
      %1680 = vmatpush1.msra.mxu0 %v1663
      %1681 = vmatprep.subr.mxu0 0.0
      %1682 = vmatpush1.msra.mxu0 %v1664
      %1683 = vmatprep.subr.mxu0 0.0
      %1684 = vmatpush1.msra.mxu0 %v1665
      %1685 = vmatprep.subr.mxu0 0.0
      %1686 = vmatpush1.msra.mxu0 %v1666
      %1687 = vmatprep.subr.mxu0 0.0
      %1688 = vmatpush1.msra.mxu0 %v1667
      %1689 = vmatprep.subr.mxu0 0.0
      %1690 = vmatpush1.msra.mxu0 %v1668
      %1691 = vmatprep.subr.mxu0 0.0
      %1692 = vmatpush1.msra.mxu0 %v1669
      %1693 = vmatprep.subr.mxu0 0.0
      %1694 = vmatpush1.msra.mxu0 %v1670
      %1695 = vmatprep.subr.mxu0 0.0
      %1696 = vmatpush1.msra.mxu0 %v1671
      %1697 = vmatprep.subr.mxu0 0.0
      %1698 = vmatpush1.msra.mxu0 %v1672
      %1699 = vmatprep.subr.mxu0 0.0
      %1700 = vmatpush1.msra.mxu0 %v1673
      %1701 = vmatprep.subr.mxu0 0.0
      %1702 = vmatpush1.msra.mxu0 %v1674
      %1703 = vmatprep.subr.mxu0 0.0
      %1704 = vmatpush1.msra.mxu0 %v1675
      %1705 = vmatprep.subr.mxu0 0.0
      %1706 = vmatpush1.msra.mxu0 %v1676
      %1707 = vmatprep.subr.mxu0 0.0
      %1708 = vmatpush1.msra.mxu0 %v1677
      %1709 = vmatprep.subr.mxu0 0.0
      %1710 = vmatpush1.msra.mxu0 %v1678
      %1711 = vmatprep.subr.mxu0 0.0
      %1712 = vmatpush1.msra.mxu0 0.0
      %1713 = vmatprep.subr.mxu0 0.0
      %1714 = vmatpush1.msra.mxu0 0.0
      %1715 = vmatprep.subr.mxu0 0.0
      %1716 = vmatpush1.msra.mxu0 0.0
      %1717 = vmatprep.subr.mxu0 0.0
      %1718 = vmatpush1.msra.mxu0 0.0
      %1719 = vmatprep.subr.mxu0 0.0
      %1720 = vmatpush1.msra.mxu0 0.0
      %1721 = vmatprep.subr.mxu0 0.0
      %1722 = vmatpush1.msra.mxu0 0.0
      %1723 = vmatprep.subr.mxu0 0.0
      %1724 = vmatpush1.msra.mxu0 0.0
      %1725 = vmatprep.subr.mxu0 0.0
      %1726 = vmatpush1.msra.mxu0 0.0
      %1727 = vmatprep.subr.mxu0 0.0
      %1728 = vmatpush1.msra.mxu0 0.0
      %1729 = vmatprep.subr.mxu0 0.0
      %1730 = vmatpush1.msra.mxu0 0.0
      %1731 = vmatprep.subr.mxu0 0.0
      %1732 = vmatpush1.msra.mxu0 0.0
      %1733 = vmatprep.subr.mxu0 0.0
      %1734 = vmatpush1.msra.mxu0 0.0
      %1735 = vmatprep.subr.mxu0 0.0
      %1736 = vmatpush1.msra.mxu0 0.0
      %1737 = vmatprep.subr.mxu0 0.0
      %1738 = vmatpush1.msra.mxu0 0.0
      %1739 = vmatprep.subr.mxu0 0.0
      %1740 = vmatpush1.msra.mxu0 0.0
      %1741 = vmatprep.subr.mxu0 0.0
      %1742 = vmatpush1.msra.mxu0 0.0
      %1743 = vmatprep.mubr.f32.mxu0 0.0
      %1744 = vmatmul.mubr.f32.gmra.mrb[0].mxu0 %v1655
      %v1745 = vpop.f32.mrb[0].mxu0
      %v1746 = vadd.f32 0.0, %v1745
      %v1747 = vpop.f32.mrb[0].mxu0
      %1748 = vmatprep.mubr.f32.mxu0 0.0
      %1749 = vmatmul.mubr.f32.gmra.mrb[0].mxu0 %v1656
      %v1750 = vpop.f32.mrb[0].mxu0
      %v1751 = vadd.f32 0.0, %v1750
      %v1752 = vpop.f32.mrb[0].mxu0
      %1753 = vmatprep.mubr.f32.mxu0 0.0
      %1754 = vmatmul.mubr.f32.gmra.mrb[0].mxu0 %v1657
      %v1755 = vpop.f32.mrb[0].mxu0
      %v1756 = vadd.f32 0.0, %v1755
      %v1757 = vpop.f32.mrb[0].mxu0
      %1758 = vmatprep.mubr.f32.mxu0 0.0
      %1759 = vmatmul.mubr.f32.gmra.mrb[0].mxu0 %v1658
      %v1760 = vpop.f32.mrb[0].mxu0
      %v1761 = vadd.f32 0.0, %v1760
      %v1762 = vpop.f32.mrb[0].mxu0
      %1763 = vmatprep.mubr.f32.mxu0 0.0
      %1764 = vmatmul.mubr.f32.gmra.mrb[0].mxu0 %v1659
      %v1765 = vpop.f32.mrb[0].mxu0
      %v1766 = vadd.f32 0.0, %v1765
      %v1767 = vpop.f32.mrb[0].mxu0
      %1768 = vmatprep.mubr.f32.mxu0 0.0
      %1769 = vmatmul.mubr.f32.gmra.mrb[0].mxu0 %v1660
      %v1770 = vpop.f32.mrb[0].mxu0
      %v1771 = vadd.f32 0.0, %v1770
      %v1772 = vpop.f32.mrb[0].mxu0
      %1773 = vmatprep.mubr.f32.mxu0 0.0
      %1774 = vmatmul.mubr.f32.gmra.mrb[0].mxu0 %v1661
      %v1775 = vpop.f32.mrb[0].mxu0
      %v1776 = vadd.f32 0.0, %v1775
      %v1777 = vpop.f32.mrb[0].mxu0
      %1778 = vmatprep.mubr.f32.mxu0 0.0
      %1779 = vmatmul.mubr.f32.gmra.mrb[0].mxu0 %v1662
      %v1780 = vpop.f32.mrb[0].mxu0
      %v1781 = vadd.f32 0.0, %v1780
      %v1782 = vpop.f32.mrb[0].mxu0
      %1783 = vdwg.mxu0
      %v1784 = vadd.f32 %v1647, %v1746
      %v1785 = vadd.f32 %v1648, %v1751
      %v1786 = vadd.f32 %v1649, %v1756
      %v1787 = vadd.f32 %v1650, %v1761
      %v1788 = vadd.f32 %v1651, %v1766
      %v1789 = vadd.f32 %v1652, %v1771
      %v1790 = vadd.f32 %v1653, %v1776
      %v1791 = vadd.f32 %v1654, %v1781
      %v1792 = vld [vmem:[#allocation3 + $0x1] sm:$0xff]
      %v1793 = vld [vmem:[#allocation3 + $0x11] sm:$0xff]
      %v1794 = vld [vmem:[#allocation3 + $0x21] sm:$0xff]
      %v1795 = vld [vmem:[#allocation3 + $0x31] sm:$0xff]
      %v1796 = vld [vmem:[#allocation3 + $0x41] sm:$0xff]
      %v1797 = vld [vmem:[#allocation3 + $0x51] sm:$0xff]
      %v1798 = vld [vmem:[#allocation3 + $0x61] sm:$0xff]
      %v1799 = vld [vmem:[#allocation3 + $0x71] sm:$0xff]
      %s1800 = scalar_lea.vmem %s6, 128
      %v1801 = vld [vmem:[%s1800] sm:$0xff]
      %v1802 = vld [vmem:[%s1800 + $0x8] sm:$0xff]
      %v1803 = vld [vmem:[%s1800 + $0x10] sm:$0xff]
      %v1804 = vld [vmem:[%s1800 + $0x18] sm:$0xff]
      %v1805 = vld [vmem:[%s1800 + $0x20] sm:$0xff]
      %v1806 = vld [vmem:[%s1800 + $0x28] sm:$0xff]
      %v1807 = vld [vmem:[%s1800 + $0x30] sm:$0xff]
      %v1808 = vld [vmem:[%s1800 + $0x38] sm:$0xff]
      %v1809 = vld [vmem:[%s1800 + $0x40] sm:$0xff]
      %v1810 = vld [vmem:[%s1800 + $0x48] sm:$0xff]
      %v1811 = vld [vmem:[%s1800 + $0x50] sm:$0xff]
      %v1812 = vld [vmem:[%s1800 + $0x58] sm:$0xff]
      %v1813 = vld [vmem:[%s1800 + $0x60] sm:$0xff]
      %v1814 = vld [vmem:[%s1800 + $0x68] sm:$0xff]
      %v1815 = vld [vmem:[%s1800 + $0x70] sm:$0xff]
      %v1816 = vld [vmem:[%s1800 + $0x78] sm:$0xff]
      %1817 = vmatprep.subr.mxu0 0.0
      %1818 = vmatpush1.msra.mxu0 %v1801
      %1819 = vmatprep.subr.mxu0 0.0
      %1820 = vmatpush1.msra.mxu0 %v1802
      %1821 = vmatprep.subr.mxu0 0.0
      %1822 = vmatpush1.msra.mxu0 %v1803
      %1823 = vmatprep.subr.mxu0 0.0
      %1824 = vmatpush1.msra.mxu0 %v1804
      %1825 = vmatprep.subr.mxu0 0.0
      %1826 = vmatpush1.msra.mxu0 %v1805
      %1827 = vmatprep.subr.mxu0 0.0
      %1828 = vmatpush1.msra.mxu0 %v1806
      %1829 = vmatprep.subr.mxu0 0.0
      %1830 = vmatpush1.msra.mxu0 %v1807
      %1831 = vmatprep.subr.mxu0 0.0
      %1832 = vmatpush1.msra.mxu0 %v1808
      %1833 = vmatprep.subr.mxu0 0.0
      %1834 = vmatpush1.msra.mxu0 %v1809
      %1835 = vmatprep.subr.mxu0 0.0
      %1836 = vmatpush1.msra.mxu0 %v1810
      %1837 = vmatprep.subr.mxu0 0.0
      %1838 = vmatpush1.msra.mxu0 %v1811
      %1839 = vmatprep.subr.mxu0 0.0
      %1840 = vmatpush1.msra.mxu0 %v1812
      %1841 = vmatprep.subr.mxu0 0.0
      %1842 = vmatpush1.msra.mxu0 %v1813
      %1843 = vmatprep.subr.mxu0 0.0
      %1844 = vmatpush1.msra.mxu0 %v1814
      %1845 = vmatprep.subr.mxu0 0.0
      %1846 = vmatpush1.msra.mxu0 %v1815
      %1847 = vmatprep.subr.mxu0 0.0
      %1848 = vmatpush1.msra.mxu0 %v1816
      %1849 = vmatprep.subr.mxu0 0.0
      %1850 = vmatpush1.msra.mxu0 0.0
      %1851 = vmatprep.subr.mxu0 0.0
      %1852 = vmatpush1.msra.mxu0 0.0
      %1853 = vmatprep.subr.mxu0 0.0
      %1854 = vmatpush1.msra.mxu0 0.0
      %1855 = vmatprep.subr.mxu0 0.0
      %1856 = vmatpush1.msra.mxu0 0.0
      %1857 = vmatprep.subr.mxu0 0.0
      %1858 = vmatpush1.msra.mxu0 0.0
      %1859 = vmatprep.subr.mxu0 0.0
      %1860 = vmatpush1.msra.mxu0 0.0
      %1861 = vmatprep.subr.mxu0 0.0
      %1862 = vmatpush1.msra.mxu0 0.0
      %1863 = vmatprep.subr.mxu0 0.0
      %1864 = vmatpush1.msra.mxu0 0.0
      %1865 = vmatprep.subr.mxu0 0.0
      %1866 = vmatpush1.msra.mxu0 0.0
      %1867 = vmatprep.subr.mxu0 0.0
      %1868 = vmatpush1.msra.mxu0 0.0
      %1869 = vmatprep.subr.mxu0 0.0
      %1870 = vmatpush1.msra.mxu0 0.0
      %1871 = vmatprep.subr.mxu0 0.0
      %1872 = vmatpush1.msra.mxu0 0.0
      %1873 = vmatprep.subr.mxu0 0.0
      %1874 = vmatpush1.msra.mxu0 0.0
      %1875 = vmatprep.subr.mxu0 0.0
      %1876 = vmatpush1.msra.mxu0 0.0
      %1877 = vmatprep.subr.mxu0 0.0
      %1878 = vmatpush1.msra.mxu0 0.0
      %1879 = vmatprep.subr.mxu0 0.0
      %1880 = vmatpush1.msra.mxu0 0.0
      %1881 = vmatprep.mubr.f32.mxu0 0.0
      %1882 = vmatmul.mubr.f32.gmra.mrb[0].mxu0 %v1792
      %v1883 = vpop.f32.mrb[0].mxu0
      %v1884 = vadd.f32 0.0, %v1883
      %v1885 = vpop.f32.mrb[0].mxu0
      %1886 = vmatprep.mubr.f32.mxu0 0.0
      %1887 = vmatmul.mubr.f32.gmra.mrb[0].mxu0 %v1793
      %v1888 = vpop.f32.mrb[0].mxu0
      %v1889 = vadd.f32 0.0, %v1888
      %v1890 = vpop.f32.mrb[0].mxu0
      %1891 = vmatprep.mubr.f32.mxu0 0.0
      %1892 = vmatmul.mubr.f32.gmra.mrb[0].mxu0 %v1794
      %v1893 = vpop.f32.mrb[0].mxu0
      %v1894 = vadd.f32 0.0, %v1893
      %v1895 = vpop.f32.mrb[0].mxu0
      %1896 = vmatprep.mubr.f32.mxu0 0.0
      %1897 = vmatmul.mubr.f32.gmra.mrb[0].mxu0 %v1795
      %v1898 = vpop.f32.mrb[0].mxu0
      %v1899 = vadd.f32 0.0, %v1898
      %v1900 = vpop.f32.mrb[0].mxu0
      %1901 = vmatprep.mubr.f32.mxu0 0.0
      %1902 = vmatmul.mubr.f32.gmra.mrb[0].mxu0 %v1796
      %v1903 = vpop.f32.mrb[0].mxu0
      %v1904 = vadd.f32 0.0, %v1903
      %v1905 = vpop.f32.mrb[0].mxu0
      %1906 = vmatprep.mubr.f32.mxu0 0.0
      %1907 = vmatmul.mubr.f32.gmra.mrb[0].mxu0 %v1797
      %v1908 = vpop.f32.mrb[0].mxu0
      %v1909 = vadd.f32 0.0, %v1908
      %v1910 = vpop.f32.mrb[0].mxu0
      %1911 = vmatprep.mubr.f32.mxu0 0.0
      %1912 = vmatmul.mubr.f32.gmra.mrb[0].mxu0 %v1798
      %v1913 = vpop.f32.mrb[0].mxu0
      %v1914 = vadd.f32 0.0, %v1913
      %v1915 = vpop.f32.mrb[0].mxu0
      %1916 = vmatprep.mubr.f32.mxu0 0.0
      %1917 = vmatmul.mubr.f32.gmra.mrb[0].mxu0 %v1799
      %v1918 = vpop.f32.mrb[0].mxu0
      %v1919 = vadd.f32 0.0, %v1918
      %v1920 = vpop.f32.mrb[0].mxu0
      %1921 = vdwg.mxu0
      %v1922 = vadd.f32 %v1784, %v1884
      %v1923 = vadd.f32 %v1785, %v1889
      %v1924 = vadd.f32 %v1786, %v1894
      %v1925 = vadd.f32 %v1787, %v1899
      %v1926 = vadd.f32 %v1788, %v1904
      %v1927 = vadd.f32 %v1789, %v1909
      %v1928 = vadd.f32 %v1790, %v1914
      %v1929 = vadd.f32 %v1791, %v1919
      %v1930 = vld [vmem:[#allocation3 + $0x2] sm:$0xff]
      %v1931 = vld [vmem:[#allocation3 + $0x12] sm:$0xff]
      %v1932 = vld [vmem:[#allocation3 + $0x22] sm:$0xff]
      %v1933 = vld [vmem:[#allocation3 + $0x32] sm:$0xff]
      %v1934 = vld [vmem:[#allocation3 + $0x42] sm:$0xff]
      %v1935 = vld [vmem:[#allocation3 + $0x52] sm:$0xff]
      %v1936 = vld [vmem:[#allocation3 + $0x62] sm:$0xff]
      %v1937 = vld [vmem:[#allocation3 + $0x72] sm:$0xff]
      %s1938 = scalar_lea.vmem %s6, 256
      %v1939 = vld [vmem:[%s1938] sm:$0xff]
      %v1940 = vld [vmem:[%s1938 + $0x8] sm:$0xff]
      %v1941 = vld [vmem:[%s1938 + $0x10] sm:$0xff]
      %v1942 = vld [vmem:[%s1938 + $0x18] sm:$0xff]
      %v1943 = vld [vmem:[%s1938 + $0x20] sm:$0xff]
      %v1944 = vld [vmem:[%s1938 + $0x28] sm:$0xff]
      %v1945 = vld [vmem:[%s1938 + $0x30] sm:$0xff]
      %v1946 = vld [vmem:[%s1938 + $0x38] sm:$0xff]
      %v1947 = vld [vmem:[%s1938 + $0x40] sm:$0xff]
      %v1948 = vld [vmem:[%s1938 + $0x48] sm:$0xff]
      %v1949 = vld [vmem:[%s1938 + $0x50] sm:$0xff]
      %v1950 = vld [vmem:[%s1938 + $0x58] sm:$0xff]
      %v1951 = vld [vmem:[%s1938 + $0x60] sm:$0xff]
      %v1952 = vld [vmem:[%s1938 + $0x68] sm:$0xff]
      %v1953 = vld [vmem:[%s1938 + $0x70] sm:$0xff]
      %v1954 = vld [vmem:[%s1938 + $0x78] sm:$0xff]
      %1955 = vmatprep.subr.mxu0 0.0
      %1956 = vmatpush1.msra.mxu0 %v1939
      %1957 = vmatprep.subr.mxu0 0.0
      %1958 = vmatpush1.msra.mxu0 %v1940
      %1959 = vmatprep.subr.mxu0 0.0
      %1960 = vmatpush1.msra.mxu0 %v1941
      %1961 = vmatprep.subr.mxu0 0.0
      %1962 = vmatpush1.msra.mxu0 %v1942
      %1963 = vmatprep.subr.mxu0 0.0
      %1964 = vmatpush1.msra.mxu0 %v1943
      %1965 = vmatprep.subr.mxu0 0.0
      %1966 = vmatpush1.msra.mxu0 %v1944
      %1967 = vmatprep.subr.mxu0 0.0
      %1968 = vmatpush1.msra.mxu0 %v1945
      %1969 = vmatprep.subr.mxu0 0.0
      %1970 = vmatpush1.msra.mxu0 %v1946
      %1971 = vmatprep.subr.mxu0 0.0
      %1972 = vmatpush1.msra.mxu0 %v1947
      %1973 = vmatprep.subr.mxu0 0.0
      %1974 = vmatpush1.msra.mxu0 %v1948
      %1975 = vmatprep.subr.mxu0 0.0
      %1976 = vmatpush1.msra.mxu0 %v1949
      %1977 = vmatprep.subr.mxu0 0.0
      %1978 = vmatpush1.msra.mxu0 %v1950
      %1979 = vmatprep.subr.mxu0 0.0
      %1980 = vmatpush1.msra.mxu0 %v1951
      %1981 = vmatprep.subr.mxu0 0.0
      %1982 = vmatpush1.msra.mxu0 %v1952
      %1983 = vmatprep.subr.mxu0 0.0
      %1984 = vmatpush1.msra.mxu0 %v1953
      %1985 = vmatprep.subr.mxu0 0.0
      %1986 = vmatpush1.msra.mxu0 %v1954
      %1987 = vmatprep.subr.mxu0 0.0
      %1988 = vmatpush1.msra.mxu0 0.0
      %1989 = vmatprep.subr.mxu0 0.0
      %1990 = vmatpush1.msra.mxu0 0.0
      %1991 = vmatprep.subr.mxu0 0.0
      %1992 = vmatpush1.msra.mxu0 0.0
      %1993 = vmatprep.subr.mxu0 0.0
      %1994 = vmatpush1.msra.mxu0 0.0
      %1995 = vmatprep.subr.mxu0 0.0
      %1996 = vmatpush1.msra.mxu0 0.0
      %1997 = vmatprep.subr.mxu0 0.0
      %1998 = vmatpush1.msra.mxu0 0.0
      %1999 = vmatprep.subr.mxu0 0.0
      %2000 = vmatpush1.msra.mxu0 0.0
      %2001 = vmatprep.subr.mxu0 0.0
      %2002 = vmatpush1.msra.mxu0 0.0
      %2003 = vmatprep.subr.mxu0 0.0
      %2004 = vmatpush1.msra.mxu0 0.0
      %2005 = vmatprep.subr.mxu0 0.0
      %2006 = vmatpush1.msra.mxu0 0.0
      %2007 = vmatprep.subr.mxu0 0.0
      %2008 = vmatpush1.msra.mxu0 0.0
      %2009 = vmatprep.subr.mxu0 0.0
      %2010 = vmatpush1.msra.mxu0 0.0
      %2011 = vmatprep.subr.mxu0 0.0
      %2012 = vmatpush1.msra.mxu0 0.0
      %2013 = vmatprep.subr.mxu0 0.0
      %2014 = vmatpush1.msra.mxu0 0.0
      %2015 = vmatprep.subr.mxu0 0.0
      %2016 = vmatpush1.msra.mxu0 0.0
      %2017 = vmatprep.subr.mxu0 0.0
      %2018 = vmatpush1.msra.mxu0 0.0
      %2019 = vmatprep.mubr.f32.mxu0 0.0
      %2020 = vmatmul.mubr.f32.gmra.mrb[0].mxu0 %v1930
      %v2021 = vpop.f32.mrb[0].mxu0
      %v2022 = vadd.f32 0.0, %v2021
      %v2023 = vpop.f32.mrb[0].mxu0
      %2024 = vmatprep.mubr.f32.mxu0 0.0
      %2025 = vmatmul.mubr.f32.gmra.mrb[0].mxu0 %v1931
      %v2026 = vpop.f32.mrb[0].mxu0
      %v2027 = vadd.f32 0.0, %v2026
      %v2028 = vpop.f32.mrb[0].mxu0
      %2029 = vmatprep.mubr.f32.mxu0 0.0
      %2030 = vmatmul.mubr.f32.gmra.mrb[0].mxu0 %v1932
      %v2031 = vpop.f32.mrb[0].mxu0
      %v2032 = vadd.f32 0.0, %v2031
      %v2033 = vpop.f32.mrb[0].mxu0
      %2034 = vmatprep.mubr.f32.mxu0 0.0
      %2035 = vmatmul.mubr.f32.gmra.mrb[0].mxu0 %v1933
      %v2036 = vpop.f32.mrb[0].mxu0
      %v2037 = vadd.f32 0.0, %v2036
      %v2038 = vpop.f32.mrb[0].mxu0
      %2039 = vmatprep.mubr.f32.mxu0 0.0
      %2040 = vmatmul.mubr.f32.gmra.mrb[0].mxu0 %v1934
      %v2041 = vpop.f32.mrb[0].mxu0
      %v2042 = vadd.f32 0.0, %v2041
      %v2043 = vpop.f32.mrb[0].mxu0
      %2044 = vmatprep.mubr.f32.mxu0 0.0
      %2045 = vmatmul.mubr.f32.gmra.mrb[0].mxu0 %v1935
      %v2046 = vpop.f32.mrb[0].mxu0
      %v2047 = vadd.f32 0.0, %v2046
      %v2048 = vpop.f32.mrb[0].mxu0
      %2049 = vmatprep.mubr.f32.mxu0 0.0
      %2050 = vmatmul.mubr.f32.gmra.mrb[0].mxu0 %v1936
      %v2051 = vpop.f32.mrb[0].mxu0
      %v2052 = vadd.f32 0.0, %v2051
      %v2053 = vpop.f32.mrb[0].mxu0
      %2054 = vmatprep.mubr.f32.mxu0 0.0
      %2055 = vmatmul.mubr.f32.gmra.mrb[0].mxu0 %v1937
      %v2056 = vpop.f32.mrb[0].mxu0
      %v2057 = vadd.f32 0.0, %v2056
      %v2058 = vpop.f32.mrb[0].mxu0
      %2059 = vdwg.mxu0
      %v2060 = vadd.f32 %v1922, %v2022
      %v2061 = vadd.f32 %v1923, %v2027
      %v2062 = vadd.f32 %v1924, %v2032
      %v2063 = vadd.f32 %v1925, %v2037
      %v2064 = vadd.f32 %v1926, %v2042
      %v2065 = vadd.f32 %v1927, %v2047
      %v2066 = vadd.f32 %v1928, %v2052
      %v2067 = vadd.f32 %v1929, %v2057
      %v2068 = vld [vmem:[%s1638] sm:$0xff]
      %v2069 = vld [vmem:[%s1638 + $0x10] sm:$0xff]
      %v2070 = vld [vmem:[%s1638 + $0x20] sm:$0xff]
      %v2071 = vld [vmem:[%s1638 + $0x30] sm:$0xff]
      %v2072 = vld [vmem:[%s1638 + $0x40] sm:$0xff]
      %v2073 = vld [vmem:[%s1638 + $0x50] sm:$0xff]
      %v2074 = vld [vmem:[%s1638 + $0x60] sm:$0xff]
      %v2075 = vld [vmem:[%s1638 + $0x70] sm:$0xff]
      %s2076 = scalar_lea.vmem %s6, 384
      %v2077 = vld [vmem:[%s2076] sm:$0xff]
      %v2078 = vld [vmem:[%s2076 + $0x8] sm:$0xff]
      %v2079 = vld [vmem:[%s2076 + $0x10] sm:$0xff]
      %v2080 = vld [vmem:[%s2076 + $0x18] sm:$0xff]
      %v2081 = vld [vmem:[%s2076 + $0x20] sm:$0xff]
      %v2082 = vld [vmem:[%s2076 + $0x28] sm:$0xff]
      %v2083 = vld [vmem:[%s2076 + $0x30] sm:$0xff]
      %v2084 = vld [vmem:[%s2076 + $0x38] sm:$0xff]
      %v2085 = vld [vmem:[%s2076 + $0x40] sm:$0xff]
      %v2086 = vld [vmem:[%s2076 + $0x48] sm:$0xff]
      %v2087 = vld [vmem:[%s2076 + $0x50] sm:$0xff]
      %v2088 = vld [vmem:[%s2076 + $0x58] sm:$0xff]
      %v2089 = vld [vmem:[%s2076 + $0x60] sm:$0xff]
      %v2090 = vld [vmem:[%s2076 + $0x68] sm:$0xff]
      %v2091 = vld [vmem:[%s2076 + $0x70] sm:$0xff]
      %v2092 = vld [vmem:[%s2076 + $0x78] sm:$0xff]
      %2093 = vmatprep.subr.mxu0 0.0
      %2094 = vmatpush1.msra.mxu0 %v2077
      %2095 = vmatprep.subr.mxu0 0.0
      %2096 = vmatpush1.msra.mxu0 %v2078
      %2097 = vmatprep.subr.mxu0 0.0
      %2098 = vmatpush1.msra.mxu0 %v2079
      %2099 = vmatprep.subr.mxu0 0.0
      %2100 = vmatpush1.msra.mxu0 %v2080
      %2101 = vmatprep.subr.mxu0 0.0
      %2102 = vmatpush1.msra.mxu0 %v2081
      %2103 = vmatprep.subr.mxu0 0.0
      %2104 = vmatpush1.msra.mxu0 %v2082
      %2105 = vmatprep.subr.mxu0 0.0
      %2106 = vmatpush1.msra.mxu0 %v2083
      %2107 = vmatprep.subr.mxu0 0.0
      %2108 = vmatpush1.msra.mxu0 %v2084
      %2109 = vmatprep.subr.mxu0 0.0
      %2110 = vmatpush1.msra.mxu0 %v2085
      %2111 = vmatprep.subr.mxu0 0.0
      %2112 = vmatpush1.msra.mxu0 %v2086
      %2113 = vmatprep.subr.mxu0 0.0
      %2114 = vmatpush1.msra.mxu0 %v2087
      %2115 = vmatprep.subr.mxu0 0.0
      %2116 = vmatpush1.msra.mxu0 %v2088
      %2117 = vmatprep.subr.mxu0 0.0
      %2118 = vmatpush1.msra.mxu0 %v2089
      %2119 = vmatprep.subr.mxu0 0.0
      %2120 = vmatpush1.msra.mxu0 %v2090
      %2121 = vmatprep.subr.mxu0 0.0
      %2122 = vmatpush1.msra.mxu0 %v2091
      %2123 = vmatprep.subr.mxu0 0.0
      %2124 = vmatpush1.msra.mxu0 %v2092
      %2125 = vmatprep.subr.mxu0 0.0
      %2126 = vmatpush1.msra.mxu0 0.0
      %2127 = vmatprep.subr.mxu0 0.0
      %2128 = vmatpush1.msra.mxu0 0.0
      %2129 = vmatprep.subr.mxu0 0.0
      %2130 = vmatpush1.msra.mxu0 0.0
      %2131 = vmatprep.subr.mxu0 0.0
      %2132 = vmatpush1.msra.mxu0 0.0
      %2133 = vmatprep.subr.mxu0 0.0
      %2134 = vmatpush1.msra.mxu0 0.0
      %2135 = vmatprep.subr.mxu0 0.0
      %2136 = vmatpush1.msra.mxu0 0.0
      %2137 = vmatprep.subr.mxu0 0.0
      %2138 = vmatpush1.msra.mxu0 0.0
      %2139 = vmatprep.subr.mxu0 0.0
      %2140 = vmatpush1.msra.mxu0 0.0
      %2141 = vmatprep.subr.mxu0 0.0
      %2142 = vmatpush1.msra.mxu0 0.0
      %2143 = vmatprep.subr.mxu0 0.0
      %2144 = vmatpush1.msra.mxu0 0.0
      %2145 = vmatprep.subr.mxu0 0.0
      %2146 = vmatpush1.msra.mxu0 0.0
      %2147 = vmatprep.subr.mxu0 0.0
      %2148 = vmatpush1.msra.mxu0 0.0
      %2149 = vmatprep.subr.mxu0 0.0
      %2150 = vmatpush1.msra.mxu0 0.0
      %2151 = vmatprep.subr.mxu0 0.0
      %2152 = vmatpush1.msra.mxu0 0.0
      %2153 = vmatprep.subr.mxu0 0.0
      %2154 = vmatpush1.msra.mxu0 0.0
      %2155 = vmatprep.subr.mxu0 0.0
      %2156 = vmatpush1.msra.mxu0 0.0
      %2157 = vmatprep.mubr.f32.mxu0 0.0
      %2158 = vmatmul.mubr.f32.gmra.mrb[0].mxu0 %v2068
      %v2159 = vpop.f32.mrb[0].mxu0
      %v2160 = vadd.f32 0.0, %v2159
      %v2161 = vpop.f32.mrb[0].mxu0
      %2162 = vmatprep.mubr.f32.mxu0 0.0
      %2163 = vmatmul.mubr.f32.gmra.mrb[0].mxu0 %v2069
      %v2164 = vpop.f32.mrb[0].mxu0
      %v2165 = vadd.f32 0.0, %v2164
      %v2166 = vpop.f32.mrb[0].mxu0
      %2167 = vmatprep.mubr.f32.mxu0 0.0
      %2168 = vmatmul.mubr.f32.gmra.mrb[0].mxu0 %v2070
      %v2169 = vpop.f32.mrb[0].mxu0
      %v2170 = vadd.f32 0.0, %v2169
      %v2171 = vpop.f32.mrb[0].mxu0
      %2172 = vmatprep.mubr.f32.mxu0 0.0
      %2173 = vmatmul.mubr.f32.gmra.mrb[0].mxu0 %v2071
      %v2174 = vpop.f32.mrb[0].mxu0
      %v2175 = vadd.f32 0.0, %v2174
      %v2176 = vpop.f32.mrb[0].mxu0
      %2177 = vmatprep.mubr.f32.mxu0 0.0
      %2178 = vmatmul.mubr.f32.gmra.mrb[0].mxu0 %v2072
      %v2179 = vpop.f32.mrb[0].mxu0
      %v2180 = vadd.f32 0.0, %v2179
      %v2181 = vpop.f32.mrb[0].mxu0
      %2182 = vmatprep.mubr.f32.mxu0 0.0
      %2183 = vmatmul.mubr.f32.gmra.mrb[0].mxu0 %v2073
      %v2184 = vpop.f32.mrb[0].mxu0
      %v2185 = vadd.f32 0.0, %v2184
      %v2186 = vpop.f32.mrb[0].mxu0
      %2187 = vmatprep.mubr.f32.mxu0 0.0
      %2188 = vmatmul.mubr.f32.gmra.mrb[0].mxu0 %v2074
      %v2189 = vpop.f32.mrb[0].mxu0
      %v2190 = vadd.f32 0.0, %v2189
      %v2191 = vpop.f32.mrb[0].mxu0
      %2192 = vmatprep.mubr.f32.mxu0 0.0
      %2193 = vmatmul.mubr.f32.gmra.mrb[0].mxu0 %v2075
      %v2194 = vpop.f32.mrb[0].mxu0
      %v2195 = vadd.f32 0.0, %v2194
      %v2196 = vpop.f32.mrb[0].mxu0
      %2197 = vdwg.mxu0
      %v2198 = vadd.f32 %v2060, %v2160
      %v2199 = vadd.f32 %v2061, %v2165
      %v2200 = vadd.f32 %v2062, %v2170
      %v2201 = vadd.f32 %v2063, %v2175
      %v2202 = vadd.f32 %v2064, %v2180
      %v2203 = vadd.f32 %v2065, %v2185
      %v2204 = vadd.f32 %v2066, %v2190
      %v2205 = vadd.f32 %v2067, %v2195
      %v2206 = vld [vmem:[%s1638 + $0x1] sm:$0xff]
      %v2207 = vld [vmem:[%s1638 + $0x11] sm:$0xff]
      %v2208 = vld [vmem:[%s1638 + $0x21] sm:$0xff]
      %v2209 = vld [vmem:[%s1638 + $0x31] sm:$0xff]
      %v2210 = vld [vmem:[%s1638 + $0x41] sm:$0xff]
      %v2211 = vld [vmem:[%s1638 + $0x51] sm:$0xff]
      %v2212 = vld [vmem:[%s1638 + $0x61] sm:$0xff]
      %v2213 = vld [vmem:[%s1638 + $0x71] sm:$0xff]
      %s2214 = scalar_lea.vmem %s6, 512
      %v2215 = vld [vmem:[%s2214] sm:$0xff]
      %v2216 = vld [vmem:[%s2214 + $0x8] sm:$0xff]
      %v2217 = vld [vmem:[%s2214 + $0x10] sm:$0xff]
      %v2218 = vld [vmem:[%s2214 + $0x18] sm:$0xff]
      %v2219 = vld [vmem:[%s2214 + $0x20] sm:$0xff]
      %v2220 = vld [vmem:[%s2214 + $0x28] sm:$0xff]
      %v2221 = vld [vmem:[%s2214 + $0x30] sm:$0xff]
      %v2222 = vld [vmem:[%s2214 + $0x38] sm:$0xff]
      %v2223 = vld [vmem:[%s2214 + $0x40] sm:$0xff]
      %v2224 = vld [vmem:[%s2214 + $0x48] sm:$0xff]
      %v2225 = vld [vmem:[%s2214 + $0x50] sm:$0xff]
      %v2226 = vld [vmem:[%s2214 + $0x58] sm:$0xff]
      %v2227 = vld [vmem:[%s2214 + $0x60] sm:$0xff]
      %v2228 = vld [vmem:[%s2214 + $0x68] sm:$0xff]
      %v2229 = vld [vmem:[%s2214 + $0x70] sm:$0xff]
      %v2230 = vld [vmem:[%s2214 + $0x78] sm:$0xff]
      %2231 = vmatprep.subr.mxu0 0.0
      %2232 = vmatpush1.msra.mxu0 %v2215
      %2233 = vmatprep.subr.mxu0 0.0
      %2234 = vmatpush1.msra.mxu0 %v2216
      %2235 = vmatprep.subr.mxu0 0.0
      %2236 = vmatpush1.msra.mxu0 %v2217
      %2237 = vmatprep.subr.mxu0 0.0
      %2238 = vmatpush1.msra.mxu0 %v2218
      %2239 = vmatprep.subr.mxu0 0.0
      %2240 = vmatpush1.msra.mxu0 %v2219
      %2241 = vmatprep.subr.mxu0 0.0
      %2242 = vmatpush1.msra.mxu0 %v2220
      %2243 = vmatprep.subr.mxu0 0.0
      %2244 = vmatpush1.msra.mxu0 %v2221
      %2245 = vmatprep.subr.mxu0 0.0
      %2246 = vmatpush1.msra.mxu0 %v2222
      %2247 = vmatprep.subr.mxu0 0.0
      %2248 = vmatpush1.msra.mxu0 %v2223
      %2249 = vmatprep.subr.mxu0 0.0
      %2250 = vmatpush1.msra.mxu0 %v2224
      %2251 = vmatprep.subr.mxu0 0.0
      %2252 = vmatpush1.msra.mxu0 %v2225
      %2253 = vmatprep.subr.mxu0 0.0
      %2254 = vmatpush1.msra.mxu0 %v2226
      %2255 = vmatprep.subr.mxu0 0.0
      %2256 = vmatpush1.msra.mxu0 %v2227
      %2257 = vmatprep.subr.mxu0 0.0
      %2258 = vmatpush1.msra.mxu0 %v2228
      %2259 = vmatprep.subr.mxu0 0.0
      %2260 = vmatpush1.msra.mxu0 %v2229
      %2261 = vmatprep.subr.mxu0 0.0
      %2262 = vmatpush1.msra.mxu0 %v2230
      %2263 = vmatprep.subr.mxu0 0.0
      %2264 = vmatpush1.msra.mxu0 0.0
      %2265 = vmatprep.subr.mxu0 0.0
      %2266 = vmatpush1.msra.mxu0 0.0
      %2267 = vmatprep.subr.mxu0 0.0
      %2268 = vmatpush1.msra.mxu0 0.0
      %2269 = vmatprep.subr.mxu0 0.0
      %2270 = vmatpush1.msra.mxu0 0.0
      %2271 = vmatprep.subr.mxu0 0.0
      %2272 = vmatpush1.msra.mxu0 0.0
      %2273 = vmatprep.subr.mxu0 0.0
      %2274 = vmatpush1.msra.mxu0 0.0
      %2275 = vmatprep.subr.mxu0 0.0
      %2276 = vmatpush1.msra.mxu0 0.0
      %2277 = vmatprep.subr.mxu0 0.0
      %2278 = vmatpush1.msra.mxu0 0.0
      %2279 = vmatprep.subr.mxu0 0.0
      %2280 = vmatpush1.msra.mxu0 0.0
      %2281 = vmatprep.subr.mxu0 0.0
      %2282 = vmatpush1.msra.mxu0 0.0
      %2283 = vmatprep.subr.mxu0 0.0
      %2284 = vmatpush1.msra.mxu0 0.0
      %2285 = vmatprep.subr.mxu0 0.0
      %2286 = vmatpush1.msra.mxu0 0.0
      %2287 = vmatprep.subr.mxu0 0.0
      %2288 = vmatpush1.msra.mxu0 0.0
      %2289 = vmatprep.subr.mxu0 0.0
      %2290 = vmatpush1.msra.mxu0 0.0
      %2291 = vmatprep.subr.mxu0 0.0
      %2292 = vmatpush1.msra.mxu0 0.0
      %2293 = vmatprep.subr.mxu0 0.0
      %2294 = vmatpush1.msra.mxu0 0.0
      %2295 = vmatprep.mubr.f32.mxu0 0.0
      %2296 = vmatmul.mubr.f32.gmra.mrb[0].mxu0 %v2206
      %v2297 = vpop.f32.mrb[0].mxu0
      %v2298 = vadd.f32 0.0, %v2297
      %v2299 = vpop.f32.mrb[0].mxu0
      %2300 = vmatprep.mubr.f32.mxu0 0.0
      %2301 = vmatmul.mubr.f32.gmra.mrb[0].mxu0 %v2207
      %v2302 = vpop.f32.mrb[0].mxu0
      %v2303 = vadd.f32 0.0, %v2302
      %v2304 = vpop.f32.mrb[0].mxu0
      %2305 = vmatprep.mubr.f32.mxu0 0.0
      %2306 = vmatmul.mubr.f32.gmra.mrb[0].mxu0 %v2208
      %v2307 = vpop.f32.mrb[0].mxu0
      %v2308 = vadd.f32 0.0, %v2307
      %v2309 = vpop.f32.mrb[0].mxu0
      %2310 = vmatprep.mubr.f32.mxu0 0.0
      %2311 = vmatmul.mubr.f32.gmra.mrb[0].mxu0 %v2209
      %v2312 = vpop.f32.mrb[0].mxu0
      %v2313 = vadd.f32 0.0, %v2312
      %v2314 = vpop.f32.mrb[0].mxu0
      %2315 = vmatprep.mubr.f32.mxu0 0.0
      %2316 = vmatmul.mubr.f32.gmra.mrb[0].mxu0 %v2210
      %v2317 = vpop.f32.mrb[0].mxu0
      %v2318 = vadd.f32 0.0, %v2317
      %v2319 = vpop.f32.mrb[0].mxu0
      %2320 = vmatprep.mubr.f32.mxu0 0.0
      %2321 = vmatmul.mubr.f32.gmra.mrb[0].mxu0 %v2211
      %v2322 = vpop.f32.mrb[0].mxu0
      %v2323 = vadd.f32 0.0, %v2322
      %v2324 = vpop.f32.mrb[0].mxu0
      %2325 = vmatprep.mubr.f32.mxu0 0.0
      %2326 = vmatmul.mubr.f32.gmra.mrb[0].mxu0 %v2212
      %v2327 = vpop.f32.mrb[0].mxu0
      %v2328 = vadd.f32 0.0, %v2327
      %v2329 = vpop.f32.mrb[0].mxu0
      %2330 = vmatprep.mubr.f32.mxu0 0.0
      %2331 = vmatmul.mubr.f32.gmra.mrb[0].mxu0 %v2213
      %v2332 = vpop.f32.mrb[0].mxu0
      %v2333 = vadd.f32 0.0, %v2332
      %v2334 = vpop.f32.mrb[0].mxu0
      %2335 = vdwg.mxu0
      %v2336 = vadd.f32 %v2198, %v2298
      %v2337 = vadd.f32 %v2199, %v2303
      %v2338 = vadd.f32 %v2200, %v2308
      %v2339 = vadd.f32 %v2201, %v2313
      %v2340 = vadd.f32 %v2202, %v2318
      %v2341 = vadd.f32 %v2203, %v2323
      %v2342 = vadd.f32 %v2204, %v2328
      %v2343 = vadd.f32 %v2205, %v2333
      %v2344 = vld [vmem:[%s1638 + $0x2] sm:$0xff]
      %v2345 = vld [vmem:[%s1638 + $0x12] sm:$0xff]
      %v2346 = vld [vmem:[%s1638 + $0x22] sm:$0xff]
      %v2347 = vld [vmem:[%s1638 + $0x32] sm:$0xff]
      %v2348 = vld [vmem:[%s1638 + $0x42] sm:$0xff]
      %v2349 = vld [vmem:[%s1638 + $0x52] sm:$0xff]
      %v2350 = vld [vmem:[%s1638 + $0x62] sm:$0xff]
      %v2351 = vld [vmem:[%s1638 + $0x72] sm:$0xff]
      %s2352 = scalar_lea.vmem %s6, 640
      %v2353 = vld [vmem:[%s2352] sm:$0xff]
      %v2354 = vld [vmem:[%s2352 + $0x8] sm:$0xff]
      %v2355 = vld [vmem:[%s2352 + $0x10] sm:$0xff]
      %v2356 = vld [vmem:[%s2352 + $0x18] sm:$0xff]
      %v2357 = vld [vmem:[%s2352 + $0x20] sm:$0xff]
      %v2358 = vld [vmem:[%s2352 + $0x28] sm:$0xff]
      %v2359 = vld [vmem:[%s2352 + $0x30] sm:$0xff]
      %v2360 = vld [vmem:[%s2352 + $0x38] sm:$0xff]
      %v2361 = vld [vmem:[%s2352 + $0x40] sm:$0xff]
      %v2362 = vld [vmem:[%s2352 + $0x48] sm:$0xff]
      %v2363 = vld [vmem:[%s2352 + $0x50] sm:$0xff]
      %v2364 = vld [vmem:[%s2352 + $0x58] sm:$0xff]
      %v2365 = vld [vmem:[%s2352 + $0x60] sm:$0xff]
      %v2366 = vld [vmem:[%s2352 + $0x68] sm:$0xff]
      %v2367 = vld [vmem:[%s2352 + $0x70] sm:$0xff]
      %v2368 = vld [vmem:[%s2352 + $0x78] sm:$0xff]
      %2369 = vmatprep.subr.mxu0 0.0
      %2370 = vmatpush1.msra.mxu0 %v2353
      %2371 = vmatprep.subr.mxu0 0.0
      %2372 = vmatpush1.msra.mxu0 %v2354
      %2373 = vmatprep.subr.mxu0 0.0
      %2374 = vmatpush1.msra.mxu0 %v2355
      %2375 = vmatprep.subr.mxu0 0.0
      %2376 = vmatpush1.msra.mxu0 %v2356
      %2377 = vmatprep.subr.mxu0 0.0
      %2378 = vmatpush1.msra.mxu0 %v2357
      %2379 = vmatprep.subr.mxu0 0.0
      %2380 = vmatpush1.msra.mxu0 %v2358
      %2381 = vmatprep.subr.mxu0 0.0
      %2382 = vmatpush1.msra.mxu0 %v2359
      %2383 = vmatprep.subr.mxu0 0.0
      %2384 = vmatpush1.msra.mxu0 %v2360
      %2385 = vmatprep.subr.mxu0 0.0
      %2386 = vmatpush1.msra.mxu0 %v2361
      %2387 = vmatprep.subr.mxu0 0.0
      %2388 = vmatpush1.msra.mxu0 %v2362
      %2389 = vmatprep.subr.mxu0 0.0
      %2390 = vmatpush1.msra.mxu0 %v2363
      %2391 = vmatprep.subr.mxu0 0.0
      %2392 = vmatpush1.msra.mxu0 %v2364
      %2393 = vmatprep.subr.mxu0 0.0
      %2394 = vmatpush1.msra.mxu0 %v2365
      %2395 = vmatprep.subr.mxu0 0.0
      %2396 = vmatpush1.msra.mxu0 %v2366
      %2397 = vmatprep.subr.mxu0 0.0
      %2398 = vmatpush1.msra.mxu0 %v2367
      %2399 = vmatprep.subr.mxu0 0.0
      %2400 = vmatpush1.msra.mxu0 %v2368
      %2401 = vmatprep.subr.mxu0 0.0
      %2402 = vmatpush1.msra.mxu0 0.0
      %2403 = vmatprep.subr.mxu0 0.0
      %2404 = vmatpush1.msra.mxu0 0.0
      %2405 = vmatprep.subr.mxu0 0.0
      %2406 = vmatpush1.msra.mxu0 0.0
      %2407 = vmatprep.subr.mxu0 0.0
      %2408 = vmatpush1.msra.mxu0 0.0
      %2409 = vmatprep.subr.mxu0 0.0
      %2410 = vmatpush1.msra.mxu0 0.0
      %2411 = vmatprep.subr.mxu0 0.0
      %2412 = vmatpush1.msra.mxu0 0.0
      %2413 = vmatprep.subr.mxu0 0.0
      %2414 = vmatpush1.msra.mxu0 0.0
      %2415 = vmatprep.subr.mxu0 0.0
      %2416 = vmatpush1.msra.mxu0 0.0
      %2417 = vmatprep.subr.mxu0 0.0
      %2418 = vmatpush1.msra.mxu0 0.0
      %2419 = vmatprep.subr.mxu0 0.0
      %2420 = vmatpush1.msra.mxu0 0.0
      %2421 = vmatprep.subr.mxu0 0.0
      %2422 = vmatpush1.msra.mxu0 0.0
      %2423 = vmatprep.subr.mxu0 0.0
      %2424 = vmatpush1.msra.mxu0 0.0
      %2425 = vmatprep.subr.mxu0 0.0
      %2426 = vmatpush1.msra.mxu0 0.0
      %2427 = vmatprep.subr.mxu0 0.0
      %2428 = vmatpush1.msra.mxu0 0.0
      %2429 = vmatprep.subr.mxu0 0.0
      %2430 = vmatpush1.msra.mxu0 0.0
      %2431 = vmatprep.subr.mxu0 0.0
      %2432 = vmatpush1.msra.mxu0 0.0
      %2433 = vmatprep.mubr.f32.mxu0 0.0
      %2434 = vmatmul.mubr.f32.gmra.mrb[0].mxu0 %v2344
      %v2435 = vpop.f32.mrb[0].mxu0
      %v2436 = vadd.f32 0.0, %v2435
      %v2437 = vpop.f32.mrb[0].mxu0
      %2438 = vmatprep.mubr.f32.mxu0 0.0
      %2439 = vmatmul.mubr.f32.gmra.mrb[0].mxu0 %v2345
      %v2440 = vpop.f32.mrb[0].mxu0
      %v2441 = vadd.f32 0.0, %v2440
      %v2442 = vpop.f32.mrb[0].mxu0
      %2443 = vmatprep.mubr.f32.mxu0 0.0
      %2444 = vmatmul.mubr.f32.gmra.mrb[0].mxu0 %v2346
      %v2445 = vpop.f32.mrb[0].mxu0
      %v2446 = vadd.f32 0.0, %v2445
      %v2447 = vpop.f32.mrb[0].mxu0
      %2448 = vmatprep.mubr.f32.mxu0 0.0
      %2449 = vmatmul.mubr.f32.gmra.mrb[0].mxu0 %v2347
      %v2450 = vpop.f32.mrb[0].mxu0
      %v2451 = vadd.f32 0.0, %v2450
      %v2452 = vpop.f32.mrb[0].mxu0
      %2453 = vmatprep.mubr.f32.mxu0 0.0
      %2454 = vmatmul.mubr.f32.gmra.mrb[0].mxu0 %v2348
      %v2455 = vpop.f32.mrb[0].mxu0
      %v2456 = vadd.f32 0.0, %v2455
      %v2457 = vpop.f32.mrb[0].mxu0
      %2458 = vmatprep.mubr.f32.mxu0 0.0
      %2459 = vmatmul.mubr.f32.gmra.mrb[0].mxu0 %v2349
      %v2460 = vpop.f32.mrb[0].mxu0
      %v2461 = vadd.f32 0.0, %v2460
      %v2462 = vpop.f32.mrb[0].mxu0
      %2463 = vmatprep.mubr.f32.mxu0 0.0
      %2464 = vmatmul.mubr.f32.gmra.mrb[0].mxu0 %v2350
      %v2465 = vpop.f32.mrb[0].mxu0
      %v2466 = vadd.f32 0.0, %v2465
      %v2467 = vpop.f32.mrb[0].mxu0
      %2468 = vmatprep.mubr.f32.mxu0 0.0
      %2469 = vmatmul.mubr.f32.gmra.mrb[0].mxu0 %v2351
      %v2470 = vpop.f32.mrb[0].mxu0
      %v2471 = vadd.f32 0.0, %v2470
      %v2472 = vpop.f32.mrb[0].mxu0
      %2473 = vdwg.mxu0
      %v2474 = vadd.f32 %v2336, %v2436
      %v2475 = vadd.f32 %v2337, %v2441
      %v2476 = vadd.f32 %v2338, %v2446
      %v2477 = vadd.f32 %v2339, %v2451
      %v2478 = vadd.f32 %v2340, %v2456
      %v2479 = vadd.f32 %v2341, %v2461
      %v2480 = vadd.f32 %v2342, %v2466
      %v2481 = vadd.f32 %v2343, %v2471
      %s2482 = scalar_lea.vmem [#allocation3], 32
      %v2483 = vld [vmem:[%s2482] sm:$0xff]
      %v2484 = vld [vmem:[%s2482 + $0x10] sm:$0xff]
      %v2485 = vld [vmem:[%s2482 + $0x20] sm:$0xff]
      %v2486 = vld [vmem:[%s2482 + $0x30] sm:$0xff]
      %v2487 = vld [vmem:[%s2482 + $0x40] sm:$0xff]
      %v2488 = vld [vmem:[%s2482 + $0x50] sm:$0xff]
      %v2489 = vld [vmem:[%s2482 + $0x60] sm:$0xff]
      %v2490 = vld [vmem:[%s2482 + $0x70] sm:$0xff]
      %s2491 = scalar_lea.vmem %s6, 768
      %v2492 = vld [vmem:[%s2491] sm:$0xff]
      %v2493 = vld [vmem:[%s2491 + $0x8] sm:$0xff]
      %v2494 = vld [vmem:[%s2491 + $0x10] sm:$0xff]
      %v2495 = vld [vmem:[%s2491 + $0x18] sm:$0xff]
      %v2496 = vld [vmem:[%s2491 + $0x20] sm:$0xff]
      %v2497 = vld [vmem:[%s2491 + $0x28] sm:$0xff]
      %v2498 = vld [vmem:[%s2491 + $0x30] sm:$0xff]
      %v2499 = vld [vmem:[%s2491 + $0x38] sm:$0xff]
      %v2500 = vld [vmem:[%s2491 + $0x40] sm:$0xff]
      %v2501 = vld [vmem:[%s2491 + $0x48] sm:$0xff]
      %v2502 = vld [vmem:[%s2491 + $0x50] sm:$0xff]
      %v2503 = vld [vmem:[%s2491 + $0x58] sm:$0xff]
      %v2504 = vld [vmem:[%s2491 + $0x60] sm:$0xff]
      %v2505 = vld [vmem:[%s2491 + $0x68] sm:$0xff]
      %v2506 = vld [vmem:[%s2491 + $0x70] sm:$0xff]
      %v2507 = vld [vmem:[%s2491 + $0x78] sm:$0xff]
      %2508 = vmatprep.subr.mxu0 0.0
      %2509 = vmatpush1.msra.mxu0 %v2492
      %2510 = vmatprep.subr.mxu0 0.0
      %2511 = vmatpush1.msra.mxu0 %v2493
      %2512 = vmatprep.subr.mxu0 0.0
      %2513 = vmatpush1.msra.mxu0 %v2494
      %2514 = vmatprep.subr.mxu0 0.0
      %2515 = vmatpush1.msra.mxu0 %v2495
      %2516 = vmatprep.subr.mxu0 0.0
      %2517 = vmatpush1.msra.mxu0 %v2496
      %2518 = vmatprep.subr.mxu0 0.0
      %2519 = vmatpush1.msra.mxu0 %v2497
      %2520 = vmatprep.subr.mxu0 0.0
      %2521 = vmatpush1.msra.mxu0 %v2498
      %2522 = vmatprep.subr.mxu0 0.0
      %2523 = vmatpush1.msra.mxu0 %v2499
      %2524 = vmatprep.subr.mxu0 0.0
      %2525 = vmatpush1.msra.mxu0 %v2500
      %2526 = vmatprep.subr.mxu0 0.0
      %2527 = vmatpush1.msra.mxu0 %v2501
      %2528 = vmatprep.subr.mxu0 0.0
      %2529 = vmatpush1.msra.mxu0 %v2502
      %2530 = vmatprep.subr.mxu0 0.0
      %2531 = vmatpush1.msra.mxu0 %v2503
      %2532 = vmatprep.subr.mxu0 0.0
      %2533 = vmatpush1.msra.mxu0 %v2504
      %2534 = vmatprep.subr.mxu0 0.0
      %2535 = vmatpush1.msra.mxu0 %v2505
      %2536 = vmatprep.subr.mxu0 0.0
      %2537 = vmatpush1.msra.mxu0 %v2506
      %2538 = vmatprep.subr.mxu0 0.0
      %2539 = vmatpush1.msra.mxu0 %v2507
      %2540 = vmatprep.subr.mxu0 0.0
      %2541 = vmatpush1.msra.mxu0 0.0
      %2542 = vmatprep.subr.mxu0 0.0
      %2543 = vmatpush1.msra.mxu0 0.0
      %2544 = vmatprep.subr.mxu0 0.0
      %2545 = vmatpush1.msra.mxu0 0.0
      %2546 = vmatprep.subr.mxu0 0.0
      %2547 = vmatpush1.msra.mxu0 0.0
      %2548 = vmatprep.subr.mxu0 0.0
      %2549 = vmatpush1.msra.mxu0 0.0
      %2550 = vmatprep.subr.mxu0 0.0
      %2551 = vmatpush1.msra.mxu0 0.0
      %2552 = vmatprep.subr.mxu0 0.0
      %2553 = vmatpush1.msra.mxu0 0.0
      %2554 = vmatprep.subr.mxu0 0.0
      %2555 = vmatpush1.msra.mxu0 0.0
      %2556 = vmatprep.subr.mxu0 0.0
      %2557 = vmatpush1.msra.mxu0 0.0
      %2558 = vmatprep.subr.mxu0 0.0
      %2559 = vmatpush1.msra.mxu0 0.0
      %2560 = vmatprep.subr.mxu0 0.0
      %2561 = vmatpush1.msra.mxu0 0.0
      %2562 = vmatprep.subr.mxu0 0.0
      %2563 = vmatpush1.msra.mxu0 0.0
      %2564 = vmatprep.subr.mxu0 0.0
      %2565 = vmatpush1.msra.mxu0 0.0
      %2566 = vmatprep.subr.mxu0 0.0
      %2567 = vmatpush1.msra.mxu0 0.0
      %2568 = vmatprep.subr.mxu0 0.0
      %2569 = vmatpush1.msra.mxu0 0.0
      %2570 = vmatprep.subr.mxu0 0.0
      %2571 = vmatpush1.msra.mxu0 0.0
      %2572 = vmatprep.mubr.f32.mxu0 0.0
      %2573 = vmatmul.mubr.f32.gmra.mrb[0].mxu0 %v2483
      %v2574 = vpop.f32.mrb[0].mxu0
      %v2575 = vadd.f32 0.0, %v2574
      %v2576 = vpop.f32.mrb[0].mxu0
      %2577 = vmatprep.mubr.f32.mxu0 0.0
      %2578 = vmatmul.mubr.f32.gmra.mrb[0].mxu0 %v2484
      %v2579 = vpop.f32.mrb[0].mxu0
      %v2580 = vadd.f32 0.0, %v2579
      %v2581 = vpop.f32.mrb[0].mxu0
      %2582 = vmatprep.mubr.f32.mxu0 0.0
      %2583 = vmatmul.mubr.f32.gmra.mrb[0].mxu0 %v2485
      %v2584 = vpop.f32.mrb[0].mxu0
      %v2585 = vadd.f32 0.0, %v2584
      %v2586 = vpop.f32.mrb[0].mxu0
      %2587 = vmatprep.mubr.f32.mxu0 0.0
      %2588 = vmatmul.mubr.f32.gmra.mrb[0].mxu0 %v2486
      %v2589 = vpop.f32.mrb[0].mxu0
      %v2590 = vadd.f32 0.0, %v2589
      %v2591 = vpop.f32.mrb[0].mxu0
      %2592 = vmatprep.mubr.f32.mxu0 0.0
      %2593 = vmatmul.mubr.f32.gmra.mrb[0].mxu0 %v2487
      %v2594 = vpop.f32.mrb[0].mxu0
      %v2595 = vadd.f32 0.0, %v2594
      %v2596 = vpop.f32.mrb[0].mxu0
      %2597 = vmatprep.mubr.f32.mxu0 0.0
      %2598 = vmatmul.mubr.f32.gmra.mrb[0].mxu0 %v2488
      %v2599 = vpop.f32.mrb[0].mxu0
      %v2600 = vadd.f32 0.0, %v2599
      %v2601 = vpop.f32.mrb[0].mxu0
      %2602 = vmatprep.mubr.f32.mxu0 0.0
      %2603 = vmatmul.mubr.f32.gmra.mrb[0].mxu0 %v2489
      %v2604 = vpop.f32.mrb[0].mxu0
      %v2605 = vadd.f32 0.0, %v2604
      %v2606 = vpop.f32.mrb[0].mxu0
      %2607 = vmatprep.mubr.f32.mxu0 0.0
      %2608 = vmatmul.mubr.f32.gmra.mrb[0].mxu0 %v2490
      %v2609 = vpop.f32.mrb[0].mxu0
      %v2610 = vadd.f32 0.0, %v2609
      %v2611 = vpop.f32.mrb[0].mxu0
      %2612 = vdwg.mxu0
      %v2613 = vadd.f32 %v2474, %v2575
      %v2614 = vadd.f32 %v2475, %v2580
      %v2615 = vadd.f32 %v2476, %v2585
      %v2616 = vadd.f32 %v2477, %v2590
      %v2617 = vadd.f32 %v2478, %v2595
      %v2618 = vadd.f32 %v2479, %v2600
      %v2619 = vadd.f32 %v2480, %v2605
      %v2620 = vadd.f32 %v2481, %v2610
      %v2621 = vld [vmem:[%s2482 + $0x1] sm:$0xff]
      %v2622 = vld [vmem:[%s2482 + $0x11] sm:$0xff]
      %v2623 = vld [vmem:[%s2482 + $0x21] sm:$0xff]
      %v2624 = vld [vmem:[%s2482 + $0x31] sm:$0xff]
      %v2625 = vld [vmem:[%s2482 + $0x41] sm:$0xff]
      %v2626 = vld [vmem:[%s2482 + $0x51] sm:$0xff]
      %v2627 = vld [vmem:[%s2482 + $0x61] sm:$0xff]
      %v2628 = vld [vmem:[%s2482 + $0x71] sm:$0xff]
      %s2629 = scalar_lea.vmem %s6, 896
      %v2630 = vld [vmem:[%s2629] sm:$0xff]
      %v2631 = vld [vmem:[%s2629 + $0x8] sm:$0xff]
      %v2632 = vld [vmem:[%s2629 + $0x10] sm:$0xff]
      %v2633 = vld [vmem:[%s2629 + $0x18] sm:$0xff]
      %v2634 = vld [vmem:[%s2629 + $0x20] sm:$0xff]
      %v2635 = vld [vmem:[%s2629 + $0x28] sm:$0xff]
      %v2636 = vld [vmem:[%s2629 + $0x30] sm:$0xff]
      %v2637 = vld [vmem:[%s2629 + $0x38] sm:$0xff]
      %v2638 = vld [vmem:[%s2629 + $0x40] sm:$0xff]
      %v2639 = vld [vmem:[%s2629 + $0x48] sm:$0xff]
      %v2640 = vld [vmem:[%s2629 + $0x50] sm:$0xff]
      %v2641 = vld [vmem:[%s2629 + $0x58] sm:$0xff]
      %v2642 = vld [vmem:[%s2629 + $0x60] sm:$0xff]
      %v2643 = vld [vmem:[%s2629 + $0x68] sm:$0xff]
      %v2644 = vld [vmem:[%s2629 + $0x70] sm:$0xff]
      %v2645 = vld [vmem:[%s2629 + $0x78] sm:$0xff]
      %2646 = vmatprep.subr.mxu0 0.0
      %2647 = vmatpush1.msra.mxu0 %v2630
      %2648 = vmatprep.subr.mxu0 0.0
      %2649 = vmatpush1.msra.mxu0 %v2631
      %2650 = vmatprep.subr.mxu0 0.0
      %2651 = vmatpush1.msra.mxu0 %v2632
      %2652 = vmatprep.subr.mxu0 0.0
      %2653 = vmatpush1.msra.mxu0 %v2633
      %2654 = vmatprep.subr.mxu0 0.0
      %2655 = vmatpush1.msra.mxu0 %v2634
      %2656 = vmatprep.subr.mxu0 0.0
      %2657 = vmatpush1.msra.mxu0 %v2635
      %2658 = vmatprep.subr.mxu0 0.0
      %2659 = vmatpush1.msra.mxu0 %v2636
      %2660 = vmatprep.subr.mxu0 0.0
      %2661 = vmatpush1.msra.mxu0 %v2637
      %2662 = vmatprep.subr.mxu0 0.0
      %2663 = vmatpush1.msra.mxu0 %v2638
      %2664 = vmatprep.subr.mxu0 0.0
      %2665 = vmatpush1.msra.mxu0 %v2639
      %2666 = vmatprep.subr.mxu0 0.0
      %2667 = vmatpush1.msra.mxu0 %v2640
      %2668 = vmatprep.subr.mxu0 0.0
      %2669 = vmatpush1.msra.mxu0 %v2641
      %2670 = vmatprep.subr.mxu0 0.0
      %2671 = vmatpush1.msra.mxu0 %v2642
      %2672 = vmatprep.subr.mxu0 0.0
      %2673 = vmatpush1.msra.mxu0 %v2643
      %2674 = vmatprep.subr.mxu0 0.0
      %2675 = vmatpush1.msra.mxu0 %v2644
      %2676 = vmatprep.subr.mxu0 0.0
      %2677 = vmatpush1.msra.mxu0 %v2645
      %2678 = vmatprep.subr.mxu0 0.0
      %2679 = vmatpush1.msra.mxu0 0.0
      %2680 = vmatprep.subr.mxu0 0.0
      %2681 = vmatpush1.msra.mxu0 0.0
      %2682 = vmatprep.subr.mxu0 0.0
      %2683 = vmatpush1.msra.mxu0 0.0
      %2684 = vmatprep.subr.mxu0 0.0
      %2685 = vmatpush1.msra.mxu0 0.0
      %2686 = vmatprep.subr.mxu0 0.0
      %2687 = vmatpush1.msra.mxu0 0.0
      %2688 = vmatprep.subr.mxu0 0.0
      %2689 = vmatpush1.msra.mxu0 0.0
      %2690 = vmatprep.subr.mxu0 0.0
      %2691 = vmatpush1.msra.mxu0 0.0
      %2692 = vmatprep.subr.mxu0 0.0
      %2693 = vmatpush1.msra.mxu0 0.0
      %2694 = vmatprep.subr.mxu0 0.0
      %2695 = vmatpush1.msra.mxu0 0.0
      %2696 = vmatprep.subr.mxu0 0.0
      %2697 = vmatpush1.msra.mxu0 0.0
      %2698 = vmatprep.subr.mxu0 0.0
      %2699 = vmatpush1.msra.mxu0 0.0
      %2700 = vmatprep.subr.mxu0 0.0
      %2701 = vmatpush1.msra.mxu0 0.0
      %2702 = vmatprep.subr.mxu0 0.0
      %2703 = vmatpush1.msra.mxu0 0.0
      %2704 = vmatprep.subr.mxu0 0.0
      %2705 = vmatpush1.msra.mxu0 0.0
      %2706 = vmatprep.subr.mxu0 0.0
      %2707 = vmatpush1.msra.mxu0 0.0
      %2708 = vmatprep.subr.mxu0 0.0
      %2709 = vmatpush1.msra.mxu0 0.0
      %2710 = vmatprep.mubr.f32.mxu0 0.0
      %2711 = vmatmul.mubr.f32.gmra.mrb[0].mxu0 %v2621
      %v2712 = vpop.f32.mrb[0].mxu0
      %v2713 = vadd.f32 0.0, %v2712
      %v2714 = vpop.f32.mrb[0].mxu0
      %2715 = vmatprep.mubr.f32.mxu0 0.0
      %2716 = vmatmul.mubr.f32.gmra.mrb[0].mxu0 %v2622
      %v2717 = vpop.f32.mrb[0].mxu0
      %v2718 = vadd.f32 0.0, %v2717
      %v2719 = vpop.f32.mrb[0].mxu0
      %2720 = vmatprep.mubr.f32.mxu0 0.0
      %2721 = vmatmul.mubr.f32.gmra.mrb[0].mxu0 %v2623
      %v2722 = vpop.f32.mrb[0].mxu0
      %v2723 = vadd.f32 0.0, %v2722
      %v2724 = vpop.f32.mrb[0].mxu0
      %2725 = vmatprep.mubr.f32.mxu0 0.0
      %2726 = vmatmul.mubr.f32.gmra.mrb[0].mxu0 %v2624
      %v2727 = vpop.f32.mrb[0].mxu0
      %v2728 = vadd.f32 0.0, %v2727
      %v2729 = vpop.f32.mrb[0].mxu0
      %2730 = vmatprep.mubr.f32.mxu0 0.0
      %2731 = vmatmul.mubr.f32.gmra.mrb[0].mxu0 %v2625
      %v2732 = vpop.f32.mrb[0].mxu0
      %v2733 = vadd.f32 0.0, %v2732
      %v2734 = vpop.f32.mrb[0].mxu0
      %2735 = vmatprep.mubr.f32.mxu0 0.0
      %2736 = vmatmul.mubr.f32.gmra.mrb[0].mxu0 %v2626
      %v2737 = vpop.f32.mrb[0].mxu0
      %v2738 = vadd.f32 0.0, %v2737
      %v2739 = vpop.f32.mrb[0].mxu0
      %2740 = vmatprep.mubr.f32.mxu0 0.0
      %2741 = vmatmul.mubr.f32.gmra.mrb[0].mxu0 %v2627
      %v2742 = vpop.f32.mrb[0].mxu0
      %v2743 = vadd.f32 0.0, %v2742
      %v2744 = vpop.f32.mrb[0].mxu0
      %2745 = vmatprep.mubr.f32.mxu0 0.0
      %2746 = vmatmul.mubr.f32.gmra.mrb[0].mxu0 %v2628
      %v2747 = vpop.f32.mrb[0].mxu0
      %v2748 = vadd.f32 0.0, %v2747
      %v2749 = vpop.f32.mrb[0].mxu0
      %2750 = vdwg.mxu0
      %v2751 = vadd.f32 %v2613, %v2713
      %v2752 = vadd.f32 %v2614, %v2718
      %v2753 = vadd.f32 %v2615, %v2723
      %v2754 = vadd.f32 %v2616, %v2728
      %v2755 = vadd.f32 %v2617, %v2733
      %v2756 = vadd.f32 %v2618, %v2738
      %v2757 = vadd.f32 %v2619, %v2743
      %v2758 = vadd.f32 %v2620, %v2748
      %v2759 = vld [vmem:[%s2482 + $0x2] sm:$0xff]
      %v2760 = vld [vmem:[%s2482 + $0x12] sm:$0xff]
      %v2761 = vld [vmem:[%s2482 + $0x22] sm:$0xff]
      %v2762 = vld [vmem:[%s2482 + $0x32] sm:$0xff]
      %v2763 = vld [vmem:[%s2482 + $0x42] sm:$0xff]
      %v2764 = vld [vmem:[%s2482 + $0x52] sm:$0xff]
      %v2765 = vld [vmem:[%s2482 + $0x62] sm:$0xff]
      %v2766 = vld [vmem:[%s2482 + $0x72] sm:$0xff]
      %s2767 = scalar_lea.vmem %s6, 1024
      %v2768 = vld [vmem:[%s2767] sm:$0xff]
      %v2769 = vld [vmem:[%s2767 + $0x8] sm:$0xff]
      %v2770 = vld [vmem:[%s2767 + $0x10] sm:$0xff]
      %v2771 = vld [vmem:[%s2767 + $0x18] sm:$0xff]
      %v2772 = vld [vmem:[%s2767 + $0x20] sm:$0xff]
      %v2773 = vld [vmem:[%s2767 + $0x28] sm:$0xff]
      %v2774 = vld [vmem:[%s2767 + $0x30] sm:$0xff]
      %v2775 = vld [vmem:[%s2767 + $0x38] sm:$0xff]
      %v2776 = vld [vmem:[%s2767 + $0x40] sm:$0xff]
      %v2777 = vld [vmem:[%s2767 + $0x48] sm:$0xff]
      %v2778 = vld [vmem:[%s2767 + $0x50] sm:$0xff]
      %v2779 = vld [vmem:[%s2767 + $0x58] sm:$0xff]
      %v2780 = vld [vmem:[%s2767 + $0x60] sm:$0xff]
      %v2781 = vld [vmem:[%s2767 + $0x68] sm:$0xff]
      %v2782 = vld [vmem:[%s2767 + $0x70] sm:$0xff]
      %v2783 = vld [vmem:[%s2767 + $0x78] sm:$0xff]
      %2784 = vmatprep.subr.mxu0 0.0
      %2785 = vmatpush1.msra.mxu0 %v2768
      %2786 = vmatprep.subr.mxu0 0.0
      %2787 = vmatpush1.msra.mxu0 %v2769
      %2788 = vmatprep.subr.mxu0 0.0
      %2789 = vmatpush1.msra.mxu0 %v2770
      %2790 = vmatprep.subr.mxu0 0.0
      %2791 = vmatpush1.msra.mxu0 %v2771
      %2792 = vmatprep.subr.mxu0 0.0
      %2793 = vmatpush1.msra.mxu0 %v2772
      %2794 = vmatprep.subr.mxu0 0.0
      %2795 = vmatpush1.msra.mxu0 %v2773
      %2796 = vmatprep.subr.mxu0 0.0
      %2797 = vmatpush1.msra.mxu0 %v2774
      %2798 = vmatprep.subr.mxu0 0.0
      %2799 = vmatpush1.msra.mxu0 %v2775
      %2800 = vmatprep.subr.mxu0 0.0
      %2801 = vmatpush1.msra.mxu0 %v2776
      %2802 = vmatprep.subr.mxu0 0.0
      %2803 = vmatpush1.msra.mxu0 %v2777
      %2804 = vmatprep.subr.mxu0 0.0
      %2805 = vmatpush1.msra.mxu0 %v2778
      %2806 = vmatprep.subr.mxu0 0.0
      %2807 = vmatpush1.msra.mxu0 %v2779
      %2808 = vmatprep.subr.mxu0 0.0
      %2809 = vmatpush1.msra.mxu0 %v2780
      %2810 = vmatprep.subr.mxu0 0.0
      %2811 = vmatpush1.msra.mxu0 %v2781
      %2812 = vmatprep.subr.mxu0 0.0
      %2813 = vmatpush1.msra.mxu0 %v2782
      %2814 = vmatprep.subr.mxu0 0.0
      %2815 = vmatpush1.msra.mxu0 %v2783
      %2816 = vmatprep.subr.mxu0 0.0
      %2817 = vmatpush1.msra.mxu0 0.0
      %2818 = vmatprep.subr.mxu0 0.0
      %2819 = vmatpush1.msra.mxu0 0.0
      %2820 = vmatprep.subr.mxu0 0.0
      %2821 = vmatpush1.msra.mxu0 0.0
      %2822 = vmatprep.subr.mxu0 0.0
      %2823 = vmatpush1.msra.mxu0 0.0
      %2824 = vmatprep.subr.mxu0 0.0
      %2825 = vmatpush1.msra.mxu0 0.0
      %2826 = vmatprep.subr.mxu0 0.0
      %2827 = vmatpush1.msra.mxu0 0.0
      %2828 = vmatprep.subr.mxu0 0.0
      %2829 = vmatpush1.msra.mxu0 0.0
      %2830 = vmatprep.subr.mxu0 0.0
      %2831 = vmatpush1.msra.mxu0 0.0
      %2832 = vmatprep.subr.mxu0 0.0
      %2833 = vmatpush1.msra.mxu0 0.0
      %2834 = vmatprep.subr.mxu0 0.0
      %2835 = vmatpush1.msra.mxu0 0.0
      %2836 = vmatprep.subr.mxu0 0.0
      %2837 = vmatpush1.msra.mxu0 0.0
      %2838 = vmatprep.subr.mxu0 0.0
      %2839 = vmatpush1.msra.mxu0 0.0
      %2840 = vmatprep.subr.mxu0 0.0
      %2841 = vmatpush1.msra.mxu0 0.0
      %2842 = vmatprep.subr.mxu0 0.0
      %2843 = vmatpush1.msra.mxu0 0.0
      %2844 = vmatprep.subr.mxu0 0.0
      %2845 = vmatpush1.msra.mxu0 0.0
      %2846 = vmatprep.subr.mxu0 0.0
      %2847 = vmatpush1.msra.mxu0 0.0
      %2848 = vmatprep.mubr.f32.mxu0 0.0
      %2849 = vmatmul.mubr.f32.gmra.mrb[0].mxu0 %v2759
      %v2850 = vpop.f32.mrb[0].mxu0
      %v2851 = vadd.f32 0.0, %v2850
      %v2852 = vpop.f32.mrb[0].mxu0
      %2853 = vmatprep.mubr.f32.mxu0 0.0
      %2854 = vmatmul.mubr.f32.gmra.mrb[0].mxu0 %v2760
      %v2855 = vpop.f32.mrb[0].mxu0
      %v2856 = vadd.f32 0.0, %v2855
      %v2857 = vpop.f32.mrb[0].mxu0
      %2858 = vmatprep.mubr.f32.mxu0 0.0
      %2859 = vmatmul.mubr.f32.gmra.mrb[0].mxu0 %v2761
      %v2860 = vpop.f32.mrb[0].mxu0
      %v2861 = vadd.f32 0.0, %v2860
      %v2862 = vpop.f32.mrb[0].mxu0
      %2863 = vmatprep.mubr.f32.mxu0 0.0
      %2864 = vmatmul.mubr.f32.gmra.mrb[0].mxu0 %v2762
      %v2865 = vpop.f32.mrb[0].mxu0
      %v2866 = vadd.f32 0.0, %v2865
      %v2867 = vpop.f32.mrb[0].mxu0
      %2868 = vmatprep.mubr.f32.mxu0 0.0
      %2869 = vmatmul.mubr.f32.gmra.mrb[0].mxu0 %v2763
      %v2870 = vpop.f32.mrb[0].mxu0
      %v2871 = vadd.f32 0.0, %v2870
      %v2872 = vpop.f32.mrb[0].mxu0
      %2873 = vmatprep.mubr.f32.mxu0 0.0
      %2874 = vmatmul.mubr.f32.gmra.mrb[0].mxu0 %v2764
      %v2875 = vpop.f32.mrb[0].mxu0
      %v2876 = vadd.f32 0.0, %v2875
      %v2877 = vpop.f32.mrb[0].mxu0
      %2878 = vmatprep.mubr.f32.mxu0 0.0
      %2879 = vmatmul.mubr.f32.gmra.mrb[0].mxu0 %v2765
      %v2880 = vpop.f32.mrb[0].mxu0
      %v2881 = vadd.f32 0.0, %v2880
      %v2882 = vpop.f32.mrb[0].mxu0
      %2883 = vmatprep.mubr.f32.mxu0 0.0
      %2884 = vmatmul.mubr.f32.gmra.mrb[0].mxu0 %v2766
      %v2885 = vpop.f32.mrb[0].mxu0
      %v2886 = vadd.f32 0.0, %v2885
      %v2887 = vpop.f32.mrb[0].mxu0
      %2888 = vdwg.mxu0
      %v2889 = vadd.f32 %v2751, %v2851
      %v2890 = vadd.f32 %v2752, %v2856
      %v2891 = vadd.f32 %v2753, %v2861
      %v2892 = vadd.f32 %v2754, %v2866
      %v2893 = vadd.f32 %v2755, %v2871
      %v2894 = vadd.f32 %v2756, %v2876
      %v2895 = vadd.f32 %v2757, %v2881
      %v2896 = vadd.f32 %v2758, %v2886
      %2897 = vst [vmem:[%s278] sm:$0xff] %v2889
      %2898 = vst [vmem:[%s278 + $0x8] sm:$0xff] %v2890
      %2899 = vst [vmem:[%s278 + $0x10] sm:$0xff] %v2891
      %2900 = vst [vmem:[%s278 + $0x18] sm:$0xff] %v2892
      %2901 = vst [vmem:[%s278 + $0x20] sm:$0xff] %v2893
      %2902 = vst [vmem:[%s278 + $0x28] sm:$0xff] %v2894
      %2903 = vst [vmem:[%s278 + $0x30] sm:$0xff] %v2895
      %2904 = vst [vmem:[%s278 + $0x38] sm:$0xff] %v2896
      %p2905 = scmp.lt.s32.totalorder %s18, 1
      %s2906 = scalar_select %p2905, %s18, 1
      %s2907 = smul.addr %s2906, 8
      %s2908 = smul.addr %s2907, 8
      %s2909 = scalar_lea.vmem %s7, %s2908
      // Predicated region
      $region49: #{network_block_forward.3} parent=47 // pred_check
        %p2910 = pneg %p188
      $region50: #{network_block_forward.3} parent=47 // pred_check_branch
        %2912 = sbr.rel (%p2910) target = $region52
      $region51: #{network_block_forward.3} parent=47 // pred_region
        _
      $region52: #{network_block_forward.3} parent=47 // pred_fallthru
        _
    $region48: #{network_block_forward.3} parent=5 // pred_fallthru
      _
    %p2913 = scmp.le.s32.totalorder 2, %s13
    // Predicated region
    $region53: #{network_block_forward.3} parent=5 // pred_check
      %p2914 = pneg %p2913
    $region54: #{network_block_forward.3} parent=5 // pred_check_branch
      %2916 = sbr.rel (%p2914) target = $region56
    $region55: #{network_block_forward.3} parent=5 // pred_region
      %s2917 = ssub.s32 %s13, 2
      // Predicated region
      $region57: #{network_block_forward.3} parent=55 // pred_check
        %p2918 = pneg %p194
      $region58: #{network_block_forward.3} parent=55 // pred_check_branch
        %2920 = sbr.rel (%p2918) target = $region60
      $region59: #{network_block_forward.3} parent=55 // pred_region
        %p2921 = scmp.lt.s32.totalorder %s19, 1
        %s2922 = scalar_select %p2921, %s19, 1
        %s2923 = smul.addr %s2922, 8
        %s2924 = smul.addr %s2923, 8
        %s2925 = scalar_lea.vmem %s7, %s2924
      $region60: #{network_block_forward.3} parent=55 // pred_fallthru
        _
    $region56: #{network_block_forward.3} parent=5 // pred_fallthru
      _
  $region6: #{network_block_forward.3} parent=0 // loop_footer
    %s17 = sadd.s32 1, %s13
  $region7: #{network_block_forward.3} parent=0 // loop_footer_branch
    %12 = sbr.rel target = $region3
  $region8: #{network_block_forward.3} parent=0 // loop_exit
    _

// kernel: network_block_forward.2
$region0: #{network_block_forward.2}
  #allocation0 [shape = 'u32[]', space=smem, size = 0x4, offset = 0x4, fixed_abs, tag = 'smem constant byte address 0x4 - core index']
  #allocation1 [shape = 'u32[144,128]{1,0:T(1,128)}', space=vmem, size = 0x12000, scoped, tag = 'internal scratch']
  #allocation2 [shape = 'f32[18,18,128]{2,1,0:T(8,128)}', space=vmem, size = 0x36000, scoped, tag = 'scratch operand']
  #allocation3 [shape = 'f32[10,10,128]{2,1,0:T(8,128)}', space=vmem, size = 0x14000, scoped, tag = 'scratch operand']
  %s0 = inlined_call_operand.vmem [shape: f32[2,16,16,128], index: 0, kind: input, shape index: {}]
  %s1 = inlined_call_operand.vmem [shape: f32[1,128], index: 1, kind: input, shape index: {}]
  %s2 = inlined_call_operand.vmem [shape: f32[1,128], index: 2, kind: input, shape index: {}]
  %s3 = inlined_call_operand.vmem [shape: f32[9,128,128], index: 3, kind: input, shape index: {}]
  %s4 = inlined_call_operand.vmem [shape: f32[1,128], index: 4, kind: input, shape index: {}]
  %s5 = inlined_call_operand.vmem [shape: f32[1,128], index: 5, kind: input, shape index: {}]
  %s6 = inlined_call_operand.vmem [shape: f32[9,128,128], index: 6, kind: input, shape index: {}]
  %s7 = inlined_call_operand.vmem [shape: f32[128,128], index: 7, kind: input, shape index: {}]
  %s8 = inlined_call_operand.vmem [shape: f32[2,8,8,128], index: 8, kind: output, shape index: {}]
  %s9 = sld [smem:[#allocation0]]
  $region65: #{network_block_forward.2} parent=0
    _
  %s11 = ssub.s32 1, %s9
  %s12 = scalar_select 0, %s11, %s9
  loop: start=0, step=1, limit=4
  $region2: #{network_block_forward.2} parent=0 // loop_pre_header
    _
  $region3: #{network_block_forward.2} parent=0 // loop_header
    %s14 = sphi 0, %s18
    %p15 = scmp.ge.s32.totalorder %s14, 4
    %s24 = sphi 0, %s26
    %s27 = sphi 0, %s24
    %s28 = sphi 0, %s27
    %s44 = sphi 0, %s28
    %s48 = sphi 0, %s48
    %s50 = sphi 0, %s48
    %s51 = sphi 0, %s50
    %s65 = sphi 0, %s51
    %s69 = sphi 0, %s69
    %s71 = sphi 0, %s69
    %s72 = sphi 0, %s71
    %s86 = sphi 0, %s72
    %s90 = sphi 0, %s90
    %s92 = sphi 0, %s90
    %s93 = sphi 0, %s92
    %s107 = sphi 0, %s93
    %s111 = sphi 0, %s111
    %s113 = sphi 0, %s111
    %s114 = sphi 0, %s113
    %s128 = sphi 0, %s114
    %s132 = sphi 0, %s132
    %s134 = sphi 0, %s132
    %s135 = sphi 0, %s134
    %s149 = sphi 0, %s135
    %s153 = sphi 0, %s153
    %s155 = sphi 0, %s153
    %s156 = sphi 0, %s155
    %s170 = sphi 0, %s156
    %s174 = sphi 0, %s174
    %s176 = sphi 0, %s174
    %s177 = sphi 0, %s176
    %s191 = sphi 0, %s177
    %s197 = sphi 0, %s199
    %s200 = sphi 0, %s197
    %s201 = sphi 0, %s200
    %s217 = sphi 0, %s201
  $region4: #{network_block_forward.2} parent=0 // loop_header_branch
    %17 = sbr.rel (%p15) target = $region8
  $region5: #{network_block_forward.2} parent=0 // loop_body
    %s19 = ssub.s32 %s14, 1
    %s20 = ssub.s32 %s14, 2
    %s21 = sadd.s32 %s14, 1
    %s22 = ssub.s32 %s14, %s21
    %p23 = scmp.eq.s32.totalorder %s22, 0
    %s25 = sadd.s32 %s24, 1
    %s26 = scalar_select %p23, %s24, %s25
    %p29 = pneg %p23
    %p30 = scmp.eq.s32.totalorder %s14, 1
    %p31 = por %p29, %p30
    %p32 = scmp.ne.s32.totalorder %s24, %s27
    %p33 = scmp.eq.s32.totalorder %s14, 0
    %p34 = por %p32, %p33
    %p35 = scmp.ne.s32.totalorder %s24, %s27
    %p36 = scmp.eq.s32.totalorder %s19, 1
    %p37 = por %p35, %p36
    %p38 = scmp.ne.s32.totalorder %s27, %s28
    %p39 = scmp.eq.s32.totalorder %s19, 0
    %p40 = por %p38, %p39
    %p41 = scmp.ne.s32.totalorder %s27, %s28
    %p42 = scmp.eq.s32.totalorder %s20, 1
    %p43 = por %p41, %p42
    %p45 = scmp.ne.s32.totalorder %s28, %s44
    %p46 = scmp.eq.s32.totalorder %s20, 0
    %p47 = por %p45, %p46
    %s49 = sadd.s32 %s48, 1
    %p52 = scmp.eq.s32.totalorder %s14, 1
    %p53 = scmp.ne.s32.totalorder %s48, %s50
    %p54 = scmp.eq.s32.totalorder %s14, 0
    %p55 = por %p53, %p54
    %p56 = scmp.ne.s32.totalorder %s48, %s50
    %p57 = scmp.eq.s32.totalorder %s19, 1
    %p58 = por %p56, %p57
    %p59 = scmp.ne.s32.totalorder %s50, %s51
    %p60 = scmp.eq.s32.totalorder %s19, 0
    %p61 = por %p59, %p60
    %p62 = scmp.ne.s32.totalorder %s50, %s51
    %p63 = scmp.eq.s32.totalorder %s20, 1
    %p64 = por %p62, %p63
    %p66 = scmp.ne.s32.totalorder %s51, %s65
    %p67 = scmp.eq.s32.totalorder %s20, 0
    %p68 = por %p66, %p67
    %s70 = sadd.s32 %s69, 1
    %p73 = scmp.eq.s32.totalorder %s14, 1
    %p74 = scmp.ne.s32.totalorder %s69, %s71
    %p75 = scmp.eq.s32.totalorder %s14, 0
    %p76 = por %p74, %p75
    %p77 = scmp.ne.s32.totalorder %s69, %s71
    %p78 = scmp.eq.s32.totalorder %s19, 1
    %p79 = por %p77, %p78
    %p80 = scmp.ne.s32.totalorder %s71, %s72
    %p81 = scmp.eq.s32.totalorder %s19, 0
    %p82 = por %p80, %p81
    %p83 = scmp.ne.s32.totalorder %s71, %s72
    %p84 = scmp.eq.s32.totalorder %s20, 1
    %p85 = por %p83, %p84
    %p87 = scmp.ne.s32.totalorder %s72, %s86
    %p88 = scmp.eq.s32.totalorder %s20, 0
    %p89 = por %p87, %p88
    %s91 = sadd.s32 %s90, 1
    %p94 = scmp.eq.s32.totalorder %s14, 1
    %p95 = scmp.ne.s32.totalorder %s90, %s92
    %p96 = scmp.eq.s32.totalorder %s14, 0
    %p97 = por %p95, %p96
    %p98 = scmp.ne.s32.totalorder %s90, %s92
    %p99 = scmp.eq.s32.totalorder %s19, 1
    %p100 = por %p98, %p99
    %p101 = scmp.ne.s32.totalorder %s92, %s93
    %p102 = scmp.eq.s32.totalorder %s19, 0
    %p103 = por %p101, %p102
    %p104 = scmp.ne.s32.totalorder %s92, %s93
    %p105 = scmp.eq.s32.totalorder %s20, 1
    %p106 = por %p104, %p105
    %p108 = scmp.ne.s32.totalorder %s93, %s107
    %p109 = scmp.eq.s32.totalorder %s20, 0
    %p110 = por %p108, %p109
    %s112 = sadd.s32 %s111, 1
    %p115 = scmp.eq.s32.totalorder %s14, 1
    %p116 = scmp.ne.s32.totalorder %s111, %s113
    %p117 = scmp.eq.s32.totalorder %s14, 0
    %p118 = por %p116, %p117
    %p119 = scmp.ne.s32.totalorder %s111, %s113
    %p120 = scmp.eq.s32.totalorder %s19, 1
    %p121 = por %p119, %p120
    %p122 = scmp.ne.s32.totalorder %s113, %s114
    %p123 = scmp.eq.s32.totalorder %s19, 0
    %p124 = por %p122, %p123
    %p125 = scmp.ne.s32.totalorder %s113, %s114
    %p126 = scmp.eq.s32.totalorder %s20, 1
    %p127 = por %p125, %p126
    %p129 = scmp.ne.s32.totalorder %s114, %s128
    %p130 = scmp.eq.s32.totalorder %s20, 0
    %p131 = por %p129, %p130
    %s133 = sadd.s32 %s132, 1
    %p136 = scmp.eq.s32.totalorder %s14, 1
    %p137 = scmp.ne.s32.totalorder %s132, %s134
    %p138 = scmp.eq.s32.totalorder %s14, 0
    %p139 = por %p137, %p138
    %p140 = scmp.ne.s32.totalorder %s132, %s134
    %p141 = scmp.eq.s32.totalorder %s19, 1
    %p142 = por %p140, %p141
    %p143 = scmp.ne.s32.totalorder %s134, %s135
    %p144 = scmp.eq.s32.totalorder %s19, 0
    %p145 = por %p143, %p144
    %p146 = scmp.ne.s32.totalorder %s134, %s135
    %p147 = scmp.eq.s32.totalorder %s20, 1
    %p148 = por %p146, %p147
    %p150 = scmp.ne.s32.totalorder %s135, %s149
    %p151 = scmp.eq.s32.totalorder %s20, 0
    %p152 = por %p150, %p151
    %s154 = sadd.s32 %s153, 1
    %p157 = scmp.eq.s32.totalorder %s14, 1
    %p158 = scmp.ne.s32.totalorder %s153, %s155
    %p159 = scmp.eq.s32.totalorder %s14, 0
    %p160 = por %p158, %p159
    %p161 = scmp.ne.s32.totalorder %s153, %s155
    %p162 = scmp.eq.s32.totalorder %s19, 1
    %p163 = por %p161, %p162
    %p164 = scmp.ne.s32.totalorder %s155, %s156
    %p165 = scmp.eq.s32.totalorder %s19, 0
    %p166 = por %p164, %p165
    %p167 = scmp.ne.s32.totalorder %s155, %s156
    %p168 = scmp.eq.s32.totalorder %s20, 1
    %p169 = por %p167, %p168
    %p171 = scmp.ne.s32.totalorder %s156, %s170
    %p172 = scmp.eq.s32.totalorder %s20, 0
    %p173 = por %p171, %p172
    %s175 = sadd.s32 %s174, 1
    %p178 = scmp.eq.s32.totalorder %s14, 1
    %p179 = scmp.ne.s32.totalorder %s174, %s176
    %p180 = scmp.eq.s32.totalorder %s14, 0
    %p181 = por %p179, %p180
    %p182 = scmp.ne.s32.totalorder %s174, %s176
    %p183 = scmp.eq.s32.totalorder %s19, 1
    %p184 = por %p182, %p183
    %p185 = scmp.ne.s32.totalorder %s176, %s177
    %p186 = scmp.eq.s32.totalorder %s19, 0
    %p187 = por %p185, %p186
    %p188 = scmp.ne.s32.totalorder %s176, %s177
    %p189 = scmp.eq.s32.totalorder %s20, 1
    %p190 = por %p188, %p189
    %p192 = scmp.ne.s32.totalorder %s177, %s191
    %p193 = scmp.eq.s32.totalorder %s20, 0
    %p194 = por %p192, %p193
    %s195 = ssub.s32 %s14, %s21
    %p196 = scmp.eq.s32.totalorder %s195, 0
    %s198 = sadd.s32 %s197, 1
    %s199 = scalar_select %p196, %s197, %s198
    %p202 = pneg %p196
    %p203 = scmp.eq.s32.totalorder %s14, 1
    %p204 = por %p202, %p203
    %p205 = scmp.ne.s32.totalorder %s197, %s200
    %p206 = scmp.eq.s32.totalorder %s14, 0
    %p207 = por %p205, %p206
    %p208 = scmp.ne.s32.totalorder %s197, %s200
    %p209 = scmp.eq.s32.totalorder %s19, 1
    %p210 = por %p208, %p209
    %p211 = scmp.ne.s32.totalorder %s200, %s201
    %p212 = scmp.eq.s32.totalorder %s19, 0
    %p213 = por %p211, %p212
    %p214 = scmp.ne.s32.totalorder %s200, %s201
    %p215 = scmp.eq.s32.totalorder %s20, 1
    %p216 = por %p214, %p215
    %p218 = scmp.ne.s32.totalorder %s201, %s217
    %p219 = scmp.eq.s32.totalorder %s20, 0
    %p220 = por %p218, %p219
    %p221 = scmp.le.s32.totalorder 1, %s14
    %p222 = scmp.lt.s32.totalorder %s14, 3
    %p223 = pnand %p221, %p222
    %p224 = pneg %p223
    // Predicated region
    $region9: #{network_block_forward.2} parent=5 // pred_check
      _
    $region10: #{network_block_forward.2} parent=5 // pred_check_branch
      %226 = sbr.rel (%p223) target = $region12
    $region11: #{network_block_forward.2} parent=5 // pred_region
      %s227 = ssub.s32 %s14, 1
      // Predicated region
      $region13: #{network_block_forward.2} parent=11 // pred_check
        %p228 = pneg %p61
      $region14: #{network_block_forward.2} parent=11 // pred_check_branch
        %230 = sbr.rel (%p228) target = $region16
      $region15: #{network_block_forward.2} parent=11 // pred_region
        _
      $region16: #{network_block_forward.2} parent=11 // pred_fallthru
        _
      // Predicated region
      $region17: #{network_block_forward.2} parent=11 // pred_check
        %p231 = pneg %p82
      $region18: #{network_block_forward.2} parent=11 // pred_check_branch
        %233 = sbr.rel (%p231) target = $region20
      $region19: #{network_block_forward.2} parent=11 // pred_region
        _
      $region20: #{network_block_forward.2} parent=11 // pred_fallthru
        _
      // Predicated region
      $region21: #{network_block_forward.2} parent=11 // pred_check
        %p234 = pneg %p103
      $region22: #{network_block_forward.2} parent=11 // pred_check_branch
        %236 = sbr.rel (%p234) target = $region24
      $region23: #{network_block_forward.2} parent=11 // pred_region
        _
      $region24: #{network_block_forward.2} parent=11 // pred_fallthru
        _
      // Predicated region
      $region25: #{network_block_forward.2} parent=11 // pred_check
        %p237 = pneg %p124
      $region26: #{network_block_forward.2} parent=11 // pred_check_branch
        %239 = sbr.rel (%p237) target = $region28
      $region27: #{network_block_forward.2} parent=11 // pred_region
        _
      $region28: #{network_block_forward.2} parent=11 // pred_fallthru
        _
      // Predicated region
      $region29: #{network_block_forward.2} parent=11 // pred_check
        %p240 = pneg %p145
      $region30: #{network_block_forward.2} parent=11 // pred_check_branch
        %242 = sbr.rel (%p240) target = $region32
      $region31: #{network_block_forward.2} parent=11 // pred_region
        _
      $region32: #{network_block_forward.2} parent=11 // pred_fallthru
        _
      // Predicated region
      $region33: #{network_block_forward.2} parent=11 // pred_check
        %p243 = pneg %p166
      $region34: #{network_block_forward.2} parent=11 // pred_check_branch
        %245 = sbr.rel (%p243) target = $region36
      $region35: #{network_block_forward.2} parent=11 // pred_region
        _
      $region36: #{network_block_forward.2} parent=11 // pred_fallthru
        _
      // Predicated region
      $region37: #{network_block_forward.2} parent=11 // pred_check
        %p246 = pneg %p187
      $region38: #{network_block_forward.2} parent=11 // pred_check_branch
        %248 = sbr.rel (%p246) target = $region40
      $region39: #{network_block_forward.2} parent=11 // pred_region
        _
      $region40: #{network_block_forward.2} parent=11 // pred_fallthru
        _
    $region12: #{network_block_forward.2} parent=5 // pred_fallthru
      _
    %p249 = scmp.lt.s32.totalorder %s14, 2
    // Predicated region
    $region41: #{network_block_forward.2} parent=5 // pred_check
      %p250 = pneg %p249
    $region42: #{network_block_forward.2} parent=5 // pred_check_branch
      %252 = sbr.rel (%p250) target = $region44
    $region43: #{network_block_forward.2} parent=5 // pred_region
      // Predicated region
      $region45: #{network_block_forward.2} parent=43 // pred_check
        %p253 = pneg %p34
      $region46: #{network_block_forward.2} parent=43 // pred_check_branch
        %255 = sbr.rel (%p253) target = $region48
      $region47: #{network_block_forward.2} parent=43 // pred_region
        %p256 = scmp.lt.s32.totalorder %s14, 1
        %s257 = scalar_select %p256, %s14, 1
        %s258 = smul.addr %s257, 32
        %s259 = smul.addr %s258, 8
        %s260 = scalar_lea.vmem %s0, %s259
      $region48: #{network_block_forward.2} parent=43 // pred_fallthru
        _
    $region44: #{network_block_forward.2} parent=5 // pred_fallthru
      _
    %p261 = scmp.le.s32.totalorder 1, %s14
    %p262 = scmp.lt.s32.totalorder %s14, 3
    %p263 = pnand %p261, %p262
    %p264 = pneg %p263
    // Predicated region
    $region49: #{network_block_forward.2} parent=5 // pred_check
      _
    $region50: #{network_block_forward.2} parent=5 // pred_check_branch
      %266 = sbr.rel (%p263) target = $region52
    $region51: #{network_block_forward.2} parent=5 // pred_region
      %s267 = ssub.s32 %s14, 1
      %p268 = scmp.lt.s32.totalorder %s19, 1
      %s269 = scalar_select %p268, %s19, 1
      %s270 = smul.addr %s269, 32
      %s271 = smul.addr %s270, 8
      %s272 = scalar_lea.vmem %s0, %s271
      %p273 = pneg %p40
      %p274 = pneg %p37
      %p275 = pneg %p61
      %p276 = pneg %p58
      %p277 = pneg %p82
      %p278 = pneg %p79
      %p279 = pneg %p103
      %p280 = pneg %p100
      %p281 = pneg %p124
      %p282 = pneg %p121
      %p283 = pneg %p145
      %p284 = pneg %p142
      %p285 = pneg %p166
      %p286 = pneg %p163
      %p287 = pneg %p187
      %p288 = pneg %p184
      %p289 = pneg %p213
      %p290 = pneg %p210
      %p291 = scmp.lt.s32.totalorder %s19, 1
      %s292 = scalar_select %p291, %s19, 1
      %s293 = smul.addr %s292, 8
      %s294 = smul.addr %s293, 8
      %s295 = scalar_lea.vmem %s8, %s294
      %p296 = scmp.lt.s32.totalorder %s19, 1
      %s297 = scalar_select %p296, %s19, 1
      %s298 = smul.addr %s297, 32
      %s299 = smul.addr %s298, 8
      %s300 = scalar_lea.vmem %s0, %s299
      %p301 = scmp.lt.s32.totalorder %s19, 1
      %s302 = scalar_select %p301, %s19, 1
      %s303 = smul.addr %s302, 8
      %s304 = smul.addr %s303, 8
      %s305 = scalar_lea.vmem %s8, %s304
      %306 = vst [vmem:[#allocation2] sm:$0xff] 0.0
      %307 = vst [vmem:[#allocation2 + $0x8] sm:$0xff] 0.0
      %308 = vst [vmem:[#allocation2 + $0x10] sm:$0x3] 0.0
      %309 = vst [vmem:[#allocation2 + $0x18] sm:$0xff] 0.0
      %310 = vst [vmem:[#allocation2 + $0x20] sm:$0xff] 0.0
      %311 = vst [vmem:[#allocation2 + $0x28] sm:$0x3] 0.0
      %312 = vst [vmem:[#allocation2 + $0x30] sm:$0xff] 0.0
      %313 = vst [vmem:[#allocation2 + $0x38] sm:$0xff] 0.0
      %314 = vst [vmem:[#allocation2 + $0x40] sm:$0x3] 0.0
      %315 = vst [vmem:[#allocation2 + $0x48] sm:$0xff] 0.0
      %316 = vst [vmem:[#allocation2 + $0x50] sm:$0xff] 0.0
      %317 = vst [vmem:[#allocation2 + $0x58] sm:$0x3] 0.0
      %318 = vst [vmem:[#allocation2 + $0x60] sm:$0xff] 0.0
      %319 = vst [vmem:[#allocation2 + $0x68] sm:$0xff] 0.0
      %320 = vst [vmem:[#allocation2 + $0x70] sm:$0x3] 0.0
      %321 = vst [vmem:[#allocation2 + $0x78] sm:$0xff] 0.0
      %322 = vst [vmem:[#allocation2 + $0x80] sm:$0xff] 0.0
      %323 = vst [vmem:[#allocation2 + $0x88] sm:$0x3] 0.0
      %324 = vst [vmem:[#allocation2 + $0x90] sm:$0xff] 0.0
      %325 = vst [vmem:[#allocation2 + $0x98] sm:$0xff] 0.0
      %326 = vst [vmem:[#allocation2 + $0xa0] sm:$0x3] 0.0
      %327 = vst [vmem:[#allocation2 + $0xa8] sm:$0xff] 0.0
      %328 = vst [vmem:[#allocation2 + $0xb0] sm:$0xff] 0.0
      %329 = vst [vmem:[#allocation2 + $0xb8] sm:$0x3] 0.0
      %330 = vst [vmem:[#allocation2 + $0xc0] sm:$0xff] 0.0
      %331 = vst [vmem:[#allocation2 + $0xc8] sm:$0xff] 0.0
      %332 = vst [vmem:[#allocation2 + $0xd0] sm:$0x3] 0.0
      %333 = vst [vmem:[#allocation2 + $0xd8] sm:$0xff] 0.0
      %334 = vst [vmem:[#allocation2 + $0xe0] sm:$0xff] 0.0
      %335 = vst [vmem:[#allocation2 + $0xe8] sm:$0x3] 0.0
      %336 = vst [vmem:[#allocation2 + $0xf0] sm:$0xff] 0.0
      %337 = vst [vmem:[#allocation2 + $0xf8] sm:$0xff] 0.0
      %338 = vst [vmem:[#allocation2 + $0x100] sm:$0x3] 0.0
      %339 = vst [vmem:[#allocation2 + $0x108] sm:$0xff] 0.0
      %340 = vst [vmem:[#allocation2 + $0x110] sm:$0xff] 0.0
      %341 = vst [vmem:[#allocation2 + $0x118] sm:$0x3] 0.0
      %342 = vst [vmem:[#allocation2 + $0x120] sm:$0xff] 0.0
      %343 = vst [vmem:[#allocation2 + $0x128] sm:$0xff] 0.0
      %344 = vst [vmem:[#allocation2 + $0x130] sm:$0x3] 0.0
      %345 = vst [vmem:[#allocation2 + $0x138] sm:$0xff] 0.0
      %346 = vst [vmem:[#allocation2 + $0x140] sm:$0xff] 0.0
      %347 = vst [vmem:[#allocation2 + $0x148] sm:$0x3] 0.0
      %348 = vst [vmem:[#allocation2 + $0x150] sm:$0xff] 0.0
      %349 = vst [vmem:[#allocation2 + $0x158] sm:$0xff] 0.0
      %350 = vst [vmem:[#allocation2 + $0x160] sm:$0x3] 0.0
      %351 = vst [vmem:[#allocation2 + $0x168] sm:$0xff] 0.0
      %352 = vst [vmem:[#allocation2 + $0x170] sm:$0xff] 0.0
      %353 = vst [vmem:[#allocation2 + $0x178] sm:$0x3] 0.0
      %354 = vst [vmem:[#allocation2 + $0x180] sm:$0xff] 0.0
      %355 = vst [vmem:[#allocation2 + $0x188] sm:$0xff] 0.0
      %356 = vst [vmem:[#allocation2 + $0x190] sm:$0x3] 0.0
      %357 = vst [vmem:[#allocation2 + $0x198] sm:$0xff] 0.0
      %358 = vst [vmem:[#allocation2 + $0x1a0] sm:$0xff] 0.0
      %359 = vst [vmem:[#allocation2 + $0x1a8] sm:$0x3] 0.0
      %v360 = vld [vmem:[%s300] sm:$0xff]
      %v361 = vld [vmem:[%s300 + $0x8] sm:$0xff]
      %v362 = vld [vmem:[%s300 + $0x10] sm:$0xff]
      %v363 = vld [vmem:[%s300 + $0x18] sm:$0xff]
      %v364 = vld [vmem:[%s300 + $0x20] sm:$0xff]
      %v365 = vld [vmem:[%s300 + $0x28] sm:$0xff]
      %v366 = vld [vmem:[%s300 + $0x30] sm:$0xff]
      %v367 = vld [vmem:[%s300 + $0x38] sm:$0xff]
      %v368 = vld [vmem:[%s300 + $0x40] sm:$0xff]
      %v369 = vld [vmem:[%s300 + $0x48] sm:$0xff]
      %v370 = vld [vmem:[%s300 + $0x50] sm:$0xff]
      %v371 = vld [vmem:[%s300 + $0x58] sm:$0xff]
      %v372 = vld [vmem:[%s300 + $0x60] sm:$0xff]
      %v373 = vld [vmem:[%s300 + $0x68] sm:$0xff]
      %v374 = vld [vmem:[%s300 + $0x70] sm:$0xff]
      %v375 = vld [vmem:[%s300 + $0x78] sm:$0xff]
      %v376 = vld [vmem:[%s300 + $0x80] sm:$0xff]
      %v377 = vld [vmem:[%s300 + $0x88] sm:$0xff]
      %v378 = vld [vmem:[%s300 + $0x90] sm:$0xff]
      %v379 = vld [vmem:[%s300 + $0x98] sm:$0xff]
      %v380 = vld [vmem:[%s300 + $0xa0] sm:$0xff]
      %v381 = vld [vmem:[%s300 + $0xa8] sm:$0xff]
      %v382 = vld [vmem:[%s300 + $0xb0] sm:$0xff]
      %v383 = vld [vmem:[%s300 + $0xb8] sm:$0xff]
      %v384 = vld [vmem:[%s300 + $0xc0] sm:$0xff]
      %v385 = vld [vmem:[%s300 + $0xc8] sm:$0xff]
      %v386 = vld [vmem:[%s300 + $0xd0] sm:$0xff]
      %v387 = vld [vmem:[%s300 + $0xd8] sm:$0xff]
      %v388 = vld [vmem:[%s300 + $0xe0] sm:$0xff]
      %v389 = vld [vmem:[%s300 + $0xe8] sm:$0xff]
      %v390 = vld [vmem:[%s300 + $0xf0] sm:$0xff]
      %v391 = vld [vmem:[%s300 + $0xf8] sm:$0xff]
      %v392 = vld [vmem:[%s1] sm:$0x1]
      %v394 = vlaneseq
      %v395 = vshrl.u32 %v394, 7
      %v396 = vsub.s32 0, %v395
      %v397 = vrot.slane %v392, %v396
      %v399 = vmul.f32 %v360, %v397
      %v400 = vmul.f32 %v361, %v397
      %v401 = vmul.f32 %v362, %v397
      %v402 = vmul.f32 %v363, %v397
      %v403 = vmul.f32 %v364, %v397
      %v404 = vmul.f32 %v365, %v397
      %v405 = vmul.f32 %v366, %v397
      %v406 = vmul.f32 %v367, %v397
      %v407 = vmul.f32 %v368, %v397
      %v408 = vmul.f32 %v369, %v397
      %v409 = vmul.f32 %v370, %v397
      %v410 = vmul.f32 %v371, %v397
      %v411 = vmul.f32 %v372, %v397
      %v412 = vmul.f32 %v373, %v397
      %v413 = vmul.f32 %v374, %v397
      %v414 = vmul.f32 %v375, %v397
      %v415 = vmul.f32 %v376, %v397
      %v416 = vmul.f32 %v377, %v397
      %v417 = vmul.f32 %v378, %v397
      %v418 = vmul.f32 %v379, %v397
      %v419 = vmul.f32 %v380, %v397
      %v420 = vmul.f32 %v381, %v397
      %v421 = vmul.f32 %v382, %v397
      %v422 = vmul.f32 %v383, %v397
      %v423 = vmul.f32 %v384, %v397
      %v424 = vmul.f32 %v385, %v397
      %v425 = vmul.f32 %v386, %v397
      %v426 = vmul.f32 %v387, %v397
      %v427 = vmul.f32 %v388, %v397
      %v428 = vmul.f32 %v389, %v397
      %v429 = vmul.f32 %v390, %v397
      %v430 = vmul.f32 %v391, %v397
      %v431 = vld [vmem:[%s2] sm:$0x1]
      %v433 = vlaneseq
      %v434 = vshrl.u32 %v433, 7
      %v435 = vsub.s32 0, %v434
      %v436 = vrot.slane %v431, %v435
      %v438 = vadd.f32 %v399, %v436
      %v439 = vadd.f32 %v400, %v436
      %v440 = vadd.f32 %v401, %v436
      %v441 = vadd.f32 %v402, %v436
      %v442 = vadd.f32 %v403, %v436
      %v443 = vadd.f32 %v404, %v436
      %v444 = vadd.f32 %v405, %v436
      %v445 = vadd.f32 %v406, %v436
      %v446 = vadd.f32 %v407, %v436
      %v447 = vadd.f32 %v408, %v436
      %v448 = vadd.f32 %v409, %v436
      %v449 = vadd.f32 %v410, %v436
      %v450 = vadd.f32 %v411, %v436
      %v451 = vadd.f32 %v412, %v436
      %v452 = vadd.f32 %v413, %v436
      %v453 = vadd.f32 %v414, %v436
      %v454 = vadd.f32 %v415, %v436
      %v455 = vadd.f32 %v416, %v436
      %v456 = vadd.f32 %v417, %v436
      %v457 = vadd.f32 %v418, %v436
      %v458 = vadd.f32 %v419, %v436
      %v459 = vadd.f32 %v420, %v436
      %v460 = vadd.f32 %v421, %v436
      %v461 = vadd.f32 %v422, %v436
      %v462 = vadd.f32 %v423, %v436
      %v463 = vadd.f32 %v424, %v436
      %v464 = vadd.f32 %v425, %v436
      %v465 = vadd.f32 %v426, %v436
      %v466 = vadd.f32 %v427, %v436
      %v467 = vadd.f32 %v428, %v436
      %v468 = vadd.f32 %v429, %v436
      %v469 = vadd.f32 %v430, %v436
      %v470 = vmax.f32 %v438, 0.0
      %v471 = vmax.f32 %v439, 0.0
      %v472 = vmax.f32 %v440, 0.0
      %v473 = vmax.f32 %v441, 0.0
      %v474 = vmax.f32 %v442, 0.0
      %v475 = vmax.f32 %v443, 0.0
      %v476 = vmax.f32 %v444, 0.0
      %v477 = vmax.f32 %v445, 0.0
      %v478 = vmax.f32 %v446, 0.0
      %v479 = vmax.f32 %v447, 0.0
      %v480 = vmax.f32 %v448, 0.0
      %v481 = vmax.f32 %v449, 0.0
      %v482 = vmax.f32 %v450, 0.0
      %v483 = vmax.f32 %v451, 0.0
      %v484 = vmax.f32 %v452, 0.0
      %v485 = vmax.f32 %v453, 0.0
      %v486 = vmax.f32 %v454, 0.0
      %v487 = vmax.f32 %v455, 0.0
      %v488 = vmax.f32 %v456, 0.0
      %v489 = vmax.f32 %v457, 0.0
      %v490 = vmax.f32 %v458, 0.0
      %v491 = vmax.f32 %v459, 0.0
      %v492 = vmax.f32 %v460, 0.0
      %v493 = vmax.f32 %v461, 0.0
      %v494 = vmax.f32 %v462, 0.0
      %v495 = vmax.f32 %v463, 0.0
      %v496 = vmax.f32 %v464, 0.0
      %v497 = vmax.f32 %v465, 0.0
      %v498 = vmax.f32 %v466, 0.0
      %v499 = vmax.f32 %v467, 0.0
      %v500 = vmax.f32 %v468, 0.0
      %v501 = vmax.f32 %v469, 0.0
      %s502 = scalar_lea.vmem [#allocation2], 24
      %503 = vst [vmem:[%s502 + $0x1] sm:$0xff] %v470
      %504 = vst [vmem:[%s502 + $0x9] sm:$0xff] %v471
      %505 = vst [vmem:[%s502 + $0x19] sm:$0xff] %v472
      %506 = vst [vmem:[%s502 + $0x21] sm:$0xff] %v473
      %507 = vst [vmem:[%s502 + $0x31] sm:$0xff] %v474
      %508 = vst [vmem:[%s502 + $0x39] sm:$0xff] %v475
      %509 = vst [vmem:[%s502 + $0x49] sm:$0xff] %v476
      %510 = vst [vmem:[%s502 + $0x51] sm:$0xff] %v477
      %511 = vst [vmem:[%s502 + $0x61] sm:$0xff] %v478
      %512 = vst [vmem:[%s502 + $0x69] sm:$0xff] %v479
      %513 = vst [vmem:[%s502 + $0x79] sm:$0xff] %v480
      %514 = vst [vmem:[%s502 + $0x81] sm:$0xff] %v481
      %515 = vst [vmem:[%s502 + $0x91] sm:$0xff] %v482
      %516 = vst [vmem:[%s502 + $0x99] sm:$0xff] %v483
      %517 = vst [vmem:[%s502 + $0xa9] sm:$0xff] %v484
      %518 = vst [vmem:[%s502 + $0xb1] sm:$0xff] %v485
      %519 = vst [vmem:[%s502 + $0xc1] sm:$0xff] %v486
      %520 = vst [vmem:[%s502 + $0xc9] sm:$0xff] %v487
      %521 = vst [vmem:[%s502 + $0xd9] sm:$0xff] %v488
      %522 = vst [vmem:[%s502 + $0xe1] sm:$0xff] %v489
      %523 = vst [vmem:[%s502 + $0xf1] sm:$0xff] %v490
      %524 = vst [vmem:[%s502 + $0xf9] sm:$0xff] %v491
      %525 = vst [vmem:[%s502 + $0x109] sm:$0xff] %v492
      %526 = vst [vmem:[%s502 + $0x111] sm:$0xff] %v493
      %527 = vst [vmem:[%s502 + $0x121] sm:$0xff] %v494
      %528 = vst [vmem:[%s502 + $0x129] sm:$0xff] %v495
      %529 = vst [vmem:[%s502 + $0x139] sm:$0xff] %v496
      %530 = vst [vmem:[%s502 + $0x141] sm:$0xff] %v497
      %531 = vst [vmem:[%s502 + $0x151] sm:$0xff] %v498
      %532 = vst [vmem:[%s502 + $0x159] sm:$0xff] %v499
      %533 = vst [vmem:[%s502 + $0x169] sm:$0xff] %v500
      %534 = vst [vmem:[%s502 + $0x171] sm:$0xff] %v501
      %v535 = vld [vmem:[#allocation2] ss:$2 sm:$0xff]
      %s536 = scalar_lea.vmem [#allocation2], 48
      %v537 = vld [vmem:[%s536] ss:$2 sm:$0xff]
      %s538 = scalar_lea.vmem [#allocation2], 96
      %v539 = vld [vmem:[%s538] ss:$2 sm:$0xff]
      %s540 = scalar_lea.vmem [#allocation2], 144
      %v541 = vld [vmem:[%s540] ss:$2 sm:$0xff]
      %s542 = scalar_lea.vmem [#allocation2], 192
      %v543 = vld [vmem:[%s542] ss:$2 sm:$0xff]
      %s544 = scalar_lea.vmem [#allocation2], 240
      %v545 = vld [vmem:[%s544] ss:$2 sm:$0xff]
      %s546 = scalar_lea.vmem [#allocation2], 288
      %v547 = vld [vmem:[%s546] ss:$2 sm:$0xff]
      %s548 = scalar_lea.vmem [#allocation2], 336
      %v549 = vld [vmem:[%s548] ss:$2 sm:$0xff]
      %v550 = vld [vmem:[%s3] sm:$0xff]
      %v551 = vld [vmem:[%s3 + $0x8] sm:$0xff]
      %v552 = vld [vmem:[%s3 + $0x10] sm:$0xff]
      %v553 = vld [vmem:[%s3 + $0x18] sm:$0xff]
      %v554 = vld [vmem:[%s3 + $0x20] sm:$0xff]
      %v555 = vld [vmem:[%s3 + $0x28] sm:$0xff]
      %v556 = vld [vmem:[%s3 + $0x30] sm:$0xff]
      %v557 = vld [vmem:[%s3 + $0x38] sm:$0xff]
      %v558 = vld [vmem:[%s3 + $0x40] sm:$0xff]
      %v559 = vld [vmem:[%s3 + $0x48] sm:$0xff]
      %v560 = vld [vmem:[%s3 + $0x50] sm:$0xff]
      %v561 = vld [vmem:[%s3 + $0x58] sm:$0xff]
      %v562 = vld [vmem:[%s3 + $0x60] sm:$0xff]
      %v563 = vld [vmem:[%s3 + $0x68] sm:$0xff]
      %v564 = vld [vmem:[%s3 + $0x70] sm:$0xff]
      %v565 = vld [vmem:[%s3 + $0x78] sm:$0xff]
      %s566 = scalar_lea.vmem [#allocation2], 1
      %v567 = vld [vmem:[%s566] ss:$2 sm:$0xff]
      %s568 = scalar_lea.vmem [#allocation2], 49
      %v569 = vld [vmem:[%s568] ss:$2 sm:$0xff]
      %s570 = scalar_lea.vmem [#allocation2], 97
      %v571 = vld [vmem:[%s570] ss:$2 sm:$0xff]
      %s572 = scalar_lea.vmem [#allocation2], 145
      %v573 = vld [vmem:[%s572] ss:$2 sm:$0xff]
      %s574 = scalar_lea.vmem [#allocation2], 193
      %v575 = vld [vmem:[%s574] ss:$2 sm:$0xff]
      %s576 = scalar_lea.vmem [#allocation2], 241
      %v577 = vld [vmem:[%s576] ss:$2 sm:$0xff]
      %s578 = scalar_lea.vmem [#allocation2], 289
      %v579 = vld [vmem:[%s578] ss:$2 sm:$0xff]
      %s580 = scalar_lea.vmem [#allocation2], 337
      %v581 = vld [vmem:[%s580] ss:$2 sm:$0xff]
      %s582 = scalar_lea.vmem %s3, 128
      %v583 = vld [vmem:[%s582] sm:$0xff]
      %v584 = vld [vmem:[%s582 + $0x8] sm:$0xff]
      %v585 = vld [vmem:[%s582 + $0x10] sm:$0xff]
      %v586 = vld [vmem:[%s582 + $0x18] sm:$0xff]
      %v587 = vld [vmem:[%s582 + $0x20] sm:$0xff]
      %v588 = vld [vmem:[%s582 + $0x28] sm:$0xff]
      %v589 = vld [vmem:[%s582 + $0x30] sm:$0xff]
      %v590 = vld [vmem:[%s582 + $0x38] sm:$0xff]
      %v591 = vld [vmem:[%s582 + $0x40] sm:$0xff]
      %v592 = vld [vmem:[%s582 + $0x48] sm:$0xff]
      %v593 = vld [vmem:[%s582 + $0x50] sm:$0xff]
      %v594 = vld [vmem:[%s582 + $0x58] sm:$0xff]
      %v595 = vld [vmem:[%s582 + $0x60] sm:$0xff]
      %v596 = vld [vmem:[%s582 + $0x68] sm:$0xff]
      %v597 = vld [vmem:[%s582 + $0x70] sm:$0xff]
      %v598 = vld [vmem:[%s582 + $0x78] sm:$0xff]
      %599 = vmatprep.subr.mxu0 0.0
      %600 = vmatpush1.msra.mxu0 %v583
      %601 = vmatprep.subr.mxu0 0.0
      %602 = vmatpush1.msra.mxu0 %v584
      %603 = vmatprep.subr.mxu0 0.0
      %604 = vmatpush1.msra.mxu0 %v585
      %605 = vmatprep.subr.mxu0 0.0
      %606 = vmatpush1.msra.mxu0 %v586
      %607 = vmatprep.subr.mxu0 0.0
      %608 = vmatpush1.msra.mxu0 %v587
      %609 = vmatprep.subr.mxu0 0.0
      %610 = vmatpush1.msra.mxu0 %v588
      %611 = vmatprep.subr.mxu0 0.0
      %612 = vmatpush1.msra.mxu0 %v589
      %613 = vmatprep.subr.mxu0 0.0
      %614 = vmatpush1.msra.mxu0 %v590
      %615 = vmatprep.subr.mxu0 0.0
      %616 = vmatpush1.msra.mxu0 %v591
      %617 = vmatprep.subr.mxu0 0.0
      %618 = vmatpush1.msra.mxu0 %v592
      %619 = vmatprep.subr.mxu0 0.0
      %620 = vmatpush1.msra.mxu0 %v593
      %621 = vmatprep.subr.mxu0 0.0
      %622 = vmatpush1.msra.mxu0 %v594
      %623 = vmatprep.subr.mxu0 0.0
      %624 = vmatpush1.msra.mxu0 %v595
      %625 = vmatprep.subr.mxu0 0.0
      %626 = vmatpush1.msra.mxu0 %v596
      %627 = vmatprep.subr.mxu0 0.0
      %628 = vmatpush1.msra.mxu0 %v597
      %629 = vmatprep.subr.mxu0 0.0
      %630 = vmatpush1.msra.mxu0 %v598
      %631 = vmatprep.subr.mxu0 0.0
      %632 = vmatpush1.msra.mxu0 0.0
      %633 = vmatprep.subr.mxu0 0.0
      %634 = vmatpush1.msra.mxu0 0.0
      %635 = vmatprep.subr.mxu0 0.0
      %636 = vmatpush1.msra.mxu0 0.0
      %637 = vmatprep.subr.mxu0 0.0
      %638 = vmatpush1.msra.mxu0 0.0
      %639 = vmatprep.subr.mxu0 0.0
      %640 = vmatpush1.msra.mxu0 0.0
      %641 = vmatprep.subr.mxu0 0.0
      %642 = vmatpush1.msra.mxu0 0.0
      %643 = vmatprep.subr.mxu0 0.0
      %644 = vmatpush1.msra.mxu0 0.0
      %645 = vmatprep.subr.mxu0 0.0
      %646 = vmatpush1.msra.mxu0 0.0
      %647 = vmatprep.subr.mxu0 0.0
      %648 = vmatpush1.msra.mxu0 0.0
      %649 = vmatprep.subr.mxu0 0.0
      %650 = vmatpush1.msra.mxu0 0.0
      %651 = vmatprep.subr.mxu0 0.0
      %652 = vmatpush1.msra.mxu0 0.0
      %653 = vmatprep.subr.mxu0 0.0
      %654 = vmatpush1.msra.mxu0 0.0
      %655 = vmatprep.subr.mxu0 0.0
      %656 = vmatpush1.msra.mxu0 0.0
      %657 = vmatprep.subr.mxu0 0.0
      %658 = vmatpush1.msra.mxu0 0.0
      %659 = vmatprep.subr.mxu0 0.0
      %660 = vmatpush1.msra.mxu0 0.0
      %661 = vmatprep.subr.mxu0 0.0
      %662 = vmatpush1.msra.mxu0 0.0
      %663 = vmatprep.mubr.f32.mxu0 0.0
      %664 = vmatmul.mubr.f32.gmra.mrb[0].mxu0 %v567
      %v665 = vpop.f32.mrb[0].mxu0
      %v666 = vadd.f32 0.0, %v665
      %v667 = vpop.f32.mrb[0].mxu0
      %668 = vmatprep.mubr.f32.mxu0 0.0
      %669 = vmatmul.mubr.f32.gmra.mrb[0].mxu0 %v569
      %v670 = vpop.f32.mrb[0].mxu0
      %v671 = vadd.f32 0.0, %v670
      %v672 = vpop.f32.mrb[0].mxu0
      %673 = vmatprep.mubr.f32.mxu0 0.0
      %674 = vmatmul.mubr.f32.gmra.mrb[0].mxu0 %v571
      %v675 = vpop.f32.mrb[0].mxu0
      %v676 = vadd.f32 0.0, %v675
      %v677 = vpop.f32.mrb[0].mxu0
      %678 = vmatprep.mubr.f32.mxu0 0.0
      %679 = vmatmul.mubr.f32.gmra.mrb[0].mxu0 %v573
      %v680 = vpop.f32.mrb[0].mxu0
      %v681 = vadd.f32 0.0, %v680
      %v682 = vpop.f32.mrb[0].mxu0
      %683 = vmatprep.mubr.f32.mxu0 0.0
      %684 = vmatmul.mubr.f32.gmra.mrb[0].mxu0 %v575
      %v685 = vpop.f32.mrb[0].mxu0
      %v686 = vadd.f32 0.0, %v685
      %v687 = vpop.f32.mrb[0].mxu0
      %688 = vmatprep.mubr.f32.mxu0 0.0
      %689 = vmatmul.mubr.f32.gmra.mrb[0].mxu0 %v577
      %v690 = vpop.f32.mrb[0].mxu0
      %v691 = vadd.f32 0.0, %v690
      %v692 = vpop.f32.mrb[0].mxu0
      %693 = vmatprep.mubr.f32.mxu0 0.0
      %694 = vmatmul.mubr.f32.gmra.mrb[0].mxu0 %v579
      %v695 = vpop.f32.mrb[0].mxu0
      %v696 = vadd.f32 0.0, %v695
      %v697 = vpop.f32.mrb[0].mxu0
      %698 = vmatprep.mubr.f32.mxu0 0.0
      %699 = vmatmul.mubr.f32.gmra.mrb[0].mxu0 %v581
      %v700 = vpop.f32.mrb[0].mxu0
      %v701 = vadd.f32 0.0, %v700
      %v702 = vpop.f32.mrb[0].mxu0
      %703 = vdwg.mxu0
      %704 = vmatprep.subr.mxu0 0.0
      %705 = vmatpush1.msra.mxu0 %v550
      %706 = vmatprep.subr.mxu0 0.0
      %707 = vmatpush1.msra.mxu0 %v551
      %708 = vmatprep.subr.mxu0 0.0
      %709 = vmatpush1.msra.mxu0 %v552
      %710 = vmatprep.subr.mxu0 0.0
      %711 = vmatpush1.msra.mxu0 %v553
      %712 = vmatprep.subr.mxu0 0.0
      %713 = vmatpush1.msra.mxu0 %v554
      %714 = vmatprep.subr.mxu0 0.0
      %715 = vmatpush1.msra.mxu0 %v555
      %716 = vmatprep.subr.mxu0 0.0
      %717 = vmatpush1.msra.mxu0 %v556
      %718 = vmatprep.subr.mxu0 0.0
      %719 = vmatpush1.msra.mxu0 %v557
      %720 = vmatprep.subr.mxu0 0.0
      %721 = vmatpush1.msra.mxu0 %v558
      %722 = vmatprep.subr.mxu0 0.0
      %723 = vmatpush1.msra.mxu0 %v559
      %724 = vmatprep.subr.mxu0 0.0
      %725 = vmatpush1.msra.mxu0 %v560
      %726 = vmatprep.subr.mxu0 0.0
      %727 = vmatpush1.msra.mxu0 %v561
      %728 = vmatprep.subr.mxu0 0.0
      %729 = vmatpush1.msra.mxu0 %v562
      %730 = vmatprep.subr.mxu0 0.0
      %731 = vmatpush1.msra.mxu0 %v563
      %732 = vmatprep.subr.mxu0 0.0
      %733 = vmatpush1.msra.mxu0 %v564
      %734 = vmatprep.subr.mxu0 0.0
      %735 = vmatpush1.msra.mxu0 %v565
      %736 = vmatprep.subr.mxu0 0.0
      %737 = vmatpush1.msra.mxu0 0.0
      %738 = vmatprep.subr.mxu0 0.0
      %739 = vmatpush1.msra.mxu0 0.0
      %740 = vmatprep.subr.mxu0 0.0
      %741 = vmatpush1.msra.mxu0 0.0
      %742 = vmatprep.subr.mxu0 0.0
      %743 = vmatpush1.msra.mxu0 0.0
      %744 = vmatprep.subr.mxu0 0.0
      %745 = vmatpush1.msra.mxu0 0.0
      %746 = vmatprep.subr.mxu0 0.0
      %747 = vmatpush1.msra.mxu0 0.0
      %748 = vmatprep.subr.mxu0 0.0
      %749 = vmatpush1.msra.mxu0 0.0
      %750 = vmatprep.subr.mxu0 0.0
      %751 = vmatpush1.msra.mxu0 0.0
      %752 = vmatprep.subr.mxu0 0.0
      %753 = vmatpush1.msra.mxu0 0.0
      %754 = vmatprep.subr.mxu0 0.0
      %755 = vmatpush1.msra.mxu0 0.0
      %756 = vmatprep.subr.mxu0 0.0
      %757 = vmatpush1.msra.mxu0 0.0
      %758 = vmatprep.subr.mxu0 0.0
      %759 = vmatpush1.msra.mxu0 0.0
      %760 = vmatprep.subr.mxu0 0.0
      %761 = vmatpush1.msra.mxu0 0.0
      %762 = vmatprep.subr.mxu0 0.0
      %763 = vmatpush1.msra.mxu0 0.0
      %764 = vmatprep.subr.mxu0 0.0
      %765 = vmatpush1.msra.mxu0 0.0
      %766 = vmatprep.subr.mxu0 0.0
      %767 = vmatpush1.msra.mxu0 0.0
      %768 = vmatprep.mubr.f32.mxu0 0.0
      %769 = vmatmul.mubr.f32.gmra.mrb[0].mxu0 %v535
      %v770 = vpop.f32.mrb[0].mxu0
      %v771 = vadd.f32 %v666, %v770
      %v772 = vpop.f32.mrb[0].mxu0
      %773 = vmatprep.mubr.f32.mxu0 0.0
      %774 = vmatmul.mubr.f32.gmra.mrb[0].mxu0 %v537
      %v775 = vpop.f32.mrb[0].mxu0
      %v776 = vadd.f32 %v671, %v775
      %v777 = vpop.f32.mrb[0].mxu0
      %778 = vmatprep.mubr.f32.mxu0 0.0
      %779 = vmatmul.mubr.f32.gmra.mrb[0].mxu0 %v539
      %v780 = vpop.f32.mrb[0].mxu0
      %v781 = vadd.f32 %v676, %v780
      %v782 = vpop.f32.mrb[0].mxu0
      %783 = vmatprep.mubr.f32.mxu0 0.0
      %784 = vmatmul.mubr.f32.gmra.mrb[0].mxu0 %v541
      %v785 = vpop.f32.mrb[0].mxu0
      %v786 = vadd.f32 %v681, %v785
      %v787 = vpop.f32.mrb[0].mxu0
      %788 = vmatprep.mubr.f32.mxu0 0.0
      %789 = vmatmul.mubr.f32.gmra.mrb[0].mxu0 %v543
      %v790 = vpop.f32.mrb[0].mxu0
      %v791 = vadd.f32 %v686, %v790
      %v792 = vpop.f32.mrb[0].mxu0
      %793 = vmatprep.mubr.f32.mxu0 0.0
      %794 = vmatmul.mubr.f32.gmra.mrb[0].mxu0 %v545
      %v795 = vpop.f32.mrb[0].mxu0
      %v796 = vadd.f32 %v691, %v795
      %v797 = vpop.f32.mrb[0].mxu0
      %798 = vmatprep.mubr.f32.mxu0 0.0
      %799 = vmatmul.mubr.f32.gmra.mrb[0].mxu0 %v547
      %v800 = vpop.f32.mrb[0].mxu0
      %v801 = vadd.f32 %v696, %v800
      %v802 = vpop.f32.mrb[0].mxu0
      %803 = vmatprep.mubr.f32.mxu0 0.0
      %804 = vmatmul.mubr.f32.gmra.mrb[0].mxu0 %v549
      %v805 = vpop.f32.mrb[0].mxu0
      %v806 = vadd.f32 %v701, %v805
      %v807 = vpop.f32.mrb[0].mxu0
      %808 = vdwg.mxu0
      %s809 = scalar_lea.vmem [#allocation2], 2
      %v810 = vld [vmem:[%s809] ss:$2 sm:$0xff]
      %s811 = scalar_lea.vmem [#allocation2], 50
      %v812 = vld [vmem:[%s811] ss:$2 sm:$0xff]
      %s813 = scalar_lea.vmem [#allocation2], 98
      %v814 = vld [vmem:[%s813] ss:$2 sm:$0xff]
      %s815 = scalar_lea.vmem [#allocation2], 146
      %v816 = vld [vmem:[%s815] ss:$2 sm:$0xff]
      %s817 = scalar_lea.vmem [#allocation2], 194
      %v818 = vld [vmem:[%s817] ss:$2 sm:$0xff]
      %s819 = scalar_lea.vmem [#allocation2], 242
      %v820 = vld [vmem:[%s819] ss:$2 sm:$0xff]
      %s821 = scalar_lea.vmem [#allocation2], 290
      %v822 = vld [vmem:[%s821] ss:$2 sm:$0xff]
      %s823 = scalar_lea.vmem [#allocation2], 338
      %v824 = vld [vmem:[%s823] ss:$2 sm:$0xff]
      %s825 = scalar_lea.vmem %s3, 256
      %v826 = vld [vmem:[%s825] sm:$0xff]
      %v827 = vld [vmem:[%s825 + $0x8] sm:$0xff]
      %v828 = vld [vmem:[%s825 + $0x10] sm:$0xff]
      %v829 = vld [vmem:[%s825 + $0x18] sm:$0xff]
      %v830 = vld [vmem:[%s825 + $0x20] sm:$0xff]
      %v831 = vld [vmem:[%s825 + $0x28] sm:$0xff]
      %v832 = vld [vmem:[%s825 + $0x30] sm:$0xff]
      %v833 = vld [vmem:[%s825 + $0x38] sm:$0xff]
      %v834 = vld [vmem:[%s825 + $0x40] sm:$0xff]
      %v835 = vld [vmem:[%s825 + $0x48] sm:$0xff]
      %v836 = vld [vmem:[%s825 + $0x50] sm:$0xff]
      %v837 = vld [vmem:[%s825 + $0x58] sm:$0xff]
      %v838 = vld [vmem:[%s825 + $0x60] sm:$0xff]
      %v839 = vld [vmem:[%s825 + $0x68] sm:$0xff]
      %v840 = vld [vmem:[%s825 + $0x70] sm:$0xff]
      %v841 = vld [vmem:[%s825 + $0x78] sm:$0xff]
      %842 = vmatprep.subr.mxu0 0.0
      %843 = vmatpush1.msra.mxu0 %v826
      %844 = vmatprep.subr.mxu0 0.0
      %845 = vmatpush1.msra.mxu0 %v827
      %846 = vmatprep.subr.mxu0 0.0
      %847 = vmatpush1.msra.mxu0 %v828
      %848 = vmatprep.subr.mxu0 0.0
      %849 = vmatpush1.msra.mxu0 %v829
      %850 = vmatprep.subr.mxu0 0.0
      %851 = vmatpush1.msra.mxu0 %v830
      %852 = vmatprep.subr.mxu0 0.0
      %853 = vmatpush1.msra.mxu0 %v831
      %854 = vmatprep.subr.mxu0 0.0
      %855 = vmatpush1.msra.mxu0 %v832
      %856 = vmatprep.subr.mxu0 0.0
      %857 = vmatpush1.msra.mxu0 %v833
      %858 = vmatprep.subr.mxu0 0.0
      %859 = vmatpush1.msra.mxu0 %v834
      %860 = vmatprep.subr.mxu0 0.0
      %861 = vmatpush1.msra.mxu0 %v835
      %862 = vmatprep.subr.mxu0 0.0
      %863 = vmatpush1.msra.mxu0 %v836
      %864 = vmatprep.subr.mxu0 0.0
      %865 = vmatpush1.msra.mxu0 %v837
      %866 = vmatprep.subr.mxu0 0.0
      %867 = vmatpush1.msra.mxu0 %v838
      %868 = vmatprep.subr.mxu0 0.0
      %869 = vmatpush1.msra.mxu0 %v839
      %870 = vmatprep.subr.mxu0 0.0
      %871 = vmatpush1.msra.mxu0 %v840
      %872 = vmatprep.subr.mxu0 0.0
      %873 = vmatpush1.msra.mxu0 %v841
      %874 = vmatprep.subr.mxu0 0.0
      %875 = vmatpush1.msra.mxu0 0.0
      %876 = vmatprep.subr.mxu0 0.0
      %877 = vmatpush1.msra.mxu0 0.0
      %878 = vmatprep.subr.mxu0 0.0
      %879 = vmatpush1.msra.mxu0 0.0
      %880 = vmatprep.subr.mxu0 0.0
      %881 = vmatpush1.msra.mxu0 0.0
      %882 = vmatprep.subr.mxu0 0.0
      %883 = vmatpush1.msra.mxu0 0.0
      %884 = vmatprep.subr.mxu0 0.0
      %885 = vmatpush1.msra.mxu0 0.0
      %886 = vmatprep.subr.mxu0 0.0
      %887 = vmatpush1.msra.mxu0 0.0
      %888 = vmatprep.subr.mxu0 0.0
      %889 = vmatpush1.msra.mxu0 0.0
      %890 = vmatprep.subr.mxu0 0.0
      %891 = vmatpush1.msra.mxu0 0.0
      %892 = vmatprep.subr.mxu0 0.0
      %893 = vmatpush1.msra.mxu0 0.0
      %894 = vmatprep.subr.mxu0 0.0
      %895 = vmatpush1.msra.mxu0 0.0
      %896 = vmatprep.subr.mxu0 0.0
      %897 = vmatpush1.msra.mxu0 0.0
      %898 = vmatprep.subr.mxu0 0.0
      %899 = vmatpush1.msra.mxu0 0.0
      %900 = vmatprep.subr.mxu0 0.0
      %901 = vmatpush1.msra.mxu0 0.0
      %902 = vmatprep.subr.mxu0 0.0
      %903 = vmatpush1.msra.mxu0 0.0
      %904 = vmatprep.subr.mxu0 0.0
      %905 = vmatpush1.msra.mxu0 0.0
      %906 = vmatprep.mubr.f32.mxu0 0.0
      %907 = vmatmul.mubr.f32.gmra.mrb[0].mxu0 %v810
      %v908 = vpop.f32.mrb[0].mxu0
      %v909 = vadd.f32 0.0, %v908
      %v910 = vpop.f32.mrb[0].mxu0
      %911 = vmatprep.mubr.f32.mxu0 0.0
      %912 = vmatmul.mubr.f32.gmra.mrb[0].mxu0 %v812
      %v913 = vpop.f32.mrb[0].mxu0
      %v914 = vadd.f32 0.0, %v913
      %v915 = vpop.f32.mrb[0].mxu0
      %916 = vmatprep.mubr.f32.mxu0 0.0
      %917 = vmatmul.mubr.f32.gmra.mrb[0].mxu0 %v814
      %v918 = vpop.f32.mrb[0].mxu0
      %v919 = vadd.f32 0.0, %v918
      %v920 = vpop.f32.mrb[0].mxu0
      %921 = vmatprep.mubr.f32.mxu0 0.0
      %922 = vmatmul.mubr.f32.gmra.mrb[0].mxu0 %v816
      %v923 = vpop.f32.mrb[0].mxu0
      %v924 = vadd.f32 0.0, %v923
      %v925 = vpop.f32.mrb[0].mxu0
      %926 = vmatprep.mubr.f32.mxu0 0.0
      %927 = vmatmul.mubr.f32.gmra.mrb[0].mxu0 %v818
      %v928 = vpop.f32.mrb[0].mxu0
      %v929 = vadd.f32 0.0, %v928
      %v930 = vpop.f32.mrb[0].mxu0
      %931 = vmatprep.mubr.f32.mxu0 0.0
      %932 = vmatmul.mubr.f32.gmra.mrb[0].mxu0 %v820
      %v933 = vpop.f32.mrb[0].mxu0
      %v934 = vadd.f32 0.0, %v933
      %v935 = vpop.f32.mrb[0].mxu0
      %936 = vmatprep.mubr.f32.mxu0 0.0
      %937 = vmatmul.mubr.f32.gmra.mrb[0].mxu0 %v822
      %v938 = vpop.f32.mrb[0].mxu0
      %v939 = vadd.f32 0.0, %v938
      %v940 = vpop.f32.mrb[0].mxu0
      %941 = vmatprep.mubr.f32.mxu0 0.0
      %942 = vmatmul.mubr.f32.gmra.mrb[0].mxu0 %v824
      %v943 = vpop.f32.mrb[0].mxu0
      %v944 = vadd.f32 0.0, %v943
      %v945 = vpop.f32.mrb[0].mxu0
      %946 = vdwg.mxu0
      %v947 = vadd.f32 %v771, %v909
      %v948 = vadd.f32 %v776, %v914
      %v949 = vadd.f32 %v781, %v919
      %v950 = vadd.f32 %v786, %v924
      %v951 = vadd.f32 %v791, %v929
      %v952 = vadd.f32 %v796, %v934
      %v953 = vadd.f32 %v801, %v939
      %v954 = vadd.f32 %v806, %v944
      %v955 = vld [vmem:[%s502] ss:$2 sm:$0xff]
      %s956 = scalar_lea.vmem %s502, 48 [#allocation2]
      %v957 = vld [vmem:[%s956] ss:$2 sm:$0xff]
      %s958 = scalar_lea.vmem %s502, 96 [#allocation2]
      %v959 = vld [vmem:[%s958] ss:$2 sm:$0xff]
      %s960 = scalar_lea.vmem %s502, 144 [#allocation2]
      %v961 = vld [vmem:[%s960] ss:$2 sm:$0xff]
      %s962 = scalar_lea.vmem %s502, 192 [#allocation2]
      %v963 = vld [vmem:[%s962] ss:$2 sm:$0xff]
      %s964 = scalar_lea.vmem %s502, 240 [#allocation2]
      %v965 = vld [vmem:[%s964] ss:$2 sm:$0xff]
      %s966 = scalar_lea.vmem %s502, 288 [#allocation2]
      %v967 = vld [vmem:[%s966] ss:$2 sm:$0xff]
      %s968 = scalar_lea.vmem %s502, 336 [#allocation2]
      %v969 = vld [vmem:[%s968] ss:$2 sm:$0xff]
      %s970 = scalar_lea.vmem %s3, 384
      %v971 = vld [vmem:[%s970] sm:$0xff]
      %v972 = vld [vmem:[%s970 + $0x8] sm:$0xff]
      %v973 = vld [vmem:[%s970 + $0x10] sm:$0xff]
      %v974 = vld [vmem:[%s970 + $0x18] sm:$0xff]
      %v975 = vld [vmem:[%s970 + $0x20] sm:$0xff]
      %v976 = vld [vmem:[%s970 + $0x28] sm:$0xff]
      %v977 = vld [vmem:[%s970 + $0x30] sm:$0xff]
      %v978 = vld [vmem:[%s970 + $0x38] sm:$0xff]
      %v979 = vld [vmem:[%s970 + $0x40] sm:$0xff]
      %v980 = vld [vmem:[%s970 + $0x48] sm:$0xff]
      %v981 = vld [vmem:[%s970 + $0x50] sm:$0xff]
      %v982 = vld [vmem:[%s970 + $0x58] sm:$0xff]
      %v983 = vld [vmem:[%s970 + $0x60] sm:$0xff]
      %v984 = vld [vmem:[%s970 + $0x68] sm:$0xff]
      %v985 = vld [vmem:[%s970 + $0x70] sm:$0xff]
      %v986 = vld [vmem:[%s970 + $0x78] sm:$0xff]
      %987 = vmatprep.subr.mxu0 0.0
      %988 = vmatpush1.msra.mxu0 %v971
      %989 = vmatprep.subr.mxu0 0.0
      %990 = vmatpush1.msra.mxu0 %v972
      %991 = vmatprep.subr.mxu0 0.0
      %992 = vmatpush1.msra.mxu0 %v973
      %993 = vmatprep.subr.mxu0 0.0
      %994 = vmatpush1.msra.mxu0 %v974
      %995 = vmatprep.subr.mxu0 0.0
      %996 = vmatpush1.msra.mxu0 %v975
      %997 = vmatprep.subr.mxu0 0.0
      %998 = vmatpush1.msra.mxu0 %v976
      %999 = vmatprep.subr.mxu0 0.0
      %1000 = vmatpush1.msra.mxu0 %v977
      %1001 = vmatprep.subr.mxu0 0.0
      %1002 = vmatpush1.msra.mxu0 %v978
      %1003 = vmatprep.subr.mxu0 0.0
      %1004 = vmatpush1.msra.mxu0 %v979
      %1005 = vmatprep.subr.mxu0 0.0
      %1006 = vmatpush1.msra.mxu0 %v980
      %1007 = vmatprep.subr.mxu0 0.0
      %1008 = vmatpush1.msra.mxu0 %v981
      %1009 = vmatprep.subr.mxu0 0.0
      %1010 = vmatpush1.msra.mxu0 %v982
      %1011 = vmatprep.subr.mxu0 0.0
      %1012 = vmatpush1.msra.mxu0 %v983
      %1013 = vmatprep.subr.mxu0 0.0
      %1014 = vmatpush1.msra.mxu0 %v984
      %1015 = vmatprep.subr.mxu0 0.0
      %1016 = vmatpush1.msra.mxu0 %v985
      %1017 = vmatprep.subr.mxu0 0.0
      %1018 = vmatpush1.msra.mxu0 %v986
      %1019 = vmatprep.subr.mxu0 0.0
      %1020 = vmatpush1.msra.mxu0 0.0
      %1021 = vmatprep.subr.mxu0 0.0
      %1022 = vmatpush1.msra.mxu0 0.0
      %1023 = vmatprep.subr.mxu0 0.0
      %1024 = vmatpush1.msra.mxu0 0.0
      %1025 = vmatprep.subr.mxu0 0.0
      %1026 = vmatpush1.msra.mxu0 0.0
      %1027 = vmatprep.subr.mxu0 0.0
      %1028 = vmatpush1.msra.mxu0 0.0
      %1029 = vmatprep.subr.mxu0 0.0
      %1030 = vmatpush1.msra.mxu0 0.0
      %1031 = vmatprep.subr.mxu0 0.0
      %1032 = vmatpush1.msra.mxu0 0.0
      %1033 = vmatprep.subr.mxu0 0.0
      %1034 = vmatpush1.msra.mxu0 0.0
      %1035 = vmatprep.subr.mxu0 0.0
      %1036 = vmatpush1.msra.mxu0 0.0
      %1037 = vmatprep.subr.mxu0 0.0
      %1038 = vmatpush1.msra.mxu0 0.0
      %1039 = vmatprep.subr.mxu0 0.0
      %1040 = vmatpush1.msra.mxu0 0.0
      %1041 = vmatprep.subr.mxu0 0.0
      %1042 = vmatpush1.msra.mxu0 0.0
      %1043 = vmatprep.subr.mxu0 0.0
      %1044 = vmatpush1.msra.mxu0 0.0
      %1045 = vmatprep.subr.mxu0 0.0
      %1046 = vmatpush1.msra.mxu0 0.0
      %1047 = vmatprep.subr.mxu0 0.0
      %1048 = vmatpush1.msra.mxu0 0.0
      %1049 = vmatprep.subr.mxu0 0.0
      %1050 = vmatpush1.msra.mxu0 0.0
      %1051 = vmatprep.mubr.f32.mxu0 0.0
      %1052 = vmatmul.mubr.f32.gmra.mrb[0].mxu0 %v955
      %v1053 = vpop.f32.mrb[0].mxu0
      %v1054 = vadd.f32 0.0, %v1053
      %v1055 = vpop.f32.mrb[0].mxu0
      %1056 = vmatprep.mubr.f32.mxu0 0.0
      %1057 = vmatmul.mubr.f32.gmra.mrb[0].mxu0 %v957
      %v1058 = vpop.f32.mrb[0].mxu0
      %v1059 = vadd.f32 0.0, %v1058
      %v1060 = vpop.f32.mrb[0].mxu0
      %1061 = vmatprep.mubr.f32.mxu0 0.0
      %1062 = vmatmul.mubr.f32.gmra.mrb[0].mxu0 %v959
      %v1063 = vpop.f32.mrb[0].mxu0
      %v1064 = vadd.f32 0.0, %v1063
      %v1065 = vpop.f32.mrb[0].mxu0
      %1066 = vmatprep.mubr.f32.mxu0 0.0
      %1067 = vmatmul.mubr.f32.gmra.mrb[0].mxu0 %v961
      %v1068 = vpop.f32.mrb[0].mxu0
      %v1069 = vadd.f32 0.0, %v1068
      %v1070 = vpop.f32.mrb[0].mxu0
      %1071 = vmatprep.mubr.f32.mxu0 0.0
      %1072 = vmatmul.mubr.f32.gmra.mrb[0].mxu0 %v963
      %v1073 = vpop.f32.mrb[0].mxu0
      %v1074 = vadd.f32 0.0, %v1073
      %v1075 = vpop.f32.mrb[0].mxu0
      %1076 = vmatprep.mubr.f32.mxu0 0.0
      %1077 = vmatmul.mubr.f32.gmra.mrb[0].mxu0 %v965
      %v1078 = vpop.f32.mrb[0].mxu0
      %v1079 = vadd.f32 0.0, %v1078
      %v1080 = vpop.f32.mrb[0].mxu0
      %1081 = vmatprep.mubr.f32.mxu0 0.0
      %1082 = vmatmul.mubr.f32.gmra.mrb[0].mxu0 %v967
      %v1083 = vpop.f32.mrb[0].mxu0
      %v1084 = vadd.f32 0.0, %v1083
      %v1085 = vpop.f32.mrb[0].mxu0
      %1086 = vmatprep.mubr.f32.mxu0 0.0
      %1087 = vmatmul.mubr.f32.gmra.mrb[0].mxu0 %v969
      %v1088 = vpop.f32.mrb[0].mxu0
      %v1089 = vadd.f32 0.0, %v1088
      %v1090 = vpop.f32.mrb[0].mxu0
      %1091 = vdwg.mxu0
      %v1092 = vadd.f32 %v947, %v1054
      %v1093 = vadd.f32 %v948, %v1059
      %v1094 = vadd.f32 %v949, %v1064
      %v1095 = vadd.f32 %v950, %v1069
      %v1096 = vadd.f32 %v951, %v1074
      %v1097 = vadd.f32 %v952, %v1079
      %v1098 = vadd.f32 %v953, %v1084
      %v1099 = vadd.f32 %v954, %v1089
      %s1100 = scalar_lea.vmem %s502, 1 [#allocation2]
      %v1101 = vld [vmem:[%s1100] ss:$2 sm:$0xff]
      %s1102 = scalar_lea.vmem %s502, 49 [#allocation2]
      %v1103 = vld [vmem:[%s1102] ss:$2 sm:$0xff]
      %s1104 = scalar_lea.vmem %s502, 97 [#allocation2]
      %v1105 = vld [vmem:[%s1104] ss:$2 sm:$0xff]
      %s1106 = scalar_lea.vmem %s502, 145 [#allocation2]
      %v1107 = vld [vmem:[%s1106] ss:$2 sm:$0xff]
      %s1108 = scalar_lea.vmem %s502, 193 [#allocation2]
      %v1109 = vld [vmem:[%s1108] ss:$2 sm:$0xff]
      %s1110 = scalar_lea.vmem %s502, 241 [#allocation2]
      %v1111 = vld [vmem:[%s1110] ss:$2 sm:$0xff]
      %s1112 = scalar_lea.vmem %s502, 289 [#allocation2]
      %v1113 = vld [vmem:[%s1112] ss:$2 sm:$0xff]
      %s1114 = scalar_lea.vmem %s502, 337 [#allocation2]
      %v1115 = vld [vmem:[%s1114] ss:$2 sm:$0xff]
      %s1116 = scalar_lea.vmem %s3, 512
      %v1117 = vld [vmem:[%s1116] sm:$0xff]
      %v1118 = vld [vmem:[%s1116 + $0x8] sm:$0xff]
      %v1119 = vld [vmem:[%s1116 + $0x10] sm:$0xff]
      %v1120 = vld [vmem:[%s1116 + $0x18] sm:$0xff]
      %v1121 = vld [vmem:[%s1116 + $0x20] sm:$0xff]
      %v1122 = vld [vmem:[%s1116 + $0x28] sm:$0xff]
      %v1123 = vld [vmem:[%s1116 + $0x30] sm:$0xff]
      %v1124 = vld [vmem:[%s1116 + $0x38] sm:$0xff]
      %v1125 = vld [vmem:[%s1116 + $0x40] sm:$0xff]
      %v1126 = vld [vmem:[%s1116 + $0x48] sm:$0xff]
      %v1127 = vld [vmem:[%s1116 + $0x50] sm:$0xff]
      %v1128 = vld [vmem:[%s1116 + $0x58] sm:$0xff]
      %v1129 = vld [vmem:[%s1116 + $0x60] sm:$0xff]
      %v1130 = vld [vmem:[%s1116 + $0x68] sm:$0xff]
      %v1131 = vld [vmem:[%s1116 + $0x70] sm:$0xff]
      %v1132 = vld [vmem:[%s1116 + $0x78] sm:$0xff]
      %1133 = vmatprep.subr.mxu0 0.0
      %1134 = vmatpush1.msra.mxu0 %v1117
      %1135 = vmatprep.subr.mxu0 0.0
      %1136 = vmatpush1.msra.mxu0 %v1118
      %1137 = vmatprep.subr.mxu0 0.0
      %1138 = vmatpush1.msra.mxu0 %v1119
      %1139 = vmatprep.subr.mxu0 0.0
      %1140 = vmatpush1.msra.mxu0 %v1120
      %1141 = vmatprep.subr.mxu0 0.0
      %1142 = vmatpush1.msra.mxu0 %v1121
      %1143 = vmatprep.subr.mxu0 0.0
      %1144 = vmatpush1.msra.mxu0 %v1122
      %1145 = vmatprep.subr.mxu0 0.0
      %1146 = vmatpush1.msra.mxu0 %v1123
      %1147 = vmatprep.subr.mxu0 0.0
      %1148 = vmatpush1.msra.mxu0 %v1124
      %1149 = vmatprep.subr.mxu0 0.0
      %1150 = vmatpush1.msra.mxu0 %v1125
      %1151 = vmatprep.subr.mxu0 0.0
      %1152 = vmatpush1.msra.mxu0 %v1126
      %1153 = vmatprep.subr.mxu0 0.0
      %1154 = vmatpush1.msra.mxu0 %v1127
      %1155 = vmatprep.subr.mxu0 0.0
      %1156 = vmatpush1.msra.mxu0 %v1128
      %1157 = vmatprep.subr.mxu0 0.0
      %1158 = vmatpush1.msra.mxu0 %v1129
      %1159 = vmatprep.subr.mxu0 0.0
      %1160 = vmatpush1.msra.mxu0 %v1130
      %1161 = vmatprep.subr.mxu0 0.0
      %1162 = vmatpush1.msra.mxu0 %v1131
      %1163 = vmatprep.subr.mxu0 0.0
      %1164 = vmatpush1.msra.mxu0 %v1132
      %1165 = vmatprep.subr.mxu0 0.0
      %1166 = vmatpush1.msra.mxu0 0.0
      %1167 = vmatprep.subr.mxu0 0.0
      %1168 = vmatpush1.msra.mxu0 0.0
      %1169 = vmatprep.subr.mxu0 0.0
      %1170 = vmatpush1.msra.mxu0 0.0
      %1171 = vmatprep.subr.mxu0 0.0
      %1172 = vmatpush1.msra.mxu0 0.0
      %1173 = vmatprep.subr.mxu0 0.0
      %1174 = vmatpush1.msra.mxu0 0.0
      %1175 = vmatprep.subr.mxu0 0.0
      %1176 = vmatpush1.msra.mxu0 0.0
      %1177 = vmatprep.subr.mxu0 0.0
      %1178 = vmatpush1.msra.mxu0 0.0
      %1179 = vmatprep.subr.mxu0 0.0
      %1180 = vmatpush1.msra.mxu0 0.0
      %1181 = vmatprep.subr.mxu0 0.0
      %1182 = vmatpush1.msra.mxu0 0.0
      %1183 = vmatprep.subr.mxu0 0.0
      %1184 = vmatpush1.msra.mxu0 0.0
      %1185 = vmatprep.subr.mxu0 0.0
      %1186 = vmatpush1.msra.mxu0 0.0
      %1187 = vmatprep.subr.mxu0 0.0
      %1188 = vmatpush1.msra.mxu0 0.0
      %1189 = vmatprep.subr.mxu0 0.0
      %1190 = vmatpush1.msra.mxu0 0.0
      %1191 = vmatprep.subr.mxu0 0.0
      %1192 = vmatpush1.msra.mxu0 0.0
      %1193 = vmatprep.subr.mxu0 0.0
      %1194 = vmatpush1.msra.mxu0 0.0
      %1195 = vmatprep.subr.mxu0 0.0
      %1196 = vmatpush1.msra.mxu0 0.0
      %1197 = vmatprep.mubr.f32.mxu0 0.0
      %1198 = vmatmul.mubr.f32.gmra.mrb[0].mxu0 %v1101
      %v1199 = vpop.f32.mrb[0].mxu0
      %v1200 = vadd.f32 0.0, %v1199
      %v1201 = vpop.f32.mrb[0].mxu0
      %1202 = vmatprep.mubr.f32.mxu0 0.0
      %1203 = vmatmul.mubr.f32.gmra.mrb[0].mxu0 %v1103
      %v1204 = vpop.f32.mrb[0].mxu0
      %v1205 = vadd.f32 0.0, %v1204
      %v1206 = vpop.f32.mrb[0].mxu0
      %1207 = vmatprep.mubr.f32.mxu0 0.0
      %1208 = vmatmul.mubr.f32.gmra.mrb[0].mxu0 %v1105
      %v1209 = vpop.f32.mrb[0].mxu0
      %v1210 = vadd.f32 0.0, %v1209
      %v1211 = vpop.f32.mrb[0].mxu0
      %1212 = vmatprep.mubr.f32.mxu0 0.0
      %1213 = vmatmul.mubr.f32.gmra.mrb[0].mxu0 %v1107
      %v1214 = vpop.f32.mrb[0].mxu0
      %v1215 = vadd.f32 0.0, %v1214
      %v1216 = vpop.f32.mrb[0].mxu0
      %1217 = vmatprep.mubr.f32.mxu0 0.0
      %1218 = vmatmul.mubr.f32.gmra.mrb[0].mxu0 %v1109
      %v1219 = vpop.f32.mrb[0].mxu0
      %v1220 = vadd.f32 0.0, %v1219
      %v1221 = vpop.f32.mrb[0].mxu0
      %1222 = vmatprep.mubr.f32.mxu0 0.0
      %1223 = vmatmul.mubr.f32.gmra.mrb[0].mxu0 %v1111
      %v1224 = vpop.f32.mrb[0].mxu0
      %v1225 = vadd.f32 0.0, %v1224
      %v1226 = vpop.f32.mrb[0].mxu0
      %1227 = vmatprep.mubr.f32.mxu0 0.0
      %1228 = vmatmul.mubr.f32.gmra.mrb[0].mxu0 %v1113
      %v1229 = vpop.f32.mrb[0].mxu0
      %v1230 = vadd.f32 0.0, %v1229
      %v1231 = vpop.f32.mrb[0].mxu0
      %1232 = vmatprep.mubr.f32.mxu0 0.0
      %1233 = vmatmul.mubr.f32.gmra.mrb[0].mxu0 %v1115
      %v1234 = vpop.f32.mrb[0].mxu0
      %v1235 = vadd.f32 0.0, %v1234
      %v1236 = vpop.f32.mrb[0].mxu0
      %1237 = vdwg.mxu0
      %v1238 = vadd.f32 %v1092, %v1200
      %v1239 = vadd.f32 %v1093, %v1205
      %v1240 = vadd.f32 %v1094, %v1210
      %v1241 = vadd.f32 %v1095, %v1215
      %v1242 = vadd.f32 %v1096, %v1220
      %v1243 = vadd.f32 %v1097, %v1225
      %v1244 = vadd.f32 %v1098, %v1230
      %v1245 = vadd.f32 %v1099, %v1235
      %s1246 = scalar_lea.vmem %s502, 2 [#allocation2]
      %v1247 = vld [vmem:[%s1246] ss:$2 sm:$0xff]
      %s1248 = scalar_lea.vmem %s502, 50 [#allocation2]
      %v1249 = vld [vmem:[%s1248] ss:$2 sm:$0xff]
      %s1250 = scalar_lea.vmem %s502, 98 [#allocation2]
      %v1251 = vld [vmem:[%s1250] ss:$2 sm:$0xff]
      %s1252 = scalar_lea.vmem %s502, 146 [#allocation2]
      %v1253 = vld [vmem:[%s1252] ss:$2 sm:$0xff]
      %s1254 = scalar_lea.vmem %s502, 194 [#allocation2]
      %v1255 = vld [vmem:[%s1254] ss:$2 sm:$0xff]
      %s1256 = scalar_lea.vmem %s502, 242 [#allocation2]
      %v1257 = vld [vmem:[%s1256] ss:$2 sm:$0xff]
      %s1258 = scalar_lea.vmem %s502, 290 [#allocation2]
      %v1259 = vld [vmem:[%s1258] ss:$2 sm:$0xff]
      %s1260 = scalar_lea.vmem %s502, 338 [#allocation2]
      %v1261 = vld [vmem:[%s1260] ss:$2 sm:$0xff]
      %s1262 = scalar_lea.vmem %s3, 640
      %v1263 = vld [vmem:[%s1262] sm:$0xff]
      %v1264 = vld [vmem:[%s1262 + $0x8] sm:$0xff]
      %v1265 = vld [vmem:[%s1262 + $0x10] sm:$0xff]
      %v1266 = vld [vmem:[%s1262 + $0x18] sm:$0xff]
      %v1267 = vld [vmem:[%s1262 + $0x20] sm:$0xff]
      %v1268 = vld [vmem:[%s1262 + $0x28] sm:$0xff]
      %v1269 = vld [vmem:[%s1262 + $0x30] sm:$0xff]
      %v1270 = vld [vmem:[%s1262 + $0x38] sm:$0xff]
      %v1271 = vld [vmem:[%s1262 + $0x40] sm:$0xff]
      %v1272 = vld [vmem:[%s1262 + $0x48] sm:$0xff]
      %v1273 = vld [vmem:[%s1262 + $0x50] sm:$0xff]
      %v1274 = vld [vmem:[%s1262 + $0x58] sm:$0xff]
      %v1275 = vld [vmem:[%s1262 + $0x60] sm:$0xff]
      %v1276 = vld [vmem:[%s1262 + $0x68] sm:$0xff]
      %v1277 = vld [vmem:[%s1262 + $0x70] sm:$0xff]
      %v1278 = vld [vmem:[%s1262 + $0x78] sm:$0xff]
      %1279 = vmatprep.subr.mxu0 0.0
      %1280 = vmatpush1.msra.mxu0 %v1263
      %1281 = vmatprep.subr.mxu0 0.0
      %1282 = vmatpush1.msra.mxu0 %v1264
      %1283 = vmatprep.subr.mxu0 0.0
      %1284 = vmatpush1.msra.mxu0 %v1265
      %1285 = vmatprep.subr.mxu0 0.0
      %1286 = vmatpush1.msra.mxu0 %v1266
      %1287 = vmatprep.subr.mxu0 0.0
      %1288 = vmatpush1.msra.mxu0 %v1267
      %1289 = vmatprep.subr.mxu0 0.0
      %1290 = vmatpush1.msra.mxu0 %v1268
      %1291 = vmatprep.subr.mxu0 0.0
      %1292 = vmatpush1.msra.mxu0 %v1269
      %1293 = vmatprep.subr.mxu0 0.0
      %1294 = vmatpush1.msra.mxu0 %v1270
      %1295 = vmatprep.subr.mxu0 0.0
      %1296 = vmatpush1.msra.mxu0 %v1271
      %1297 = vmatprep.subr.mxu0 0.0
      %1298 = vmatpush1.msra.mxu0 %v1272
      %1299 = vmatprep.subr.mxu0 0.0
      %1300 = vmatpush1.msra.mxu0 %v1273
      %1301 = vmatprep.subr.mxu0 0.0
      %1302 = vmatpush1.msra.mxu0 %v1274
      %1303 = vmatprep.subr.mxu0 0.0
      %1304 = vmatpush1.msra.mxu0 %v1275
      %1305 = vmatprep.subr.mxu0 0.0
      %1306 = vmatpush1.msra.mxu0 %v1276
      %1307 = vmatprep.subr.mxu0 0.0
      %1308 = vmatpush1.msra.mxu0 %v1277
      %1309 = vmatprep.subr.mxu0 0.0
      %1310 = vmatpush1.msra.mxu0 %v1278
      %1311 = vmatprep.subr.mxu0 0.0
      %1312 = vmatpush1.msra.mxu0 0.0
      %1313 = vmatprep.subr.mxu0 0.0
      %1314 = vmatpush1.msra.mxu0 0.0
      %1315 = vmatprep.subr.mxu0 0.0
      %1316 = vmatpush1.msra.mxu0 0.0
      %1317 = vmatprep.subr.mxu0 0.0
      %1318 = vmatpush1.msra.mxu0 0.0
      %1319 = vmatprep.subr.mxu0 0.0
      %1320 = vmatpush1.msra.mxu0 0.0
      %1321 = vmatprep.subr.mxu0 0.0
      %1322 = vmatpush1.msra.mxu0 0.0
      %1323 = vmatprep.subr.mxu0 0.0
      %1324 = vmatpush1.msra.mxu0 0.0
      %1325 = vmatprep.subr.mxu0 0.0
      %1326 = vmatpush1.msra.mxu0 0.0
      %1327 = vmatprep.subr.mxu0 0.0
      %1328 = vmatpush1.msra.mxu0 0.0
      %1329 = vmatprep.subr.mxu0 0.0
      %1330 = vmatpush1.msra.mxu0 0.0
      %1331 = vmatprep.subr.mxu0 0.0
      %1332 = vmatpush1.msra.mxu0 0.0
      %1333 = vmatprep.subr.mxu0 0.0
      %1334 = vmatpush1.msra.mxu0 0.0
      %1335 = vmatprep.subr.mxu0 0.0
      %1336 = vmatpush1.msra.mxu0 0.0
      %1337 = vmatprep.subr.mxu0 0.0
      %1338 = vmatpush1.msra.mxu0 0.0
      %1339 = vmatprep.subr.mxu0 0.0
      %1340 = vmatpush1.msra.mxu0 0.0
      %1341 = vmatprep.subr.mxu0 0.0
      %1342 = vmatpush1.msra.mxu0 0.0
      %1343 = vmatprep.mubr.f32.mxu0 0.0
      %1344 = vmatmul.mubr.f32.gmra.mrb[0].mxu0 %v1247
      %v1345 = vpop.f32.mrb[0].mxu0
      %v1346 = vadd.f32 0.0, %v1345
      %v1347 = vpop.f32.mrb[0].mxu0
      %1348 = vmatprep.mubr.f32.mxu0 0.0
      %1349 = vmatmul.mubr.f32.gmra.mrb[0].mxu0 %v1249
      %v1350 = vpop.f32.mrb[0].mxu0
      %v1351 = vadd.f32 0.0, %v1350
      %v1352 = vpop.f32.mrb[0].mxu0
      %1353 = vmatprep.mubr.f32.mxu0 0.0
      %1354 = vmatmul.mubr.f32.gmra.mrb[0].mxu0 %v1251
      %v1355 = vpop.f32.mrb[0].mxu0
      %v1356 = vadd.f32 0.0, %v1355
      %v1357 = vpop.f32.mrb[0].mxu0
      %1358 = vmatprep.mubr.f32.mxu0 0.0
      %1359 = vmatmul.mubr.f32.gmra.mrb[0].mxu0 %v1253
      %v1360 = vpop.f32.mrb[0].mxu0
      %v1361 = vadd.f32 0.0, %v1360
      %v1362 = vpop.f32.mrb[0].mxu0
      %1363 = vmatprep.mubr.f32.mxu0 0.0
      %1364 = vmatmul.mubr.f32.gmra.mrb[0].mxu0 %v1255
      %v1365 = vpop.f32.mrb[0].mxu0
      %v1366 = vadd.f32 0.0, %v1365
      %v1367 = vpop.f32.mrb[0].mxu0
      %1368 = vmatprep.mubr.f32.mxu0 0.0
      %1369 = vmatmul.mubr.f32.gmra.mrb[0].mxu0 %v1257
      %v1370 = vpop.f32.mrb[0].mxu0
      %v1371 = vadd.f32 0.0, %v1370
      %v1372 = vpop.f32.mrb[0].mxu0
      %1373 = vmatprep.mubr.f32.mxu0 0.0
      %1374 = vmatmul.mubr.f32.gmra.mrb[0].mxu0 %v1259
      %v1375 = vpop.f32.mrb[0].mxu0
      %v1376 = vadd.f32 0.0, %v1375
      %v1377 = vpop.f32.mrb[0].mxu0
      %1378 = vmatprep.mubr.f32.mxu0 0.0
      %1379 = vmatmul.mubr.f32.gmra.mrb[0].mxu0 %v1261
      %v1380 = vpop.f32.mrb[0].mxu0
      %v1381 = vadd.f32 0.0, %v1380
      %v1382 = vpop.f32.mrb[0].mxu0
      %1383 = vdwg.mxu0
      %v1384 = vadd.f32 %v1238, %v1346
      %v1385 = vadd.f32 %v1239, %v1351
      %v1386 = vadd.f32 %v1240, %v1356
      %v1387 = vadd.f32 %v1241, %v1361
      %v1388 = vadd.f32 %v1242, %v1366
      %v1389 = vadd.f32 %v1243, %v1371
      %v1390 = vadd.f32 %v1244, %v1376
      %v1391 = vadd.f32 %v1245, %v1381
      %s1392 = scalar_lea.vmem [#allocation2], 48
      %v1393 = vld [vmem:[%s1392] ss:$2 sm:$0xff]
      %s1394 = scalar_lea.vmem %s1392, 48 [#allocation2]
      %v1395 = vld [vmem:[%s1394] ss:$2 sm:$0xff]
      %s1396 = scalar_lea.vmem %s1392, 96 [#allocation2]
      %v1397 = vld [vmem:[%s1396] ss:$2 sm:$0xff]
      %s1398 = scalar_lea.vmem %s1392, 144 [#allocation2]
      %v1399 = vld [vmem:[%s1398] ss:$2 sm:$0xff]
      %s1400 = scalar_lea.vmem %s1392, 192 [#allocation2]
      %v1401 = vld [vmem:[%s1400] ss:$2 sm:$0xff]
      %s1402 = scalar_lea.vmem %s1392, 240 [#allocation2]
      %v1403 = vld [vmem:[%s1402] ss:$2 sm:$0xff]
      %s1404 = scalar_lea.vmem %s1392, 288 [#allocation2]
      %v1405 = vld [vmem:[%s1404] ss:$2 sm:$0xff]
      %s1406 = scalar_lea.vmem %s1392, 336 [#allocation2]
      %v1407 = vld [vmem:[%s1406] ss:$2 sm:$0xff]
      %s1408 = scalar_lea.vmem %s3, 768
      %v1409 = vld [vmem:[%s1408] sm:$0xff]
      %v1410 = vld [vmem:[%s1408 + $0x8] sm:$0xff]
      %v1411 = vld [vmem:[%s1408 + $0x10] sm:$0xff]
      %v1412 = vld [vmem:[%s1408 + $0x18] sm:$0xff]
      %v1413 = vld [vmem:[%s1408 + $0x20] sm:$0xff]
      %v1414 = vld [vmem:[%s1408 + $0x28] sm:$0xff]
      %v1415 = vld [vmem:[%s1408 + $0x30] sm:$0xff]
      %v1416 = vld [vmem:[%s1408 + $0x38] sm:$0xff]
      %v1417 = vld [vmem:[%s1408 + $0x40] sm:$0xff]
      %v1418 = vld [vmem:[%s1408 + $0x48] sm:$0xff]
      %v1419 = vld [vmem:[%s1408 + $0x50] sm:$0xff]
      %v1420 = vld [vmem:[%s1408 + $0x58] sm:$0xff]
      %v1421 = vld [vmem:[%s1408 + $0x60] sm:$0xff]
      %v1422 = vld [vmem:[%s1408 + $0x68] sm:$0xff]
      %v1423 = vld [vmem:[%s1408 + $0x70] sm:$0xff]
      %v1424 = vld [vmem:[%s1408 + $0x78] sm:$0xff]
      %1425 = vmatprep.subr.mxu0 0.0
      %1426 = vmatpush1.msra.mxu0 %v1409
      %1427 = vmatprep.subr.mxu0 0.0
      %1428 = vmatpush1.msra.mxu0 %v1410
      %1429 = vmatprep.subr.mxu0 0.0
      %1430 = vmatpush1.msra.mxu0 %v1411
      %1431 = vmatprep.subr.mxu0 0.0
      %1432 = vmatpush1.msra.mxu0 %v1412
      %1433 = vmatprep.subr.mxu0 0.0
      %1434 = vmatpush1.msra.mxu0 %v1413
      %1435 = vmatprep.subr.mxu0 0.0
      %1436 = vmatpush1.msra.mxu0 %v1414
      %1437 = vmatprep.subr.mxu0 0.0
      %1438 = vmatpush1.msra.mxu0 %v1415
      %1439 = vmatprep.subr.mxu0 0.0
      %1440 = vmatpush1.msra.mxu0 %v1416
      %1441 = vmatprep.subr.mxu0 0.0
      %1442 = vmatpush1.msra.mxu0 %v1417
      %1443 = vmatprep.subr.mxu0 0.0
      %1444 = vmatpush1.msra.mxu0 %v1418
      %1445 = vmatprep.subr.mxu0 0.0
      %1446 = vmatpush1.msra.mxu0 %v1419
      %1447 = vmatprep.subr.mxu0 0.0
      %1448 = vmatpush1.msra.mxu0 %v1420
      %1449 = vmatprep.subr.mxu0 0.0
      %1450 = vmatpush1.msra.mxu0 %v1421
      %1451 = vmatprep.subr.mxu0 0.0
      %1452 = vmatpush1.msra.mxu0 %v1422
      %1453 = vmatprep.subr.mxu0 0.0
      %1454 = vmatpush1.msra.mxu0 %v1423
      %1455 = vmatprep.subr.mxu0 0.0
      %1456 = vmatpush1.msra.mxu0 %v1424
      %1457 = vmatprep.subr.mxu0 0.0
      %1458 = vmatpush1.msra.mxu0 0.0
      %1459 = vmatprep.subr.mxu0 0.0
      %1460 = vmatpush1.msra.mxu0 0.0
      %1461 = vmatprep.subr.mxu0 0.0
      %1462 = vmatpush1.msra.mxu0 0.0
      %1463 = vmatprep.subr.mxu0 0.0
      %1464 = vmatpush1.msra.mxu0 0.0
      %1465 = vmatprep.subr.mxu0 0.0
      %1466 = vmatpush1.msra.mxu0 0.0
      %1467 = vmatprep.subr.mxu0 0.0
      %1468 = vmatpush1.msra.mxu0 0.0
      %1469 = vmatprep.subr.mxu0 0.0
      %1470 = vmatpush1.msra.mxu0 0.0
      %1471 = vmatprep.subr.mxu0 0.0
      %1472 = vmatpush1.msra.mxu0 0.0
      %1473 = vmatprep.subr.mxu0 0.0
      %1474 = vmatpush1.msra.mxu0 0.0
      %1475 = vmatprep.subr.mxu0 0.0
      %1476 = vmatpush1.msra.mxu0 0.0
      %1477 = vmatprep.subr.mxu0 0.0
      %1478 = vmatpush1.msra.mxu0 0.0
      %1479 = vmatprep.subr.mxu0 0.0
      %1480 = vmatpush1.msra.mxu0 0.0
      %1481 = vmatprep.subr.mxu0 0.0
      %1482 = vmatpush1.msra.mxu0 0.0
      %1483 = vmatprep.subr.mxu0 0.0
      %1484 = vmatpush1.msra.mxu0 0.0
      %1485 = vmatprep.subr.mxu0 0.0
      %1486 = vmatpush1.msra.mxu0 0.0
      %1487 = vmatprep.subr.mxu0 0.0
      %1488 = vmatpush1.msra.mxu0 0.0
      %1489 = vmatprep.mubr.f32.mxu0 0.0
      %1490 = vmatmul.mubr.f32.gmra.mrb[0].mxu0 %v1393
      %v1491 = vpop.f32.mrb[0].mxu0
      %v1492 = vadd.f32 0.0, %v1491
      %v1493 = vpop.f32.mrb[0].mxu0
      %1494 = vmatprep.mubr.f32.mxu0 0.0
      %1495 = vmatmul.mubr.f32.gmra.mrb[0].mxu0 %v1395
      %v1496 = vpop.f32.mrb[0].mxu0
      %v1497 = vadd.f32 0.0, %v1496
      %v1498 = vpop.f32.mrb[0].mxu0
      %1499 = vmatprep.mubr.f32.mxu0 0.0
      %1500 = vmatmul.mubr.f32.gmra.mrb[0].mxu0 %v1397
      %v1501 = vpop.f32.mrb[0].mxu0
      %v1502 = vadd.f32 0.0, %v1501
      %v1503 = vpop.f32.mrb[0].mxu0
      %1504 = vmatprep.mubr.f32.mxu0 0.0
      %1505 = vmatmul.mubr.f32.gmra.mrb[0].mxu0 %v1399
      %v1506 = vpop.f32.mrb[0].mxu0
      %v1507 = vadd.f32 0.0, %v1506
      %v1508 = vpop.f32.mrb[0].mxu0
      %1509 = vmatprep.mubr.f32.mxu0 0.0
      %1510 = vmatmul.mubr.f32.gmra.mrb[0].mxu0 %v1401
      %v1511 = vpop.f32.mrb[0].mxu0
      %v1512 = vadd.f32 0.0, %v1511
      %v1513 = vpop.f32.mrb[0].mxu0
      %1514 = vmatprep.mubr.f32.mxu0 0.0
      %1515 = vmatmul.mubr.f32.gmra.mrb[0].mxu0 %v1403
      %v1516 = vpop.f32.mrb[0].mxu0
      %v1517 = vadd.f32 0.0, %v1516
      %v1518 = vpop.f32.mrb[0].mxu0
      %1519 = vmatprep.mubr.f32.mxu0 0.0
      %1520 = vmatmul.mubr.f32.gmra.mrb[0].mxu0 %v1405
      %v1521 = vpop.f32.mrb[0].mxu0
      %v1522 = vadd.f32 0.0, %v1521
      %v1523 = vpop.f32.mrb[0].mxu0
      %1524 = vmatprep.mubr.f32.mxu0 0.0
      %1525 = vmatmul.mubr.f32.gmra.mrb[0].mxu0 %v1407
      %v1526 = vpop.f32.mrb[0].mxu0
      %v1527 = vadd.f32 0.0, %v1526
      %v1528 = vpop.f32.mrb[0].mxu0
      %1529 = vdwg.mxu0
      %v1530 = vadd.f32 %v1384, %v1492
      %v1531 = vadd.f32 %v1385, %v1497
      %v1532 = vadd.f32 %v1386, %v1502
      %v1533 = vadd.f32 %v1387, %v1507
      %v1534 = vadd.f32 %v1388, %v1512
      %v1535 = vadd.f32 %v1389, %v1517
      %v1536 = vadd.f32 %v1390, %v1522
      %v1537 = vadd.f32 %v1391, %v1527
      %s1538 = scalar_lea.vmem %s1392, 1 [#allocation2]
      %v1539 = vld [vmem:[%s1538] ss:$2 sm:$0xff]
      %s1540 = scalar_lea.vmem %s1392, 49 [#allocation2]
      %v1541 = vld [vmem:[%s1540] ss:$2 sm:$0xff]
      %s1542 = scalar_lea.vmem %s1392, 97 [#allocation2]
      %v1543 = vld [vmem:[%s1542] ss:$2 sm:$0xff]
      %s1544 = scalar_lea.vmem %s1392, 145 [#allocation2]
      %v1545 = vld [vmem:[%s1544] ss:$2 sm:$0xff]
      %s1546 = scalar_lea.vmem %s1392, 193 [#allocation2]
      %v1547 = vld [vmem:[%s1546] ss:$2 sm:$0xff]
      %s1548 = scalar_lea.vmem %s1392, 241 [#allocation2]
      %v1549 = vld [vmem:[%s1548] ss:$2 sm:$0xff]
      %s1550 = scalar_lea.vmem %s1392, 289 [#allocation2]
      %v1551 = vld [vmem:[%s1550] ss:$2 sm:$0xff]
      %s1552 = scalar_lea.vmem %s1392, 337 [#allocation2]
      %v1553 = vld [vmem:[%s1552] ss:$2 sm:$0xff]
      %s1554 = scalar_lea.vmem %s3, 896
      %v1555 = vld [vmem:[%s1554] sm:$0xff]
      %v1556 = vld [vmem:[%s1554 + $0x8] sm:$0xff]
      %v1557 = vld [vmem:[%s1554 + $0x10] sm:$0xff]
      %v1558 = vld [vmem:[%s1554 + $0x18] sm:$0xff]
      %v1559 = vld [vmem:[%s1554 + $0x20] sm:$0xff]
      %v1560 = vld [vmem:[%s1554 + $0x28] sm:$0xff]
      %v1561 = vld [vmem:[%s1554 + $0x30] sm:$0xff]
      %v1562 = vld [vmem:[%s1554 + $0x38] sm:$0xff]
      %v1563 = vld [vmem:[%s1554 + $0x40] sm:$0xff]
      %v1564 = vld [vmem:[%s1554 + $0x48] sm:$0xff]
      %v1565 = vld [vmem:[%s1554 + $0x50] sm:$0xff]
      %v1566 = vld [vmem:[%s1554 + $0x58] sm:$0xff]
      %v1567 = vld [vmem:[%s1554 + $0x60] sm:$0xff]
      %v1568 = vld [vmem:[%s1554 + $0x68] sm:$0xff]
      %v1569 = vld [vmem:[%s1554 + $0x70] sm:$0xff]
      %v1570 = vld [vmem:[%s1554 + $0x78] sm:$0xff]
      %1571 = vmatprep.subr.mxu0 0.0
      %1572 = vmatpush1.msra.mxu0 %v1555
      %1573 = vmatprep.subr.mxu0 0.0
      %1574 = vmatpush1.msra.mxu0 %v1556
      %1575 = vmatprep.subr.mxu0 0.0
      %1576 = vmatpush1.msra.mxu0 %v1557
      %1577 = vmatprep.subr.mxu0 0.0
      %1578 = vmatpush1.msra.mxu0 %v1558
      %1579 = vmatprep.subr.mxu0 0.0
      %1580 = vmatpush1.msra.mxu0 %v1559
      %1581 = vmatprep.subr.mxu0 0.0
      %1582 = vmatpush1.msra.mxu0 %v1560
      %1583 = vmatprep.subr.mxu0 0.0
      %1584 = vmatpush1.msra.mxu0 %v1561
      %1585 = vmatprep.subr.mxu0 0.0
      %1586 = vmatpush1.msra.mxu0 %v1562
      %1587 = vmatprep.subr.mxu0 0.0
      %1588 = vmatpush1.msra.mxu0 %v1563
      %1589 = vmatprep.subr.mxu0 0.0
      %1590 = vmatpush1.msra.mxu0 %v1564
      %1591 = vmatprep.subr.mxu0 0.0
      %1592 = vmatpush1.msra.mxu0 %v1565
      %1593 = vmatprep.subr.mxu0 0.0
      %1594 = vmatpush1.msra.mxu0 %v1566
      %1595 = vmatprep.subr.mxu0 0.0
      %1596 = vmatpush1.msra.mxu0 %v1567
      %1597 = vmatprep.subr.mxu0 0.0
      %1598 = vmatpush1.msra.mxu0 %v1568
      %1599 = vmatprep.subr.mxu0 0.0
      %1600 = vmatpush1.msra.mxu0 %v1569
      %1601 = vmatprep.subr.mxu0 0.0
      %1602 = vmatpush1.msra.mxu0 %v1570
      %1603 = vmatprep.subr.mxu0 0.0
      %1604 = vmatpush1.msra.mxu0 0.0
      %1605 = vmatprep.subr.mxu0 0.0
      %1606 = vmatpush1.msra.mxu0 0.0
      %1607 = vmatprep.subr.mxu0 0.0
      %1608 = vmatpush1.msra.mxu0 0.0
      %1609 = vmatprep.subr.mxu0 0.0
      %1610 = vmatpush1.msra.mxu0 0.0
      %1611 = vmatprep.subr.mxu0 0.0
      %1612 = vmatpush1.msra.mxu0 0.0
      %1613 = vmatprep.subr.mxu0 0.0
      %1614 = vmatpush1.msra.mxu0 0.0
      %1615 = vmatprep.subr.mxu0 0.0
      %1616 = vmatpush1.msra.mxu0 0.0
      %1617 = vmatprep.subr.mxu0 0.0
      %1618 = vmatpush1.msra.mxu0 0.0
      %1619 = vmatprep.subr.mxu0 0.0
      %1620 = vmatpush1.msra.mxu0 0.0
      %1621 = vmatprep.subr.mxu0 0.0
      %1622 = vmatpush1.msra.mxu0 0.0
      %1623 = vmatprep.subr.mxu0 0.0
      %1624 = vmatpush1.msra.mxu0 0.0
      %1625 = vmatprep.subr.mxu0 0.0
      %1626 = vmatpush1.msra.mxu0 0.0
      %1627 = vmatprep.subr.mxu0 0.0
      %1628 = vmatpush1.msra.mxu0 0.0
      %1629 = vmatprep.subr.mxu0 0.0
      %1630 = vmatpush1.msra.mxu0 0.0
      %1631 = vmatprep.subr.mxu0 0.0
      %1632 = vmatpush1.msra.mxu0 0.0
      %1633 = vmatprep.subr.mxu0 0.0
      %1634 = vmatpush1.msra.mxu0 0.0
      %1635 = vmatprep.mubr.f32.mxu0 0.0
      %1636 = vmatmul.mubr.f32.gmra.mrb[0].mxu0 %v1539
      %v1637 = vpop.f32.mrb[0].mxu0
      %v1638 = vadd.f32 0.0, %v1637
      %v1639 = vpop.f32.mrb[0].mxu0
      %1640 = vmatprep.mubr.f32.mxu0 0.0
      %1641 = vmatmul.mubr.f32.gmra.mrb[0].mxu0 %v1541
      %v1642 = vpop.f32.mrb[0].mxu0
      %v1643 = vadd.f32 0.0, %v1642
      %v1644 = vpop.f32.mrb[0].mxu0
      %1645 = vmatprep.mubr.f32.mxu0 0.0
      %1646 = vmatmul.mubr.f32.gmra.mrb[0].mxu0 %v1543
      %v1647 = vpop.f32.mrb[0].mxu0
      %v1648 = vadd.f32 0.0, %v1647
      %v1649 = vpop.f32.mrb[0].mxu0
      %1650 = vmatprep.mubr.f32.mxu0 0.0
      %1651 = vmatmul.mubr.f32.gmra.mrb[0].mxu0 %v1545
      %v1652 = vpop.f32.mrb[0].mxu0
      %v1653 = vadd.f32 0.0, %v1652
      %v1654 = vpop.f32.mrb[0].mxu0
      %1655 = vmatprep.mubr.f32.mxu0 0.0
      %1656 = vmatmul.mubr.f32.gmra.mrb[0].mxu0 %v1547
      %v1657 = vpop.f32.mrb[0].mxu0
      %v1658 = vadd.f32 0.0, %v1657
      %v1659 = vpop.f32.mrb[0].mxu0
      %1660 = vmatprep.mubr.f32.mxu0 0.0
      %1661 = vmatmul.mubr.f32.gmra.mrb[0].mxu0 %v1549
      %v1662 = vpop.f32.mrb[0].mxu0
      %v1663 = vadd.f32 0.0, %v1662
      %v1664 = vpop.f32.mrb[0].mxu0
      %1665 = vmatprep.mubr.f32.mxu0 0.0
      %1666 = vmatmul.mubr.f32.gmra.mrb[0].mxu0 %v1551
      %v1667 = vpop.f32.mrb[0].mxu0
      %v1668 = vadd.f32 0.0, %v1667
      %v1669 = vpop.f32.mrb[0].mxu0
      %1670 = vmatprep.mubr.f32.mxu0 0.0
      %1671 = vmatmul.mubr.f32.gmra.mrb[0].mxu0 %v1553
      %v1672 = vpop.f32.mrb[0].mxu0
      %v1673 = vadd.f32 0.0, %v1672
      %v1674 = vpop.f32.mrb[0].mxu0
      %1675 = vdwg.mxu0
      %v1676 = vadd.f32 %v1530, %v1638
      %v1677 = vadd.f32 %v1531, %v1643
      %v1678 = vadd.f32 %v1532, %v1648
      %v1679 = vadd.f32 %v1533, %v1653
      %v1680 = vadd.f32 %v1534, %v1658
      %v1681 = vadd.f32 %v1535, %v1663
      %v1682 = vadd.f32 %v1536, %v1668
      %v1683 = vadd.f32 %v1537, %v1673
      %s1684 = scalar_lea.vmem %s1392, 2 [#allocation2]
      %v1685 = vld [vmem:[%s1684] ss:$2 sm:$0xff]
      %s1686 = scalar_lea.vmem %s1392, 50 [#allocation2]
      %v1687 = vld [vmem:[%s1686] ss:$2 sm:$0xff]
      %s1688 = scalar_lea.vmem %s1392, 98 [#allocation2]
      %v1689 = vld [vmem:[%s1688] ss:$2 sm:$0xff]
      %s1690 = scalar_lea.vmem %s1392, 146 [#allocation2]
      %v1691 = vld [vmem:[%s1690] ss:$2 sm:$0xff]
      %s1692 = scalar_lea.vmem %s1392, 194 [#allocation2]
      %v1693 = vld [vmem:[%s1692] ss:$2 sm:$0xff]
      %s1694 = scalar_lea.vmem %s1392, 242 [#allocation2]
      %v1695 = vld [vmem:[%s1694] ss:$2 sm:$0xff]
      %s1696 = scalar_lea.vmem %s1392, 290 [#allocation2]
      %v1697 = vld [vmem:[%s1696] ss:$2 sm:$0xff]
      %s1698 = scalar_lea.vmem %s1392, 338 [#allocation2]
      %v1699 = vld [vmem:[%s1698] ss:$2 sm:$0xff]
      %s1700 = scalar_lea.vmem %s3, 1024
      %v1701 = vld [vmem:[%s1700] sm:$0xff]
      %v1702 = vld [vmem:[%s1700 + $0x8] sm:$0xff]
      %v1703 = vld [vmem:[%s1700 + $0x10] sm:$0xff]
      %v1704 = vld [vmem:[%s1700 + $0x18] sm:$0xff]
      %v1705 = vld [vmem:[%s1700 + $0x20] sm:$0xff]
      %v1706 = vld [vmem:[%s1700 + $0x28] sm:$0xff]
      %v1707 = vld [vmem:[%s1700 + $0x30] sm:$0xff]
      %v1708 = vld [vmem:[%s1700 + $0x38] sm:$0xff]
      %v1709 = vld [vmem:[%s1700 + $0x40] sm:$0xff]
      %v1710 = vld [vmem:[%s1700 + $0x48] sm:$0xff]
      %v1711 = vld [vmem:[%s1700 + $0x50] sm:$0xff]
      %v1712 = vld [vmem:[%s1700 + $0x58] sm:$0xff]
      %v1713 = vld [vmem:[%s1700 + $0x60] sm:$0xff]
      %v1714 = vld [vmem:[%s1700 + $0x68] sm:$0xff]
      %v1715 = vld [vmem:[%s1700 + $0x70] sm:$0xff]
      %v1716 = vld [vmem:[%s1700 + $0x78] sm:$0xff]
      %1717 = vmatprep.subr.mxu0 0.0
      %1718 = vmatpush1.msra.mxu0 %v1701
      %1719 = vmatprep.subr.mxu0 0.0
      %1720 = vmatpush1.msra.mxu0 %v1702
      %1721 = vmatprep.subr.mxu0 0.0
      %1722 = vmatpush1.msra.mxu0 %v1703
      %1723 = vmatprep.subr.mxu0 0.0
      %1724 = vmatpush1.msra.mxu0 %v1704
      %1725 = vmatprep.subr.mxu0 0.0
      %1726 = vmatpush1.msra.mxu0 %v1705
      %1727 = vmatprep.subr.mxu0 0.0
      %1728 = vmatpush1.msra.mxu0 %v1706
      %1729 = vmatprep.subr.mxu0 0.0
      %1730 = vmatpush1.msra.mxu0 %v1707
      %1731 = vmatprep.subr.mxu0 0.0
      %1732 = vmatpush1.msra.mxu0 %v1708
      %1733 = vmatprep.subr.mxu0 0.0
      %1734 = vmatpush1.msra.mxu0 %v1709
      %1735 = vmatprep.subr.mxu0 0.0
      %1736 = vmatpush1.msra.mxu0 %v1710
      %1737 = vmatprep.subr.mxu0 0.0
      %1738 = vmatpush1.msra.mxu0 %v1711
      %1739 = vmatprep.subr.mxu0 0.0
      %1740 = vmatpush1.msra.mxu0 %v1712
      %1741 = vmatprep.subr.mxu0 0.0
      %1742 = vmatpush1.msra.mxu0 %v1713
      %1743 = vmatprep.subr.mxu0 0.0
      %1744 = vmatpush1.msra.mxu0 %v1714
      %1745 = vmatprep.subr.mxu0 0.0
      %1746 = vmatpush1.msra.mxu0 %v1715
      %1747 = vmatprep.subr.mxu0 0.0
      %1748 = vmatpush1.msra.mxu0 %v1716
      %1749 = vmatprep.subr.mxu0 0.0
      %1750 = vmatpush1.msra.mxu0 0.0
      %1751 = vmatprep.subr.mxu0 0.0
      %1752 = vmatpush1.msra.mxu0 0.0
      %1753 = vmatprep.subr.mxu0 0.0
      %1754 = vmatpush1.msra.mxu0 0.0
      %1755 = vmatprep.subr.mxu0 0.0
      %1756 = vmatpush1.msra.mxu0 0.0
      %1757 = vmatprep.subr.mxu0 0.0
      %1758 = vmatpush1.msra.mxu0 0.0
      %1759 = vmatprep.subr.mxu0 0.0
      %1760 = vmatpush1.msra.mxu0 0.0
      %1761 = vmatprep.subr.mxu0 0.0
      %1762 = vmatpush1.msra.mxu0 0.0
      %1763 = vmatprep.subr.mxu0 0.0
      %1764 = vmatpush1.msra.mxu0 0.0
      %1765 = vmatprep.subr.mxu0 0.0
      %1766 = vmatpush1.msra.mxu0 0.0
      %1767 = vmatprep.subr.mxu0 0.0
      %1768 = vmatpush1.msra.mxu0 0.0
      %1769 = vmatprep.subr.mxu0 0.0
      %1770 = vmatpush1.msra.mxu0 0.0
      %1771 = vmatprep.subr.mxu0 0.0
      %1772 = vmatpush1.msra.mxu0 0.0
      %1773 = vmatprep.subr.mxu0 0.0
      %1774 = vmatpush1.msra.mxu0 0.0
      %1775 = vmatprep.subr.mxu0 0.0
      %1776 = vmatpush1.msra.mxu0 0.0
      %1777 = vmatprep.subr.mxu0 0.0
      %1778 = vmatpush1.msra.mxu0 0.0
      %1779 = vmatprep.subr.mxu0 0.0
      %1780 = vmatpush1.msra.mxu0 0.0
      %1781 = vmatprep.mubr.f32.mxu0 0.0
      %1782 = vmatmul.mubr.f32.gmra.mrb[0].mxu0 %v1685
      %v1783 = vpop.f32.mrb[0].mxu0
      %v1784 = vadd.f32 0.0, %v1783
      %v1785 = vpop.f32.mrb[0].mxu0
      %1786 = vmatprep.mubr.f32.mxu0 0.0
      %1787 = vmatmul.mubr.f32.gmra.mrb[0].mxu0 %v1687
      %v1788 = vpop.f32.mrb[0].mxu0
      %v1789 = vadd.f32 0.0, %v1788
      %v1790 = vpop.f32.mrb[0].mxu0
      %1791 = vmatprep.mubr.f32.mxu0 0.0
      %1792 = vmatmul.mubr.f32.gmra.mrb[0].mxu0 %v1689
      %v1793 = vpop.f32.mrb[0].mxu0
      %v1794 = vadd.f32 0.0, %v1793
      %v1795 = vpop.f32.mrb[0].mxu0
      %1796 = vmatprep.mubr.f32.mxu0 0.0
      %1797 = vmatmul.mubr.f32.gmra.mrb[0].mxu0 %v1691
      %v1798 = vpop.f32.mrb[0].mxu0
      %v1799 = vadd.f32 0.0, %v1798
      %v1800 = vpop.f32.mrb[0].mxu0
      %1801 = vmatprep.mubr.f32.mxu0 0.0
      %1802 = vmatmul.mubr.f32.gmra.mrb[0].mxu0 %v1693
      %v1803 = vpop.f32.mrb[0].mxu0
      %v1804 = vadd.f32 0.0, %v1803
      %v1805 = vpop.f32.mrb[0].mxu0
      %1806 = vmatprep.mubr.f32.mxu0 0.0
      %1807 = vmatmul.mubr.f32.gmra.mrb[0].mxu0 %v1695
      %v1808 = vpop.f32.mrb[0].mxu0
      %v1809 = vadd.f32 0.0, %v1808
      %v1810 = vpop.f32.mrb[0].mxu0
      %1811 = vmatprep.mubr.f32.mxu0 0.0
      %1812 = vmatmul.mubr.f32.gmra.mrb[0].mxu0 %v1697
      %v1813 = vpop.f32.mrb[0].mxu0
      %v1814 = vadd.f32 0.0, %v1813
      %v1815 = vpop.f32.mrb[0].mxu0
      %1816 = vmatprep.mubr.f32.mxu0 0.0
      %1817 = vmatmul.mubr.f32.gmra.mrb[0].mxu0 %v1699
      %v1818 = vpop.f32.mrb[0].mxu0
      %v1819 = vadd.f32 0.0, %v1818
      %v1820 = vpop.f32.mrb[0].mxu0
      %1821 = vdwg.mxu0
      %v1822 = vadd.f32 %v1676, %v1784
      %v1823 = vadd.f32 %v1677, %v1789
      %v1824 = vadd.f32 %v1678, %v1794
      %v1825 = vadd.f32 %v1679, %v1799
      %v1826 = vadd.f32 %v1680, %v1804
      %v1827 = vadd.f32 %v1681, %v1809
      %v1828 = vadd.f32 %v1682, %v1814
      %v1829 = vadd.f32 %v1683, %v1819
      %v1830 = vld [vmem:[%s4] sm:$0x1]
      %v1832 = vlaneseq
      %v1833 = vshrl.u32 %v1832, 7
      %v1834 = vsub.s32 0, %v1833
      %v1835 = vrot.slane %v1830, %v1834
      %v1837 = vmul.f32 %v1822, %v1835
      %v1838 = vmul.f32 %v1823, %v1835
      %v1839 = vmul.f32 %v1824, %v1835
      %v1840 = vmul.f32 %v1825, %v1835
      %v1841 = vmul.f32 %v1826, %v1835
      %v1842 = vmul.f32 %v1827, %v1835
      %v1843 = vmul.f32 %v1828, %v1835
      %v1844 = vmul.f32 %v1829, %v1835
      %v1845 = vld [vmem:[%s5] sm:$0x1]
      %v1847 = vlaneseq
      %v1848 = vshrl.u32 %v1847, 7
      %v1849 = vsub.s32 0, %v1848
      %v1850 = vrot.slane %v1845, %v1849
      %v1852 = vadd.f32 %v1837, %v1850
      %v1853 = vadd.f32 %v1838, %v1850
      %v1854 = vadd.f32 %v1839, %v1850
      %v1855 = vadd.f32 %v1840, %v1850
      %v1856 = vadd.f32 %v1841, %v1850
      %v1857 = vadd.f32 %v1842, %v1850
      %v1858 = vadd.f32 %v1843, %v1850
      %v1859 = vadd.f32 %v1844, %v1850
      %v1860 = vmax.f32 %v1852, 0.0
      %v1861 = vmax.f32 %v1853, 0.0
      %v1862 = vmax.f32 %v1854, 0.0
      %v1863 = vmax.f32 %v1855, 0.0
      %v1864 = vmax.f32 %v1856, 0.0
      %v1865 = vmax.f32 %v1857, 0.0
      %v1866 = vmax.f32 %v1858, 0.0
      %v1867 = vmax.f32 %v1859, 0.0
      %1868 = vst [vmem:[#allocation3] sm:$0xff] 0.0
      %1869 = vst [vmem:[#allocation3 + $0x8] sm:$0x3] 0.0
      %1870 = vst [vmem:[#allocation3 + $0x10] sm:$0xff] 0.0
      %1871 = vst [vmem:[#allocation3 + $0x18] sm:$0x3] 0.0
      %1872 = vst [vmem:[#allocation3 + $0x20] sm:$0xff] 0.0
      %1873 = vst [vmem:[#allocation3 + $0x28] sm:$0x3] 0.0
      %1874 = vst [vmem:[#allocation3 + $0x30] sm:$0xff] 0.0
      %1875 = vst [vmem:[#allocation3 + $0x38] sm:$0x3] 0.0
      %1876 = vst [vmem:[#allocation3 + $0x40] sm:$0xff] 0.0
      %1877 = vst [vmem:[#allocation3 + $0x48] sm:$0x3] 0.0
      %1878 = vst [vmem:[#allocation3 + $0x50] sm:$0xff] 0.0
      %1879 = vst [vmem:[#allocation3 + $0x58] sm:$0x3] 0.0
      %1880 = vst [vmem:[#allocation3 + $0x60] sm:$0xff] 0.0
      %1881 = vst [vmem:[#allocation3 + $0x68] sm:$0x3] 0.0
      %1882 = vst [vmem:[#allocation3 + $0x70] sm:$0xff] 0.0
      %1883 = vst [vmem:[#allocation3 + $0x78] sm:$0x3] 0.0
      %1884 = vst [vmem:[#allocation3 + $0x80] sm:$0xff] 0.0
      %1885 = vst [vmem:[#allocation3 + $0x88] sm:$0x3] 0.0
      %1886 = vst [vmem:[#allocation3 + $0x90] sm:$0xff] 0.0
      %1887 = vst [vmem:[#allocation3 + $0x98] sm:$0x3] 0.0
      %s1888 = scalar_lea.vmem [#allocation3], 16
      %1889 = vst [vmem:[%s1888 + $0x1] sm:$0xff] %v1860
      %1890 = vst [vmem:[%s1888 + $0x11] sm:$0xff] %v1861
      %1891 = vst [vmem:[%s1888 + $0x21] sm:$0xff] %v1862
      %1892 = vst [vmem:[%s1888 + $0x31] sm:$0xff] %v1863
      %1893 = vst [vmem:[%s1888 + $0x41] sm:$0xff] %v1864
      %1894 = vst [vmem:[%s1888 + $0x51] sm:$0xff] %v1865
      %1895 = vst [vmem:[%s1888 + $0x61] sm:$0xff] %v1866
      %1896 = vst [vmem:[%s1888 + $0x71] sm:$0xff] %v1867
      %v1897 = vld [vmem:[%s1100] ss:$2 sm:$0xff]
      %v1898 = vld [vmem:[%s1102] ss:$2 sm:$0xff]
      %v1899 = vld [vmem:[%s1104] ss:$2 sm:$0xff]
      %v1900 = vld [vmem:[%s1106] ss:$2 sm:$0xff]
      %v1901 = vld [vmem:[%s1108] ss:$2 sm:$0xff]
      %v1902 = vld [vmem:[%s1110] ss:$2 sm:$0xff]
      %v1903 = vld [vmem:[%s1112] ss:$2 sm:$0xff]
      %v1904 = vld [vmem:[%s1114] ss:$2 sm:$0xff]
      %v1905 = vld [vmem:[%s7] sm:$0xff]
      %v1906 = vld [vmem:[%s7 + $0x8] sm:$0xff]
      %v1907 = vld [vmem:[%s7 + $0x10] sm:$0xff]
      %v1908 = vld [vmem:[%s7 + $0x18] sm:$0xff]
      %v1909 = vld [vmem:[%s7 + $0x20] sm:$0xff]
      %v1910 = vld [vmem:[%s7 + $0x28] sm:$0xff]
      %v1911 = vld [vmem:[%s7 + $0x30] sm:$0xff]
      %v1912 = vld [vmem:[%s7 + $0x38] sm:$0xff]
      %v1913 = vld [vmem:[%s7 + $0x40] sm:$0xff]
      %v1914 = vld [vmem:[%s7 + $0x48] sm:$0xff]
      %v1915 = vld [vmem:[%s7 + $0x50] sm:$0xff]
      %v1916 = vld [vmem:[%s7 + $0x58] sm:$0xff]
      %v1917 = vld [vmem:[%s7 + $0x60] sm:$0xff]
      %v1918 = vld [vmem:[%s7 + $0x68] sm:$0xff]
      %v1919 = vld [vmem:[%s7 + $0x70] sm:$0xff]
      %v1920 = vld [vmem:[%s7 + $0x78] sm:$0xff]
      %v1921 = vld [vmem:[#allocation3] sm:$0xff]
      %v1922 = vld [vmem:[#allocation3 + $0x10] sm:$0xff]
      %v1923 = vld [vmem:[#allocation3 + $0x20] sm:$0xff]
      %v1924 = vld [vmem:[#allocation3 + $0x30] sm:$0xff]
      %v1925 = vld [vmem:[#allocation3 + $0x40] sm:$0xff]
      %v1926 = vld [vmem:[#allocation3 + $0x50] sm:$0xff]
      %v1927 = vld [vmem:[#allocation3 + $0x60] sm:$0xff]
      %v1928 = vld [vmem:[#allocation3 + $0x70] sm:$0xff]
      %v1929 = vld [vmem:[%s6] sm:$0xff]
      %v1930 = vld [vmem:[%s6 + $0x8] sm:$0xff]
      %v1931 = vld [vmem:[%s6 + $0x10] sm:$0xff]
      %v1932 = vld [vmem:[%s6 + $0x18] sm:$0xff]
      %v1933 = vld [vmem:[%s6 + $0x20] sm:$0xff]
      %v1934 = vld [vmem:[%s6 + $0x28] sm:$0xff]
      %v1935 = vld [vmem:[%s6 + $0x30] sm:$0xff]
      %v1936 = vld [vmem:[%s6 + $0x38] sm:$0xff]
      %v1937 = vld [vmem:[%s6 + $0x40] sm:$0xff]
      %v1938 = vld [vmem:[%s6 + $0x48] sm:$0xff]
      %v1939 = vld [vmem:[%s6 + $0x50] sm:$0xff]
      %v1940 = vld [vmem:[%s6 + $0x58] sm:$0xff]
      %v1941 = vld [vmem:[%s6 + $0x60] sm:$0xff]
      %v1942 = vld [vmem:[%s6 + $0x68] sm:$0xff]
      %v1943 = vld [vmem:[%s6 + $0x70] sm:$0xff]
      %v1944 = vld [vmem:[%s6 + $0x78] sm:$0xff]
      %1945 = vmatprep.subr.mxu0 0.0
      %1946 = vmatpush1.msra.mxu0 %v1929
      %1947 = vmatprep.subr.mxu0 0.0
      %1948 = vmatpush1.msra.mxu0 %v1930
      %1949 = vmatprep.subr.mxu0 0.0
      %1950 = vmatpush1.msra.mxu0 %v1931
      %1951 = vmatprep.subr.mxu0 0.0
      %1952 = vmatpush1.msra.mxu0 %v1932
      %1953 = vmatprep.subr.mxu0 0.0
      %1954 = vmatpush1.msra.mxu0 %v1933
      %1955 = vmatprep.subr.mxu0 0.0
      %1956 = vmatpush1.msra.mxu0 %v1934
      %1957 = vmatprep.subr.mxu0 0.0
      %1958 = vmatpush1.msra.mxu0 %v1935
      %1959 = vmatprep.subr.mxu0 0.0
      %1960 = vmatpush1.msra.mxu0 %v1936
      %1961 = vmatprep.subr.mxu0 0.0
      %1962 = vmatpush1.msra.mxu0 %v1937
      %1963 = vmatprep.subr.mxu0 0.0
      %1964 = vmatpush1.msra.mxu0 %v1938
      %1965 = vmatprep.subr.mxu0 0.0
      %1966 = vmatpush1.msra.mxu0 %v1939
      %1967 = vmatprep.subr.mxu0 0.0
      %1968 = vmatpush1.msra.mxu0 %v1940
      %1969 = vmatprep.subr.mxu0 0.0
      %1970 = vmatpush1.msra.mxu0 %v1941
      %1971 = vmatprep.subr.mxu0 0.0
      %1972 = vmatpush1.msra.mxu0 %v1942
      %1973 = vmatprep.subr.mxu0 0.0
      %1974 = vmatpush1.msra.mxu0 %v1943
      %1975 = vmatprep.subr.mxu0 0.0
      %1976 = vmatpush1.msra.mxu0 %v1944
      %1977 = vmatprep.subr.mxu0 0.0
      %1978 = vmatpush1.msra.mxu0 0.0
      %1979 = vmatprep.subr.mxu0 0.0
      %1980 = vmatpush1.msra.mxu0 0.0
      %1981 = vmatprep.subr.mxu0 0.0
      %1982 = vmatpush1.msra.mxu0 0.0
      %1983 = vmatprep.subr.mxu0 0.0
      %1984 = vmatpush1.msra.mxu0 0.0
      %1985 = vmatprep.subr.mxu0 0.0
      %1986 = vmatpush1.msra.mxu0 0.0
      %1987 = vmatprep.subr.mxu0 0.0
      %1988 = vmatpush1.msra.mxu0 0.0
      %1989 = vmatprep.subr.mxu0 0.0
      %1990 = vmatpush1.msra.mxu0 0.0
      %1991 = vmatprep.subr.mxu0 0.0
      %1992 = vmatpush1.msra.mxu0 0.0
      %1993 = vmatprep.subr.mxu0 0.0
      %1994 = vmatpush1.msra.mxu0 0.0
      %1995 = vmatprep.subr.mxu0 0.0
      %1996 = vmatpush1.msra.mxu0 0.0
      %1997 = vmatprep.subr.mxu0 0.0
      %1998 = vmatpush1.msra.mxu0 0.0
      %1999 = vmatprep.subr.mxu0 0.0
      %2000 = vmatpush1.msra.mxu0 0.0
      %2001 = vmatprep.subr.mxu0 0.0
      %2002 = vmatpush1.msra.mxu0 0.0
      %2003 = vmatprep.subr.mxu0 0.0
      %2004 = vmatpush1.msra.mxu0 0.0
      %2005 = vmatprep.subr.mxu0 0.0
      %2006 = vmatpush1.msra.mxu0 0.0
      %2007 = vmatprep.subr.mxu0 0.0
      %2008 = vmatpush1.msra.mxu0 0.0
      %2009 = vmatprep.mubr.f32.mxu0 0.0
      %2010 = vmatmul.mubr.f32.gmra.mrb[0].mxu0 %v1921
      %v2011 = vpop.f32.mrb[0].mxu0
      %v2012 = vadd.f32 0.0, %v2011
      %v2013 = vpop.f32.mrb[0].mxu0
      %2014 = vmatprep.mubr.f32.mxu0 0.0
      %2015 = vmatmul.mubr.f32.gmra.mrb[0].mxu0 %v1922
      %v2016 = vpop.f32.mrb[0].mxu0
      %v2017 = vadd.f32 0.0, %v2016
      %v2018 = vpop.f32.mrb[0].mxu0
      %2019 = vmatprep.mubr.f32.mxu0 0.0
      %2020 = vmatmul.mubr.f32.gmra.mrb[0].mxu0 %v1923
      %v2021 = vpop.f32.mrb[0].mxu0
      %v2022 = vadd.f32 0.0, %v2021
      %v2023 = vpop.f32.mrb[0].mxu0
      %2024 = vmatprep.mubr.f32.mxu0 0.0
      %2025 = vmatmul.mubr.f32.gmra.mrb[0].mxu0 %v1924
      %v2026 = vpop.f32.mrb[0].mxu0
      %v2027 = vadd.f32 0.0, %v2026
      %v2028 = vpop.f32.mrb[0].mxu0
      %2029 = vmatprep.mubr.f32.mxu0 0.0
      %2030 = vmatmul.mubr.f32.gmra.mrb[0].mxu0 %v1925
      %v2031 = vpop.f32.mrb[0].mxu0
      %v2032 = vadd.f32 0.0, %v2031
      %v2033 = vpop.f32.mrb[0].mxu0
      %2034 = vmatprep.mubr.f32.mxu0 0.0
      %2035 = vmatmul.mubr.f32.gmra.mrb[0].mxu0 %v1926
      %v2036 = vpop.f32.mrb[0].mxu0
      %v2037 = vadd.f32 0.0, %v2036
      %v2038 = vpop.f32.mrb[0].mxu0
      %2039 = vmatprep.mubr.f32.mxu0 0.0
      %2040 = vmatmul.mubr.f32.gmra.mrb[0].mxu0 %v1927
      %v2041 = vpop.f32.mrb[0].mxu0
      %v2042 = vadd.f32 0.0, %v2041
      %v2043 = vpop.f32.mrb[0].mxu0
      %2044 = vmatprep.mubr.f32.mxu0 0.0
      %2045 = vmatmul.mubr.f32.gmra.mrb[0].mxu0 %v1928
      %v2046 = vpop.f32.mrb[0].mxu0
      %v2047 = vadd.f32 0.0, %v2046
      %v2048 = vpop.f32.mrb[0].mxu0
      %2049 = vdwg.mxu0
      %2050 = vmatprep.subr.mxu0 0.0
      %2051 = vmatpush1.msra.mxu0 %v1905
      %2052 = vmatprep.subr.mxu0 0.0
      %2053 = vmatpush1.msra.mxu0 %v1906
      %2054 = vmatprep.subr.mxu0 0.0
      %2055 = vmatpush1.msra.mxu0 %v1907
      %2056 = vmatprep.subr.mxu0 0.0
      %2057 = vmatpush1.msra.mxu0 %v1908
      %2058 = vmatprep.subr.mxu0 0.0
      %2059 = vmatpush1.msra.mxu0 %v1909
      %2060 = vmatprep.subr.mxu0 0.0
      %2061 = vmatpush1.msra.mxu0 %v1910
      %2062 = vmatprep.subr.mxu0 0.0
      %2063 = vmatpush1.msra.mxu0 %v1911
      %2064 = vmatprep.subr.mxu0 0.0
      %2065 = vmatpush1.msra.mxu0 %v1912
      %2066 = vmatprep.subr.mxu0 0.0
      %2067 = vmatpush1.msra.mxu0 %v1913
      %2068 = vmatprep.subr.mxu0 0.0
      %2069 = vmatpush1.msra.mxu0 %v1914
      %2070 = vmatprep.subr.mxu0 0.0
      %2071 = vmatpush1.msra.mxu0 %v1915
      %2072 = vmatprep.subr.mxu0 0.0
      %2073 = vmatpush1.msra.mxu0 %v1916
      %2074 = vmatprep.subr.mxu0 0.0
      %2075 = vmatpush1.msra.mxu0 %v1917
      %2076 = vmatprep.subr.mxu0 0.0
      %2077 = vmatpush1.msra.mxu0 %v1918
      %2078 = vmatprep.subr.mxu0 0.0
      %2079 = vmatpush1.msra.mxu0 %v1919
      %2080 = vmatprep.subr.mxu0 0.0
      %2081 = vmatpush1.msra.mxu0 %v1920
      %2082 = vmatprep.subr.mxu0 0.0
      %2083 = vmatpush1.msra.mxu0 0.0
      %2084 = vmatprep.subr.mxu0 0.0
      %2085 = vmatpush1.msra.mxu0 0.0
      %2086 = vmatprep.subr.mxu0 0.0
      %2087 = vmatpush1.msra.mxu0 0.0
      %2088 = vmatprep.subr.mxu0 0.0
      %2089 = vmatpush1.msra.mxu0 0.0
      %2090 = vmatprep.subr.mxu0 0.0
      %2091 = vmatpush1.msra.mxu0 0.0
      %2092 = vmatprep.subr.mxu0 0.0
      %2093 = vmatpush1.msra.mxu0 0.0
      %2094 = vmatprep.subr.mxu0 0.0
      %2095 = vmatpush1.msra.mxu0 0.0
      %2096 = vmatprep.subr.mxu0 0.0
      %2097 = vmatpush1.msra.mxu0 0.0
      %2098 = vmatprep.subr.mxu0 0.0
      %2099 = vmatpush1.msra.mxu0 0.0
      %2100 = vmatprep.subr.mxu0 0.0
      %2101 = vmatpush1.msra.mxu0 0.0
      %2102 = vmatprep.subr.mxu0 0.0
      %2103 = vmatpush1.msra.mxu0 0.0
      %2104 = vmatprep.subr.mxu0 0.0
      %2105 = vmatpush1.msra.mxu0 0.0
      %2106 = vmatprep.subr.mxu0 0.0
      %2107 = vmatpush1.msra.mxu0 0.0
      %2108 = vmatprep.subr.mxu0 0.0
      %2109 = vmatpush1.msra.mxu0 0.0
      %2110 = vmatprep.subr.mxu0 0.0
      %2111 = vmatpush1.msra.mxu0 0.0
      %2112 = vmatprep.subr.mxu0 0.0
      %2113 = vmatpush1.msra.mxu0 0.0
      %2114 = vmatprep.mubr.f32.mxu0 0.0
      %2115 = vmatmul.mubr.f32.gmra.mrb[0].mxu0 %v1897
      %v2116 = vpop.f32.mrb[0].mxu0
      %v2117 = vadd.f32 %v2012, %v2116
      %v2118 = vpop.f32.mrb[0].mxu0
      %2119 = vmatprep.mubr.f32.mxu0 0.0
      %2120 = vmatmul.mubr.f32.gmra.mrb[0].mxu0 %v1898
      %v2121 = vpop.f32.mrb[0].mxu0
      %v2122 = vadd.f32 %v2017, %v2121
      %v2123 = vpop.f32.mrb[0].mxu0
      %2124 = vmatprep.mubr.f32.mxu0 0.0
      %2125 = vmatmul.mubr.f32.gmra.mrb[0].mxu0 %v1899
      %v2126 = vpop.f32.mrb[0].mxu0
      %v2127 = vadd.f32 %v2022, %v2126
      %v2128 = vpop.f32.mrb[0].mxu0
      %2129 = vmatprep.mubr.f32.mxu0 0.0
      %2130 = vmatmul.mubr.f32.gmra.mrb[0].mxu0 %v1900
      %v2131 = vpop.f32.mrb[0].mxu0
      %v2132 = vadd.f32 %v2027, %v2131
      %v2133 = vpop.f32.mrb[0].mxu0
      %2134 = vmatprep.mubr.f32.mxu0 0.0
      %2135 = vmatmul.mubr.f32.gmra.mrb[0].mxu0 %v1901
      %v2136 = vpop.f32.mrb[0].mxu0
      %v2137 = vadd.f32 %v2032, %v2136
      %v2138 = vpop.f32.mrb[0].mxu0
      %2139 = vmatprep.mubr.f32.mxu0 0.0
      %2140 = vmatmul.mubr.f32.gmra.mrb[0].mxu0 %v1902
      %v2141 = vpop.f32.mrb[0].mxu0
      %v2142 = vadd.f32 %v2037, %v2141
      %v2143 = vpop.f32.mrb[0].mxu0
      %2144 = vmatprep.mubr.f32.mxu0 0.0
      %2145 = vmatmul.mubr.f32.gmra.mrb[0].mxu0 %v1903
      %v2146 = vpop.f32.mrb[0].mxu0
      %v2147 = vadd.f32 %v2042, %v2146
      %v2148 = vpop.f32.mrb[0].mxu0
      %2149 = vmatprep.mubr.f32.mxu0 0.0
      %2150 = vmatmul.mubr.f32.gmra.mrb[0].mxu0 %v1904
      %v2151 = vpop.f32.mrb[0].mxu0
      %v2152 = vadd.f32 %v2047, %v2151
      %v2153 = vpop.f32.mrb[0].mxu0
      %2154 = vdwg.mxu0
      %v2155 = vld [vmem:[#allocation3 + $0x1] sm:$0xff]
      %v2156 = vld [vmem:[#allocation3 + $0x11] sm:$0xff]
      %v2157 = vld [vmem:[#allocation3 + $0x21] sm:$0xff]
      %v2158 = vld [vmem:[#allocation3 + $0x31] sm:$0xff]
      %v2159 = vld [vmem:[#allocation3 + $0x41] sm:$0xff]
      %v2160 = vld [vmem:[#allocation3 + $0x51] sm:$0xff]
      %v2161 = vld [vmem:[#allocation3 + $0x61] sm:$0xff]
      %v2162 = vld [vmem:[#allocation3 + $0x71] sm:$0xff]
      %s2163 = scalar_lea.vmem %s6, 128
      %v2164 = vld [vmem:[%s2163] sm:$0xff]
      %v2165 = vld [vmem:[%s2163 + $0x8] sm:$0xff]
      %v2166 = vld [vmem:[%s2163 + $0x10] sm:$0xff]
      %v2167 = vld [vmem:[%s2163 + $0x18] sm:$0xff]
      %v2168 = vld [vmem:[%s2163 + $0x20] sm:$0xff]
      %v2169 = vld [vmem:[%s2163 + $0x28] sm:$0xff]
      %v2170 = vld [vmem:[%s2163 + $0x30] sm:$0xff]
      %v2171 = vld [vmem:[%s2163 + $0x38] sm:$0xff]
      %v2172 = vld [vmem:[%s2163 + $0x40] sm:$0xff]
      %v2173 = vld [vmem:[%s2163 + $0x48] sm:$0xff]
      %v2174 = vld [vmem:[%s2163 + $0x50] sm:$0xff]
      %v2175 = vld [vmem:[%s2163 + $0x58] sm:$0xff]
      %v2176 = vld [vmem:[%s2163 + $0x60] sm:$0xff]
      %v2177 = vld [vmem:[%s2163 + $0x68] sm:$0xff]
      %v2178 = vld [vmem:[%s2163 + $0x70] sm:$0xff]
      %v2179 = vld [vmem:[%s2163 + $0x78] sm:$0xff]
      %2180 = vmatprep.subr.mxu0 0.0
      %2181 = vmatpush1.msra.mxu0 %v2164
      %2182 = vmatprep.subr.mxu0 0.0
      %2183 = vmatpush1.msra.mxu0 %v2165
      %2184 = vmatprep.subr.mxu0 0.0
      %2185 = vmatpush1.msra.mxu0 %v2166
      %2186 = vmatprep.subr.mxu0 0.0
      %2187 = vmatpush1.msra.mxu0 %v2167
      %2188 = vmatprep.subr.mxu0 0.0
      %2189 = vmatpush1.msra.mxu0 %v2168
      %2190 = vmatprep.subr.mxu0 0.0
      %2191 = vmatpush1.msra.mxu0 %v2169
      %2192 = vmatprep.subr.mxu0 0.0
      %2193 = vmatpush1.msra.mxu0 %v2170
      %2194 = vmatprep.subr.mxu0 0.0
      %2195 = vmatpush1.msra.mxu0 %v2171
      %2196 = vmatprep.subr.mxu0 0.0
      %2197 = vmatpush1.msra.mxu0 %v2172
      %2198 = vmatprep.subr.mxu0 0.0
      %2199 = vmatpush1.msra.mxu0 %v2173
      %2200 = vmatprep.subr.mxu0 0.0
      %2201 = vmatpush1.msra.mxu0 %v2174
      %2202 = vmatprep.subr.mxu0 0.0
      %2203 = vmatpush1.msra.mxu0 %v2175
      %2204 = vmatprep.subr.mxu0 0.0
      %2205 = vmatpush1.msra.mxu0 %v2176
      %2206 = vmatprep.subr.mxu0 0.0
      %2207 = vmatpush1.msra.mxu0 %v2177
      %2208 = vmatprep.subr.mxu0 0.0
      %2209 = vmatpush1.msra.mxu0 %v2178
      %2210 = vmatprep.subr.mxu0 0.0
      %2211 = vmatpush1.msra.mxu0 %v2179
      %2212 = vmatprep.subr.mxu0 0.0
      %2213 = vmatpush1.msra.mxu0 0.0
      %2214 = vmatprep.subr.mxu0 0.0
      %2215 = vmatpush1.msra.mxu0 0.0
      %2216 = vmatprep.subr.mxu0 0.0
      %2217 = vmatpush1.msra.mxu0 0.0
      %2218 = vmatprep.subr.mxu0 0.0
      %2219 = vmatpush1.msra.mxu0 0.0
      %2220 = vmatprep.subr.mxu0 0.0
      %2221 = vmatpush1.msra.mxu0 0.0
      %2222 = vmatprep.subr.mxu0 0.0
      %2223 = vmatpush1.msra.mxu0 0.0
      %2224 = vmatprep.subr.mxu0 0.0
      %2225 = vmatpush1.msra.mxu0 0.0
      %2226 = vmatprep.subr.mxu0 0.0
      %2227 = vmatpush1.msra.mxu0 0.0
      %2228 = vmatprep.subr.mxu0 0.0
      %2229 = vmatpush1.msra.mxu0 0.0
      %2230 = vmatprep.subr.mxu0 0.0
      %2231 = vmatpush1.msra.mxu0 0.0
      %2232 = vmatprep.subr.mxu0 0.0
      %2233 = vmatpush1.msra.mxu0 0.0
      %2234 = vmatprep.subr.mxu0 0.0
      %2235 = vmatpush1.msra.mxu0 0.0
      %2236 = vmatprep.subr.mxu0 0.0
      %2237 = vmatpush1.msra.mxu0 0.0
      %2238 = vmatprep.subr.mxu0 0.0
      %2239 = vmatpush1.msra.mxu0 0.0
      %2240 = vmatprep.subr.mxu0 0.0
      %2241 = vmatpush1.msra.mxu0 0.0
      %2242 = vmatprep.subr.mxu0 0.0
      %2243 = vmatpush1.msra.mxu0 0.0
      %2244 = vmatprep.mubr.f32.mxu0 0.0
      %2245 = vmatmul.mubr.f32.gmra.mrb[0].mxu0 %v2155
      %v2246 = vpop.f32.mrb[0].mxu0
      %v2247 = vadd.f32 0.0, %v2246
      %v2248 = vpop.f32.mrb[0].mxu0
      %2249 = vmatprep.mubr.f32.mxu0 0.0
      %2250 = vmatmul.mubr.f32.gmra.mrb[0].mxu0 %v2156
      %v2251 = vpop.f32.mrb[0].mxu0
      %v2252 = vadd.f32 0.0, %v2251
      %v2253 = vpop.f32.mrb[0].mxu0
      %2254 = vmatprep.mubr.f32.mxu0 0.0
      %2255 = vmatmul.mubr.f32.gmra.mrb[0].mxu0 %v2157
      %v2256 = vpop.f32.mrb[0].mxu0
      %v2257 = vadd.f32 0.0, %v2256
      %v2258 = vpop.f32.mrb[0].mxu0
      %2259 = vmatprep.mubr.f32.mxu0 0.0
      %2260 = vmatmul.mubr.f32.gmra.mrb[0].mxu0 %v2158
      %v2261 = vpop.f32.mrb[0].mxu0
      %v2262 = vadd.f32 0.0, %v2261
      %v2263 = vpop.f32.mrb[0].mxu0
      %2264 = vmatprep.mubr.f32.mxu0 0.0
      %2265 = vmatmul.mubr.f32.gmra.mrb[0].mxu0 %v2159
      %v2266 = vpop.f32.mrb[0].mxu0
      %v2267 = vadd.f32 0.0, %v2266
      %v2268 = vpop.f32.mrb[0].mxu0
      %2269 = vmatprep.mubr.f32.mxu0 0.0
      %2270 = vmatmul.mubr.f32.gmra.mrb[0].mxu0 %v2160
      %v2271 = vpop.f32.mrb[0].mxu0
      %v2272 = vadd.f32 0.0, %v2271
      %v2273 = vpop.f32.mrb[0].mxu0
      %2274 = vmatprep.mubr.f32.mxu0 0.0
      %2275 = vmatmul.mubr.f32.gmra.mrb[0].mxu0 %v2161
      %v2276 = vpop.f32.mrb[0].mxu0
      %v2277 = vadd.f32 0.0, %v2276
      %v2278 = vpop.f32.mrb[0].mxu0
      %2279 = vmatprep.mubr.f32.mxu0 0.0
      %2280 = vmatmul.mubr.f32.gmra.mrb[0].mxu0 %v2162
      %v2281 = vpop.f32.mrb[0].mxu0
      %v2282 = vadd.f32 0.0, %v2281
      %v2283 = vpop.f32.mrb[0].mxu0
      %2284 = vdwg.mxu0
      %v2285 = vadd.f32 %v2117, %v2247
      %v2286 = vadd.f32 %v2122, %v2252
      %v2287 = vadd.f32 %v2127, %v2257
      %v2288 = vadd.f32 %v2132, %v2262
      %v2289 = vadd.f32 %v2137, %v2267
      %v2290 = vadd.f32 %v2142, %v2272
      %v2291 = vadd.f32 %v2147, %v2277
      %v2292 = vadd.f32 %v2152, %v2282
      %v2293 = vld [vmem:[#allocation3 + $0x2] sm:$0xff]
      %v2294 = vld [vmem:[#allocation3 + $0x12] sm:$0xff]
      %v2295 = vld [vmem:[#allocation3 + $0x22] sm:$0xff]
      %v2296 = vld [vmem:[#allocation3 + $0x32] sm:$0xff]
      %v2297 = vld [vmem:[#allocation3 + $0x42] sm:$0xff]
      %v2298 = vld [vmem:[#allocation3 + $0x52] sm:$0xff]
      %v2299 = vld [vmem:[#allocation3 + $0x62] sm:$0xff]
      %v2300 = vld [vmem:[#allocation3 + $0x72] sm:$0xff]
      %s2301 = scalar_lea.vmem %s6, 256
      %v2302 = vld [vmem:[%s2301] sm:$0xff]
      %v2303 = vld [vmem:[%s2301 + $0x8] sm:$0xff]
      %v2304 = vld [vmem:[%s2301 + $0x10] sm:$0xff]
      %v2305 = vld [vmem:[%s2301 + $0x18] sm:$0xff]
      %v2306 = vld [vmem:[%s2301 + $0x20] sm:$0xff]
      %v2307 = vld [vmem:[%s2301 + $0x28] sm:$0xff]
      %v2308 = vld [vmem:[%s2301 + $0x30] sm:$0xff]
      %v2309 = vld [vmem:[%s2301 + $0x38] sm:$0xff]
      %v2310 = vld [vmem:[%s2301 + $0x40] sm:$0xff]
      %v2311 = vld [vmem:[%s2301 + $0x48] sm:$0xff]
      %v2312 = vld [vmem:[%s2301 + $0x50] sm:$0xff]
      %v2313 = vld [vmem:[%s2301 + $0x58] sm:$0xff]
      %v2314 = vld [vmem:[%s2301 + $0x60] sm:$0xff]
      %v2315 = vld [vmem:[%s2301 + $0x68] sm:$0xff]
      %v2316 = vld [vmem:[%s2301 + $0x70] sm:$0xff]
      %v2317 = vld [vmem:[%s2301 + $0x78] sm:$0xff]
      %2318 = vmatprep.subr.mxu0 0.0
      %2319 = vmatpush1.msra.mxu0 %v2302
      %2320 = vmatprep.subr.mxu0 0.0
      %2321 = vmatpush1.msra.mxu0 %v2303
      %2322 = vmatprep.subr.mxu0 0.0
      %2323 = vmatpush1.msra.mxu0 %v2304
      %2324 = vmatprep.subr.mxu0 0.0
      %2325 = vmatpush1.msra.mxu0 %v2305
      %2326 = vmatprep.subr.mxu0 0.0
      %2327 = vmatpush1.msra.mxu0 %v2306
      %2328 = vmatprep.subr.mxu0 0.0
      %2329 = vmatpush1.msra.mxu0 %v2307
      %2330 = vmatprep.subr.mxu0 0.0
      %2331 = vmatpush1.msra.mxu0 %v2308
      %2332 = vmatprep.subr.mxu0 0.0
      %2333 = vmatpush1.msra.mxu0 %v2309
      %2334 = vmatprep.subr.mxu0 0.0
      %2335 = vmatpush1.msra.mxu0 %v2310
      %2336 = vmatprep.subr.mxu0 0.0
      %2337 = vmatpush1.msra.mxu0 %v2311
      %2338 = vmatprep.subr.mxu0 0.0
      %2339 = vmatpush1.msra.mxu0 %v2312
      %2340 = vmatprep.subr.mxu0 0.0
      %2341 = vmatpush1.msra.mxu0 %v2313
      %2342 = vmatprep.subr.mxu0 0.0
      %2343 = vmatpush1.msra.mxu0 %v2314
      %2344 = vmatprep.subr.mxu0 0.0
      %2345 = vmatpush1.msra.mxu0 %v2315
      %2346 = vmatprep.subr.mxu0 0.0
      %2347 = vmatpush1.msra.mxu0 %v2316
      %2348 = vmatprep.subr.mxu0 0.0
      %2349 = vmatpush1.msra.mxu0 %v2317
      %2350 = vmatprep.subr.mxu0 0.0
      %2351 = vmatpush1.msra.mxu0 0.0
      %2352 = vmatprep.subr.mxu0 0.0
      %2353 = vmatpush1.msra.mxu0 0.0
      %2354 = vmatprep.subr.mxu0 0.0
      %2355 = vmatpush1.msra.mxu0 0.0
      %2356 = vmatprep.subr.mxu0 0.0
      %2357 = vmatpush1.msra.mxu0 0.0
      %2358 = vmatprep.subr.mxu0 0.0
      %2359 = vmatpush1.msra.mxu0 0.0
      %2360 = vmatprep.subr.mxu0 0.0
      %2361 = vmatpush1.msra.mxu0 0.0
      %2362 = vmatprep.subr.mxu0 0.0
      %2363 = vmatpush1.msra.mxu0 0.0
      %2364 = vmatprep.subr.mxu0 0.0
      %2365 = vmatpush1.msra.mxu0 0.0
      %2366 = vmatprep.subr.mxu0 0.0
      %2367 = vmatpush1.msra.mxu0 0.0
      %2368 = vmatprep.subr.mxu0 0.0
      %2369 = vmatpush1.msra.mxu0 0.0
      %2370 = vmatprep.subr.mxu0 0.0
      %2371 = vmatpush1.msra.mxu0 0.0
      %2372 = vmatprep.subr.mxu0 0.0
      %2373 = vmatpush1.msra.mxu0 0.0
      %2374 = vmatprep.subr.mxu0 0.0
      %2375 = vmatpush1.msra.mxu0 0.0
      %2376 = vmatprep.subr.mxu0 0.0
      %2377 = vmatpush1.msra.mxu0 0.0
      %2378 = vmatprep.subr.mxu0 0.0
      %2379 = vmatpush1.msra.mxu0 0.0
      %2380 = vmatprep.subr.mxu0 0.0
      %2381 = vmatpush1.msra.mxu0 0.0
      %2382 = vmatprep.mubr.f32.mxu0 0.0
      %2383 = vmatmul.mubr.f32.gmra.mrb[0].mxu0 %v2293
      %v2384 = vpop.f32.mrb[0].mxu0
      %v2385 = vadd.f32 0.0, %v2384
      %v2386 = vpop.f32.mrb[0].mxu0
      %2387 = vmatprep.mubr.f32.mxu0 0.0
      %2388 = vmatmul.mubr.f32.gmra.mrb[0].mxu0 %v2294
      %v2389 = vpop.f32.mrb[0].mxu0
      %v2390 = vadd.f32 0.0, %v2389
      %v2391 = vpop.f32.mrb[0].mxu0
      %2392 = vmatprep.mubr.f32.mxu0 0.0
      %2393 = vmatmul.mubr.f32.gmra.mrb[0].mxu0 %v2295
      %v2394 = vpop.f32.mrb[0].mxu0
      %v2395 = vadd.f32 0.0, %v2394
      %v2396 = vpop.f32.mrb[0].mxu0
      %2397 = vmatprep.mubr.f32.mxu0 0.0
      %2398 = vmatmul.mubr.f32.gmra.mrb[0].mxu0 %v2296
      %v2399 = vpop.f32.mrb[0].mxu0
      %v2400 = vadd.f32 0.0, %v2399
      %v2401 = vpop.f32.mrb[0].mxu0
      %2402 = vmatprep.mubr.f32.mxu0 0.0
      %2403 = vmatmul.mubr.f32.gmra.mrb[0].mxu0 %v2297
      %v2404 = vpop.f32.mrb[0].mxu0
      %v2405 = vadd.f32 0.0, %v2404
      %v2406 = vpop.f32.mrb[0].mxu0
      %2407 = vmatprep.mubr.f32.mxu0 0.0
      %2408 = vmatmul.mubr.f32.gmra.mrb[0].mxu0 %v2298
      %v2409 = vpop.f32.mrb[0].mxu0
      %v2410 = vadd.f32 0.0, %v2409
      %v2411 = vpop.f32.mrb[0].mxu0
      %2412 = vmatprep.mubr.f32.mxu0 0.0
      %2413 = vmatmul.mubr.f32.gmra.mrb[0].mxu0 %v2299
      %v2414 = vpop.f32.mrb[0].mxu0
      %v2415 = vadd.f32 0.0, %v2414
      %v2416 = vpop.f32.mrb[0].mxu0
      %2417 = vmatprep.mubr.f32.mxu0 0.0
      %2418 = vmatmul.mubr.f32.gmra.mrb[0].mxu0 %v2300
      %v2419 = vpop.f32.mrb[0].mxu0
      %v2420 = vadd.f32 0.0, %v2419
      %v2421 = vpop.f32.mrb[0].mxu0
      %2422 = vdwg.mxu0
      %v2423 = vadd.f32 %v2285, %v2385
      %v2424 = vadd.f32 %v2286, %v2390
      %v2425 = vadd.f32 %v2287, %v2395
      %v2426 = vadd.f32 %v2288, %v2400
      %v2427 = vadd.f32 %v2289, %v2405
      %v2428 = vadd.f32 %v2290, %v2410
      %v2429 = vadd.f32 %v2291, %v2415
      %v2430 = vadd.f32 %v2292, %v2420
      %v2431 = vld [vmem:[%s1888] sm:$0xff]
      %v2432 = vld [vmem:[%s1888 + $0x10] sm:$0xff]
      %v2433 = vld [vmem:[%s1888 + $0x20] sm:$0xff]
      %v2434 = vld [vmem:[%s1888 + $0x30] sm:$0xff]
      %v2435 = vld [vmem:[%s1888 + $0x40] sm:$0xff]
      %v2436 = vld [vmem:[%s1888 + $0x50] sm:$0xff]
      %v2437 = vld [vmem:[%s1888 + $0x60] sm:$0xff]
      %v2438 = vld [vmem:[%s1888 + $0x70] sm:$0xff]
      %s2439 = scalar_lea.vmem %s6, 384
      %v2440 = vld [vmem:[%s2439] sm:$0xff]
      %v2441 = vld [vmem:[%s2439 + $0x8] sm:$0xff]
      %v2442 = vld [vmem:[%s2439 + $0x10] sm:$0xff]
      %v2443 = vld [vmem:[%s2439 + $0x18] sm:$0xff]
      %v2444 = vld [vmem:[%s2439 + $0x20] sm:$0xff]
      %v2445 = vld [vmem:[%s2439 + $0x28] sm:$0xff]
      %v2446 = vld [vmem:[%s2439 + $0x30] sm:$0xff]
      %v2447 = vld [vmem:[%s2439 + $0x38] sm:$0xff]
      %v2448 = vld [vmem:[%s2439 + $0x40] sm:$0xff]
      %v2449 = vld [vmem:[%s2439 + $0x48] sm:$0xff]
      %v2450 = vld [vmem:[%s2439 + $0x50] sm:$0xff]
      %v2451 = vld [vmem:[%s2439 + $0x58] sm:$0xff]
      %v2452 = vld [vmem:[%s2439 + $0x60] sm:$0xff]
      %v2453 = vld [vmem:[%s2439 + $0x68] sm:$0xff]
      %v2454 = vld [vmem:[%s2439 + $0x70] sm:$0xff]
      %v2455 = vld [vmem:[%s2439 + $0x78] sm:$0xff]
      %2456 = vmatprep.subr.mxu0 0.0
      %2457 = vmatpush1.msra.mxu0 %v2440
      %2458 = vmatprep.subr.mxu0 0.0
      %2459 = vmatpush1.msra.mxu0 %v2441
      %2460 = vmatprep.subr.mxu0 0.0
      %2461 = vmatpush1.msra.mxu0 %v2442
      %2462 = vmatprep.subr.mxu0 0.0
      %2463 = vmatpush1.msra.mxu0 %v2443
      %2464 = vmatprep.subr.mxu0 0.0
      %2465 = vmatpush1.msra.mxu0 %v2444
      %2466 = vmatprep.subr.mxu0 0.0
      %2467 = vmatpush1.msra.mxu0 %v2445
      %2468 = vmatprep.subr.mxu0 0.0
      %2469 = vmatpush1.msra.mxu0 %v2446
      %2470 = vmatprep.subr.mxu0 0.0
      %2471 = vmatpush1.msra.mxu0 %v2447
      %2472 = vmatprep.subr.mxu0 0.0
      %2473 = vmatpush1.msra.mxu0 %v2448
      %2474 = vmatprep.subr.mxu0 0.0
      %2475 = vmatpush1.msra.mxu0 %v2449
      %2476 = vmatprep.subr.mxu0 0.0
      %2477 = vmatpush1.msra.mxu0 %v2450
      %2478 = vmatprep.subr.mxu0 0.0
      %2479 = vmatpush1.msra.mxu0 %v2451
      %2480 = vmatprep.subr.mxu0 0.0
      %2481 = vmatpush1.msra.mxu0 %v2452
      %2482 = vmatprep.subr.mxu0 0.0
      %2483 = vmatpush1.msra.mxu0 %v2453
      %2484 = vmatprep.subr.mxu0 0.0
      %2485 = vmatpush1.msra.mxu0 %v2454
      %2486 = vmatprep.subr.mxu0 0.0
      %2487 = vmatpush1.msra.mxu0 %v2455
      %2488 = vmatprep.subr.mxu0 0.0
      %2489 = vmatpush1.msra.mxu0 0.0
      %2490 = vmatprep.subr.mxu0 0.0
      %2491 = vmatpush1.msra.mxu0 0.0
      %2492 = vmatprep.subr.mxu0 0.0
      %2493 = vmatpush1.msra.mxu0 0.0
      %2494 = vmatprep.subr.mxu0 0.0
      %2495 = vmatpush1.msra.mxu0 0.0
      %2496 = vmatprep.subr.mxu0 0.0
      %2497 = vmatpush1.msra.mxu0 0.0
      %2498 = vmatprep.subr.mxu0 0.0
      %2499 = vmatpush1.msra.mxu0 0.0
      %2500 = vmatprep.subr.mxu0 0.0
      %2501 = vmatpush1.msra.mxu0 0.0
      %2502 = vmatprep.subr.mxu0 0.0
      %2503 = vmatpush1.msra.mxu0 0.0
      %2504 = vmatprep.subr.mxu0 0.0
      %2505 = vmatpush1.msra.mxu0 0.0
      %2506 = vmatprep.subr.mxu0 0.0
      %2507 = vmatpush1.msra.mxu0 0.0
      %2508 = vmatprep.subr.mxu0 0.0
      %2509 = vmatpush1.msra.mxu0 0.0
      %2510 = vmatprep.subr.mxu0 0.0
      %2511 = vmatpush1.msra.mxu0 0.0
      %2512 = vmatprep.subr.mxu0 0.0
      %2513 = vmatpush1.msra.mxu0 0.0
      %2514 = vmatprep.subr.mxu0 0.0
      %2515 = vmatpush1.msra.mxu0 0.0
      %2516 = vmatprep.subr.mxu0 0.0
      %2517 = vmatpush1.msra.mxu0 0.0
      %2518 = vmatprep.subr.mxu0 0.0
      %2519 = vmatpush1.msra.mxu0 0.0
      %2520 = vmatprep.mubr.f32.mxu0 0.0
      %2521 = vmatmul.mubr.f32.gmra.mrb[0].mxu0 %v2431
      %v2522 = vpop.f32.mrb[0].mxu0
      %v2523 = vadd.f32 0.0, %v2522
      %v2524 = vpop.f32.mrb[0].mxu0
      %2525 = vmatprep.mubr.f32.mxu0 0.0
      %2526 = vmatmul.mubr.f32.gmra.mrb[0].mxu0 %v2432
      %v2527 = vpop.f32.mrb[0].mxu0
      %v2528 = vadd.f32 0.0, %v2527
      %v2529 = vpop.f32.mrb[0].mxu0
      %2530 = vmatprep.mubr.f32.mxu0 0.0
      %2531 = vmatmul.mubr.f32.gmra.mrb[0].mxu0 %v2433
      %v2532 = vpop.f32.mrb[0].mxu0
      %v2533 = vadd.f32 0.0, %v2532
      %v2534 = vpop.f32.mrb[0].mxu0
      %2535 = vmatprep.mubr.f32.mxu0 0.0
      %2536 = vmatmul.mubr.f32.gmra.mrb[0].mxu0 %v2434
      %v2537 = vpop.f32.mrb[0].mxu0
      %v2538 = vadd.f32 0.0, %v2537
      %v2539 = vpop.f32.mrb[0].mxu0
      %2540 = vmatprep.mubr.f32.mxu0 0.0
      %2541 = vmatmul.mubr.f32.gmra.mrb[0].mxu0 %v2435
      %v2542 = vpop.f32.mrb[0].mxu0
      %v2543 = vadd.f32 0.0, %v2542
      %v2544 = vpop.f32.mrb[0].mxu0
      %2545 = vmatprep.mubr.f32.mxu0 0.0
      %2546 = vmatmul.mubr.f32.gmra.mrb[0].mxu0 %v2436
      %v2547 = vpop.f32.mrb[0].mxu0
      %v2548 = vadd.f32 0.0, %v2547
      %v2549 = vpop.f32.mrb[0].mxu0
      %2550 = vmatprep.mubr.f32.mxu0 0.0
      %2551 = vmatmul.mubr.f32.gmra.mrb[0].mxu0 %v2437
      %v2552 = vpop.f32.mrb[0].mxu0
      %v2553 = vadd.f32 0.0, %v2552
      %v2554 = vpop.f32.mrb[0].mxu0
      %2555 = vmatprep.mubr.f32.mxu0 0.0
      %2556 = vmatmul.mubr.f32.gmra.mrb[0].mxu0 %v2438
      %v2557 = vpop.f32.mrb[0].mxu0
      %v2558 = vadd.f32 0.0, %v2557
      %v2559 = vpop.f32.mrb[0].mxu0
      %2560 = vdwg.mxu0
      %v2561 = vadd.f32 %v2423, %v2523
      %v2562 = vadd.f32 %v2424, %v2528
      %v2563 = vadd.f32 %v2425, %v2533
      %v2564 = vadd.f32 %v2426, %v2538
      %v2565 = vadd.f32 %v2427, %v2543
      %v2566 = vadd.f32 %v2428, %v2548
      %v2567 = vadd.f32 %v2429, %v2553
      %v2568 = vadd.f32 %v2430, %v2558
      %v2569 = vld [vmem:[%s1888 + $0x1] sm:$0xff]
      %v2570 = vld [vmem:[%s1888 + $0x11] sm:$0xff]
      %v2571 = vld [vmem:[%s1888 + $0x21] sm:$0xff]
      %v2572 = vld [vmem:[%s1888 + $0x31] sm:$0xff]
      %v2573 = vld [vmem:[%s1888 + $0x41] sm:$0xff]
      %v2574 = vld [vmem:[%s1888 + $0x51] sm:$0xff]
      %v2575 = vld [vmem:[%s1888 + $0x61] sm:$0xff]
      %v2576 = vld [vmem:[%s1888 + $0x71] sm:$0xff]
      %s2577 = scalar_lea.vmem %s6, 512
      %v2578 = vld [vmem:[%s2577] sm:$0xff]
      %v2579 = vld [vmem:[%s2577 + $0x8] sm:$0xff]
      %v2580 = vld [vmem:[%s2577 + $0x10] sm:$0xff]
      %v2581 = vld [vmem:[%s2577 + $0x18] sm:$0xff]
      %v2582 = vld [vmem:[%s2577 + $0x20] sm:$0xff]
      %v2583 = vld [vmem:[%s2577 + $0x28] sm:$0xff]
      %v2584 = vld [vmem:[%s2577 + $0x30] sm:$0xff]
      %v2585 = vld [vmem:[%s2577 + $0x38] sm:$0xff]
      %v2586 = vld [vmem:[%s2577 + $0x40] sm:$0xff]
      %v2587 = vld [vmem:[%s2577 + $0x48] sm:$0xff]
      %v2588 = vld [vmem:[%s2577 + $0x50] sm:$0xff]
      %v2589 = vld [vmem:[%s2577 + $0x58] sm:$0xff]
      %v2590 = vld [vmem:[%s2577 + $0x60] sm:$0xff]
      %v2591 = vld [vmem:[%s2577 + $0x68] sm:$0xff]
      %v2592 = vld [vmem:[%s2577 + $0x70] sm:$0xff]
      %v2593 = vld [vmem:[%s2577 + $0x78] sm:$0xff]
      %2594 = vmatprep.subr.mxu0 0.0
      %2595 = vmatpush1.msra.mxu0 %v2578
      %2596 = vmatprep.subr.mxu0 0.0
      %2597 = vmatpush1.msra.mxu0 %v2579
      %2598 = vmatprep.subr.mxu0 0.0
      %2599 = vmatpush1.msra.mxu0 %v2580
      %2600 = vmatprep.subr.mxu0 0.0
      %2601 = vmatpush1.msra.mxu0 %v2581
      %2602 = vmatprep.subr.mxu0 0.0
      %2603 = vmatpush1.msra.mxu0 %v2582
      %2604 = vmatprep.subr.mxu0 0.0
      %2605 = vmatpush1.msra.mxu0 %v2583
      %2606 = vmatprep.subr.mxu0 0.0
      %2607 = vmatpush1.msra.mxu0 %v2584
      %2608 = vmatprep.subr.mxu0 0.0
      %2609 = vmatpush1.msra.mxu0 %v2585
      %2610 = vmatprep.subr.mxu0 0.0
      %2611 = vmatpush1.msra.mxu0 %v2586
      %2612 = vmatprep.subr.mxu0 0.0
      %2613 = vmatpush1.msra.mxu0 %v2587
      %2614 = vmatprep.subr.mxu0 0.0
      %2615 = vmatpush1.msra.mxu0 %v2588
      %2616 = vmatprep.subr.mxu0 0.0
      %2617 = vmatpush1.msra.mxu0 %v2589
      %2618 = vmatprep.subr.mxu0 0.0
      %2619 = vmatpush1.msra.mxu0 %v2590
      %2620 = vmatprep.subr.mxu0 0.0
      %2621 = vmatpush1.msra.mxu0 %v2591
      %2622 = vmatprep.subr.mxu0 0.0
      %2623 = vmatpush1.msra.mxu0 %v2592
      %2624 = vmatprep.subr.mxu0 0.0
      %2625 = vmatpush1.msra.mxu0 %v2593
      %2626 = vmatprep.subr.mxu0 0.0
      %2627 = vmatpush1.msra.mxu0 0.0
      %2628 = vmatprep.subr.mxu0 0.0
      %2629 = vmatpush1.msra.mxu0 0.0
      %2630 = vmatprep.subr.mxu0 0.0
      %2631 = vmatpush1.msra.mxu0 0.0
      %2632 = vmatprep.subr.mxu0 0.0
      %2633 = vmatpush1.msra.mxu0 0.0
      %2634 = vmatprep.subr.mxu0 0.0
      %2635 = vmatpush1.msra.mxu0 0.0
      %2636 = vmatprep.subr.mxu0 0.0
      %2637 = vmatpush1.msra.mxu0 0.0
      %2638 = vmatprep.subr.mxu0 0.0
      %2639 = vmatpush1.msra.mxu0 0.0
      %2640 = vmatprep.subr.mxu0 0.0
      %2641 = vmatpush1.msra.mxu0 0.0
      %2642 = vmatprep.subr.mxu0 0.0
      %2643 = vmatpush1.msra.mxu0 0.0
      %2644 = vmatprep.subr.mxu0 0.0
      %2645 = vmatpush1.msra.mxu0 0.0
      %2646 = vmatprep.subr.mxu0 0.0
      %2647 = vmatpush1.msra.mxu0 0.0
      %2648 = vmatprep.subr.mxu0 0.0
      %2649 = vmatpush1.msra.mxu0 0.0
      %2650 = vmatprep.subr.mxu0 0.0
      %2651 = vmatpush1.msra.mxu0 0.0
      %2652 = vmatprep.subr.mxu0 0.0
      %2653 = vmatpush1.msra.mxu0 0.0
      %2654 = vmatprep.subr.mxu0 0.0
      %2655 = vmatpush1.msra.mxu0 0.0
      %2656 = vmatprep.subr.mxu0 0.0
      %2657 = vmatpush1.msra.mxu0 0.0
      %2658 = vmatprep.mubr.f32.mxu0 0.0
      %2659 = vmatmul.mubr.f32.gmra.mrb[0].mxu0 %v2569
      %v2660 = vpop.f32.mrb[0].mxu0
      %v2661 = vadd.f32 0.0, %v2660
      %v2662 = vpop.f32.mrb[0].mxu0
      %2663 = vmatprep.mubr.f32.mxu0 0.0
      %2664 = vmatmul.mubr.f32.gmra.mrb[0].mxu0 %v2570
      %v2665 = vpop.f32.mrb[0].mxu0
      %v2666 = vadd.f32 0.0, %v2665
      %v2667 = vpop.f32.mrb[0].mxu0
      %2668 = vmatprep.mubr.f32.mxu0 0.0
      %2669 = vmatmul.mubr.f32.gmra.mrb[0].mxu0 %v2571
      %v2670 = vpop.f32.mrb[0].mxu0
      %v2671 = vadd.f32 0.0, %v2670
      %v2672 = vpop.f32.mrb[0].mxu0
      %2673 = vmatprep.mubr.f32.mxu0 0.0
      %2674 = vmatmul.mubr.f32.gmra.mrb[0].mxu0 %v2572
      %v2675 = vpop.f32.mrb[0].mxu0
      %v2676 = vadd.f32 0.0, %v2675
      %v2677 = vpop.f32.mrb[0].mxu0
      %2678 = vmatprep.mubr.f32.mxu0 0.0
      %2679 = vmatmul.mubr.f32.gmra.mrb[0].mxu0 %v2573
      %v2680 = vpop.f32.mrb[0].mxu0
      %v2681 = vadd.f32 0.0, %v2680
      %v2682 = vpop.f32.mrb[0].mxu0
      %2683 = vmatprep.mubr.f32.mxu0 0.0
      %2684 = vmatmul.mubr.f32.gmra.mrb[0].mxu0 %v2574
      %v2685 = vpop.f32.mrb[0].mxu0
      %v2686 = vadd.f32 0.0, %v2685
      %v2687 = vpop.f32.mrb[0].mxu0
      %2688 = vmatprep.mubr.f32.mxu0 0.0
      %2689 = vmatmul.mubr.f32.gmra.mrb[0].mxu0 %v2575
      %v2690 = vpop.f32.mrb[0].mxu0
      %v2691 = vadd.f32 0.0, %v2690
      %v2692 = vpop.f32.mrb[0].mxu0
      %2693 = vmatprep.mubr.f32.mxu0 0.0
      %2694 = vmatmul.mubr.f32.gmra.mrb[0].mxu0 %v2576
      %v2695 = vpop.f32.mrb[0].mxu0
      %v2696 = vadd.f32 0.0, %v2695
      %v2697 = vpop.f32.mrb[0].mxu0
      %2698 = vdwg.mxu0
      %v2699 = vadd.f32 %v2561, %v2661
      %v2700 = vadd.f32 %v2562, %v2666
      %v2701 = vadd.f32 %v2563, %v2671
      %v2702 = vadd.f32 %v2564, %v2676
      %v2703 = vadd.f32 %v2565, %v2681
      %v2704 = vadd.f32 %v2566, %v2686
      %v2705 = vadd.f32 %v2567, %v2691
      %v2706 = vadd.f32 %v2568, %v2696
      %v2707 = vld [vmem:[%s1888 + $0x2] sm:$0xff]
      %v2708 = vld [vmem:[%s1888 + $0x12] sm:$0xff]
      %v2709 = vld [vmem:[%s1888 + $0x22] sm:$0xff]
      %v2710 = vld [vmem:[%s1888 + $0x32] sm:$0xff]
      %v2711 = vld [vmem:[%s1888 + $0x42] sm:$0xff]
      %v2712 = vld [vmem:[%s1888 + $0x52] sm:$0xff]
      %v2713 = vld [vmem:[%s1888 + $0x62] sm:$0xff]
      %v2714 = vld [vmem:[%s1888 + $0x72] sm:$0xff]
      %s2715 = scalar_lea.vmem %s6, 640
      %v2716 = vld [vmem:[%s2715] sm:$0xff]
      %v2717 = vld [vmem:[%s2715 + $0x8] sm:$0xff]
      %v2718 = vld [vmem:[%s2715 + $0x10] sm:$0xff]
      %v2719 = vld [vmem:[%s2715 + $0x18] sm:$0xff]
      %v2720 = vld [vmem:[%s2715 + $0x20] sm:$0xff]
      %v2721 = vld [vmem:[%s2715 + $0x28] sm:$0xff]
      %v2722 = vld [vmem:[%s2715 + $0x30] sm:$0xff]
      %v2723 = vld [vmem:[%s2715 + $0x38] sm:$0xff]
      %v2724 = vld [vmem:[%s2715 + $0x40] sm:$0xff]
      %v2725 = vld [vmem:[%s2715 + $0x48] sm:$0xff]
      %v2726 = vld [vmem:[%s2715 + $0x50] sm:$0xff]
      %v2727 = vld [vmem:[%s2715 + $0x58] sm:$0xff]
      %v2728 = vld [vmem:[%s2715 + $0x60] sm:$0xff]
      %v2729 = vld [vmem:[%s2715 + $0x68] sm:$0xff]
      %v2730 = vld [vmem:[%s2715 + $0x70] sm:$0xff]
      %v2731 = vld [vmem:[%s2715 + $0x78] sm:$0xff]
      %2732 = vmatprep.subr.mxu0 0.0
      %2733 = vmatpush1.msra.mxu0 %v2716
      %2734 = vmatprep.subr.mxu0 0.0
      %2735 = vmatpush1.msra.mxu0 %v2717
      %2736 = vmatprep.subr.mxu0 0.0
      %2737 = vmatpush1.msra.mxu0 %v2718
      %2738 = vmatprep.subr.mxu0 0.0
      %2739 = vmatpush1.msra.mxu0 %v2719
      %2740 = vmatprep.subr.mxu0 0.0
      %2741 = vmatpush1.msra.mxu0 %v2720
      %2742 = vmatprep.subr.mxu0 0.0
      %2743 = vmatpush1.msra.mxu0 %v2721
      %2744 = vmatprep.subr.mxu0 0.0
      %2745 = vmatpush1.msra.mxu0 %v2722
      %2746 = vmatprep.subr.mxu0 0.0
      %2747 = vmatpush1.msra.mxu0 %v2723
      %2748 = vmatprep.subr.mxu0 0.0
      %2749 = vmatpush1.msra.mxu0 %v2724
      %2750 = vmatprep.subr.mxu0 0.0
      %2751 = vmatpush1.msra.mxu0 %v2725
      %2752 = vmatprep.subr.mxu0 0.0
      %2753 = vmatpush1.msra.mxu0 %v2726
      %2754 = vmatprep.subr.mxu0 0.0
      %2755 = vmatpush1.msra.mxu0 %v2727
      %2756 = vmatprep.subr.mxu0 0.0
      %2757 = vmatpush1.msra.mxu0 %v2728
      %2758 = vmatprep.subr.mxu0 0.0
      %2759 = vmatpush1.msra.mxu0 %v2729
      %2760 = vmatprep.subr.mxu0 0.0
      %2761 = vmatpush1.msra.mxu0 %v2730
      %2762 = vmatprep.subr.mxu0 0.0
      %2763 = vmatpush1.msra.mxu0 %v2731
      %2764 = vmatprep.subr.mxu0 0.0
      %2765 = vmatpush1.msra.mxu0 0.0
      %2766 = vmatprep.subr.mxu0 0.0
      %2767 = vmatpush1.msra.mxu0 0.0
      %2768 = vmatprep.subr.mxu0 0.0
      %2769 = vmatpush1.msra.mxu0 0.0
      %2770 = vmatprep.subr.mxu0 0.0
      %2771 = vmatpush1.msra.mxu0 0.0
      %2772 = vmatprep.subr.mxu0 0.0
      %2773 = vmatpush1.msra.mxu0 0.0
      %2774 = vmatprep.subr.mxu0 0.0
      %2775 = vmatpush1.msra.mxu0 0.0
      %2776 = vmatprep.subr.mxu0 0.0
      %2777 = vmatpush1.msra.mxu0 0.0
      %2778 = vmatprep.subr.mxu0 0.0
      %2779 = vmatpush1.msra.mxu0 0.0
      %2780 = vmatprep.subr.mxu0 0.0
      %2781 = vmatpush1.msra.mxu0 0.0
      %2782 = vmatprep.subr.mxu0 0.0
      %2783 = vmatpush1.msra.mxu0 0.0
      %2784 = vmatprep.subr.mxu0 0.0
      %2785 = vmatpush1.msra.mxu0 0.0
      %2786 = vmatprep.subr.mxu0 0.0
      %2787 = vmatpush1.msra.mxu0 0.0
      %2788 = vmatprep.subr.mxu0 0.0
      %2789 = vmatpush1.msra.mxu0 0.0
      %2790 = vmatprep.subr.mxu0 0.0
      %2791 = vmatpush1.msra.mxu0 0.0
      %2792 = vmatprep.subr.mxu0 0.0
      %2793 = vmatpush1.msra.mxu0 0.0
      %2794 = vmatprep.subr.mxu0 0.0
      %2795 = vmatpush1.msra.mxu0 0.0
      %2796 = vmatprep.mubr.f32.mxu0 0.0
      %2797 = vmatmul.mubr.f32.gmra.mrb[0].mxu0 %v2707
      %v2798 = vpop.f32.mrb[0].mxu0
      %v2799 = vadd.f32 0.0, %v2798
      %v2800 = vpop.f32.mrb[0].mxu0
      %2801 = vmatprep.mubr.f32.mxu0 0.0
      %2802 = vmatmul.mubr.f32.gmra.mrb[0].mxu0 %v2708
      %v2803 = vpop.f32.mrb[0].mxu0
      %v2804 = vadd.f32 0.0, %v2803
      %v2805 = vpop.f32.mrb[0].mxu0
      %2806 = vmatprep.mubr.f32.mxu0 0.0
      %2807 = vmatmul.mubr.f32.gmra.mrb[0].mxu0 %v2709
      %v2808 = vpop.f32.mrb[0].mxu0
      %v2809 = vadd.f32 0.0, %v2808
      %v2810 = vpop.f32.mrb[0].mxu0
      %2811 = vmatprep.mubr.f32.mxu0 0.0
      %2812 = vmatmul.mubr.f32.gmra.mrb[0].mxu0 %v2710
      %v2813 = vpop.f32.mrb[0].mxu0
      %v2814 = vadd.f32 0.0, %v2813
      %v2815 = vpop.f32.mrb[0].mxu0
      %2816 = vmatprep.mubr.f32.mxu0 0.0
      %2817 = vmatmul.mubr.f32.gmra.mrb[0].mxu0 %v2711
      %v2818 = vpop.f32.mrb[0].mxu0
      %v2819 = vadd.f32 0.0, %v2818
      %v2820 = vpop.f32.mrb[0].mxu0
      %2821 = vmatprep.mubr.f32.mxu0 0.0
      %2822 = vmatmul.mubr.f32.gmra.mrb[0].mxu0 %v2712
      %v2823 = vpop.f32.mrb[0].mxu0
      %v2824 = vadd.f32 0.0, %v2823
      %v2825 = vpop.f32.mrb[0].mxu0
      %2826 = vmatprep.mubr.f32.mxu0 0.0
      %2827 = vmatmul.mubr.f32.gmra.mrb[0].mxu0 %v2713
      %v2828 = vpop.f32.mrb[0].mxu0
      %v2829 = vadd.f32 0.0, %v2828
      %v2830 = vpop.f32.mrb[0].mxu0
      %2831 = vmatprep.mubr.f32.mxu0 0.0
      %2832 = vmatmul.mubr.f32.gmra.mrb[0].mxu0 %v2714
      %v2833 = vpop.f32.mrb[0].mxu0
      %v2834 = vadd.f32 0.0, %v2833
      %v2835 = vpop.f32.mrb[0].mxu0
      %2836 = vdwg.mxu0
      %v2837 = vadd.f32 %v2699, %v2799
      %v2838 = vadd.f32 %v2700, %v2804
      %v2839 = vadd.f32 %v2701, %v2809
      %v2840 = vadd.f32 %v2702, %v2814
      %v2841 = vadd.f32 %v2703, %v2819
      %v2842 = vadd.f32 %v2704, %v2824
      %v2843 = vadd.f32 %v2705, %v2829
      %v2844 = vadd.f32 %v2706, %v2834
      %s2845 = scalar_lea.vmem [#allocation3], 32
      %v2846 = vld [vmem:[%s2845] sm:$0xff]
      %v2847 = vld [vmem:[%s2845 + $0x10] sm:$0xff]
      %v2848 = vld [vmem:[%s2845 + $0x20] sm:$0xff]
      %v2849 = vld [vmem:[%s2845 + $0x30] sm:$0xff]
      %v2850 = vld [vmem:[%s2845 + $0x40] sm:$0xff]
      %v2851 = vld [vmem:[%s2845 + $0x50] sm:$0xff]
      %v2852 = vld [vmem:[%s2845 + $0x60] sm:$0xff]
      %v2853 = vld [vmem:[%s2845 + $0x70] sm:$0xff]
      %s2854 = scalar_lea.vmem %s6, 768
      %v2855 = vld [vmem:[%s2854] sm:$0xff]
      %v2856 = vld [vmem:[%s2854 + $0x8] sm:$0xff]
      %v2857 = vld [vmem:[%s2854 + $0x10] sm:$0xff]
      %v2858 = vld [vmem:[%s2854 + $0x18] sm:$0xff]
      %v2859 = vld [vmem:[%s2854 + $0x20] sm:$0xff]
      %v2860 = vld [vmem:[%s2854 + $0x28] sm:$0xff]
      %v2861 = vld [vmem:[%s2854 + $0x30] sm:$0xff]
      %v2862 = vld [vmem:[%s2854 + $0x38] sm:$0xff]
      %v2863 = vld [vmem:[%s2854 + $0x40] sm:$0xff]
      %v2864 = vld [vmem:[%s2854 + $0x48] sm:$0xff]
      %v2865 = vld [vmem:[%s2854 + $0x50] sm:$0xff]
      %v2866 = vld [vmem:[%s2854 + $0x58] sm:$0xff]
      %v2867 = vld [vmem:[%s2854 + $0x60] sm:$0xff]
      %v2868 = vld [vmem:[%s2854 + $0x68] sm:$0xff]
      %v2869 = vld [vmem:[%s2854 + $0x70] sm:$0xff]
      %v2870 = vld [vmem:[%s2854 + $0x78] sm:$0xff]
      %2871 = vmatprep.subr.mxu0 0.0
      %2872 = vmatpush1.msra.mxu0 %v2855
      %2873 = vmatprep.subr.mxu0 0.0
      %2874 = vmatpush1.msra.mxu0 %v2856
      %2875 = vmatprep.subr.mxu0 0.0
      %2876 = vmatpush1.msra.mxu0 %v2857
      %2877 = vmatprep.subr.mxu0 0.0
      %2878 = vmatpush1.msra.mxu0 %v2858
      %2879 = vmatprep.subr.mxu0 0.0
      %2880 = vmatpush1.msra.mxu0 %v2859
      %2881 = vmatprep.subr.mxu0 0.0
      %2882 = vmatpush1.msra.mxu0 %v2860
      %2883 = vmatprep.subr.mxu0 0.0
      %2884 = vmatpush1.msra.mxu0 %v2861
      %2885 = vmatprep.subr.mxu0 0.0
      %2886 = vmatpush1.msra.mxu0 %v2862
      %2887 = vmatprep.subr.mxu0 0.0
      %2888 = vmatpush1.msra.mxu0 %v2863
      %2889 = vmatprep.subr.mxu0 0.0
      %2890 = vmatpush1.msra.mxu0 %v2864
      %2891 = vmatprep.subr.mxu0 0.0
      %2892 = vmatpush1.msra.mxu0 %v2865
      %2893 = vmatprep.subr.mxu0 0.0
      %2894 = vmatpush1.msra.mxu0 %v2866
      %2895 = vmatprep.subr.mxu0 0.0
      %2896 = vmatpush1.msra.mxu0 %v2867
      %2897 = vmatprep.subr.mxu0 0.0
      %2898 = vmatpush1.msra.mxu0 %v2868
      %2899 = vmatprep.subr.mxu0 0.0
      %2900 = vmatpush1.msra.mxu0 %v2869
      %2901 = vmatprep.subr.mxu0 0.0
      %2902 = vmatpush1.msra.mxu0 %v2870
      %2903 = vmatprep.subr.mxu0 0.0
      %2904 = vmatpush1.msra.mxu0 0.0
      %2905 = vmatprep.subr.mxu0 0.0
      %2906 = vmatpush1.msra.mxu0 0.0
      %2907 = vmatprep.subr.mxu0 0.0
      %2908 = vmatpush1.msra.mxu0 0.0
      %2909 = vmatprep.subr.mxu0 0.0
      %2910 = vmatpush1.msra.mxu0 0.0
      %2911 = vmatprep.subr.mxu0 0.0
      %2912 = vmatpush1.msra.mxu0 0.0
      %2913 = vmatprep.subr.mxu0 0.0
      %2914 = vmatpush1.msra.mxu0 0.0
      %2915 = vmatprep.subr.mxu0 0.0
      %2916 = vmatpush1.msra.mxu0 0.0
      %2917 = vmatprep.subr.mxu0 0.0
      %2918 = vmatpush1.msra.mxu0 0.0
      %2919 = vmatprep.subr.mxu0 0.0
      %2920 = vmatpush1.msra.mxu0 0.0
      %2921 = vmatprep.subr.mxu0 0.0
      %2922 = vmatpush1.msra.mxu0 0.0
      %2923 = vmatprep.subr.mxu0 0.0
      %2924 = vmatpush1.msra.mxu0 0.0
      %2925 = vmatprep.subr.mxu0 0.0
      %2926 = vmatpush1.msra.mxu0 0.0
      %2927 = vmatprep.subr.mxu0 0.0
      %2928 = vmatpush1.msra.mxu0 0.0
      %2929 = vmatprep.subr.mxu0 0.0
      %2930 = vmatpush1.msra.mxu0 0.0
      %2931 = vmatprep.subr.mxu0 0.0
      %2932 = vmatpush1.msra.mxu0 0.0
      %2933 = vmatprep.subr.mxu0 0.0
      %2934 = vmatpush1.msra.mxu0 0.0
      %2935 = vmatprep.mubr.f32.mxu0 0.0
      %2936 = vmatmul.mubr.f32.gmra.mrb[0].mxu0 %v2846
      %v2937 = vpop.f32.mrb[0].mxu0
      %v2938 = vadd.f32 0.0, %v2937
      %v2939 = vpop.f32.mrb[0].mxu0
      %2940 = vmatprep.mubr.f32.mxu0 0.0
      %2941 = vmatmul.mubr.f32.gmra.mrb[0].mxu0 %v2847
      %v2942 = vpop.f32.mrb[0].mxu0
      %v2943 = vadd.f32 0.0, %v2942
      %v2944 = vpop.f32.mrb[0].mxu0
      %2945 = vmatprep.mubr.f32.mxu0 0.0
      %2946 = vmatmul.mubr.f32.gmra.mrb[0].mxu0 %v2848
      %v2947 = vpop.f32.mrb[0].mxu0
      %v2948 = vadd.f32 0.0, %v2947
      %v2949 = vpop.f32.mrb[0].mxu0
      %2950 = vmatprep.mubr.f32.mxu0 0.0
      %2951 = vmatmul.mubr.f32.gmra.mrb[0].mxu0 %v2849
      %v2952 = vpop.f32.mrb[0].mxu0
      %v2953 = vadd.f32 0.0, %v2952
      %v2954 = vpop.f32.mrb[0].mxu0
      %2955 = vmatprep.mubr.f32.mxu0 0.0
      %2956 = vmatmul.mubr.f32.gmra.mrb[0].mxu0 %v2850
      %v2957 = vpop.f32.mrb[0].mxu0
      %v2958 = vadd.f32 0.0, %v2957
      %v2959 = vpop.f32.mrb[0].mxu0
      %2960 = vmatprep.mubr.f32.mxu0 0.0
      %2961 = vmatmul.mubr.f32.gmra.mrb[0].mxu0 %v2851
      %v2962 = vpop.f32.mrb[0].mxu0
      %v2963 = vadd.f32 0.0, %v2962
      %v2964 = vpop.f32.mrb[0].mxu0
      %2965 = vmatprep.mubr.f32.mxu0 0.0
      %2966 = vmatmul.mubr.f32.gmra.mrb[0].mxu0 %v2852
      %v2967 = vpop.f32.mrb[0].mxu0
      %v2968 = vadd.f32 0.0, %v2967
      %v2969 = vpop.f32.mrb[0].mxu0
      %2970 = vmatprep.mubr.f32.mxu0 0.0
      %2971 = vmatmul.mubr.f32.gmra.mrb[0].mxu0 %v2853
      %v2972 = vpop.f32.mrb[0].mxu0
      %v2973 = vadd.f32 0.0, %v2972
      %v2974 = vpop.f32.mrb[0].mxu0
      %2975 = vdwg.mxu0
      %v2976 = vadd.f32 %v2837, %v2938
      %v2977 = vadd.f32 %v2838, %v2943
      %v2978 = vadd.f32 %v2839, %v2948
      %v2979 = vadd.f32 %v2840, %v2953
      %v2980 = vadd.f32 %v2841, %v2958
      %v2981 = vadd.f32 %v2842, %v2963
      %v2982 = vadd.f32 %v2843, %v2968
      %v2983 = vadd.f32 %v2844, %v2973
      %v2984 = vld [vmem:[%s2845 + $0x1] sm:$0xff]
      %v2985 = vld [vmem:[%s2845 + $0x11] sm:$0xff]
      %v2986 = vld [vmem:[%s2845 + $0x21] sm:$0xff]
      %v2987 = vld [vmem:[%s2845 + $0x31] sm:$0xff]
      %v2988 = vld [vmem:[%s2845 + $0x41] sm:$0xff]
      %v2989 = vld [vmem:[%s2845 + $0x51] sm:$0xff]
      %v2990 = vld [vmem:[%s2845 + $0x61] sm:$0xff]
      %v2991 = vld [vmem:[%s2845 + $0x71] sm:$0xff]
      %s2992 = scalar_lea.vmem %s6, 896
      %v2993 = vld [vmem:[%s2992] sm:$0xff]
      %v2994 = vld [vmem:[%s2992 + $0x8] sm:$0xff]
      %v2995 = vld [vmem:[%s2992 + $0x10] sm:$0xff]
      %v2996 = vld [vmem:[%s2992 + $0x18] sm:$0xff]
      %v2997 = vld [vmem:[%s2992 + $0x20] sm:$0xff]
      %v2998 = vld [vmem:[%s2992 + $0x28] sm:$0xff]
      %v2999 = vld [vmem:[%s2992 + $0x30] sm:$0xff]
      %v3000 = vld [vmem:[%s2992 + $0x38] sm:$0xff]
      %v3001 = vld [vmem:[%s2992 + $0x40] sm:$0xff]
      %v3002 = vld [vmem:[%s2992 + $0x48] sm:$0xff]
      %v3003 = vld [vmem:[%s2992 + $0x50] sm:$0xff]
      %v3004 = vld [vmem:[%s2992 + $0x58] sm:$0xff]
      %v3005 = vld [vmem:[%s2992 + $0x60] sm:$0xff]
      %v3006 = vld [vmem:[%s2992 + $0x68] sm:$0xff]
      %v3007 = vld [vmem:[%s2992 + $0x70] sm:$0xff]
      %v3008 = vld [vmem:[%s2992 + $0x78] sm:$0xff]
      %3009 = vmatprep.subr.mxu0 0.0
      %3010 = vmatpush1.msra.mxu0 %v2993
      %3011 = vmatprep.subr.mxu0 0.0
      %3012 = vmatpush1.msra.mxu0 %v2994
      %3013 = vmatprep.subr.mxu0 0.0
      %3014 = vmatpush1.msra.mxu0 %v2995
      %3015 = vmatprep.subr.mxu0 0.0
      %3016 = vmatpush1.msra.mxu0 %v2996
      %3017 = vmatprep.subr.mxu0 0.0
      %3018 = vmatpush1.msra.mxu0 %v2997
      %3019 = vmatprep.subr.mxu0 0.0
      %3020 = vmatpush1.msra.mxu0 %v2998
      %3021 = vmatprep.subr.mxu0 0.0
      %3022 = vmatpush1.msra.mxu0 %v2999
      %3023 = vmatprep.subr.mxu0 0.0
      %3024 = vmatpush1.msra.mxu0 %v3000
      %3025 = vmatprep.subr.mxu0 0.0
      %3026 = vmatpush1.msra.mxu0 %v3001
      %3027 = vmatprep.subr.mxu0 0.0
      %3028 = vmatpush1.msra.mxu0 %v3002
      %3029 = vmatprep.subr.mxu0 0.0
      %3030 = vmatpush1.msra.mxu0 %v3003
      %3031 = vmatprep.subr.mxu0 0.0
      %3032 = vmatpush1.msra.mxu0 %v3004
      %3033 = vmatprep.subr.mxu0 0.0
      %3034 = vmatpush1.msra.mxu0 %v3005
      %3035 = vmatprep.subr.mxu0 0.0
      %3036 = vmatpush1.msra.mxu0 %v3006
      %3037 = vmatprep.subr.mxu0 0.0
      %3038 = vmatpush1.msra.mxu0 %v3007
      %3039 = vmatprep.subr.mxu0 0.0
      %3040 = vmatpush1.msra.mxu0 %v3008
      %3041 = vmatprep.subr.mxu0 0.0
      %3042 = vmatpush1.msra.mxu0 0.0
      %3043 = vmatprep.subr.mxu0 0.0
      %3044 = vmatpush1.msra.mxu0 0.0
      %3045 = vmatprep.subr.mxu0 0.0
      %3046 = vmatpush1.msra.mxu0 0.0
      %3047 = vmatprep.subr.mxu0 0.0
      %3048 = vmatpush1.msra.mxu0 0.0
      %3049 = vmatprep.subr.mxu0 0.0
      %3050 = vmatpush1.msra.mxu0 0.0
      %3051 = vmatprep.subr.mxu0 0.0
      %3052 = vmatpush1.msra.mxu0 0.0
      %3053 = vmatprep.subr.mxu0 0.0
      %3054 = vmatpush1.msra.mxu0 0.0
      %3055 = vmatprep.subr.mxu0 0.0
      %3056 = vmatpush1.msra.mxu0 0.0
      %3057 = vmatprep.subr.mxu0 0.0
      %3058 = vmatpush1.msra.mxu0 0.0
      %3059 = vmatprep.subr.mxu0 0.0
      %3060 = vmatpush1.msra.mxu0 0.0
      %3061 = vmatprep.subr.mxu0 0.0
      %3062 = vmatpush1.msra.mxu0 0.0
      %3063 = vmatprep.subr.mxu0 0.0
      %3064 = vmatpush1.msra.mxu0 0.0
      %3065 = vmatprep.subr.mxu0 0.0
      %3066 = vmatpush1.msra.mxu0 0.0
      %3067 = vmatprep.subr.mxu0 0.0
      %3068 = vmatpush1.msra.mxu0 0.0
      %3069 = vmatprep.subr.mxu0 0.0
      %3070 = vmatpush1.msra.mxu0 0.0
      %3071 = vmatprep.subr.mxu0 0.0
      %3072 = vmatpush1.msra.mxu0 0.0
      %3073 = vmatprep.mubr.f32.mxu0 0.0
      %3074 = vmatmul.mubr.f32.gmra.mrb[0].mxu0 %v2984
      %v3075 = vpop.f32.mrb[0].mxu0
      %v3076 = vadd.f32 0.0, %v3075
      %v3077 = vpop.f32.mrb[0].mxu0
      %3078 = vmatprep.mubr.f32.mxu0 0.0
      %3079 = vmatmul.mubr.f32.gmra.mrb[0].mxu0 %v2985
      %v3080 = vpop.f32.mrb[0].mxu0
      %v3081 = vadd.f32 0.0, %v3080
      %v3082 = vpop.f32.mrb[0].mxu0
      %3083 = vmatprep.mubr.f32.mxu0 0.0
      %3084 = vmatmul.mubr.f32.gmra.mrb[0].mxu0 %v2986
      %v3085 = vpop.f32.mrb[0].mxu0
      %v3086 = vadd.f32 0.0, %v3085
      %v3087 = vpop.f32.mrb[0].mxu0
      %3088 = vmatprep.mubr.f32.mxu0 0.0
      %3089 = vmatmul.mubr.f32.gmra.mrb[0].mxu0 %v2987
      %v3090 = vpop.f32.mrb[0].mxu0
      %v3091 = vadd.f32 0.0, %v3090
      %v3092 = vpop.f32.mrb[0].mxu0
      %3093 = vmatprep.mubr.f32.mxu0 0.0
      %3094 = vmatmul.mubr.f32.gmra.mrb[0].mxu0 %v2988
      %v3095 = vpop.f32.mrb[0].mxu0
      %v3096 = vadd.f32 0.0, %v3095
      %v3097 = vpop.f32.mrb[0].mxu0
      %3098 = vmatprep.mubr.f32.mxu0 0.0
      %3099 = vmatmul.mubr.f32.gmra.mrb[0].mxu0 %v2989
      %v3100 = vpop.f32.mrb[0].mxu0
      %v3101 = vadd.f32 0.0, %v3100
      %v3102 = vpop.f32.mrb[0].mxu0
      %3103 = vmatprep.mubr.f32.mxu0 0.0
      %3104 = vmatmul.mubr.f32.gmra.mrb[0].mxu0 %v2990
      %v3105 = vpop.f32.mrb[0].mxu0
      %v3106 = vadd.f32 0.0, %v3105
      %v3107 = vpop.f32.mrb[0].mxu0
      %3108 = vmatprep.mubr.f32.mxu0 0.0
      %3109 = vmatmul.mubr.f32.gmra.mrb[0].mxu0 %v2991
      %v3110 = vpop.f32.mrb[0].mxu0
      %v3111 = vadd.f32 0.0, %v3110
      %v3112 = vpop.f32.mrb[0].mxu0
      %3113 = vdwg.mxu0
      %v3114 = vadd.f32 %v2976, %v3076
      %v3115 = vadd.f32 %v2977, %v3081
      %v3116 = vadd.f32 %v2978, %v3086
      %v3117 = vadd.f32 %v2979, %v3091
      %v3118 = vadd.f32 %v2980, %v3096
      %v3119 = vadd.f32 %v2981, %v3101
      %v3120 = vadd.f32 %v2982, %v3106
      %v3121 = vadd.f32 %v2983, %v3111
      %v3122 = vld [vmem:[%s2845 + $0x2] sm:$0xff]
      %v3123 = vld [vmem:[%s2845 + $0x12] sm:$0xff]
      %v3124 = vld [vmem:[%s2845 + $0x22] sm:$0xff]
      %v3125 = vld [vmem:[%s2845 + $0x32] sm:$0xff]
      %v3126 = vld [vmem:[%s2845 + $0x42] sm:$0xff]
      %v3127 = vld [vmem:[%s2845 + $0x52] sm:$0xff]
      %v3128 = vld [vmem:[%s2845 + $0x62] sm:$0xff]
      %v3129 = vld [vmem:[%s2845 + $0x72] sm:$0xff]
      %s3130 = scalar_lea.vmem %s6, 1024
      %v3131 = vld [vmem:[%s3130] sm:$0xff]
      %v3132 = vld [vmem:[%s3130 + $0x8] sm:$0xff]
      %v3133 = vld [vmem:[%s3130 + $0x10] sm:$0xff]
      %v3134 = vld [vmem:[%s3130 + $0x18] sm:$0xff]
      %v3135 = vld [vmem:[%s3130 + $0x20] sm:$0xff]
      %v3136 = vld [vmem:[%s3130 + $0x28] sm:$0xff]
      %v3137 = vld [vmem:[%s3130 + $0x30] sm:$0xff]
      %v3138 = vld [vmem:[%s3130 + $0x38] sm:$0xff]
      %v3139 = vld [vmem:[%s3130 + $0x40] sm:$0xff]
      %v3140 = vld [vmem:[%s3130 + $0x48] sm:$0xff]
      %v3141 = vld [vmem:[%s3130 + $0x50] sm:$0xff]
      %v3142 = vld [vmem:[%s3130 + $0x58] sm:$0xff]
      %v3143 = vld [vmem:[%s3130 + $0x60] sm:$0xff]
      %v3144 = vld [vmem:[%s3130 + $0x68] sm:$0xff]
      %v3145 = vld [vmem:[%s3130 + $0x70] sm:$0xff]
      %v3146 = vld [vmem:[%s3130 + $0x78] sm:$0xff]
      %3147 = vmatprep.subr.mxu0 0.0
      %3148 = vmatpush1.msra.mxu0 %v3131
      %3149 = vmatprep.subr.mxu0 0.0
      %3150 = vmatpush1.msra.mxu0 %v3132
      %3151 = vmatprep.subr.mxu0 0.0
      %3152 = vmatpush1.msra.mxu0 %v3133
      %3153 = vmatprep.subr.mxu0 0.0
      %3154 = vmatpush1.msra.mxu0 %v3134
      %3155 = vmatprep.subr.mxu0 0.0
      %3156 = vmatpush1.msra.mxu0 %v3135
      %3157 = vmatprep.subr.mxu0 0.0
      %3158 = vmatpush1.msra.mxu0 %v3136
      %3159 = vmatprep.subr.mxu0 0.0
      %3160 = vmatpush1.msra.mxu0 %v3137
      %3161 = vmatprep.subr.mxu0 0.0
      %3162 = vmatpush1.msra.mxu0 %v3138
      %3163 = vmatprep.subr.mxu0 0.0
      %3164 = vmatpush1.msra.mxu0 %v3139
      %3165 = vmatprep.subr.mxu0 0.0
      %3166 = vmatpush1.msra.mxu0 %v3140
      %3167 = vmatprep.subr.mxu0 0.0
      %3168 = vmatpush1.msra.mxu0 %v3141
      %3169 = vmatprep.subr.mxu0 0.0
      %3170 = vmatpush1.msra.mxu0 %v3142
      %3171 = vmatprep.subr.mxu0 0.0
      %3172 = vmatpush1.msra.mxu0 %v3143
      %3173 = vmatprep.subr.mxu0 0.0
      %3174 = vmatpush1.msra.mxu0 %v3144
      %3175 = vmatprep.subr.mxu0 0.0
      %3176 = vmatpush1.msra.mxu0 %v3145
      %3177 = vmatprep.subr.mxu0 0.0
      %3178 = vmatpush1.msra.mxu0 %v3146
      %3179 = vmatprep.subr.mxu0 0.0
      %3180 = vmatpush1.msra.mxu0 0.0
      %3181 = vmatprep.subr.mxu0 0.0
      %3182 = vmatpush1.msra.mxu0 0.0
      %3183 = vmatprep.subr.mxu0 0.0
      %3184 = vmatpush1.msra.mxu0 0.0
      %3185 = vmatprep.subr.mxu0 0.0
      %3186 = vmatpush1.msra.mxu0 0.0
      %3187 = vmatprep.subr.mxu0 0.0
      %3188 = vmatpush1.msra.mxu0 0.0
      %3189 = vmatprep.subr.mxu0 0.0
      %3190 = vmatpush1.msra.mxu0 0.0
      %3191 = vmatprep.subr.mxu0 0.0
      %3192 = vmatpush1.msra.mxu0 0.0
      %3193 = vmatprep.subr.mxu0 0.0
      %3194 = vmatpush1.msra.mxu0 0.0
      %3195 = vmatprep.subr.mxu0 0.0
      %3196 = vmatpush1.msra.mxu0 0.0
      %3197 = vmatprep.subr.mxu0 0.0
      %3198 = vmatpush1.msra.mxu0 0.0
      %3199 = vmatprep.subr.mxu0 0.0
      %3200 = vmatpush1.msra.mxu0 0.0
      %3201 = vmatprep.subr.mxu0 0.0
      %3202 = vmatpush1.msra.mxu0 0.0
      %3203 = vmatprep.subr.mxu0 0.0
      %3204 = vmatpush1.msra.mxu0 0.0
      %3205 = vmatprep.subr.mxu0 0.0
      %3206 = vmatpush1.msra.mxu0 0.0
      %3207 = vmatprep.subr.mxu0 0.0
      %3208 = vmatpush1.msra.mxu0 0.0
      %3209 = vmatprep.subr.mxu0 0.0
      %3210 = vmatpush1.msra.mxu0 0.0
      %3211 = vmatprep.mubr.f32.mxu0 0.0
      %3212 = vmatmul.mubr.f32.gmra.mrb[0].mxu0 %v3122
      %v3213 = vpop.f32.mrb[0].mxu0
      %v3214 = vadd.f32 0.0, %v3213
      %v3215 = vpop.f32.mrb[0].mxu0
      %3216 = vmatprep.mubr.f32.mxu0 0.0
      %3217 = vmatmul.mubr.f32.gmra.mrb[0].mxu0 %v3123
      %v3218 = vpop.f32.mrb[0].mxu0
      %v3219 = vadd.f32 0.0, %v3218
      %v3220 = vpop.f32.mrb[0].mxu0
      %3221 = vmatprep.mubr.f32.mxu0 0.0
      %3222 = vmatmul.mubr.f32.gmra.mrb[0].mxu0 %v3124
      %v3223 = vpop.f32.mrb[0].mxu0
      %v3224 = vadd.f32 0.0, %v3223
      %v3225 = vpop.f32.mrb[0].mxu0
      %3226 = vmatprep.mubr.f32.mxu0 0.0
      %3227 = vmatmul.mubr.f32.gmra.mrb[0].mxu0 %v3125
      %v3228 = vpop.f32.mrb[0].mxu0
      %v3229 = vadd.f32 0.0, %v3228
      %v3230 = vpop.f32.mrb[0].mxu0
      %3231 = vmatprep.mubr.f32.mxu0 0.0
      %3232 = vmatmul.mubr.f32.gmra.mrb[0].mxu0 %v3126
      %v3233 = vpop.f32.mrb[0].mxu0
      %v3234 = vadd.f32 0.0, %v3233
      %v3235 = vpop.f32.mrb[0].mxu0
      %3236 = vmatprep.mubr.f32.mxu0 0.0
      %3237 = vmatmul.mubr.f32.gmra.mrb[0].mxu0 %v3127
      %v3238 = vpop.f32.mrb[0].mxu0
      %v3239 = vadd.f32 0.0, %v3238
      %v3240 = vpop.f32.mrb[0].mxu0
      %3241 = vmatprep.mubr.f32.mxu0 0.0
      %3242 = vmatmul.mubr.f32.gmra.mrb[0].mxu0 %v3128
      %v3243 = vpop.f32.mrb[0].mxu0
      %v3244 = vadd.f32 0.0, %v3243
      %v3245 = vpop.f32.mrb[0].mxu0
      %3246 = vmatprep.mubr.f32.mxu0 0.0
      %3247 = vmatmul.mubr.f32.gmra.mrb[0].mxu0 %v3129
      %v3248 = vpop.f32.mrb[0].mxu0
      %v3249 = vadd.f32 0.0, %v3248
      %v3250 = vpop.f32.mrb[0].mxu0
      %3251 = vdwg.mxu0
      %v3252 = vadd.f32 %v3114, %v3214
      %v3253 = vadd.f32 %v3115, %v3219
      %v3254 = vadd.f32 %v3116, %v3224
      %v3255 = vadd.f32 %v3117, %v3229
      %v3256 = vadd.f32 %v3118, %v3234
      %v3257 = vadd.f32 %v3119, %v3239
      %v3258 = vadd.f32 %v3120, %v3244
      %v3259 = vadd.f32 %v3121, %v3249
      %3260 = vst [vmem:[%s305] sm:$0xff] %v3252
      %3261 = vst [vmem:[%s305 + $0x8] sm:$0xff] %v3253
      %3262 = vst [vmem:[%s305 + $0x10] sm:$0xff] %v3254
      %3263 = vst [vmem:[%s305 + $0x18] sm:$0xff] %v3255
      %3264 = vst [vmem:[%s305 + $0x20] sm:$0xff] %v3256
      %3265 = vst [vmem:[%s305 + $0x28] sm:$0xff] %v3257
      %3266 = vst [vmem:[%s305 + $0x30] sm:$0xff] %v3258
      %3267 = vst [vmem:[%s305 + $0x38] sm:$0xff] %v3259
      %p3268 = scmp.lt.s32.totalorder %s19, 1
      %s3269 = scalar_select %p3268, %s19, 1
      %s3270 = smul.addr %s3269, 8
      %s3271 = smul.addr %s3270, 8
      %s3272 = scalar_lea.vmem %s8, %s3271
      // Predicated region
      $region53: #{network_block_forward.2} parent=51 // pred_check
        %p3273 = pneg %p210
      $region54: #{network_block_forward.2} parent=51 // pred_check_branch
        %3275 = sbr.rel (%p3273) target = $region56
      $region55: #{network_block_forward.2} parent=51 // pred_region
        _
      $region56: #{network_block_forward.2} parent=51 // pred_fallthru
        _
    $region52: #{network_block_forward.2} parent=5 // pred_fallthru
      _
    %p3276 = scmp.le.s32.totalorder 2, %s14
    // Predicated region
    $region57: #{network_block_forward.2} parent=5 // pred_check
      %p3277 = pneg %p3276
    $region58: #{network_block_forward.2} parent=5 // pred_check_branch
      %3279 = sbr.rel (%p3277) target = $region60
    $region59: #{network_block_forward.2} parent=5 // pred_region
      %s3280 = ssub.s32 %s14, 2
      // Predicated region
      $region61: #{network_block_forward.2} parent=59 // pred_check
        %p3281 = pneg %p216
      $region62: #{network_block_forward.2} parent=59 // pred_check_branch
        %3283 = sbr.rel (%p3281) target = $region64
      $region63: #{network_block_forward.2} parent=59 // pred_region
        %p3284 = scmp.lt.s32.totalorder %s20, 1
        %s3285 = scalar_select %p3284, %s20, 1
        %s3286 = smul.addr %s3285, 8
        %s3287 = smul.addr %s3286, 8
        %s3288 = scalar_lea.vmem %s8, %s3287
      $region64: #{network_block_forward.2} parent=59 // pred_fallthru
        _
    $region60: #{network_block_forward.2} parent=5 // pred_fallthru
      _
  $region6: #{network_block_forward.2} parent=0 // loop_footer
    %s18 = sadd.s32 1, %s14
  $region7: #{network_block_forward.2} parent=0 // loop_footer_branch
    %13 = sbr.rel target = $region3
  $region8: #{network_block_forward.2} parent=0 // loop_exit
    _

</llo_original>
